<compile_context>
chip_gen: v6e
topology: v6e:2x2x1
jax: 0.10.0
libtpu: 0.0.40
codegen_flags: <defaults>
</compile_context>

<pallas_src>
import jax
import jax.numpy as jnp
from jax.experimental import pallas as pl
from jax.experimental.pallas import tpu as pltpu

_SUB = 176            # padded positions per parity sub-grid of conv1 output (13*13=169 -> 176)
_NPOS = 4 * _SUB      # 704 parity-ordered conv1 output positions per image
_PHASE = 160          # lanes per pooling-phase slot (156 valid + 4 junk, 8/32-aligned)
_K2 = 288             # conv2 GEMM contraction: 9 taps x 32 channels
_FEAT = 64 * _PHASE   # 10240 head input features (junk columns zero-weighted in fc1)


# --------------------------------------------------------------------------
# Kernel 1: conv1 + ReLU -> conv2 + bias -> 2x2 max-pool (Bt images per step)
# --------------------------------------------------------------------------

def _conv_stage_kernel(cols_ref, w1_ref, b1_ref, w2_ref, b2_ref, out_ref,
                       a1_ref, col_ref):
    """Fused conv stage for Bt images, everything transposed/lane-dense.

    cols_ref : (Bt, 9, 704)  bf16  conv1 im2col, parity-position order on lanes:
               lane = g*176 + (h1//2)*13 + (w1//2), g = (h1%2)*2 + (w1%2)
    w1_ref   : (32, 9)       bf16  conv1 weights [cout, kh*3+kw]
    b1_ref   : (32, 1)       f32
    w2_ref   : (64, 288)     bf16  conv2 weights [cout, (kh*3+kw)*32 + cin]
    b2_ref   : (64, 1)       f32
    out_ref  : (Bt, 64, 160) bf16  pooled output, channel-major; lanes with
               pw==12 or lane>=156 are junk (zero-weighted rows in fc1)
    a1_ref   : (Bt, 32, 704)  f32  VMEM scratch, conv1 activations
    col_ref  : (Bt, 288, 640) bf16 VMEM scratch, conv2 im2col (4 phases x 160)
    """
    bt = cols_ref.shape[0]

    # conv1 + bias + ReLU: (32, 9) x (9, 704) per image, f32 epilogue.
    for b in range(bt):
        a1 = jnp.dot(w1_ref[...], cols_ref[b], preferred_element_type=jnp.float32)
        a1_ref[b] = jnp.maximum(a1 + b1_ref[...], 0.0)

    # Assemble the conv2 im2col with K=288 on sublanes.  For pool phase (dy,dx)
    # and tap (i,j), the 160-lane window of a1 starting at `start` holds the
    # conv1 activations feeding pooled outputs m = ph*13 + pw.  One static
    # block copy per (phase, tap) covers all Bt images at once.
    for phase in range(4):
        dy, dx = divmod(phase, 2)
        for i in range(3):
            for j in range(3):
                qi, par_h = divmod(dy + i, 2)
                qj, par_w = divmod(dx + j, 2)
                g = par_h * 2 + par_w
                start = g * _SUB + qi * 13 + qj
                t = i * 3 + j
                col_ref[:, t * 32:(t + 1) * 32,
                        phase * _PHASE:(phase + 1) * _PHASE] = (
                    a1_ref[:, :, start:start + _PHASE].astype(jnp.bfloat16))

    # conv2 as one (64, 288) x (288, 640) GEMM per image; the 2x2 max-pool is
    # 3 elementwise maxes over the 4 phase lane-blocks of the result.
    for b in range(bt):
        y = jnp.dot(w2_ref[...], col_ref[b], preferred_element_type=jnp.float32)
        pooled = jnp.maximum(
            jnp.maximum(y[:, 0 * _PHASE:1 * _PHASE], y[:, 1 * _PHASE:2 * _PHASE]),
            jnp.maximum(y[:, 2 * _PHASE:3 * _PHASE], y[:, 3 * _PHASE:4 * _PHASE]))
        # NOTE: no ReLU between conv2 and the pool, per the reference forward.
        out_ref[b] = (pooled + b2_ref[...]).astype(jnp.bfloat16)


def conv_stage(cols, prep, bt):
    B = cols.shape[0]
    return pl.pallas_call(
        _conv_stage_kernel,
        out_shape=jax.ShapeDtypeStruct((B, 64, _PHASE), jnp.bfloat16),
        grid=(B // bt,),
        in_specs=[
            pl.BlockSpec((bt, 9, _NPOS), lambda b: (b, 0, 0)),
            pl.BlockSpec((32, 9), lambda b: (0, 0)),
            pl.BlockSpec((32, 1), lambda b: (0, 0)),
            pl.BlockSpec((64, _K2), lambda b: (0, 0)),
            pl.BlockSpec((64, 1), lambda b: (0, 0)),
        ],
        out_specs=pl.BlockSpec((bt, 64, _PHASE), lambda b: (b, 0, 0)),
        scratch_shapes=[
            pltpu.VMEM((bt, 32, _NPOS), jnp.float32),
            pltpu.VMEM((bt, _K2, 4 * _PHASE), jnp.bfloat16),
        ],
        compiler_params=pltpu.CompilerParams(
            dimension_semantics=("parallel",),
            vmem_limit_bytes=32 * 1024 * 1024,
        ),
    )(cols, prep["conv1_w"], prep["conv1_b"], prep["conv2_w"], prep["conv2_b"])


# --------------------------------------------------------------------------
# Kernel 2: fused classifier head  fc1 + ReLU + fc2 + log_softmax
# --------------------------------------------------------------------------

def _head_kernel(x_ref, w1_ref, b1_ref, w2_ref, b2_ref, o_ref):
    h = jnp.dot(x_ref[...], w1_ref[...], preferred_element_type=jnp.float32)
    h = jnp.maximum(h + b1_ref[...], 0.0)                       # f32 epilogue
    logits = jnp.dot(h.astype(jnp.bfloat16), w2_ref[...],
                     preferred_element_type=jnp.float32)
    logits = logits + b2_ref[...]      # padded lanes carry -1e30 (f32) -> exp()==0
    m = jnp.max(logits, axis=1, keepdims=True)
    z = logits - m
    lse = jnp.log(jnp.sum(jnp.exp(z), axis=1, keepdims=True))
    o_ref[...] = z - lse               # lane-dense (tm, 128) store


def head(feats, prep, tm):
    B, K = feats.shape
    return pl.pallas_call(
        _head_kernel,
        out_shape=jax.ShapeDtypeStruct((B, 128), jnp.float32),
        grid=(B // tm,),
        in_specs=[
            pl.BlockSpec((tm, K), lambda m: (m, 0)),
            pl.BlockSpec((K, 128), lambda m: (0, 0)),
            pl.BlockSpec((1, 128), lambda m: (0, 0)),
            pl.BlockSpec((128, 128), lambda m: (0, 0)),
            pl.BlockSpec((1, 128), lambda m: (0, 0)),
        ],
        out_specs=pl.BlockSpec((tm, 128), lambda m: (m, 0)),
        compiler_params=pltpu.CompilerParams(
            dimension_semantics=("parallel",),
            vmem_limit_bytes=32 * 1024 * 1024,
        ),
    )(feats, prep["fc1_w"], prep["fc1_b"], prep["fc2_w"], prep["fc2_b"])


# --------------------------------------------------------------------------
# JAX glue: transposed parity im2col, batch planning, param prep, forward
# --------------------------------------------------------------------------

def _conv1_cols_parity_T(x_nchw):
    """conv1 im2col, transposed (taps on sublanes), parity-position lane order.

    Lanes 169..175 of each parity group are zero padding and only ever feed
    junk (zero-weighted) outputs.  Runs in bf16 end to end (tiny glue).
    """
    B = x_nchw.shape[0]
    x = x_nchw[:, 0].astype(jnp.bfloat16)                       # (B, 28, 28)
    taps = [x[:, i:i + 26, j:j + 26] for i in range(3) for j in range(3)]
    cols = jnp.stack(taps, axis=1)                              # (B, 9, 26, 26)
    cols = cols.reshape(B, 9, 13, 2, 13, 2)                     # h1=2*hh+hp, w1=2*ww+wp
    cols = jnp.transpose(cols, (0, 1, 3, 5, 2, 4))              # (B, 9, hp, wp, hh, ww)
    cols = cols.reshape(B, 9, 4, 169)
    cols = jnp.pad(cols, ((0, 0), (0, 0), (0, 0), (0, _SUB - 169)))
    return cols.reshape(B, 9, _NPOS)


def _batch_plan(B):
    """Returns (padded batch, conv images per grid step, head rows per step)."""
    if B > 128:
        bt, tm = 8, 128
        bp = -(-B // 128) * 128
    else:
        bt = 8 if B >= 16 else (4 if B >= 8 else (2 if B >= 4 else 1))
        bp = -(-B // bt) * bt
        tm = bp                      # single head step for small batches
    return bp, bt, tm


def init_params(key):
    ks = jax.random.split(key, 8)
    n = lambda k, shape, s: jax.random.normal(k, shape, jnp.float32) * s
    return dict(
        conv1_w=n(ks[0], (32, 1, 3, 3), 0.20),
        conv1_b=n(ks[1], (32,), 0.10),
        conv2_w=n(ks[2], (64, 32, 3, 3), 0.08),
        conv2_b=n(ks[3], (64,), 0.05),
        fc1_w=n(ks[4], (128, 9216), 0.01),
        fc1_b=n(ks[5], (128,), 0.05),
        fc2_w=n(ks[6], (10, 128), 0.15),
        fc2_b=n(ks[7], (10,), 0.05),
    )


def prepare_params(params):
    """One-time weight preprocessing (transposed GEMM layouts, padding, bf16)."""
    # conv1: [cout, kh*3+kw]
    w1 = params["conv1_w"].reshape(32, 9)
    # conv2: [cout, (kh*3+kw)*32 + cin]  -> matches the kernel's K=288 im2col
    w2 = jnp.transpose(params["conv2_w"], (0, 2, 3, 1)).reshape(64, _K2)
    # fc1: rows reordered to the kernel's channel-major pooled flatten (c, ph, pw)
    # with pw padded 12->13 and 4 extra junk rows per channel (zero weights), so
    # the conv output is one dense (64,160) block per image and feats is a free
    # reshape.  K: 9216 -> 10240.
    fc1 = params["fc1_w"].reshape(128, 64, 12, 12)               # (out, c, ph, pw)
    fc1 = jnp.transpose(fc1, (1, 2, 3, 0))                       # (c, ph, pw, out)
    fc1 = jnp.pad(fc1, ((0, 0), (0, 0), (0, 1), (0, 0)))         # pw 12 -> 13
    fc1 = fc1.reshape(64, 156, 128)
    fc1 = jnp.pad(fc1, ((0, 0), (0, _PHASE - 156), (0, 0)))      # 156 -> 160 rows
    fc1 = fc1.reshape(_FEAT, 128)
    # fc2: pad N=10 -> 128 lanes (zero weights, -1e30 f32 bias) so the head's
    # logits / log-softmax block is lane-dense; padded classes vanish under exp.
    fc2 = jnp.zeros((128, 128), jnp.float32).at[:, :10].set(params["fc2_w"].T)
    fc2_b = jnp.full((1, 128), -1e30, jnp.float32).at[0, :10].set(params["fc2_b"])
    return dict(
        conv1_w=w1.astype(jnp.bfloat16),
        conv1_b=params["conv1_b"].reshape(32, 1).astype(jnp.float32),
        conv2_w=w2.astype(jnp.bfloat16),
        conv2_b=params["conv2_b"].reshape(64, 1).astype(jnp.float32),
        fc1_w=fc1.astype(jnp.bfloat16),
        fc1_b=params["fc1_b"].reshape(1, 128).astype(jnp.float32),
        fc2_w=fc2.astype(jnp.bfloat16),
        fc2_b=fc2_b,
    )


def net_forward(x_nchw, prep):
    """Forward pass of Net (eval mode). x_nchw: (B, 1, 28, 28) float32."""
    B = x_nchw.shape[0]
    bp, bt, tm = _batch_plan(B)
    if bp != B:
        x_nchw = jnp.pad(x_nchw, ((0, bp - B), (0, 0), (0, 0), (0, 0)))
    cols = _conv1_cols_parity_T(x_nchw)          # (bp, 9, 704) bf16, tiny glue
    pooled = conv_stage(cols, prep, bt)          # (bp, 64, 160) bf16
    feats = pooled.reshape(bp, _FEAT)            # free channel-major flatten
    logp = head(feats, prep, tm)                 # (bp, 128) f32, lane-dense
    return logp[:B, :10]


def net_reference(x_nchw, params):
    """Pure-JAX f32 reference mirroring the PyTorch forward (eval mode)."""
    hp = jax.lax.Precision.HIGHEST
    B = x_nchw.shape[0]
    x = jnp.transpose(x_nchw, (0, 2, 3, 1)).astype(jnp.float32)  # NHWC

    def conv3x3(inp, w_pt, b):
        Bc, H, W, C = inp.shape
        cout = w_pt.shape[0]
        cols = jnp.concatenate(
            [inp[:, i:i + H - 2, j:j + W - 2, :] for i in range(3) for j in range(3)],
            axis=-1)
        wg = jnp.transpose(w_pt, (2, 3, 1, 0)).reshape(9 * C, cout)
        y = jnp.dot(cols.reshape(-1, 9 * C), wg, precision=hp) + b
        return y.reshape(Bc, H - 2, W - 2, cout)

    y = jax.nn.relu(conv3x3(x, params["conv1_w"], params["conv1_b"]))
    y = conv3x3(y, params["conv2_w"], params["conv2_b"])         # no ReLU (per spec)
    y = y.reshape(B, 12, 2, 12, 2, 64).max(axis=(2, 4))          # max_pool2d(2)
    flat = jnp.transpose(y, (0, 3, 1, 2)).reshape(B, 9216)       # NCHW flatten
    h = jax.nn.relu(jnp.dot(flat, params["fc1_w"].T, precision=hp) + params["fc1_b"])
    logits = jnp.dot(h, params["fc2_w"].T, precision=hp) + params["fc2_b"]
    return jax.nn.log_softmax(logits, axis=1)


if __name__ == "__main__":
    key = jax.random.PRNGKey(0)
    pkey, xkey = jax.random.split(key)
    params = init_params(pkey)
    prep = prepare_params(params)        # one-time weight prep (not per-forward)

    # MNIST-shaped input: fc1's 9216 = 64*12*12 pins the spatial size to 28x28.
    x = jax.random.normal(xkey, (2, 1, 28, 28), jnp.float32)

    out = jax.block_until_ready(jax.jit(net_forward)(x, prep))
    assert out.shape == (2, 10), out.shape
    assert bool(jnp.all(jnp.isfinite(out)))

    # log_softmax rows must exponentiate to a valid probability distribution.
    row_sums = jnp.exp(out).sum(axis=1)
    assert bool(jnp.allclose(row_sums, 1.0, atol=1e-3)), row_sums

    # Compare against a pure-JAX f32 reference; kernel path uses bf16 MXU
    # inputs, so allow a loose absolute tolerance on the log-probs.
    ref = jax.block_until_ready(jax.jit(net_reference)(x, params))
    max_diff = float(jnp.max(jnp.abs(out - ref)))
    assert max_diff < 0.25, f"kernel vs reference log-prob mismatch: {max_diff}"

    print("KERNEL_OK")
</pallas_src>

<mosaic_0001>
module attributes {stable_mosaic.version = 11 : i64} {
  func.func @_conv_stage_kernel(%arg0: i32, %arg1: memref<1x9x704xbf16, #tpu.memory_space<vmem>>, %arg2: memref<32x9xbf16, #tpu.memory_space<vmem>>, %arg3: memref<32x1xf32, #tpu.memory_space<vmem>>, %arg4: memref<64x288xbf16, #tpu.memory_space<vmem>>, %arg5: memref<64x1xf32, #tpu.memory_space<vmem>>, %arg6: memref<1x64x160xbf16, #tpu.memory_space<vmem>>, %arg7: memref<1x32x704xf32, #tpu.memory_space<vmem>>, %arg8: memref<1x288x640xbf16, #tpu.memory_space<vmem>>) attributes {dimension_semantics = [#tpu.dimension_semantics<parallel>], iteration_bounds = array<i64: 2>, scalar_prefetch = 0 : i64, scratch_operands = 2 : i64, tpu.core_type = #tpu.core_type<tc>, window_params = [{transform_indices = @transform_0, window_bounds = array<i64: 1, 9, 704>}, {pipeline_mode = #tpu.pipeline_mode<synchronous>, transform_indices = @transform_1, window_bounds = array<i64: 32, 9>}, {pipeline_mode = #tpu.pipeline_mode<synchronous>, transform_indices = @transform_2, window_bounds = array<i64: 32, 1>}, {pipeline_mode = #tpu.pipeline_mode<synchronous>, transform_indices = @transform_3, window_bounds = array<i64: 64, 288>}, {pipeline_mode = #tpu.pipeline_mode<synchronous>, transform_indices = @transform_4, window_bounds = array<i64: 64, 1>}, {transform_indices = @transform_5, window_bounds = array<i64: 1, 64, 160>}]} {
    %c0 = arith.constant 0 : index
    %c0_0 = arith.constant 0 : index
    %0 = vector.load %arg2[%c0, %c0_0] : memref<32x9xbf16, #tpu.memory_space<vmem>>, vector<32x9xbf16>
    %c0_1 = arith.constant 0 : index
    %c0_2 = arith.constant 0 : index
    %c0_3 = arith.constant 0 : index
    %1 = vector.load %arg1[%c0_1, %c0_2, %c0_3] : memref<1x9x704xbf16, #tpu.memory_space<vmem>>, vector<1x9x704xbf16>
    %2 = vector.shape_cast %1 : vector<1x9x704xbf16> to vector<9x704xbf16>
    %cst = arith.constant dense<0.000000e+00> : vector<32x704xf32>
    %3 = tpu.matmul %0, %2, %cst {dimension_numbers = #tpu.dot_dimension_numbers<[1], [0], [0], [1], [0, 0, 1, 1], [], []>} : vector<32x9xbf16>, vector<9x704xbf16>, vector<32x704xf32> -> vector<32x704xf32>
    %c0_4 = arith.constant 0 : index
    %c0_5 = arith.constant 0 : index
    %4 = vector.load %arg3[%c0_4, %c0_5] : memref<32x1xf32, #tpu.memory_space<vmem>>, vector<32x1xf32>
    %5 = vector.broadcast %4 : vector<32x1xf32> to vector<32x704xf32>
    %6 = arith.addf %3, %5 : vector<32x704xf32>
    %cst_6 = arith.constant 0.000000e+00 : f32
    %7 = vector.broadcast %cst_6 : f32 to vector<32x704xf32>
    %8 = arith.maximumf %6, %7 : vector<32x704xf32>
    %c0_7 = arith.constant 0 : index
    %c0_8 = arith.constant 0 : index
    %c0_9 = arith.constant 0 : index
    %9 = vector.load %arg7[%c0_7, %c0_8, %c0_9] : memref<1x32x704xf32, #tpu.memory_space<vmem>>, vector<1x32x704xf32>
    %10 = vector.shape_cast %9 : vector<1x32x704xf32> to vector<32x704xf32>
    %11 = vector.shape_cast %8 : vector<32x704xf32> to vector<1x32x704xf32>
    tpu.vector_store %arg7[%c0_7, %c0_8, %c0_9], %11 {strides = array<i32>} : memref<1x32x704xf32, #tpu.memory_space<vmem>>, vector<1x32x704xf32>,
    %c0_10 = arith.constant 0 : index
    %c0_11 = arith.constant 0 : index
    %c0_12 = arith.constant 0 : index
    %12 = vector.load %arg7[%c0_10, %c0_11, %c0_12] : memref<1x32x704xf32, #tpu.memory_space<vmem>>, vector<1x32x160xf32>
    %13 = arith.truncf %12 : vector<1x32x160xf32> to vector<1x32x160xbf16>
    %c0_13 = arith.constant 0 : index
    %c0_14 = arith.constant 0 : index
    %c0_15 = arith.constant 0 : index
    %14 = vector.load %arg8[%c0_13, %c0_14, %c0_15] : memref<1x288x640xbf16, #tpu.memory_space<vmem>>, vector<1x32x160xbf16>
    tpu.vector_store %arg8[%c0_13, %c0_14, %c0_15], %13 {strides = array<i32>} : memref<1x288x640xbf16, #tpu.memory_space<vmem>>, vector<1x32x160xbf16>,
    %c0_16 = arith.constant 0 : index
    %c0_17 = arith.constant 0 : index
    %c176 = arith.constant 176 : index
    %15 = vector.load %arg7[%c0_16, %c0_17, %c176] : memref<1x32x704xf32, #tpu.memory_space<vmem>>, vector<1x32x160xf32>
    %16 = arith.truncf %15 : vector<1x32x160xf32> to vector<1x32x160xbf16>
    %c0_18 = arith.constant 0 : index
    %c32 = arith.constant 32 : index
    %c0_19 = arith.constant 0 : index
    %17 = vector.load %arg8[%c0_18, %c32, %c0_19] : memref<1x288x640xbf16, #tpu.memory_space<vmem>>, vector<1x32x160xbf16>
    tpu.vector_store %arg8[%c0_18, %c32, %c0_19], %16 {strides = array<i32>} : memref<1x288x640xbf16, #tpu.memory_space<vmem>>, vector<1x32x160xbf16>,
    %c0_20 = arith.constant 0 : index
    %c0_21 = arith.constant 0 : index
    %c1 = arith.constant 1 : index
    %18 = vector.load %arg7[%c0_20, %c0_21, %c1] : memref<1x32x704xf32, #tpu.memory_space<vmem>>, vector<1x32x160xf32>
    %19 = arith.truncf %18 : vector<1x32x160xf32> to vector<1x32x160xbf16>
    %c0_22 = arith.constant 0 : index
    %c64 = arith.constant 64 : index
    %c0_23 = arith.constant 0 : index
    %20 = vector.load %arg8[%c0_22, %c64, %c0_23] : memref<1x288x640xbf16, #tpu.memory_space<vmem>>, vector<1x32x160xbf16>
    tpu.vector_store %arg8[%c0_22, %c64, %c0_23], %19 {strides = array<i32>} : memref<1x288x640xbf16, #tpu.memory_space<vmem>>, vector<1x32x160xbf16>,
    %c0_24 = arith.constant 0 : index
    %c0_25 = arith.constant 0 : index
    %c352 = arith.constant 352 : index
    %21 = vector.load %arg7[%c0_24, %c0_25, %c352] : memref<1x32x704xf32, #tpu.memory_space<vmem>>, vector<1x32x160xf32>
    %22 = arith.truncf %21 : vector<1x32x160xf32> to vector<1x32x160xbf16>
    %c0_26 = arith.constant 0 : index
    %c96 = arith.constant 96 : index
    %c0_27 = arith.constant 0 : index
    %23 = vector.load %arg8[%c0_26, %c96, %c0_27] : memref<1x288x640xbf16, #tpu.memory_space<vmem>>, vector<1x32x160xbf16>
    tpu.vector_store %arg8[%c0_26, %c96, %c0_27], %22 {strides = array<i32>} : memref<1x288x640xbf16, #tpu.memory_space<vmem>>, vector<1x32x160xbf16>,
    %c0_28 = arith.constant 0 : index
    %c0_29 = arith.constant 0 : index
    %c528 = arith.constant 528 : index
    %24 = vector.load %arg7[%c0_28, %c0_29, %c528] : memref<1x32x704xf32, #tpu.memory_space<vmem>>, vector<1x32x160xf32>
    %25 = arith.truncf %24 : vector<1x32x160xf32> to vector<1x32x160xbf16>
    %c0_30 = arith.constant 0 : index
    %c128 = arith.constant 128 : index
    %c0_31 = arith.constant 0 : index
    %26 = vector.load %arg8[%c0_30, %c128, %c0_31] : memref<1x288x640xbf16, #tpu.memory_space<vmem>>, vector<1x32x160xbf16>
    tpu.vector_store %arg8[%c0_30, %c128, %c0_31], %25 {strides = array<i32>} : memref<1x288x640xbf16, #tpu.memory_space<vmem>>, vector<1x32x160xbf16>,
    %c0_32 = arith.constant 0 : index
    %c0_33 = arith.constant 0 : index
    %c353 = arith.constant 353 : index
    %27 = vector.load %arg7[%c0_32, %c0_33, %c353] : memref<1x32x704xf32, #tpu.memory_space<vmem>>, vector<1x32x160xf32>
    %28 = arith.truncf %27 : vector<1x32x160xf32> to vector<1x32x160xbf16>
    %c0_34 = arith.constant 0 : index
    %c160 = arith.constant 160 : index
    %c0_35 = arith.constant 0 : index
    %29 = vector.load %arg8[%c0_34, %c160, %c0_35] : memref<1x288x640xbf16, #tpu.memory_space<vmem>>, vector<1x32x160xbf16>
    tpu.vector_store %arg8[%c0_34, %c160, %c0_35], %28 {strides = array<i32>} : memref<1x288x640xbf16, #tpu.memory_space<vmem>>, vector<1x32x160xbf16>,
    %c0_36 = arith.constant 0 : index
    %c0_37 = arith.constant 0 : index
    %c13 = arith.constant 13 : index
    %30 = vector.load %arg7[%c0_36, %c0_37, %c13] : memref<1x32x704xf32, #tpu.memory_space<vmem>>, vector<1x32x160xf32>
    %31 = arith.truncf %30 : vector<1x32x160xf32> to vector<1x32x160xbf16>
    %c0_38 = arith.constant 0 : index
    %c192 = arith.constant 192 : index
    %c0_39 = arith.constant 0 : index
    %32 = vector.load %arg8[%c0_38, %c192, %c0_39] : memref<1x288x640xbf16, #tpu.memory_space<vmem>>, vector<1x32x160xbf16>
    tpu.vector_store %arg8[%c0_38, %c192, %c0_39], %31 {strides = array<i32>} : memref<1x288x640xbf16, #tpu.memory_space<vmem>>, vector<1x32x160xbf16>,
    %c0_40 = arith.constant 0 : index
    %c0_41 = arith.constant 0 : index
    %c189 = arith.constant 189 : index
    %33 = vector.load %arg7[%c0_40, %c0_41, %c189] : memref<1x32x704xf32, #tpu.memory_space<vmem>>, vector<1x32x160xf32>
    %34 = arith.truncf %33 : vector<1x32x160xf32> to vector<1x32x160xbf16>
    %c0_42 = arith.constant 0 : index
    %c224 = arith.constant 224 : index
    %c0_43 = arith.constant 0 : index
    %35 = vector.load %arg8[%c0_42, %c224, %c0_43] : memref<1x288x640xbf16, #tpu.memory_space<vmem>>, vector<1x32x160xbf16>
    tpu.vector_store %arg8[%c0_42, %c224, %c0_43], %34 {strides = array<i32>} : memref<1x288x640xbf16, #tpu.memory_space<vmem>>, vector<1x32x160xbf16>,
    %c0_44 = arith.constant 0 : index
    %c0_45 = arith.constant 0 : index
    %c14 = arith.constant 14 : index
    %36 = vector.load %arg7[%c0_44, %c0_45, %c14] : memref<1x32x704xf32, #tpu.memory_space<vmem>>, vector<1x32x160xf32>
    %37 = arith.truncf %36 : vector<1x32x160xf32> to vector<1x32x160xbf16>
    %c0_46 = arith.constant 0 : index
    %c256 = arith.constant 256 : index
    %c0_47 = arith.constant 0 : index
    %38 = vector.load %arg8[%c0_46, %c256, %c0_47] : memref<1x288x640xbf16, #tpu.memory_space<vmem>>, vector<1x32x160xbf16>
    tpu.vector_store %arg8[%c0_46, %c256, %c0_47], %37 {strides = array<i32>} : memref<1x288x640xbf16, #tpu.memory_space<vmem>>, vector<1x32x160xbf16>,
    %c0_48 = arith.constant 0 : index
    %c0_49 = arith.constant 0 : index
    %c176_50 = arith.constant 176 : index
    %39 = vector.load %arg7[%c0_48, %c0_49, %c176_50] : memref<1x32x704xf32, #tpu.memory_space<vmem>>, vector<1x32x160xf32>
    %40 = arith.truncf %39 : vector<1x32x160xf32> to vector<1x32x160xbf16>
    %c0_51 = arith.constant 0 : index
    %c0_52 = arith.constant 0 : index
    %c160_53 = arith.constant 160 : index
    %41 = vector.load %arg8[%c0_51, %c0_52, %c160_53] : memref<1x288x640xbf16, #tpu.memory_space<vmem>>, vector<1x32x160xbf16>
    tpu.vector_store %arg8[%c0_51, %c0_52, %c160_53], %40 {strides = array<i32>} : memref<1x288x640xbf16, #tpu.memory_space<vmem>>, vector<1x32x160xbf16>,
    %c0_54 = arith.constant 0 : index
    %c0_55 = arith.constant 0 : index
    %c1_56 = arith.constant 1 : index
    %42 = vector.load %arg7[%c0_54, %c0_55, %c1_56] : memref<1x32x704xf32, #tpu.memory_space<vmem>>, vector<1x32x160xf32>
    %43 = arith.truncf %42 : vector<1x32x160xf32> to vector<1x32x160xbf16>
    %c0_57 = arith.constant 0 : index
    %c32_58 = arith.constant 32 : index
    %c160_59 = arith.constant 160 : index
    %44 = vector.load %arg8[%c0_57, %c32_58, %c160_59] : memref<1x288x640xbf16, #tpu.memory_space<vmem>>, vector<1x32x160xbf16>
    tpu.vector_store %arg8[%c0_57, %c32_58, %c160_59], %43 {strides = array<i32>} : memref<1x288x640xbf16, #tpu.memory_space<vmem>>, vector<1x32x160xbf16>,
    %c0_60 = arith.constant 0 : index
    %c0_61 = arith.constant 0 : index
    %c177 = arith.constant 177 : index
    %45 = vector.load %arg7[%c0_60, %c0_61, %c177] : memref<1x32x704xf32, #tpu.memory_space<vmem>>, vector<1x32x160xf32>
    %46 = arith.truncf %45 : vector<1x32x160xf32> to vector<1x32x160xbf16>
    %c0_62 = arith.constant 0 : index
    %c64_63 = arith.constant 64 : index
    %c160_64 = arith.constant 160 : index
    %47 = vector.load %arg8[%c0_62, %c64_63, %c160_64] : memref<1x288x640xbf16, #tpu.memory_space<vmem>>, vector<1x32x160xbf16>
    tpu.vector_store %arg8[%c0_62, %c64_63, %c160_64], %46 {strides = array<i32>} : memref<1x288x640xbf16, #tpu.memory_space<vmem>>, vector<1x32x160xbf16>,
    %c0_65 = arith.constant 0 : index
    %c0_66 = arith.constant 0 : index
    %c528_67 = arith.constant 528 : index
    %48 = vector.load %arg7[%c0_65, %c0_66, %c528_67] : memref<1x32x704xf32, #tpu.memory_space<vmem>>, vector<1x32x160xf32>
    %49 = arith.truncf %48 : vector<1x32x160xf32> to vector<1x32x160xbf16>
    %c0_68 = arith.constant 0 : index
    %c96_69 = arith.constant 96 : index
    %c160_70 = arith.constant 160 : index
    %50 = vector.load %arg8[%c0_68, %c96_69, %c160_70] : memref<1x288x640xbf16, #tpu.memory_space<vmem>>, vector<1x32x160xbf16>
    tpu.vector_store %arg8[%c0_68, %c96_69, %c160_70], %49 {strides = array<i32>} : memref<1x288x640xbf16, #tpu.memory_space<vmem>>, vector<1x32x160xbf16>,
    %c0_71 = arith.constant 0 : index
    %c0_72 = arith.constant 0 : index
    %c353_73 = arith.constant 353 : index
    %51 = vector.load %arg7[%c0_71, %c0_72, %c353_73] : memref<1x32x704xf32, #tpu.memory_space<vmem>>, vector<1x32x160xf32>
    %52 = arith.truncf %51 : vector<1x32x160xf32> to vector<1x32x160xbf16>
    %c0_74 = arith.constant 0 : index
    %c128_75 = arith.constant 128 : index
    %c160_76 = arith.constant 160 : index
    %53 = vector.load %arg8[%c0_74, %c128_75, %c160_76] : memref<1x288x640xbf16, #tpu.memory_space<vmem>>, vector<1x32x160xbf16>
    tpu.vector_store %arg8[%c0_74, %c128_75, %c160_76], %52 {strides = array<i32>} : memref<1x288x640xbf16, #tpu.memory_space<vmem>>, vector<1x32x160xbf16>,
    %c0_77 = arith.constant 0 : index
    %c0_78 = arith.constant 0 : index
    %c529 = arith.constant 529 : index
    %54 = vector.load %arg7[%c0_77, %c0_78, %c529] : memref<1x32x704xf32, #tpu.memory_space<vmem>>, vector<1x32x160xf32>
    %55 = arith.truncf %54 : vector<1x32x160xf32> to vector<1x32x160xbf16>
    %c0_79 = arith.constant 0 : index
    %c160_80 = arith.constant 160 : index
    %c160_81 = arith.constant 160 : index
    %56 = vector.load %arg8[%c0_79, %c160_80, %c160_81] : memref<1x288x640xbf16, #tpu.memory_space<vmem>>, vector<1x32x160xbf16>
    tpu.vector_store %arg8[%c0_79, %c160_80, %c160_81], %55 {strides = array<i32>} : memref<1x288x640xbf16, #tpu.memory_space<vmem>>, vector<1x32x160xbf16>,
    %c0_82 = arith.constant 0 : index
    %c0_83 = arith.constant 0 : index
    %c189_84 = arith.constant 189 : index
    %57 = vector.load %arg7[%c0_82, %c0_83, %c189_84] : memref<1x32x704xf32, #tpu.memory_space<vmem>>, vector<1x32x160xf32>
    %58 = arith.truncf %57 : vector<1x32x160xf32> to vector<1x32x160xbf16>
    %c0_85 = arith.constant 0 : index
    %c192_86 = arith.constant 192 : index
    %c160_87 = arith.constant 160 : index
    %59 = vector.load %arg8[%c0_85, %c192_86, %c160_87] : memref<1x288x640xbf16, #tpu.memory_space<vmem>>, vector<1x32x160xbf16>
    tpu.vector_store %arg8[%c0_85, %c192_86, %c160_87], %58 {strides = array<i32>} : memref<1x288x640xbf16, #tpu.memory_space<vmem>>, vector<1x32x160xbf16>,
    %c0_88 = arith.constant 0 : index
    %c0_89 = arith.constant 0 : index
    %c14_90 = arith.constant 14 : index
    %60 = vector.load %arg7[%c0_88, %c0_89, %c14_90] : memref<1x32x704xf32, #tpu.memory_space<vmem>>, vector<1x32x160xf32>
    %61 = arith.truncf %60 : vector<1x32x160xf32> to vector<1x32x160xbf16>
    %c0_91 = arith.constant 0 : index
    %c224_92 = arith.constant 224 : index
    %c160_93 = arith.constant 160 : index
    %62 = vector.load %arg8[%c0_91, %c224_92, %c160_93] : memref<1x288x640xbf16, #tpu.memory_space<vmem>>, vector<1x32x160xbf16>
    tpu.vector_store %arg8[%c0_91, %c224_92, %c160_93], %61 {strides = array<i32>} : memref<1x288x640xbf16, #tpu.memory_space<vmem>>, vector<1x32x160xbf16>,
    %c0_94 = arith.constant 0 : index
    %c0_95 = arith.constant 0 : index
    %c190 = arith.constant 190 : index
    %63 = vector.load %arg7[%c0_94, %c0_95, %c190] : memref<1x32x704xf32, #tpu.memory_space<vmem>>, vector<1x32x160xf32>
    %64 = arith.truncf %63 : vector<1x32x160xf32> to vector<1x32x160xbf16>
    %c0_96 = arith.constant 0 : index
    %c256_97 = arith.constant 256 : index
    %c160_98 = arith.constant 160 : index
    %65 = vector.load %arg8[%c0_96, %c256_97, %c160_98] : memref<1x288x640xbf16, #tpu.memory_space<vmem>>, vector<1x32x160xbf16>
    tpu.vector_store %arg8[%c0_96, %c256_97, %c160_98], %64 {strides = array<i32>} : memref<1x288x640xbf16, #tpu.memory_space<vmem>>, vector<1x32x160xbf16>,
    %c0_99 = arith.constant 0 : index
    %c0_100 = arith.constant 0 : index
    %c352_101 = arith.constant 352 : index
    %66 = vector.load %arg7[%c0_99, %c0_100, %c352_101] : memref<1x32x704xf32, #tpu.memory_space<vmem>>, vector<1x32x160xf32>
    %67 = arith.truncf %66 : vector<1x32x160xf32> to vector<1x32x160xbf16>
    %c0_102 = arith.constant 0 : index
    %c0_103 = arith.constant 0 : index
    %c320 = arith.constant 320 : index
    %68 = vector.load %arg8[%c0_102, %c0_103, %c320] : memref<1x288x640xbf16, #tpu.memory_space<vmem>>, vector<1x32x160xbf16>
    tpu.vector_store %arg8[%c0_102, %c0_103, %c320], %67 {strides = array<i32>} : memref<1x288x640xbf16, #tpu.memory_space<vmem>>, vector<1x32x160xbf16>,
    %c0_104 = arith.constant 0 : index
    %c0_105 = arith.constant 0 : index
    %c528_106 = arith.constant 528 : index
    %69 = vector.load %arg7[%c0_104, %c0_105, %c528_106] : memref<1x32x704xf32, #tpu.memory_space<vmem>>, vector<1x32x160xf32>
    %70 = arith.truncf %69 : vector<1x32x160xf32> to vector<1x32x160xbf16>
    %c0_107 = arith.constant 0 : index
    %c32_108 = arith.constant 32 : index
    %c320_109 = arith.constant 320 : index
    %71 = vector.load %arg8[%c0_107, %c32_108, %c320_109] : memref<1x288x640xbf16, #tpu.memory_space<vmem>>, vector<1x32x160xbf16>
    tpu.vector_store %arg8[%c0_107, %c32_108, %c320_109], %70 {strides = array<i32>} : memref<1x288x640xbf16, #tpu.memory_space<vmem>>, vector<1x32x160xbf16>,
    %c0_110 = arith.constant 0 : index
    %c0_111 = arith.constant 0 : index
    %c353_112 = arith.constant 353 : index
    %72 = vector.load %arg7[%c0_110, %c0_111, %c353_112] : memref<1x32x704xf32, #tpu.memory_space<vmem>>, vector<1x32x160xf32>
    %73 = arith.truncf %72 : vector<1x32x160xf32> to vector<1x32x160xbf16>
    %c0_113 = arith.constant 0 : index
    %c64_114 = arith.constant 64 : index
    %c320_115 = arith.constant 320 : index
    %74 = vector.load %arg8[%c0_113, %c64_114, %c320_115] : memref<1x288x640xbf16, #tpu.memory_space<vmem>>, vector<1x32x160xbf16>
    tpu.vector_store %arg8[%c0_113, %c64_114, %c320_115], %73 {strides = array<i32>} : memref<1x288x640xbf16, #tpu.memory_space<vmem>>, vector<1x32x160xbf16>,
    %c0_116 = arith.constant 0 : index
    %c0_117 = arith.constant 0 : index
    %c13_118 = arith.constant 13 : index
    %75 = vector.load %arg7[%c0_116, %c0_117, %c13_118] : memref<1x32x704xf32, #tpu.memory_space<vmem>>, vector<1x32x160xf32>
    %76 = arith.truncf %75 : vector<1x32x160xf32> to vector<1x32x160xbf16>
    %c0_119 = arith.constant 0 : index
    %c96_120 = arith.constant 96 : index
    %c320_121 = arith.constant 320 : index
    %77 = vector.load %arg8[%c0_119, %c96_120, %c320_121] : memref<1x288x640xbf16, #tpu.memory_space<vmem>>, vector<1x32x160xbf16>
    tpu.vector_store %arg8[%c0_119, %c96_120, %c320_121], %76 {strides = array<i32>} : memref<1x288x640xbf16, #tpu.memory_space<vmem>>, vector<1x32x160xbf16>,
    %c0_122 = arith.constant 0 : index
    %c0_123 = arith.constant 0 : index
    %c189_124 = arith.constant 189 : index
    %78 = vector.load %arg7[%c0_122, %c0_123, %c189_124] : memref<1x32x704xf32, #tpu.memory_space<vmem>>, vector<1x32x160xf32>
    %79 = arith.truncf %78 : vector<1x32x160xf32> to vector<1x32x160xbf16>
    %c0_125 = arith.constant 0 : index
    %c128_126 = arith.constant 128 : index
    %c320_127 = arith.constant 320 : index
    %80 = vector.load %arg8[%c0_125, %c128_126, %c320_127] : memref<1x288x640xbf16, #tpu.memory_space<vmem>>, vector<1x32x160xbf16>
    tpu.vector_store %arg8[%c0_125, %c128_126, %c320_127], %79 {strides = array<i32>} : memref<1x288x640xbf16, #tpu.memory_space<vmem>>, vector<1x32x160xbf16>,
    %c0_128 = arith.constant 0 : index
    %c0_129 = arith.constant 0 : index
    %c14_130 = arith.constant 14 : index
    %81 = vector.load %arg7[%c0_128, %c0_129, %c14_130] : memref<1x32x704xf32, #tpu.memory_space<vmem>>, vector<1x32x160xf32>
    %82 = arith.truncf %81 : vector<1x32x160xf32> to vector<1x32x160xbf16>
    %c0_131 = arith.constant 0 : index
    %c160_132 = arith.constant 160 : index
    %c320_133 = arith.constant 320 : index
    %83 = vector.load %arg8[%c0_131, %c160_132, %c320_133] : memref<1x288x640xbf16, #tpu.memory_space<vmem>>, vector<1x32x160xbf16>
    tpu.vector_store %arg8[%c0_131, %c160_132, %c320_133], %82 {strides = array<i32>} : memref<1x288x640xbf16, #tpu.memory_space<vmem>>, vector<1x32x160xbf16>,
    %c0_134 = arith.constant 0 : index
    %c0_135 = arith.constant 0 : index
    %c365 = arith.constant 365 : index
    %84 = vector.load %arg7[%c0_134, %c0_135, %c365] : memref<1x32x704xf32, #tpu.memory_space<vmem>>, vector<1x32x160xf32>
    %85 = arith.truncf %84 : vector<1x32x160xf32> to vector<1x32x160xbf16>
    %c0_136 = arith.constant 0 : index
    %c192_137 = arith.constant 192 : index
    %c320_138 = arith.constant 320 : index
    %86 = vector.load %arg8[%c0_136, %c192_137, %c320_138] : memref<1x288x640xbf16, #tpu.memory_space<vmem>>, vector<1x32x160xbf16>
    tpu.vector_store %arg8[%c0_136, %c192_137, %c320_138], %85 {strides = array<i32>} : memref<1x288x640xbf16, #tpu.memory_space<vmem>>, vector<1x32x160xbf16>,
    %c0_139 = arith.constant 0 : index
    %c0_140 = arith.constant 0 : index
    %c541 = arith.constant 541 : index
    %87 = vector.load %arg7[%c0_139, %c0_140, %c541] : memref<1x32x704xf32, #tpu.memory_space<vmem>>, vector<1x32x160xf32>
    %88 = arith.truncf %87 : vector<1x32x160xf32> to vector<1x32x160xbf16>
    %c0_141 = arith.constant 0 : index
    %c224_142 = arith.constant 224 : index
    %c320_143 = arith.constant 320 : index
    %89 = vector.load %arg8[%c0_141, %c224_142, %c320_143] : memref<1x288x640xbf16, #tpu.memory_space<vmem>>, vector<1x32x160xbf16>
    tpu.vector_store %arg8[%c0_141, %c224_142, %c320_143], %88 {strides = array<i32>} : memref<1x288x640xbf16, #tpu.memory_space<vmem>>, vector<1x32x160xbf16>,
    %c0_144 = arith.constant 0 : index
    %c0_145 = arith.constant 0 : index
    %c366 = arith.constant 366 : index
    %90 = vector.load %arg7[%c0_144, %c0_145, %c366] : memref<1x32x704xf32, #tpu.memory_space<vmem>>, vector<1x32x160xf32>
    %91 = arith.truncf %90 : vector<1x32x160xf32> to vector<1x32x160xbf16>
    %c0_146 = arith.constant 0 : index
    %c256_147 = arith.constant 256 : index
    %c320_148 = arith.constant 320 : index
    %92 = vector.load %arg8[%c0_146, %c256_147, %c320_148] : memref<1x288x640xbf16, #tpu.memory_space<vmem>>, vector<1x32x160xbf16>
    tpu.vector_store %arg8[%c0_146, %c256_147, %c320_148], %91 {strides = array<i32>} : memref<1x288x640xbf16, #tpu.memory_space<vmem>>, vector<1x32x160xbf16>,
    %c0_149 = arith.constant 0 : index
    %c0_150 = arith.constant 0 : index
    %c528_151 = arith.constant 528 : index
    %93 = vector.load %arg7[%c0_149, %c0_150, %c528_151] : memref<1x32x704xf32, #tpu.memory_space<vmem>>, vector<1x32x160xf32>
    %94 = arith.truncf %93 : vector<1x32x160xf32> to vector<1x32x160xbf16>
    %c0_152 = arith.constant 0 : index
    %c0_153 = arith.constant 0 : index
    %c480 = arith.constant 480 : index
    %95 = vector.load %arg8[%c0_152, %c0_153, %c480] : memref<1x288x640xbf16, #tpu.memory_space<vmem>>, vector<1x32x160xbf16>
    tpu.vector_store %arg8[%c0_152, %c0_153, %c480], %94 {strides = array<i32>} : memref<1x288x640xbf16, #tpu.memory_space<vmem>>, vector<1x32x160xbf16>,
    %c0_154 = arith.constant 0 : index
    %c0_155 = arith.constant 0 : index
    %c353_156 = arith.constant 353 : index
    %96 = vector.load %arg7[%c0_154, %c0_155, %c353_156] : memref<1x32x704xf32, #tpu.memory_space<vmem>>, vector<1x32x160xf32>
    %97 = arith.truncf %96 : vector<1x32x160xf32> to vector<1x32x160xbf16>
    %c0_157 = arith.constant 0 : index
    %c32_158 = arith.constant 32 : index
    %c480_159 = arith.constant 480 : index
    %98 = vector.load %arg8[%c0_157, %c32_158, %c480_159] : memref<1x288x640xbf16, #tpu.memory_space<vmem>>, vector<1x32x160xbf16>
    tpu.vector_store %arg8[%c0_157, %c32_158, %c480_159], %97 {strides = array<i32>} : memref<1x288x640xbf16, #tpu.memory_space<vmem>>, vector<1x32x160xbf16>,
    %c0_160 = arith.constant 0 : index
    %c0_161 = arith.constant 0 : index
    %c529_162 = arith.constant 529 : index
    %99 = vector.load %arg7[%c0_160, %c0_161, %c529_162] : memref<1x32x704xf32, #tpu.memory_space<vmem>>, vector<1x32x160xf32>
    %100 = arith.truncf %99 : vector<1x32x160xf32> to vector<1x32x160xbf16>
    %c0_163 = arith.constant 0 : index
    %c64_164 = arith.constant 64 : index
    %c480_165 = arith.constant 480 : index
    %101 = vector.load %arg8[%c0_163, %c64_164, %c480_165] : memref<1x288x640xbf16, #tpu.memory_space<vmem>>, vector<1x32x160xbf16>
    tpu.vector_store %arg8[%c0_163, %c64_164, %c480_165], %100 {strides = array<i32>} : memref<1x288x640xbf16, #tpu.memory_space<vmem>>, vector<1x32x160xbf16>,
    %c0_166 = arith.constant 0 : index
    %c0_167 = arith.constant 0 : index
    %c189_168 = arith.constant 189 : index
    %102 = vector.load %arg7[%c0_166, %c0_167, %c189_168] : memref<1x32x704xf32, #tpu.memory_space<vmem>>, vector<1x32x160xf32>
    %103 = arith.truncf %102 : vector<1x32x160xf32> to vector<1x32x160xbf16>
    %c0_169 = arith.constant 0 : index
    %c96_170 = arith.constant 96 : index
    %c480_171 = arith.constant 480 : index
    %104 = vector.load %arg8[%c0_169, %c96_170, %c480_171] : memref<1x288x640xbf16, #tpu.memory_space<vmem>>, vector<1x32x160xbf16>
    tpu.vector_store %arg8[%c0_169, %c96_170, %c480_171], %103 {strides = array<i32>} : memref<1x288x640xbf16, #tpu.memory_space<vmem>>, vector<1x32x160xbf16>,
    %c0_172 = arith.constant 0 : index
    %c0_173 = arith.constant 0 : index
    %c14_174 = arith.constant 14 : index
    %105 = vector.load %arg7[%c0_172, %c0_173, %c14_174] : memref<1x32x704xf32, #tpu.memory_space<vmem>>, vector<1x32x160xf32>
    %106 = arith.truncf %105 : vector<1x32x160xf32> to vector<1x32x160xbf16>
    %c0_175 = arith.constant 0 : index
    %c128_176 = arith.constant 128 : index
    %c480_177 = arith.constant 480 : index
    %107 = vector.load %arg8[%c0_175, %c128_176, %c480_177] : memref<1x288x640xbf16, #tpu.memory_space<vmem>>, vector<1x32x160xbf16>
    tpu.vector_store %arg8[%c0_175, %c128_176, %c480_177], %106 {strides = array<i32>} : memref<1x288x640xbf16, #tpu.memory_space<vmem>>, vector<1x32x160xbf16>,
    %c0_178 = arith.constant 0 : index
    %c0_179 = arith.constant 0 : index
    %c190_180 = arith.constant 190 : index
    %108 = vector.load %arg7[%c0_178, %c0_179, %c190_180] : memref<1x32x704xf32, #tpu.memory_space<vmem>>, vector<1x32x160xf32>
    %109 = arith.truncf %108 : vector<1x32x160xf32> to vector<1x32x160xbf16>
    %c0_181 = arith.constant 0 : index
    %c160_182 = arith.constant 160 : index
    %c480_183 = arith.constant 480 : index
    %110 = vector.load %arg8[%c0_181, %c160_182, %c480_183] : memref<1x288x640xbf16, #tpu.memory_space<vmem>>, vector<1x32x160xbf16>
    tpu.vector_store %arg8[%c0_181, %c160_182, %c480_183], %109 {strides = array<i32>} : memref<1x288x640xbf16, #tpu.memory_space<vmem>>, vector<1x32x160xbf16>,
    %c0_184 = arith.constant 0 : index
    %c0_185 = arith.constant 0 : index
    %c541_186 = arith.constant 541 : index
    %111 = vector.load %arg7[%c0_184, %c0_185, %c541_186] : memref<1x32x704xf32, #tpu.memory_space<vmem>>, vector<1x32x160xf32>
    %112 = arith.truncf %111 : vector<1x32x160xf32> to vector<1x32x160xbf16>
    %c0_187 = arith.constant 0 : index
    %c192_188 = arith.constant 192 : index
    %c480_189 = arith.constant 480 : index
    %113 = vector.load %arg8[%c0_187, %c192_188, %c480_189] : memref<1x288x640xbf16, #tpu.memory_space<vmem>>, vector<1x32x160xbf16>
    tpu.vector_store %arg8[%c0_187, %c192_188, %c480_189], %112 {strides = array<i32>} : memref<1x288x640xbf16, #tpu.memory_space<vmem>>, vector<1x32x160xbf16>,
    %c0_190 = arith.constant 0 : index
    %c0_191 = arith.constant 0 : index
    %c366_192 = arith.constant 366 : index
    %114 = vector.load %arg7[%c0_190, %c0_191, %c366_192] : memref<1x32x704xf32, #tpu.memory_space<vmem>>, vector<1x32x160xf32>
    %115 = arith.truncf %114 : vector<1x32x160xf32> to vector<1x32x160xbf16>
    %c0_193 = arith.constant 0 : index
    %c224_194 = arith.constant 224 : index
    %c480_195 = arith.constant 480 : index
    %116 = vector.load %arg8[%c0_193, %c224_194, %c480_195] : memref<1x288x640xbf16, #tpu.memory_space<vmem>>, vector<1x32x160xbf16>
    tpu.vector_store %arg8[%c0_193, %c224_194, %c480_195], %115 {strides = array<i32>} : memref<1x288x640xbf16, #tpu.memory_space<vmem>>, vector<1x32x160xbf16>,
    %c0_196 = arith.constant 0 : index
    %c0_197 = arith.constant 0 : index
    %c542 = arith.constant 542 : index
    %117 = vector.load %arg7[%c0_196, %c0_197, %c542] : memref<1x32x704xf32, #tpu.memory_space<vmem>>, vector<1x32x160xf32>
    %118 = arith.truncf %117 : vector<1x32x160xf32> to vector<1x32x160xbf16>
    %c0_198 = arith.constant 0 : index
    %c256_199 = arith.constant 256 : index
    %c480_200 = arith.constant 480 : index
    %119 = vector.load %arg8[%c0_198, %c256_199, %c480_200] : memref<1x288x640xbf16, #tpu.memory_space<vmem>>, vector<1x32x160xbf16>
    tpu.vector_store %arg8[%c0_198, %c256_199, %c480_200], %118 {strides = array<i32>} : memref<1x288x640xbf16, #tpu.memory_space<vmem>>, vector<1x32x160xbf16>,
    %c0_201 = arith.constant 0 : index
    %c0_202 = arith.constant 0 : index
    %120 = vector.load %arg4[%c0_201, %c0_202] : memref<64x288xbf16, #tpu.memory_space<vmem>>, vector<64x288xbf16>
    %c0_203 = arith.constant 0 : index
    %c0_204 = arith.constant 0 : index
    %c0_205 = arith.constant 0 : index
    %121 = vector.load %arg8[%c0_203, %c0_204, %c0_205] : memref<1x288x640xbf16, #tpu.memory_space<vmem>>, vector<1x288x640xbf16>
    %122 = vector.shape_cast %121 : vector<1x288x640xbf16> to vector<288x640xbf16>
    %cst_206 = arith.constant dense<0.000000e+00> : vector<64x640xf32>
    %123 = tpu.matmul %120, %122, %cst_206 {dimension_numbers = #tpu.dot_dimension_numbers<[1], [0], [0], [1], [0, 0, 1, 1], [], []>} : vector<64x288xbf16>, vector<288x640xbf16>, vector<64x640xf32> -> vector<64x640xf32>
    %124 = vector.extract_strided_slice %123 {offsets = [0, 0], sizes = [64, 160], strides = [1, 1]} : vector<64x640xf32> to vector<64x160xf32>
    %125 = vector.extract_strided_slice %123 {offsets = [0, 160], sizes = [64, 160], strides = [1, 1]} : vector<64x640xf32> to vector<64x160xf32>
    %126 = arith.maximumf %124, %125 : vector<64x160xf32>
    %127 = vector.extract_strided_slice %123 {offsets = [0, 320], sizes = [64, 160], strides = [1, 1]} : vector<64x640xf32> to vector<64x160xf32>
    %128 = vector.extract_strided_slice %123 {offsets = [0, 480], sizes = [64, 160], strides = [1, 1]} : vector<64x640xf32> to vector<64x160xf32>
    %129 = arith.maximumf %127, %128 : vector<64x160xf32>
    %130 = arith.maximumf %126, %129 : vector<64x160xf32>
    %c0_207 = arith.constant 0 : index
    %c0_208 = arith.constant 0 : index
    %131 = vector.load %arg5[%c0_207, %c0_208] : memref<64x1xf32, #tpu.memory_space<vmem>>, vector<64x1xf32>
    %132 = vector.broadcast %131 : vector<64x1xf32> to vector<64x160xf32>
    %133 = arith.addf %130, %132 : vector<64x160xf32>
    %134 = arith.truncf %133 : vector<64x160xf32> to vector<64x160xbf16>
    %c0_209 = arith.constant 0 : index
    %c0_210 = arith.constant 0 : index
    %c0_211 = arith.constant 0 : index
    %135 = vector.load %arg6[%c0_209, %c0_210, %c0_211] : memref<1x64x160xbf16, #tpu.memory_space<vmem>>, vector<1x64x160xbf16>
    %136 = vector.shape_cast %135 : vector<1x64x160xbf16> to vector<64x160xbf16>
    %137 = vector.shape_cast %134 : vector<64x160xbf16> to vector<1x64x160xbf16>
    tpu.vector_store %arg6[%c0_209, %c0_210, %c0_211], %137 {strides = array<i32>} : memref<1x64x160xbf16, #tpu.memory_space<vmem>>, vector<1x64x160xbf16>,
    return
  }
  func.func @transform_0(%arg0: i32) -> (i32, i32, i32) {
    %c0_i32 = arith.constant 0 : i32
    %c0_i32_0 = arith.constant 0 : i32
    %c0_i32_1 = arith.constant 0 : i32
    return %arg0, %c0_i32, %c0_i32_0 : i32, i32, i32
  }
  func.func @transform_1(%arg0: i32) -> (i32, i32) {
    %c0_i32 = arith.constant 0 : i32
    %c0_i32_0 = arith.constant 0 : i32
    %c0_i32_1 = arith.constant 0 : i32
    return %c0_i32, %c0_i32_0 : i32, i32
  }
  func.func @transform_2(%arg0: i32) -> (i32, i32) {
    %c0_i32 = arith.constant 0 : i32
    %c0_i32_0 = arith.constant 0 : i32
    %c0_i32_1 = arith.constant 0 : i32
    return %c0_i32, %c0_i32_0 : i32, i32
  }
  func.func @transform_3(%arg0: i32) -> (i32, i32) {
    %c0_i32 = arith.constant 0 : i32
    %c0_i32_0 = arith.constant 0 : i32
    %c0_i32_1 = arith.constant 0 : i32
    return %c0_i32, %c0_i32_0 : i32, i32
  }
  func.func @transform_4(%arg0: i32) -> (i32, i32) {
    %c0_i32 = arith.constant 0 : i32
    %c0_i32_0 = arith.constant 0 : i32
    %c0_i32_1 = arith.constant 0 : i32
    return %c0_i32, %c0_i32_0 : i32, i32
  }
  func.func @transform_5(%arg0: i32) -> (i32, i32, i32) {
    %c0_i32 = arith.constant 0 : i32
    %c0_i32_0 = arith.constant 0 : i32
    %c0_i32_1 = arith.constant 0 : i32
    return %arg0, %c0_i32, %c0_i32_0 : i32, i32, i32
  }
}

module attributes {stable_mosaic.version = 11 : i64} {
  func.func @_head_kernel(%arg0: i32, %arg1: memref<2x10240xbf16, #tpu.memory_space<vmem>>, %arg2: memref<10240x128xbf16, #tpu.memory_space<vmem>>, %arg3: memref<1x128xf32, #tpu.memory_space<vmem>>, %arg4: memref<128x128xbf16, #tpu.memory_space<vmem>>, %arg5: memref<1x128xf32, #tpu.memory_space<vmem>>, %arg6: memref<2x128xf32, #tpu.memory_space<vmem>>) attributes {dimension_semantics = [#tpu.dimension_semantics<parallel>], iteration_bounds = array<i64: 1>, scalar_prefetch = 0 : i64, scratch_operands = 0 : i64, tpu.core_type = #tpu.core_type<tc>, window_params = [{transform_indices = @transform_0, window_bounds = array<i64: 2, 10240>}, {pipeline_mode = #tpu.pipeline_mode<synchronous>, transform_indices = @transform_1, window_bounds = array<i64: 10240, 128>}, {pipeline_mode = #tpu.pipeline_mode<synchronous>, transform_indices = @transform_2, window_bounds = array<i64: 1, 128>}, {pipeline_mode = #tpu.pipeline_mode<synchronous>, transform_indices = @transform_3, window_bounds = array<i64: 128, 128>}, {pipeline_mode = #tpu.pipeline_mode<synchronous>, transform_indices = @transform_4, window_bounds = array<i64: 1, 128>}, {transform_indices = @transform_5, window_bounds = array<i64: 2, 128>}]} {
    %c0 = arith.constant 0 : index
    %c0_0 = arith.constant 0 : index
    %0 = vector.load %arg1[%c0, %c0_0] : memref<2x10240xbf16, #tpu.memory_space<vmem>>, vector<2x10240xbf16>
    %c0_1 = arith.constant 0 : index
    %c0_2 = arith.constant 0 : index
    %1 = vector.load %arg2[%c0_1, %c0_2] : memref<10240x128xbf16, #tpu.memory_space<vmem>>, vector<10240x128xbf16>
    %cst = arith.constant dense<0.000000e+00> : vector<2x128xf32>
    %2 = tpu.matmul %0, %1, %cst {dimension_numbers = #tpu.dot_dimension_numbers<[1], [0], [0], [1], [0, 0, 1, 1], [], []>} : vector<2x10240xbf16>, vector<10240x128xbf16>, vector<2x128xf32> -> vector<2x128xf32>
    %c0_3 = arith.constant 0 : index
    %c0_4 = arith.constant 0 : index
    %3 = vector.load %arg3[%c0_3, %c0_4] : memref<1x128xf32, #tpu.memory_space<vmem>>, vector<1x128xf32>
    %4 = vector.broadcast %3 : vector<1x128xf32> to vector<2x128xf32>
    %5 = arith.addf %2, %4 : vector<2x128xf32>
    %cst_5 = arith.constant 0.000000e+00 : f32
    %6 = vector.broadcast %cst_5 : f32 to vector<2x128xf32>
    %7 = arith.maximumf %5, %6 : vector<2x128xf32>
    %8 = arith.truncf %7 : vector<2x128xf32> to vector<2x128xbf16>
    %c0_6 = arith.constant 0 : index
    %c0_7 = arith.constant 0 : index
    %9 = vector.load %arg4[%c0_6, %c0_7] : memref<128x128xbf16, #tpu.memory_space<vmem>>, vector<128x128xbf16>
    %cst_8 = arith.constant dense<0.000000e+00> : vector<2x128xf32>
    %10 = tpu.matmul %8, %9, %cst_8 {dimension_numbers = #tpu.dot_dimension_numbers<[1], [0], [0], [1], [0, 0, 1, 1], [], []>} : vector<2x128xbf16>, vector<128x128xbf16>, vector<2x128xf32> -> vector<2x128xf32>
    %c0_9 = arith.constant 0 : index
    %c0_10 = arith.constant 0 : index
    %11 = vector.load %arg5[%c0_9, %c0_10] : memref<1x128xf32, #tpu.memory_space<vmem>>, vector<1x128xf32>
    %12 = vector.broadcast %11 : vector<1x128xf32> to vector<2x128xf32>
    %13 = arith.addf %10, %12 : vector<2x128xf32>
    %cst_11 = arith.constant dense<0xFF800000> : vector<2xf32>
    %14 = vector.multi_reduction <maximumf>, %13, %cst_11 [1] : vector<2x128xf32> to vector<2xf32>
    %15 = vector.shape_cast %14 : vector<2xf32> to vector<2x1xf32>
    %16 = vector.broadcast %15 : vector<2x1xf32> to vector<2x128xf32>
    %17 = arith.subf %13, %16 : vector<2x128xf32>
    %18 = math.exp %17 : vector<2x128xf32>
    %cst_12 = arith.constant dense<0.000000e+00> : vector<2xf32>
    %19 = vector.multi_reduction <add>, %18, %cst_12 [1] : vector<2x128xf32> to vector<2xf32>
    %20 = vector.shape_cast %19 : vector<2xf32> to vector<2x1xf32>
    %21 = math.log %20 : vector<2x1xf32>
    %22 = vector.broadcast %21 : vector<2x1xf32> to vector<2x128xf32>
    %23 = arith.subf %17, %22 : vector<2x128xf32>
    %c0_13 = arith.constant 0 : index
    %c0_14 = arith.constant 0 : index
    %24 = vector.load %arg6[%c0_13, %c0_14] : memref<2x128xf32, #tpu.memory_space<vmem>>, vector<2x128xf32>
    tpu.vector_store %arg6[%c0_13, %c0_14], %23 {strides = array<i32>} : memref<2x128xf32, #tpu.memory_space<vmem>>, vector<2x128xf32>,
    return
  }
  func.func @transform_0(%arg0: i32) -> (i32, i32) {
    %c0_i32 = arith.constant 0 : i32
    %c0_i32_0 = arith.constant 0 : i32
    return %arg0, %c0_i32 : i32, i32
  }
  func.func @transform_1(%arg0: i32) -> (i32, i32) {
    %c0_i32 = arith.constant 0 : i32
    %c0_i32_0 = arith.constant 0 : i32
    %c0_i32_1 = arith.constant 0 : i32
    return %c0_i32, %c0_i32_0 : i32, i32
  }
  func.func @transform_2(%arg0: i32) -> (i32, i32) {
    %c0_i32 = arith.constant 0 : i32
    %c0_i32_0 = arith.constant 0 : i32
    %c0_i32_1 = arith.constant 0 : i32
    return %c0_i32, %c0_i32_0 : i32, i32
  }
  func.func @transform_3(%arg0: i32) -> (i32, i32) {
    %c0_i32 = arith.constant 0 : i32
    %c0_i32_0 = arith.constant 0 : i32
    %c0_i32_1 = arith.constant 0 : i32
    return %c0_i32, %c0_i32_0 : i32, i32
  }
  func.func @transform_4(%arg0: i32) -> (i32, i32) {
    %c0_i32 = arith.constant 0 : i32
    %c0_i32_0 = arith.constant 0 : i32
    %c0_i32_1 = arith.constant 0 : i32
    return %c0_i32, %c0_i32_0 : i32, i32
  }
  func.func @transform_5(%arg0: i32) -> (i32, i32) {
    %c0_i32 = arith.constant 0 : i32
    %c0_i32_0 = arith.constant 0 : i32
    return %arg0, %c0_i32 : i32, i32
  }
}

</mosaic_0001>

<llo_original>
// kernel: net_forward.2
$region0: #{net_forward.2}
  #allocation0 [shape = 'u32[]', space=smem, size = 0x4, offset = 0x4, fixed_abs, tag = 'smem constant byte address 0x4 - core index']
  #allocation1 [shape = 'u32[144,128]{1,0:T(1,128)}', space=vmem, size = 0x12000, scoped, tag = 'internal scratch']
  #allocation2 [shape = 'f32[1,32,704]{2,1,0:T(8,128)}', space=vmem, size = 0x18000, scoped, tag = 'scratch operand']
  #allocation3 [shape = 'bf16[1,288,640]{2,1,0:T(8,128)(2,1)}', space=vmem, size = 0x5a000, scoped, tag = 'scratch operand']
  %s0 = inlined_call_operand.vmem [shape: bf16[2,9,704], index: 0, kind: input, shape index: {}]
  %s1 = inlined_call_operand.vmem [shape: bf16[32,9], index: 1, kind: input, shape index: {}]
  %s2 = inlined_call_operand.vmem [shape: f32[32,1], index: 2, kind: input, shape index: {}]
  %s3 = inlined_call_operand.vmem [shape: bf16[64,288], index: 3, kind: input, shape index: {}]
  %s4 = inlined_call_operand.vmem [shape: f32[64,1], index: 4, kind: input, shape index: {}]
  %s5 = inlined_call_operand.vmem [shape: bf16[2,64,160], index: 5, kind: output, shape index: {}]
  %s6 = sld [smem:[#allocation0]]
  $region53: #{net_forward.2} parent=0
    _
  %s8 = ssub.s32 1, %s6
  %s9 = scalar_select 0, %s8, %s6
  loop: start=0, step=1, limit=4
  $region2: #{net_forward.2} parent=0 // loop_pre_header
    _
  $region3: #{net_forward.2} parent=0 // loop_header
    %s11 = sphi 0, %s15
    %p12 = scmp.ge.s32.totalorder %s11, 4
    %s21 = sphi 0, %s23
    %s24 = sphi 0, %s21
    %s25 = sphi 0, %s24
    %s41 = sphi 0, %s25
    %s45 = sphi 0, %s45
    %s47 = sphi 0, %s45
    %s48 = sphi 0, %s47
    %s62 = sphi 0, %s48
    %s66 = sphi 0, %s66
    %s68 = sphi 0, %s66
    %s69 = sphi 0, %s68
    %s83 = sphi 0, %s69
    %s87 = sphi 0, %s87
    %s89 = sphi 0, %s87
    %s90 = sphi 0, %s89
    %s104 = sphi 0, %s90
    %s108 = sphi 0, %s108
    %s110 = sphi 0, %s108
    %s111 = sphi 0, %s110
    %s125 = sphi 0, %s111
    %s131 = sphi 0, %s133
    %s134 = sphi 0, %s131
    %s135 = sphi 0, %s134
    %s151 = sphi 0, %s135
  $region4: #{net_forward.2} parent=0 // loop_header_branch
    %14 = sbr.rel (%p12) target = $region8
  $region5: #{net_forward.2} parent=0 // loop_body
    %s16 = ssub.s32 %s11, 1
    %s17 = ssub.s32 %s11, 2
    %s18 = sadd.s32 %s11, 1
    %s19 = ssub.s32 %s11, %s18
    %p20 = scmp.eq.s32.totalorder %s19, 0
    %s22 = sadd.s32 %s21, 1
    %s23 = scalar_select %p20, %s21, %s22
    %p26 = pneg %p20
    %p27 = scmp.eq.s32.totalorder %s11, 1
    %p28 = por %p26, %p27
    %p29 = scmp.ne.s32.totalorder %s21, %s24
    %p30 = scmp.eq.s32.totalorder %s11, 0
    %p31 = por %p29, %p30
    %p32 = scmp.ne.s32.totalorder %s21, %s24
    %p33 = scmp.eq.s32.totalorder %s16, 1
    %p34 = por %p32, %p33
    %p35 = scmp.ne.s32.totalorder %s24, %s25
    %p36 = scmp.eq.s32.totalorder %s16, 0
    %p37 = por %p35, %p36
    %p38 = scmp.ne.s32.totalorder %s24, %s25
    %p39 = scmp.eq.s32.totalorder %s17, 1
    %p40 = por %p38, %p39
    %p42 = scmp.ne.s32.totalorder %s25, %s41
    %p43 = scmp.eq.s32.totalorder %s17, 0
    %p44 = por %p42, %p43
    %s46 = sadd.s32 %s45, 1
    %p49 = scmp.eq.s32.totalorder %s11, 1
    %p50 = scmp.ne.s32.totalorder %s45, %s47
    %p51 = scmp.eq.s32.totalorder %s11, 0
    %p52 = por %p50, %p51
    %p53 = scmp.ne.s32.totalorder %s45, %s47
    %p54 = scmp.eq.s32.totalorder %s16, 1
    %p55 = por %p53, %p54
    %p56 = scmp.ne.s32.totalorder %s47, %s48
    %p57 = scmp.eq.s32.totalorder %s16, 0
    %p58 = por %p56, %p57
    %p59 = scmp.ne.s32.totalorder %s47, %s48
    %p60 = scmp.eq.s32.totalorder %s17, 1
    %p61 = por %p59, %p60
    %p63 = scmp.ne.s32.totalorder %s48, %s62
    %p64 = scmp.eq.s32.totalorder %s17, 0
    %p65 = por %p63, %p64
    %s67 = sadd.s32 %s66, 1
    %p70 = scmp.eq.s32.totalorder %s11, 1
    %p71 = scmp.ne.s32.totalorder %s66, %s68
    %p72 = scmp.eq.s32.totalorder %s11, 0
    %p73 = por %p71, %p72
    %p74 = scmp.ne.s32.totalorder %s66, %s68
    %p75 = scmp.eq.s32.totalorder %s16, 1
    %p76 = por %p74, %p75
    %p77 = scmp.ne.s32.totalorder %s68, %s69
    %p78 = scmp.eq.s32.totalorder %s16, 0
    %p79 = por %p77, %p78
    %p80 = scmp.ne.s32.totalorder %s68, %s69
    %p81 = scmp.eq.s32.totalorder %s17, 1
    %p82 = por %p80, %p81
    %p84 = scmp.ne.s32.totalorder %s69, %s83
    %p85 = scmp.eq.s32.totalorder %s17, 0
    %p86 = por %p84, %p85
    %s88 = sadd.s32 %s87, 1
    %p91 = scmp.eq.s32.totalorder %s11, 1
    %p92 = scmp.ne.s32.totalorder %s87, %s89
    %p93 = scmp.eq.s32.totalorder %s11, 0
    %p94 = por %p92, %p93
    %p95 = scmp.ne.s32.totalorder %s87, %s89
    %p96 = scmp.eq.s32.totalorder %s16, 1
    %p97 = por %p95, %p96
    %p98 = scmp.ne.s32.totalorder %s89, %s90
    %p99 = scmp.eq.s32.totalorder %s16, 0
    %p100 = por %p98, %p99
    %p101 = scmp.ne.s32.totalorder %s89, %s90
    %p102 = scmp.eq.s32.totalorder %s17, 1
    %p103 = por %p101, %p102
    %p105 = scmp.ne.s32.totalorder %s90, %s104
    %p106 = scmp.eq.s32.totalorder %s17, 0
    %p107 = por %p105, %p106
    %s109 = sadd.s32 %s108, 1
    %p112 = scmp.eq.s32.totalorder %s11, 1
    %p113 = scmp.ne.s32.totalorder %s108, %s110
    %p114 = scmp.eq.s32.totalorder %s11, 0
    %p115 = por %p113, %p114
    %p116 = scmp.ne.s32.totalorder %s108, %s110
    %p117 = scmp.eq.s32.totalorder %s16, 1
    %p118 = por %p116, %p117
    %p119 = scmp.ne.s32.totalorder %s110, %s111
    %p120 = scmp.eq.s32.totalorder %s16, 0
    %p121 = por %p119, %p120
    %p122 = scmp.ne.s32.totalorder %s110, %s111
    %p123 = scmp.eq.s32.totalorder %s17, 1
    %p124 = por %p122, %p123
    %p126 = scmp.ne.s32.totalorder %s111, %s125
    %p127 = scmp.eq.s32.totalorder %s17, 0
    %p128 = por %p126, %p127
    %s129 = ssub.s32 %s11, %s18
    %p130 = scmp.eq.s32.totalorder %s129, 0
    %s132 = sadd.s32 %s131, 1
    %s133 = scalar_select %p130, %s131, %s132
    %p136 = pneg %p130
    %p137 = scmp.eq.s32.totalorder %s11, 1
    %p138 = por %p136, %p137
    %p139 = scmp.ne.s32.totalorder %s131, %s134
    %p140 = scmp.eq.s32.totalorder %s11, 0
    %p141 = por %p139, %p140
    %p142 = scmp.ne.s32.totalorder %s131, %s134
    %p143 = scmp.eq.s32.totalorder %s16, 1
    %p144 = por %p142, %p143
    %p145 = scmp.ne.s32.totalorder %s134, %s135
    %p146 = scmp.eq.s32.totalorder %s16, 0
    %p147 = por %p145, %p146
    %p148 = scmp.ne.s32.totalorder %s134, %s135
    %p149 = scmp.eq.s32.totalorder %s17, 1
    %p150 = por %p148, %p149
    %p152 = scmp.ne.s32.totalorder %s135, %s151
    %p153 = scmp.eq.s32.totalorder %s17, 0
    %p154 = por %p152, %p153
    %p155 = scmp.le.s32.totalorder 1, %s11
    %p156 = scmp.lt.s32.totalorder %s11, 3
    %p157 = pnand %p155, %p156
    %p158 = pneg %p157
    // Predicated region
    $region9: #{net_forward.2} parent=5 // pred_check
      _
    $region10: #{net_forward.2} parent=5 // pred_check_branch
      %160 = sbr.rel (%p157) target = $region12
    $region11: #{net_forward.2} parent=5 // pred_region
      %s161 = ssub.s32 %s11, 1
      // Predicated region
      $region13: #{net_forward.2} parent=11 // pred_check
        %p162 = pneg %p58
      $region14: #{net_forward.2} parent=11 // pred_check_branch
        %164 = sbr.rel (%p162) target = $region16
      $region15: #{net_forward.2} parent=11 // pred_region
        _
      $region16: #{net_forward.2} parent=11 // pred_fallthru
        _
      // Predicated region
      $region17: #{net_forward.2} parent=11 // pred_check
        %p165 = pneg %p79
      $region18: #{net_forward.2} parent=11 // pred_check_branch
        %167 = sbr.rel (%p165) target = $region20
      $region19: #{net_forward.2} parent=11 // pred_region
        _
      $region20: #{net_forward.2} parent=11 // pred_fallthru
        _
      // Predicated region
      $region21: #{net_forward.2} parent=11 // pred_check
        %p168 = pneg %p100
      $region22: #{net_forward.2} parent=11 // pred_check_branch
        %170 = sbr.rel (%p168) target = $region24
      $region23: #{net_forward.2} parent=11 // pred_region
        _
      $region24: #{net_forward.2} parent=11 // pred_fallthru
        _
      // Predicated region
      $region25: #{net_forward.2} parent=11 // pred_check
        %p171 = pneg %p121
      $region26: #{net_forward.2} parent=11 // pred_check_branch
        %173 = sbr.rel (%p171) target = $region28
      $region27: #{net_forward.2} parent=11 // pred_region
        _
      $region28: #{net_forward.2} parent=11 // pred_fallthru
        _
    $region12: #{net_forward.2} parent=5 // pred_fallthru
      _
    %p174 = scmp.lt.s32.totalorder %s11, 2
    // Predicated region
    $region29: #{net_forward.2} parent=5 // pred_check
      %p175 = pneg %p174
    $region30: #{net_forward.2} parent=5 // pred_check_branch
      %177 = sbr.rel (%p175) target = $region32
    $region31: #{net_forward.2} parent=5 // pred_region
      // Predicated region
      $region33: #{net_forward.2} parent=31 // pred_check
        %p178 = pneg %p31
      $region34: #{net_forward.2} parent=31 // pred_check_branch
        %180 = sbr.rel (%p178) target = $region36
      $region35: #{net_forward.2} parent=31 // pred_region
        %p181 = scmp.lt.s32.totalorder %s11, 1
        %s182 = scalar_select %p181, %s11, 1
        %s183 = smul.addr %s182, 12
        %s184 = smul.addr %s183, 4
        %s185 = scalar_lea.vmem %s0, %s184
      $region36: #{net_forward.2} parent=31 // pred_fallthru
        _
    $region32: #{net_forward.2} parent=5 // pred_fallthru
      _
    %p186 = scmp.le.s32.totalorder 1, %s11
    %p187 = scmp.lt.s32.totalorder %s11, 3
    %p188 = pnand %p186, %p187
    %p189 = pneg %p188
    // Predicated region
    $region37: #{net_forward.2} parent=5 // pred_check
      _
    $region38: #{net_forward.2} parent=5 // pred_check_branch
      %191 = sbr.rel (%p188) target = $region40
    $region39: #{net_forward.2} parent=5 // pred_region
      %s192 = ssub.s32 %s11, 1
      %p193 = scmp.lt.s32.totalorder %s16, 1
      %s194 = scalar_select %p193, %s16, 1
      %s195 = smul.addr %s194, 12
      %s196 = smul.addr %s195, 4
      %s197 = scalar_lea.vmem %s0, %s196
      %p198 = pneg %p37
      %p199 = pneg %p34
      %p200 = pneg %p58
      %p201 = pneg %p55
      %p202 = pneg %p79
      %p203 = pneg %p76
      %p204 = pneg %p100
      %p205 = pneg %p97
      %p206 = pneg %p121
      %p207 = pneg %p118
      %p208 = pneg %p147
      %p209 = pneg %p144
      %p210 = scmp.lt.s32.totalorder %s16, 1
      %s211 = scalar_select %p210, %s16, 1
      %s212 = smul.addr %s211, 16
      %s213 = smul.addr %s212, 4
      %s214 = scalar_lea.vmem %s5, %s213
      %p215 = scmp.lt.s32.totalorder %s16, 1
      %s216 = scalar_select %p215, %s16, 1
      %s217 = smul.addr %s216, 12
      %s218 = smul.addr %s217, 4
      %s219 = scalar_lea.vmem %s0, %s218
      %p220 = scmp.lt.s32.totalorder %s16, 1
      %s221 = scalar_select %p220, %s16, 1
      %s222 = smul.addr %s221, 16
      %s223 = smul.addr %s222, 4
      %s224 = scalar_lea.vmem %s5, %s223
      %v226 = vld [vmem:[%s1] sm:$0xf]
      %v227 = vld [vmem:[%s1 + $0x4] sm:$0xf]
      %v228 = vld [vmem:[%s1 + $0x8] sm:$0xf]
      %v229 = vld [vmem:[%s1 + $0xc] sm:$0xf]
      %v230 = vld [vmem:[%s219] sm:$0xff]
      %v231 = vld [vmem:[%s219 + $0x8] sm:$0xff]
      %v232 = vld [vmem:[%s219 + $0x10] sm:$0xff]
      %v233 = vld [vmem:[%s219 + $0x18] sm:$0x11]
      %v234 = vld [vmem:[%s219 + $0x20] sm:$0x11]
      %v235 = vld [vmem:[%s219 + $0x28] sm:$0x11]
      %v236 = vld [vmem:[%s2] sm:$0xff]
      %v237 = vld [vmem:[%s2 + $0x8] sm:$0xff]
      %v238 = vld [vmem:[%s2 + $0x10] sm:$0xff]
      %v239 = vld [vmem:[%s2 + $0x18] sm:$0xff]
      %241 = vset.pattern.permute.xlu0 0
      %242 = vperm.xlu0 %241, %v236
      %v243 = vpop.permute.xlu0 %242
      %246 = vset.pattern.permute.xlu0 0
      %247 = vperm.xlu0 %246, %v237
      %v248 = vpop.permute.xlu0 %247
      %251 = vset.pattern.permute.xlu0 0
      %252 = vperm.xlu0 %251, %v238
      %v253 = vpop.permute.xlu0 %252
      %256 = vset.pattern.permute.xlu0 0
      %257 = vperm.xlu0 %256, %v239
      %v258 = vpop.permute.xlu0 %257
      %v264 = vunpack.c.l.b16 %v226
      %v265 = vunpack.c.l.b16 %v227
      %v266 = vunpack.c.l.b16 %v228
      %v267 = vunpack.c.l.b16 %v229
      %v268 = vpack.c.b16 %v265, %v264
      %v269 = vpack.c.b16 %v267, %v266
      %v276 = vunpack.c.l.b16 %v230
      %v277 = vunpack.c.h.b16 %v230
      %v278 = vunpack.c.l.b16 %v231
      %v279 = vunpack.c.h.b16 %v231
      %v280 = vunpack.c.l.b16 %v232
      %v281 = vunpack.c.h.b16 %v232
      %v282 = vunpack.c.l.b16 %v233
      %v283 = vunpack.c.h.b16 %v233
      %v284 = vunpack.c.l.b16 %v234
      %v285 = vunpack.c.h.b16 %v234
      %v286 = vunpack.c.l.b16 %v235
      %v287 = vunpack.c.h.b16 %v235
      %v288 = vpack.c.b16 %v282, %v276
      %v289 = vpack.c.b16 %v283, %v277
      %v290 = vpack.c.b16 %v284, %v278
      %v291 = vpack.c.b16 %v285, %v279
      %v292 = vpack.c.b16 %v286, %v280
      %v293 = vpack.c.b16 %v287, %v281
      %vm294 = vcmask 72704
      %v296 = vsel %vm294, %v268, 0
      %v299 = vsel %vm294, %v269, 0
      %vm301 = vcmask 1043456
      %vm302 = vcmask 1044480
      %v303 = vsel %vm301, 4294967295, 65535
      %v304 = vsel %vm302, %v303, 0
      %v306 = vand.u32 %v288, %v304
      %v309 = vand.u32 %v289, %v304
      %v312 = vand.u32 %v290, %v304
      %v315 = vand.u32 %v291, %v304
      %v318 = vand.u32 %v292, %v304
      %v321 = vand.u32 %v293, %v304
      %323 = vmatprep.subr.bf16.mxu0 0
      %324 = vmatpush1.bf16.msra.mxu0 0
      %325 = vmatprep.subr.bf16.mxu0 0
      %326 = vmatpush1.bf16.msra.mxu0 0
      %327 = vmatprep.subr.bf16.mxu0 0
      %328 = vmatpush1.bf16.msra.mxu0 0
      %329 = vmatprep.subr.bf16.mxu0 0
      %330 = vmatpush1.bf16.msra.mxu0 0
      %331 = vmatprep.subr.bf16.mxu0 0
      %332 = vmatpush1.bf16.msra.mxu0 0
      %333 = vmatprep.subr.bf16.mxu0 0
      %334 = vmatpush1.bf16.msra.mxu0 0
      %335 = vmatprep.subr.bf16.mxu0 0
      %336 = vmatpush1.bf16.msra.mxu0 0
      %337 = vmatprep.subr.bf16.mxu0 %v309
      %338 = vmatpush1.bf16.msra.mxu0 %v306
      %339 = vmatprep.subr.bf16.mxu0 0
      %340 = vmatpush2.bf16.msra.mxu0 0
      %341 = vmatprep.subr.bf16.mxu0 0
      %342 = vmatpush2.bf16.msra.mxu0 0
      %343 = vmatprep.subr.bf16.mxu0 0
      %344 = vmatpush2.bf16.msra.mxu0 0
      %345 = vmatprep.subr.bf16.mxu0 0
      %346 = vmatpush2.bf16.msra.mxu0 0
      %347 = vmatprep.subr.bf16.mxu0 0
      %348 = vmatpush2.bf16.msra.mxu0 0
      %349 = vmatprep.subr.bf16.mxu0 0
      %350 = vmatpush2.bf16.msra.mxu0 0
      %351 = vmatprep.subr.bf16.mxu0 0
      %352 = vmatpush2.bf16.msra.mxu0 0
      %353 = vmatprep.subr.bf16.mxu0 0
      %354 = vmatpush2.bf16.msra.mxu0 0
      %355 = vmatprep.mubr.bf16.mxu0 0
      %356 = vmatmul.mubr.bf16.gmra.mxu0 %v296
      %v357 = vpop.f32.mrf.mxu0
      %v358 = vadd.f32 %v243, %v357
      %v359 = vpop.f32.mrf.mxu0
      %v360 = vadd.f32 %v243, %v359
      %v361 = vpop.f32.mrf.mxu0
      %v362 = vadd.f32 %v248, %v361
      %v363 = vpop.f32.mrf.mxu0
      %v364 = vadd.f32 %v248, %v363
      %365 = vmatprep.mubr.bf16.mxu0 0
      %366 = vmatmul.mubr.bf16.gmra.mxu0 %v299
      %v367 = vpop.f32.mrf.mxu0
      %v368 = vadd.f32 %v253, %v367
      %v369 = vpop.f32.mrf.mxu0
      %v370 = vadd.f32 %v253, %v369
      %v371 = vpop.f32.mrf.mxu0
      %v372 = vadd.f32 %v258, %v371
      %v373 = vpop.f32.mrf.mxu0
      %v374 = vadd.f32 %v258, %v373
      %375 = vdwg.mxu0
      %376 = vmatprep.subr.bf16.mxu0 0
      %377 = vmatpush1.bf16.msra.mxu0 0
      %378 = vmatprep.subr.bf16.mxu0 0
      %379 = vmatpush1.bf16.msra.mxu0 0
      %380 = vmatprep.subr.bf16.mxu0 0
      %381 = vmatpush1.bf16.msra.mxu0 0
      %382 = vmatprep.subr.bf16.mxu0 0
      %383 = vmatpush1.bf16.msra.mxu0 0
      %384 = vmatprep.subr.bf16.mxu0 0
      %385 = vmatpush1.bf16.msra.mxu0 0
      %386 = vmatprep.subr.bf16.mxu0 0
      %387 = vmatpush1.bf16.msra.mxu0 0
      %388 = vmatprep.subr.bf16.mxu0 0
      %389 = vmatpush1.bf16.msra.mxu0 0
      %390 = vmatprep.subr.bf16.mxu0 %v315
      %391 = vmatpush1.bf16.msra.mxu0 %v312
      %392 = vmatprep.subr.bf16.mxu0 0
      %393 = vmatpush2.bf16.msra.mxu0 0
      %394 = vmatprep.subr.bf16.mxu0 0
      %395 = vmatpush2.bf16.msra.mxu0 0
      %396 = vmatprep.subr.bf16.mxu0 0
      %397 = vmatpush2.bf16.msra.mxu0 0
      %398 = vmatprep.subr.bf16.mxu0 0
      %399 = vmatpush2.bf16.msra.mxu0 0
      %400 = vmatprep.subr.bf16.mxu0 0
      %401 = vmatpush2.bf16.msra.mxu0 0
      %402 = vmatprep.subr.bf16.mxu0 0
      %403 = vmatpush2.bf16.msra.mxu0 0
      %404 = vmatprep.subr.bf16.mxu0 0
      %405 = vmatpush2.bf16.msra.mxu0 0
      %406 = vmatprep.subr.bf16.mxu0 0
      %407 = vmatpush2.bf16.msra.mxu0 0
      %408 = vmatprep.mubr.bf16.mxu0 0
      %409 = vmatmul.mubr.bf16.gmra.mxu0 %v296
      %v410 = vpop.f32.mrf.mxu0
      %v411 = vadd.f32 %v243, %v410
      %v412 = vpop.f32.mrf.mxu0
      %v413 = vadd.f32 %v243, %v412
      %v414 = vpop.f32.mrf.mxu0
      %v415 = vadd.f32 %v248, %v414
      %v416 = vpop.f32.mrf.mxu0
      %v417 = vadd.f32 %v248, %v416
      %418 = vmatprep.mubr.bf16.mxu0 0
      %419 = vmatmul.mubr.bf16.gmra.mxu0 %v299
      %v420 = vpop.f32.mrf.mxu0
      %v421 = vadd.f32 %v253, %v420
      %v422 = vpop.f32.mrf.mxu0
      %v423 = vadd.f32 %v253, %v422
      %v424 = vpop.f32.mrf.mxu0
      %v425 = vadd.f32 %v258, %v424
      %v426 = vpop.f32.mrf.mxu0
      %v427 = vadd.f32 %v258, %v426
      %428 = vdwg.mxu0
      %429 = vmatprep.subr.bf16.mxu0 0
      %430 = vmatpush1.bf16.msra.mxu0 0
      %431 = vmatprep.subr.bf16.mxu0 0
      %432 = vmatpush1.bf16.msra.mxu0 0
      %433 = vmatprep.subr.bf16.mxu0 0
      %434 = vmatpush1.bf16.msra.mxu0 0
      %435 = vmatprep.subr.bf16.mxu0 0
      %436 = vmatpush1.bf16.msra.mxu0 0
      %437 = vmatprep.subr.bf16.mxu0 0
      %438 = vmatpush1.bf16.msra.mxu0 0
      %439 = vmatprep.subr.bf16.mxu0 0
      %440 = vmatpush1.bf16.msra.mxu0 0
      %441 = vmatprep.subr.bf16.mxu0 0
      %442 = vmatpush1.bf16.msra.mxu0 0
      %443 = vmatprep.subr.bf16.mxu0 %v321
      %444 = vmatpush1.bf16.msra.mxu0 %v318
      %445 = vmatprep.subr.bf16.mxu0 0
      %446 = vmatpush2.bf16.msra.mxu0 0
      %447 = vmatprep.subr.bf16.mxu0 0
      %448 = vmatpush2.bf16.msra.mxu0 0
      %449 = vmatprep.subr.bf16.mxu0 0
      %450 = vmatpush2.bf16.msra.mxu0 0
      %451 = vmatprep.subr.bf16.mxu0 0
      %452 = vmatpush2.bf16.msra.mxu0 0
      %453 = vmatprep.subr.bf16.mxu0 0
      %454 = vmatpush2.bf16.msra.mxu0 0
      %455 = vmatprep.subr.bf16.mxu0 0
      %456 = vmatpush2.bf16.msra.mxu0 0
      %457 = vmatprep.subr.bf16.mxu0 0
      %458 = vmatpush2.bf16.msra.mxu0 0
      %459 = vmatprep.subr.bf16.mxu0 0
      %460 = vmatpush2.bf16.msra.mxu0 0
      %461 = vmatprep.mubr.bf16.mxu0 0
      %462 = vmatmul.mubr.bf16.gmra.mxu0 %v296
      %v463 = vpop.f32.mrf.mxu0
      %v464 = vadd.f32 %v243, %v463
      %v465 = vpop.f32.mrf.mxu0
      %v466 = vadd.f32 %v243, %v465
      %v467 = vpop.f32.mrf.mxu0
      %v468 = vadd.f32 %v248, %v467
      %v469 = vpop.f32.mrf.mxu0
      %v470 = vadd.f32 %v248, %v469
      %471 = vmatprep.mubr.bf16.mxu0 0
      %472 = vmatmul.mubr.bf16.gmra.mxu0 %v299
      %v473 = vpop.f32.mrf.mxu0
      %v474 = vadd.f32 %v253, %v473
      %v475 = vpop.f32.mrf.mxu0
      %v476 = vadd.f32 %v253, %v475
      %v477 = vpop.f32.mrf.mxu0
      %v478 = vadd.f32 %v258, %v477
      %v479 = vpop.f32.mrf.mxu0
      %v480 = vadd.f32 %v258, %v479
      %481 = vdwg.mxu0
      %v482 = vmax.f32 %v358, 0.0
      %v483 = vmax.f32 %v360, 0.0
      %v484 = vmax.f32 %v411, 0.0
      %v485 = vmax.f32 %v413, 0.0
      %v486 = vmax.f32 %v464, 0.0
      %v487 = vmax.f32 %v466, 0.0
      %v488 = vmax.f32 %v362, 0.0
      %v489 = vmax.f32 %v364, 0.0
      %v490 = vmax.f32 %v415, 0.0
      %v491 = vmax.f32 %v417, 0.0
      %v492 = vmax.f32 %v468, 0.0
      %v493 = vmax.f32 %v470, 0.0
      %v494 = vmax.f32 %v368, 0.0
      %v495 = vmax.f32 %v370, 0.0
      %v496 = vmax.f32 %v421, 0.0
      %v497 = vmax.f32 %v423, 0.0
      %v498 = vmax.f32 %v474, 0.0
      %v499 = vmax.f32 %v476, 0.0
      %v500 = vmax.f32 %v372, 0.0
      %v501 = vmax.f32 %v374, 0.0
      %v502 = vmax.f32 %v425, 0.0
      %v503 = vmax.f32 %v427, 0.0
      %v504 = vmax.f32 %v478, 0.0
      %v505 = vmax.f32 %v480, 0.0
      %506 = vst [vmem:[#allocation2] sm:$0xff] %v482
      %507 = vst [vmem:[#allocation2 + $0x8] sm:$0xff] %v483
      %508 = vst [vmem:[#allocation2 + $0x10] sm:$0xff] %v484
      %509 = vst [vmem:[#allocation2 + $0x18] sm:$0xff] %v485
      %510 = vst [vmem:[#allocation2 + $0x20] sm:$0xff] %v486
      %vm511 = vcmask 523264
      %512 = vst.msk [vmem:[#allocation2 + $0x28] sm:$0xff] %vm511, %v487
      %513 = vst [vmem:[#allocation2 + $0x30] sm:$0xff] %v488
      %514 = vst [vmem:[#allocation2 + $0x38] sm:$0xff] %v489
      %515 = vst [vmem:[#allocation2 + $0x40] sm:$0xff] %v490
      %516 = vst [vmem:[#allocation2 + $0x48] sm:$0xff] %v491
      %517 = vst [vmem:[#allocation2 + $0x50] sm:$0xff] %v492
      %518 = vst.msk [vmem:[#allocation2 + $0x58] sm:$0xff] %vm511, %v493
      %519 = vst [vmem:[#allocation2 + $0x60] sm:$0xff] %v494
      %520 = vst [vmem:[#allocation2 + $0x68] sm:$0xff] %v495
      %521 = vst [vmem:[#allocation2 + $0x70] sm:$0xff] %v496
      %522 = vst [vmem:[#allocation2 + $0x78] sm:$0xff] %v497
      %523 = vst [vmem:[#allocation2 + $0x80] sm:$0xff] %v498
      %524 = vst.msk [vmem:[#allocation2 + $0x88] sm:$0xff] %vm511, %v499
      %525 = vst [vmem:[#allocation2 + $0x90] sm:$0xff] %v500
      %526 = vst [vmem:[#allocation2 + $0x98] sm:$0xff] %v501
      %527 = vst [vmem:[#allocation2 + $0xa0] sm:$0xff] %v502
      %528 = vst [vmem:[#allocation2 + $0xa8] sm:$0xff] %v503
      %529 = vst [vmem:[#allocation2 + $0xb0] sm:$0xff] %v504
      %530 = vst.msk [vmem:[#allocation2 + $0xb8] sm:$0xff] %vm511, %v505
      %v531 = vld [vmem:[#allocation2] sm:$0xff]
      %v532 = vld [vmem:[#allocation2 + $0x8] sm:$0xff]
      %v533 = vld [vmem:[#allocation2 + $0x30] sm:$0xff]
      %v534 = vld [vmem:[#allocation2 + $0x38] sm:$0xff]
      %v535 = vld [vmem:[#allocation2 + $0x60] sm:$0xff]
      %v536 = vld [vmem:[#allocation2 + $0x68] sm:$0xff]
      %v537 = vld [vmem:[#allocation2 + $0x90] sm:$0xff]
      %v538 = vld [vmem:[#allocation2 + $0x98] sm:$0xff]
      %v539 = vpack.c.bf16 %v533, %v531
      %v540 = vpack.c.bf16 %v534, %v532
      %v541 = vpack.c.bf16 %v537, %v535
      %v542 = vpack.c.bf16 %v538, %v536
      %v547 = vunpack.c.l.b16 %v539
      %v548 = vunpack.c.l.b16 %v540
      %v549 = vunpack.c.h.b16 %v539
      %v550 = vunpack.c.h.b16 %v540
      %v551 = vunpack.c.l.b16 %v541
      %v552 = vunpack.c.l.b16 %v542
      %v553 = vunpack.c.h.b16 %v541
      %v554 = vunpack.c.h.b16 %v542
      %v555 = vpack.c.b16 %v548, %v547
      %v556 = vpack.c.b16 %v550, %v549
      %v557 = vpack.c.b16 %v552, %v551
      %v558 = vpack.c.b16 %v554, %v553
      %vm563 = vcmask 261124
      %vm564 = vmor %vm563, %vm301
      %565 = vst.msk [vmem:[#allocation3] sm:$0xff] %vm564, %v555
      %566 = vst.msk [vmem:[#allocation3 + $0x14] sm:$0xff] %vm564, %v556
      %567 = vst.msk [vmem:[#allocation3 + $0x28] sm:$0xff] %vm564, %v557
      %568 = vst.msk [vmem:[#allocation3 + $0x3c] sm:$0xff] %vm564, %v558
      %v569 = vld [vmem:[#allocation2 + $0x8] sm:$0xff]
      %v570 = vld [vmem:[#allocation2 + $0x10] sm:$0xff]
      %v571 = vld [vmem:[#allocation2 + $0x38] sm:$0xff]
      %v572 = vld [vmem:[#allocation2 + $0x40] sm:$0xff]
      %v573 = vld [vmem:[#allocation2 + $0x68] sm:$0xff]
      %v574 = vld [vmem:[#allocation2 + $0x70] sm:$0xff]
      %v575 = vld [vmem:[#allocation2 + $0x98] sm:$0xff]
      %v576 = vld [vmem:[#allocation2 + $0xa0] sm:$0xff]
      %v577 = vpack.c.bf16 %v571, %v569
      %v578 = vpack.c.bf16 %v572, %v570
      %v579 = vpack.c.bf16 %v575, %v573
      %v580 = vpack.c.bf16 %v576, %v574
      %v585 = vunpack.c.l.b16 %v577
      %v586 = vunpack.c.l.b16 %v578
      %v587 = vunpack.c.h.b16 %v577
      %v588 = vunpack.c.h.b16 %v578
      %v589 = vunpack.c.l.b16 %v579
      %v590 = vunpack.c.l.b16 %v580
      %v591 = vunpack.c.h.b16 %v579
      %v592 = vunpack.c.h.b16 %v580
      %v593 = vpack.c.b16 %v586, %v585
      %v594 = vpack.c.b16 %v588, %v587
      %v595 = vpack.c.b16 %v590, %v589
      %v596 = vpack.c.b16 %v592, %v591
      %597 = vrot.lane.b32.xlu0 %v593, 80
      %v598 = vpop.permute.xlu0 %597
      %599 = vrot.lane.b32.xlu0 %v594, 80
      %v600 = vpop.permute.xlu0 %599
      %601 = vrot.lane.b32.xlu0 %v595, 80
      %v602 = vpop.permute.xlu0 %601
      %603 = vrot.lane.b32.xlu0 %v596, 80
      %v604 = vpop.permute.xlu0 %603
      %v605 = vrot.slane %v598, 4
      %v606 = vrot.slane %v600, 4
      %v607 = vrot.slane %v602, 4
      %v608 = vrot.slane %v604, 4
      %vm609 = vcmask 654336
      %v610 = vsel %vm609, %v598, %v605
      %v611 = vsel %vm609, %v600, %v606
      %v612 = vsel %vm609, %v602, %v607
      %v613 = vsel %vm609, %v604, %v608
      %618 = vst.msk [vmem:[#allocation3 + $0x50] sm:$0xff] %vm564, %v610
      %619 = vst.msk [vmem:[#allocation3 + $0x64] sm:$0xff] %vm564, %v611
      %620 = vst.msk [vmem:[#allocation3 + $0x78] sm:$0xff] %vm564, %v612
      %621 = vst.msk [vmem:[#allocation3 + $0x8c] sm:$0xff] %vm564, %v613
      %v622 = vld [vmem:[#allocation2] sm:$0xff]
      %v623 = vld [vmem:[#allocation2 + $0x8] sm:$0xff]
      %v624 = vld [vmem:[#allocation2 + $0x30] sm:$0xff]
      %v625 = vld [vmem:[#allocation2 + $0x38] sm:$0xff]
      %v626 = vld [vmem:[#allocation2 + $0x60] sm:$0xff]
      %v627 = vld [vmem:[#allocation2 + $0x68] sm:$0xff]
      %v628 = vld [vmem:[#allocation2 + $0x90] sm:$0xff]
      %v629 = vld [vmem:[#allocation2 + $0x98] sm:$0xff]
      %v630 = vpack.c.bf16 %v624, %v622
      %v631 = vpack.c.bf16 %v625, %v623
      %v632 = vpack.c.bf16 %v628, %v626
      %v633 = vpack.c.bf16 %v629, %v627
      %v638 = vunpack.c.l.b16 %v630
      %v639 = vunpack.c.l.b16 %v631
      %v640 = vunpack.c.h.b16 %v630
      %v641 = vunpack.c.h.b16 %v631
      %v642 = vunpack.c.l.b16 %v632
      %v643 = vunpack.c.l.b16 %v633
      %v644 = vunpack.c.h.b16 %v632
      %v645 = vunpack.c.h.b16 %v633
      %v646 = vpack.c.b16 %v639, %v638
      %v647 = vpack.c.b16 %v641, %v640
      %v648 = vpack.c.b16 %v643, %v642
      %v649 = vpack.c.b16 %v645, %v644
      %650 = vrot.lane.b32.xlu0 %v646, 127
      %v651 = vpop.permute.xlu0 %650
      %652 = vrot.lane.b32.xlu0 %v647, 127
      %v653 = vpop.permute.xlu0 %652
      %654 = vrot.lane.b32.xlu0 %v648, 127
      %v655 = vpop.permute.xlu0 %654
      %656 = vrot.lane.b32.xlu0 %v649, 127
      %v657 = vpop.permute.xlu0 %656
      %v658 = vrot.slane %v651, 4
      %v659 = vrot.slane %v653, 4
      %v660 = vrot.slane %v655, 4
      %v661 = vrot.slane %v657, 4
      %vm662 = vcmask 1039360
      %v663 = vsel %vm662, %v651, %v658
      %v664 = vsel %vm662, %v653, %v659
      %v665 = vsel %vm662, %v655, %v660
      %v666 = vsel %vm662, %v657, %v661
      %671 = vst.msk [vmem:[#allocation3 + $0xa0] sm:$0xff] %vm564, %v663
      %672 = vst.msk [vmem:[#allocation3 + $0xb4] sm:$0xff] %vm564, %v664
      %673 = vst.msk [vmem:[#allocation3 + $0xc8] sm:$0xff] %vm564, %v665
      %674 = vst.msk [vmem:[#allocation3 + $0xdc] sm:$0xff] %vm564, %v666
      %v675 = vld [vmem:[#allocation2 + $0x10] sm:$0xff]
      %v676 = vld [vmem:[#allocation2 + $0x18] sm:$0xff]
      %v677 = vld [vmem:[#allocation2 + $0x40] sm:$0xff]
      %v678 = vld [vmem:[#allocation2 + $0x48] sm:$0xff]
      %v679 = vld [vmem:[#allocation2 + $0x70] sm:$0xff]
      %v680 = vld [vmem:[#allocation2 + $0x78] sm:$0xff]
      %v681 = vld [vmem:[#allocation2 + $0xa0] sm:$0xff]
      %v682 = vld [vmem:[#allocation2 + $0xa8] sm:$0xff]
      %v683 = vpack.c.bf16 %v677, %v675
      %v684 = vpack.c.bf16 %v678, %v676
      %v685 = vpack.c.bf16 %v681, %v679
      %v686 = vpack.c.bf16 %v682, %v680
      %v691 = vunpack.c.l.b16 %v683
      %v692 = vunpack.c.l.b16 %v684
      %v693 = vunpack.c.h.b16 %v683
      %v694 = vunpack.c.h.b16 %v684
      %v695 = vunpack.c.l.b16 %v685
      %v696 = vunpack.c.l.b16 %v686
      %v697 = vunpack.c.h.b16 %v685
      %v698 = vunpack.c.h.b16 %v686
      %v699 = vpack.c.b16 %v692, %v691
      %v700 = vpack.c.b16 %v694, %v693
      %v701 = vpack.c.b16 %v696, %v695
      %v702 = vpack.c.b16 %v698, %v697
      %703 = vrot.lane.b32.xlu0 %v699, 32
      %v704 = vpop.permute.xlu0 %703
      %705 = vrot.lane.b32.xlu0 %v700, 32
      %v706 = vpop.permute.xlu0 %705
      %707 = vrot.lane.b32.xlu0 %v701, 32
      %v708 = vpop.permute.xlu0 %707
      %709 = vrot.lane.b32.xlu0 %v702, 32
      %v710 = vpop.permute.xlu0 %709
      %v711 = vrot.slane %v704, 4
      %v712 = vrot.slane %v706, 4
      %v713 = vrot.slane %v708, 4
      %v714 = vrot.slane %v710, 4
      %vm715 = vcmask 261120
      %v716 = vsel %vm715, %v704, %v711
      %v717 = vsel %vm715, %v706, %v712
      %v718 = vsel %vm715, %v708, %v713
      %v719 = vsel %vm715, %v710, %v714
      %724 = vst.msk [vmem:[#allocation3 + $0xf0] sm:$0xff] %vm564, %v716
      %725 = vst.msk [vmem:[#allocation3 + $0x104] sm:$0xff] %vm564, %v717
      %726 = vst.msk [vmem:[#allocation3 + $0x118] sm:$0xff] %vm564, %v718
      %727 = vst.msk [vmem:[#allocation3 + $0x12c] sm:$0xff] %vm564, %v719
      %v728 = vld [vmem:[#allocation2 + $0x20] sm:$0xff]
      %v729 = vld [vmem:[#allocation2 + $0x28] sm:$0xff]
      %v730 = vld [vmem:[#allocation2 + $0x50] sm:$0xff]
      %v731 = vld [vmem:[#allocation2 + $0x58] sm:$0xff]
      %v732 = vld [vmem:[#allocation2 + $0x80] sm:$0xff]
      %v733 = vld [vmem:[#allocation2 + $0x88] sm:$0xff]
      %v734 = vld [vmem:[#allocation2 + $0xb0] sm:$0xff]
      %v735 = vld [vmem:[#allocation2 + $0xb8] sm:$0xff]
      %v736 = vpack.c.bf16 %v730, %v728
      %v737 = vpack.c.bf16 %v731, %v729
      %v738 = vpack.c.bf16 %v734, %v732
      %v739 = vpack.c.bf16 %v735, %v733
      %v744 = vunpack.c.l.b16 %v736
      %v745 = vunpack.c.l.b16 %v737
      %v746 = vunpack.c.h.b16 %v736
      %v747 = vunpack.c.h.b16 %v737
      %v748 = vunpack.c.l.b16 %v738
      %v749 = vunpack.c.l.b16 %v739
      %v750 = vunpack.c.h.b16 %v738
      %v751 = vunpack.c.h.b16 %v739
      %v752 = vpack.c.b16 %v745, %v744
      %v753 = vpack.c.b16 %v747, %v746
      %v754 = vpack.c.b16 %v749, %v748
      %v755 = vpack.c.b16 %v751, %v750
      %756 = vrot.lane.b32.xlu0 %v752, 112
      %v757 = vpop.permute.xlu0 %756
      %758 = vrot.lane.b32.xlu0 %v753, 112
      %v759 = vpop.permute.xlu0 %758
      %760 = vrot.lane.b32.xlu0 %v754, 112
      %v761 = vpop.permute.xlu0 %760
      %762 = vrot.lane.b32.xlu0 %v755, 112
      %v763 = vpop.permute.xlu0 %762
      %v764 = vrot.slane %v757, 4
      %v765 = vrot.slane %v759, 4
      %v766 = vrot.slane %v761, 4
      %v767 = vrot.slane %v763, 4
      %vm768 = vcmask 916480
      %v769 = vsel %vm768, %v757, %v764
      %v770 = vsel %vm768, %v759, %v765
      %v771 = vsel %vm768, %v761, %v766
      %v772 = vsel %vm768, %v763, %v767
      %777 = vst.msk [vmem:[#allocation3 + $0x140] sm:$0xff] %vm564, %v769
      %778 = vst.msk [vmem:[#allocation3 + $0x154] sm:$0xff] %vm564, %v770
      %779 = vst.msk [vmem:[#allocation3 + $0x168] sm:$0xff] %vm564, %v771
      %780 = vst.msk [vmem:[#allocation3 + $0x17c] sm:$0xff] %vm564, %v772
      %v781 = vld [vmem:[#allocation2 + $0x10] sm:$0xff]
      %v782 = vld [vmem:[#allocation2 + $0x18] sm:$0xff]
      %v783 = vld [vmem:[#allocation2 + $0x20] sm:$0xff]
      %v784 = vld [vmem:[#allocation2 + $0x40] sm:$0xff]
      %v785 = vld [vmem:[#allocation2 + $0x48] sm:$0xff]
      %v786 = vld [vmem:[#allocation2 + $0x50] sm:$0xff]
      %v787 = vld [vmem:[#allocation2 + $0x70] sm:$0xff]
      %v788 = vld [vmem:[#allocation2 + $0x78] sm:$0xff]
      %v789 = vld [vmem:[#allocation2 + $0x80] sm:$0xff]
      %v790 = vld [vmem:[#allocation2 + $0xa0] sm:$0xff]
      %v791 = vld [vmem:[#allocation2 + $0xa8] sm:$0xff]
      %v792 = vld [vmem:[#allocation2 + $0xb0] sm:$0xff]
      %v793 = vpack.c.bf16 %v784, %v781
      %v794 = vpack.c.bf16 %v785, %v782
      %v795 = vpack.c.bf16 %v786, %v783
      %v796 = vpack.c.bf16 %v790, %v787
      %v797 = vpack.c.bf16 %v791, %v788
      %v798 = vpack.c.bf16 %v792, %v789
      %v805 = vunpack.c.l.b16 %v793
      %v806 = vunpack.c.l.b16 %v794
      %v807 = vunpack.c.l.b16 %v795
      %v808 = vunpack.c.h.b16 %v793
      %v809 = vunpack.c.h.b16 %v794
      %v810 = vunpack.c.h.b16 %v795
      %v811 = vunpack.c.l.b16 %v796
      %v812 = vunpack.c.l.b16 %v797
      %v813 = vunpack.c.l.b16 %v798
      %v814 = vunpack.c.h.b16 %v796
      %v815 = vunpack.c.h.b16 %v797
      %v816 = vunpack.c.h.b16 %v798
      %v817 = vpack.c.b16 %v806, %v805
      %v818 = vpack.c.b16 %v807, %v807
      %v819 = vpack.c.b16 %v809, %v808
      %v820 = vpack.c.b16 %v810, %v810
      %v821 = vpack.c.b16 %v812, %v811
      %v822 = vpack.c.b16 %v813, %v813
      %v823 = vpack.c.b16 %v815, %v814
      %v824 = vpack.c.b16 %v816, %v816
      %825 = vrot.lane.b32.xlu0 %v817, 31
      %v826 = vpop.permute.xlu0 %825
      %827 = vrot.lane.b32.xlu0 %v818, 31
      %v828 = vpop.permute.xlu0 %827
      %829 = vrot.lane.b32.xlu0 %v819, 31
      %v830 = vpop.permute.xlu0 %829
      %831 = vrot.lane.b32.xlu0 %v820, 31
      %v832 = vpop.permute.xlu0 %831
      %833 = vrot.lane.b32.xlu0 %v821, 31
      %v834 = vpop.permute.xlu0 %833
      %835 = vrot.lane.b32.xlu0 %v822, 31
      %v836 = vpop.permute.xlu0 %835
      %837 = vrot.lane.b32.xlu0 %v823, 31
      %v838 = vpop.permute.xlu0 %837
      %839 = vrot.lane.b32.xlu0 %v824, 31
      %v840 = vpop.permute.xlu0 %839
      %v841 = vrot.slane %v826, 4
      %v842 = vrot.slane %v828, 4
      %v843 = vrot.slane %v830, 4
      %v844 = vrot.slane %v832, 4
      %v845 = vrot.slane %v834, 4
      %v846 = vrot.slane %v836, 4
      %v847 = vrot.slane %v838, 4
      %v848 = vrot.slane %v840, 4
      %vm849 = vcmask 1043456
      %v850 = vsel %vm849, %v841, %v842
      %vm851 = vcmask 252928
      %v852 = vsel %vm851, %v826, %v850
      %v853 = vsel %vm849, %v843, %v844
      %v854 = vsel %vm851, %v830, %v853
      %v855 = vsel %vm849, %v845, %v846
      %v856 = vsel %vm851, %v834, %v855
      %v857 = vsel %vm849, %v847, %v848
      %v858 = vsel %vm851, %v838, %v857
      %863 = vst.msk [vmem:[#allocation3 + $0x190] sm:$0xff] %vm564, %v852
      %864 = vst.msk [vmem:[#allocation3 + $0x1a4] sm:$0xff] %vm564, %v854
      %865 = vst.msk [vmem:[#allocation3 + $0x1b8] sm:$0xff] %vm564, %v856
      %866 = vst.msk [vmem:[#allocation3 + $0x1cc] sm:$0xff] %vm564, %v858
      %v867 = vld [vmem:[#allocation2] sm:$0xff]
      %v868 = vld [vmem:[#allocation2 + $0x8] sm:$0xff]
      %v869 = vld [vmem:[#allocation2 + $0x30] sm:$0xff]
      %v870 = vld [vmem:[#allocation2 + $0x38] sm:$0xff]
      %v871 = vld [vmem:[#allocation2 + $0x60] sm:$0xff]
      %v872 = vld [vmem:[#allocation2 + $0x68] sm:$0xff]
      %v873 = vld [vmem:[#allocation2 + $0x90] sm:$0xff]
      %v874 = vld [vmem:[#allocation2 + $0x98] sm:$0xff]
      %v875 = vpack.c.bf16 %v869, %v867
      %v876 = vpack.c.bf16 %v870, %v868
      %v877 = vpack.c.bf16 %v873, %v871
      %v878 = vpack.c.bf16 %v874, %v872
      %v883 = vunpack.c.l.b16 %v875
      %v884 = vunpack.c.l.b16 %v876
      %v885 = vunpack.c.h.b16 %v875
      %v886 = vunpack.c.h.b16 %v876
      %v887 = vunpack.c.l.b16 %v877
      %v888 = vunpack.c.l.b16 %v878
      %v889 = vunpack.c.h.b16 %v877
      %v890 = vunpack.c.h.b16 %v878
      %v891 = vpack.c.b16 %v884, %v883
      %v892 = vpack.c.b16 %v886, %v885
      %v893 = vpack.c.b16 %v888, %v887
      %v894 = vpack.c.b16 %v890, %v889
      %895 = vrot.lane.b32.xlu0 %v891, 115
      %v896 = vpop.permute.xlu0 %895
      %897 = vrot.lane.b32.xlu0 %v892, 115
      %v898 = vpop.permute.xlu0 %897
      %899 = vrot.lane.b32.xlu0 %v893, 115
      %v900 = vpop.permute.xlu0 %899
      %901 = vrot.lane.b32.xlu0 %v894, 115
      %v902 = vpop.permute.xlu0 %901
      %v903 = vrot.slane %v896, 4
      %v904 = vrot.slane %v898, 4
      %v905 = vrot.slane %v900, 4
      %v906 = vrot.slane %v902, 4
      %vm907 = vcmask 941056
      %v908 = vsel %vm907, %v896, %v903
      %v909 = vsel %vm907, %v898, %v904
      %v910 = vsel %vm907, %v900, %v905
      %v911 = vsel %vm907, %v902, %v906
      %916 = vst.msk [vmem:[#allocation3 + $0x1e0] sm:$0xff] %vm564, %v908
      %917 = vst.msk [vmem:[#allocation3 + $0x1f4] sm:$0xff] %vm564, %v909
      %918 = vst.msk [vmem:[#allocation3 + $0x208] sm:$0xff] %vm564, %v910
      %919 = vst.msk [vmem:[#allocation3 + $0x21c] sm:$0xff] %vm564, %v911
      %v920 = vld [vmem:[#allocation2 + $0x8] sm:$0xff]
      %v921 = vld [vmem:[#allocation2 + $0x10] sm:$0xff]
      %v922 = vld [vmem:[#allocation2 + $0x38] sm:$0xff]
      %v923 = vld [vmem:[#allocation2 + $0x40] sm:$0xff]
      %v924 = vld [vmem:[#allocation2 + $0x68] sm:$0xff]
      %v925 = vld [vmem:[#allocation2 + $0x70] sm:$0xff]
      %v926 = vld [vmem:[#allocation2 + $0x98] sm:$0xff]
      %v927 = vld [vmem:[#allocation2 + $0xa0] sm:$0xff]
      %v928 = vpack.c.bf16 %v922, %v920
      %v929 = vpack.c.bf16 %v923, %v921
      %v930 = vpack.c.bf16 %v926, %v924
      %v931 = vpack.c.bf16 %v927, %v925
      %v936 = vunpack.c.l.b16 %v928
      %v937 = vunpack.c.l.b16 %v929
      %v938 = vunpack.c.h.b16 %v928
      %v939 = vunpack.c.h.b16 %v929
      %v940 = vunpack.c.l.b16 %v930
      %v941 = vunpack.c.l.b16 %v931
      %v942 = vunpack.c.h.b16 %v930
      %v943 = vunpack.c.h.b16 %v931
      %v944 = vpack.c.b16 %v937, %v936
      %v945 = vpack.c.b16 %v939, %v938
      %v946 = vpack.c.b16 %v941, %v940
      %v947 = vpack.c.b16 %v943, %v942
      %948 = vrot.lane.b32.xlu0 %v944, 67
      %v949 = vpop.permute.xlu0 %948
      %950 = vrot.lane.b32.xlu0 %v945, 67
      %v951 = vpop.permute.xlu0 %950
      %952 = vrot.lane.b32.xlu0 %v946, 67
      %v953 = vpop.permute.xlu0 %952
      %954 = vrot.lane.b32.xlu0 %v947, 67
      %v955 = vpop.permute.xlu0 %954
      %v956 = vrot.slane %v949, 4
      %v957 = vrot.slane %v951, 4
      %v958 = vrot.slane %v953, 4
      %v959 = vrot.slane %v955, 4
      %vm960 = vcmask 547840
      %v961 = vsel %vm960, %v949, %v956
      %v962 = vsel %vm960, %v951, %v957
      %v963 = vsel %vm960, %v953, %v958
      %v964 = vsel %vm960, %v955, %v959
      %969 = vst.msk [vmem:[#allocation3 + $0x230] sm:$0xff] %vm564, %v961
      %970 = vst.msk [vmem:[#allocation3 + $0x244] sm:$0xff] %vm564, %v962
      %971 = vst.msk [vmem:[#allocation3 + $0x258] sm:$0xff] %vm564, %v963
      %972 = vst.msk [vmem:[#allocation3 + $0x26c] sm:$0xff] %vm564, %v964
      %v973 = vld [vmem:[#allocation2] sm:$0xff]
      %v974 = vld [vmem:[#allocation2 + $0x8] sm:$0xff]
      %v975 = vld [vmem:[#allocation2 + $0x30] sm:$0xff]
      %v976 = vld [vmem:[#allocation2 + $0x38] sm:$0xff]
      %v977 = vld [vmem:[#allocation2 + $0x60] sm:$0xff]
      %v978 = vld [vmem:[#allocation2 + $0x68] sm:$0xff]
      %v979 = vld [vmem:[#allocation2 + $0x90] sm:$0xff]
      %v980 = vld [vmem:[#allocation2 + $0x98] sm:$0xff]
      %v981 = vpack.c.bf16 %v975, %v973
      %v982 = vpack.c.bf16 %v976, %v974
      %v983 = vpack.c.bf16 %v979, %v977
      %v984 = vpack.c.bf16 %v980, %v978
      %v989 = vunpack.c.l.b16 %v981
      %v990 = vunpack.c.l.b16 %v982
      %v991 = vunpack.c.h.b16 %v981
      %v992 = vunpack.c.h.b16 %v982
      %v993 = vunpack.c.l.b16 %v983
      %v994 = vunpack.c.l.b16 %v984
      %v995 = vunpack.c.h.b16 %v983
      %v996 = vunpack.c.h.b16 %v984
      %v997 = vpack.c.b16 %v990, %v989
      %v998 = vpack.c.b16 %v992, %v991
      %v999 = vpack.c.b16 %v994, %v993
      %v1000 = vpack.c.b16 %v996, %v995
      %1001 = vrot.lane.b32.xlu0 %v997, 114
      %v1002 = vpop.permute.xlu0 %1001
      %1003 = vrot.lane.b32.xlu0 %v998, 114
      %v1004 = vpop.permute.xlu0 %1003
      %1005 = vrot.lane.b32.xlu0 %v999, 114
      %v1006 = vpop.permute.xlu0 %1005
      %1007 = vrot.lane.b32.xlu0 %v1000, 114
      %v1008 = vpop.permute.xlu0 %1007
      %v1009 = vrot.slane %v1002, 4
      %v1010 = vrot.slane %v1004, 4
      %v1011 = vrot.slane %v1006, 4
      %v1012 = vrot.slane %v1008, 4
      %vm1013 = vcmask 932864
      %v1014 = vsel %vm1013, %v1002, %v1009
      %v1015 = vsel %vm1013, %v1004, %v1010
      %v1016 = vsel %vm1013, %v1006, %v1011
      %v1017 = vsel %vm1013, %v1008, %v1012
      %1022 = vst.msk [vmem:[#allocation3 + $0x280] sm:$0xff] %vm564, %v1014
      %1023 = vst.msk [vmem:[#allocation3 + $0x294] sm:$0xff] %vm564, %v1015
      %1024 = vst.msk [vmem:[#allocation3 + $0x2a8] sm:$0xff] %vm564, %v1016
      %1025 = vst.msk [vmem:[#allocation3 + $0x2bc] sm:$0xff] %vm564, %v1017
      %v1026 = vld [vmem:[#allocation2 + $0x8] sm:$0xff]
      %v1027 = vld [vmem:[#allocation2 + $0x10] sm:$0xff]
      %v1028 = vld [vmem:[#allocation2 + $0x38] sm:$0xff]
      %v1029 = vld [vmem:[#allocation2 + $0x40] sm:$0xff]
      %v1030 = vld [vmem:[#allocation2 + $0x68] sm:$0xff]
      %v1031 = vld [vmem:[#allocation2 + $0x70] sm:$0xff]
      %v1032 = vld [vmem:[#allocation2 + $0x98] sm:$0xff]
      %v1033 = vld [vmem:[#allocation2 + $0xa0] sm:$0xff]
      %v1034 = vpack.c.bf16 %v1028, %v1026
      %v1035 = vpack.c.bf16 %v1029, %v1027
      %v1036 = vpack.c.bf16 %v1032, %v1030
      %v1037 = vpack.c.bf16 %v1033, %v1031
      %v1042 = vunpack.c.l.b16 %v1034
      %v1043 = vunpack.c.l.b16 %v1035
      %v1044 = vunpack.c.h.b16 %v1034
      %v1045 = vunpack.c.h.b16 %v1035
      %v1046 = vunpack.c.l.b16 %v1036
      %v1047 = vunpack.c.l.b16 %v1037
      %v1048 = vunpack.c.h.b16 %v1036
      %v1049 = vunpack.c.h.b16 %v1037
      %v1050 = vpack.c.b16 %v1043, %v1042
      %v1051 = vpack.c.b16 %v1045, %v1044
      %v1052 = vpack.c.b16 %v1047, %v1046
      %v1053 = vpack.c.b16 %v1049, %v1048
      %1054 = vrot.lane.b32.xlu0 %v1050, 112
      %v1055 = vpop.permute.xlu0 %1054
      %1056 = vrot.lane.b32.xlu0 %v1051, 112
      %v1057 = vpop.permute.xlu0 %1056
      %1058 = vrot.lane.b32.xlu0 %v1052, 112
      %v1059 = vpop.permute.xlu0 %1058
      %1060 = vrot.lane.b32.xlu0 %v1053, 112
      %v1061 = vpop.permute.xlu0 %1060
      %v1062 = vrot.slane %v1055, 4
      %v1063 = vrot.slane %v1057, 4
      %v1064 = vrot.slane %v1059, 4
      %v1065 = vrot.slane %v1061, 4
      %v1066 = vsel %vm768, %v1055, %v1062
      %v1067 = vsel %vm768, %v1057, %v1063
      %v1068 = vsel %vm768, %v1059, %v1064
      %v1069 = vsel %vm768, %v1061, %v1065
      %vm1074 = vcmask 1043712
      %vm1075 = vcmask 523268
      %vm1076 = vmor %vm1075, %vm1074
      %1077 = vst.msk [vmem:[#allocation3 + $0x4] sm:$0xff] %vm1076, %v1066
      %1078 = vst.msk [vmem:[#allocation3 + $0x18] sm:$0xff] %vm1076, %v1067
      %1079 = vst.msk [vmem:[#allocation3 + $0x2c] sm:$0xff] %vm1076, %v1068
      %1080 = vst.msk [vmem:[#allocation3 + $0x40] sm:$0xff] %vm1076, %v1069
      %v1081 = vld [vmem:[#allocation2] sm:$0xff]
      %v1082 = vld [vmem:[#allocation2 + $0x8] sm:$0xff]
      %v1083 = vld [vmem:[#allocation2 + $0x30] sm:$0xff]
      %v1084 = vld [vmem:[#allocation2 + $0x38] sm:$0xff]
      %v1085 = vld [vmem:[#allocation2 + $0x60] sm:$0xff]
      %v1086 = vld [vmem:[#allocation2 + $0x68] sm:$0xff]
      %v1087 = vld [vmem:[#allocation2 + $0x90] sm:$0xff]
      %v1088 = vld [vmem:[#allocation2 + $0x98] sm:$0xff]
      %v1089 = vpack.c.bf16 %v1083, %v1081
      %v1090 = vpack.c.bf16 %v1084, %v1082
      %v1091 = vpack.c.bf16 %v1087, %v1085
      %v1092 = vpack.c.bf16 %v1088, %v1086
      %v1097 = vunpack.c.l.b16 %v1089
      %v1098 = vunpack.c.l.b16 %v1090
      %v1099 = vunpack.c.h.b16 %v1089
      %v1100 = vunpack.c.h.b16 %v1090
      %v1101 = vunpack.c.l.b16 %v1091
      %v1102 = vunpack.c.l.b16 %v1092
      %v1103 = vunpack.c.h.b16 %v1091
      %v1104 = vunpack.c.h.b16 %v1092
      %v1105 = vpack.c.b16 %v1098, %v1097
      %v1106 = vpack.c.b16 %v1100, %v1099
      %v1107 = vpack.c.b16 %v1102, %v1101
      %v1108 = vpack.c.b16 %v1104, %v1103
      %1109 = vrot.lane.b32.xlu0 %v1105, 31
      %v1110 = vpop.permute.xlu0 %1109
      %1111 = vrot.lane.b32.xlu0 %v1106, 31
      %v1112 = vpop.permute.xlu0 %1111
      %1113 = vrot.lane.b32.xlu0 %v1107, 31
      %v1114 = vpop.permute.xlu0 %1113
      %1115 = vrot.lane.b32.xlu0 %v1108, 31
      %v1116 = vpop.permute.xlu0 %1115
      %v1117 = vrot.slane %v1110, 4
      %v1118 = vrot.slane %v1112, 4
      %v1119 = vrot.slane %v1114, 4
      %v1120 = vrot.slane %v1116, 4
      %v1121 = vsel %vm851, %v1117, %v1110
      %v1122 = vsel %vm851, %v1118, %v1112
      %v1123 = vsel %vm851, %v1119, %v1114
      %v1124 = vsel %vm851, %v1120, %v1116
      %1129 = vst.msk [vmem:[#allocation3 + $0x54] sm:$0xff] %vm1076, %v1121
      %1130 = vst.msk [vmem:[#allocation3 + $0x68] sm:$0xff] %vm1076, %v1122
      %1131 = vst.msk [vmem:[#allocation3 + $0x7c] sm:$0xff] %vm1076, %v1123
      %1132 = vst.msk [vmem:[#allocation3 + $0x90] sm:$0xff] %vm1076, %v1124
      %v1133 = vld [vmem:[#allocation2 + $0x8] sm:$0xff]
      %v1134 = vld [vmem:[#allocation2 + $0x10] sm:$0xff]
      %v1135 = vld [vmem:[#allocation2 + $0x38] sm:$0xff]
      %v1136 = vld [vmem:[#allocation2 + $0x40] sm:$0xff]
      %v1137 = vld [vmem:[#allocation2 + $0x68] sm:$0xff]
      %v1138 = vld [vmem:[#allocation2 + $0x70] sm:$0xff]
      %v1139 = vld [vmem:[#allocation2 + $0x98] sm:$0xff]
      %v1140 = vld [vmem:[#allocation2 + $0xa0] sm:$0xff]
      %v1141 = vpack.c.bf16 %v1135, %v1133
      %v1142 = vpack.c.bf16 %v1136, %v1134
      %v1143 = vpack.c.bf16 %v1139, %v1137
      %v1144 = vpack.c.bf16 %v1140, %v1138
      %v1149 = vunpack.c.l.b16 %v1141
      %v1150 = vunpack.c.l.b16 %v1142
      %v1151 = vunpack.c.h.b16 %v1141
      %v1152 = vunpack.c.h.b16 %v1142
      %v1153 = vunpack.c.l.b16 %v1143
      %v1154 = vunpack.c.l.b16 %v1144
      %v1155 = vunpack.c.h.b16 %v1143
      %v1156 = vunpack.c.h.b16 %v1144
      %v1157 = vpack.c.b16 %v1150, %v1149
      %v1158 = vpack.c.b16 %v1152, %v1151
      %v1159 = vpack.c.b16 %v1154, %v1153
      %v1160 = vpack.c.b16 %v1156, %v1155
      %1161 = vrot.lane.b32.xlu0 %v1157, 111
      %v1162 = vpop.permute.xlu0 %1161
      %1163 = vrot.lane.b32.xlu0 %v1158, 111
      %v1164 = vpop.permute.xlu0 %1163
      %1165 = vrot.lane.b32.xlu0 %v1159, 111
      %v1166 = vpop.permute.xlu0 %1165
      %1167 = vrot.lane.b32.xlu0 %v1160, 111
      %v1168 = vpop.permute.xlu0 %1167
      %v1169 = vrot.slane %v1162, 4
      %v1170 = vrot.slane %v1164, 4
      %v1171 = vrot.slane %v1166, 4
      %v1172 = vrot.slane %v1168, 4
      %vm1173 = vcmask 908288
      %v1174 = vsel %vm1173, %v1162, %v1169
      %v1175 = vsel %vm1173, %v1164, %v1170
      %v1176 = vsel %vm1173, %v1166, %v1171
      %v1177 = vsel %vm1173, %v1168, %v1172
      %1182 = vst.msk [vmem:[#allocation3 + $0xa4] sm:$0xff] %vm1076, %v1174
      %1183 = vst.msk [vmem:[#allocation3 + $0xb8] sm:$0xff] %vm1076, %v1175
      %1184 = vst.msk [vmem:[#allocation3 + $0xcc] sm:$0xff] %vm1076, %v1176
      %1185 = vst.msk [vmem:[#allocation3 + $0xe0] sm:$0xff] %vm1076, %v1177
      %v1186 = vld [vmem:[#allocation2 + $0x20] sm:$0xff]
      %v1187 = vld [vmem:[#allocation2 + $0x28] sm:$0xff]
      %v1188 = vld [vmem:[#allocation2 + $0x50] sm:$0xff]
      %v1189 = vld [vmem:[#allocation2 + $0x58] sm:$0xff]
      %v1190 = vld [vmem:[#allocation2 + $0x80] sm:$0xff]
      %v1191 = vld [vmem:[#allocation2 + $0x88] sm:$0xff]
      %v1192 = vld [vmem:[#allocation2 + $0xb0] sm:$0xff]
      %v1193 = vld [vmem:[#allocation2 + $0xb8] sm:$0xff]
      %v1194 = vpack.c.bf16 %v1188, %v1186
      %v1195 = vpack.c.bf16 %v1189, %v1187
      %v1196 = vpack.c.bf16 %v1192, %v1190
      %v1197 = vpack.c.bf16 %v1193, %v1191
      %v1202 = vunpack.c.l.b16 %v1194
      %v1203 = vunpack.c.l.b16 %v1195
      %v1204 = vunpack.c.h.b16 %v1194
      %v1205 = vunpack.c.h.b16 %v1195
      %v1206 = vunpack.c.l.b16 %v1196
      %v1207 = vunpack.c.l.b16 %v1197
      %v1208 = vunpack.c.h.b16 %v1196
      %v1209 = vunpack.c.h.b16 %v1197
      %v1210 = vpack.c.b16 %v1203, %v1202
      %v1211 = vpack.c.b16 %v1205, %v1204
      %v1212 = vpack.c.b16 %v1207, %v1206
      %v1213 = vpack.c.b16 %v1209, %v1208
      %1214 = vrot.lane.b32.xlu0 %v1210, 16
      %v1215 = vpop.permute.xlu0 %1214
      %1216 = vrot.lane.b32.xlu0 %v1211, 16
      %v1217 = vpop.permute.xlu0 %1216
      %1218 = vrot.lane.b32.xlu0 %v1212, 16
      %v1219 = vpop.permute.xlu0 %1218
      %1220 = vrot.lane.b32.xlu0 %v1213, 16
      %v1221 = vpop.permute.xlu0 %1220
      %v1222 = vrot.slane %v1215, 4
      %v1223 = vrot.slane %v1217, 4
      %v1224 = vrot.slane %v1219, 4
      %v1225 = vrot.slane %v1221, 4
      %vm1226 = vcmask 130048
      %v1227 = vsel %vm1226, %v1222, %v1215
      %v1228 = vsel %vm1226, %v1223, %v1217
      %v1229 = vsel %vm1226, %v1224, %v1219
      %v1230 = vsel %vm1226, %v1225, %v1221
      %1235 = vst.msk [vmem:[#allocation3 + $0xf4] sm:$0xff] %vm1076, %v1227
      %1236 = vst.msk [vmem:[#allocation3 + $0x108] sm:$0xff] %vm1076, %v1228
      %1237 = vst.msk [vmem:[#allocation3 + $0x11c] sm:$0xff] %vm1076, %v1229
      %1238 = vst.msk [vmem:[#allocation3 + $0x130] sm:$0xff] %vm1076, %v1230
      %v1239 = vld [vmem:[#allocation2 + $0x10] sm:$0xff]
      %v1240 = vld [vmem:[#allocation2 + $0x18] sm:$0xff]
      %v1241 = vld [vmem:[#allocation2 + $0x20] sm:$0xff]
      %v1242 = vld [vmem:[#allocation2 + $0x40] sm:$0xff]
      %v1243 = vld [vmem:[#allocation2 + $0x48] sm:$0xff]
      %v1244 = vld [vmem:[#allocation2 + $0x50] sm:$0xff]
      %v1245 = vld [vmem:[#allocation2 + $0x70] sm:$0xff]
      %v1246 = vld [vmem:[#allocation2 + $0x78] sm:$0xff]
      %v1247 = vld [vmem:[#allocation2 + $0x80] sm:$0xff]
      %v1248 = vld [vmem:[#allocation2 + $0xa0] sm:$0xff]
      %v1249 = vld [vmem:[#allocation2 + $0xa8] sm:$0xff]
      %v1250 = vld [vmem:[#allocation2 + $0xb0] sm:$0xff]
      %v1251 = vpack.c.bf16 %v1242, %v1239
      %v1252 = vpack.c.bf16 %v1243, %v1240
      %v1253 = vpack.c.bf16 %v1244, %v1241
      %v1254 = vpack.c.bf16 %v1248, %v1245
      %v1255 = vpack.c.bf16 %v1249, %v1246
      %v1256 = vpack.c.bf16 %v1250, %v1247
      %v1263 = vunpack.c.l.b16 %v1251
      %v1264 = vunpack.c.l.b16 %v1252
      %v1265 = vunpack.c.l.b16 %v1253
      %v1266 = vunpack.c.h.b16 %v1251
      %v1267 = vunpack.c.h.b16 %v1252
      %v1268 = vunpack.c.h.b16 %v1253
      %v1269 = vunpack.c.l.b16 %v1254
      %v1270 = vunpack.c.l.b16 %v1255
      %v1271 = vunpack.c.l.b16 %v1256
      %v1272 = vunpack.c.h.b16 %v1254
      %v1273 = vunpack.c.h.b16 %v1255
      %v1274 = vunpack.c.h.b16 %v1256
      %v1275 = vpack.c.b16 %v1264, %v1263
      %v1276 = vpack.c.b16 %v1265, %v1265
      %v1277 = vpack.c.b16 %v1267, %v1266
      %v1278 = vpack.c.b16 %v1268, %v1268
      %v1279 = vpack.c.b16 %v1270, %v1269
      %v1280 = vpack.c.b16 %v1271, %v1271
      %v1281 = vpack.c.b16 %v1273, %v1272
      %v1282 = vpack.c.b16 %v1274, %v1274
      %1283 = vrot.lane.b32.xlu0 %v1275, 63
      %v1284 = vpop.permute.xlu0 %1283
      %1285 = vrot.lane.b32.xlu0 %v1276, 63
      %v1286 = vpop.permute.xlu0 %1285
      %1287 = vrot.lane.b32.xlu0 %v1277, 63
      %v1288 = vpop.permute.xlu0 %1287
      %1289 = vrot.lane.b32.xlu0 %v1278, 63
      %v1290 = vpop.permute.xlu0 %1289
      %1291 = vrot.lane.b32.xlu0 %v1279, 63
      %v1292 = vpop.permute.xlu0 %1291
      %1293 = vrot.lane.b32.xlu0 %v1280, 63
      %v1294 = vpop.permute.xlu0 %1293
      %1295 = vrot.lane.b32.xlu0 %v1281, 63
      %v1296 = vpop.permute.xlu0 %1295
      %1297 = vrot.lane.b32.xlu0 %v1282, 63
      %v1298 = vpop.permute.xlu0 %1297
      %v1299 = vrot.slane %v1284, 4
      %v1300 = vrot.slane %v1286, 4
      %v1301 = vrot.slane %v1288, 4
      %v1302 = vrot.slane %v1290, 4
      %v1303 = vrot.slane %v1292, 4
      %v1304 = vrot.slane %v1294, 4
      %v1305 = vrot.slane %v1296, 4
      %v1306 = vrot.slane %v1298, 4
      %v1307 = vsel %vm849, %v1299, %v1300
      %vm1308 = vcmask 515072
      %v1309 = vsel %vm1308, %v1284, %v1307
      %v1310 = vsel %vm849, %v1301, %v1302
      %v1311 = vsel %vm1308, %v1288, %v1310
      %v1312 = vsel %vm849, %v1303, %v1304
      %v1313 = vsel %vm1308, %v1292, %v1312
      %v1314 = vsel %vm849, %v1305, %v1306
      %v1315 = vsel %vm1308, %v1296, %v1314
      %1320 = vst.msk [vmem:[#allocation3 + $0x144] sm:$0xff] %vm1076, %v1309
      %1321 = vst.msk [vmem:[#allocation3 + $0x158] sm:$0xff] %vm1076, %v1311
      %1322 = vst.msk [vmem:[#allocation3 + $0x16c] sm:$0xff] %vm1076, %v1313
      %1323 = vst.msk [vmem:[#allocation3 + $0x180] sm:$0xff] %vm1076, %v1315
      %v1324 = vld [vmem:[#allocation2 + $0x20] sm:$0xff]
      %v1325 = vld [vmem:[#allocation2 + $0x28] sm:$0xff]
      %v1326 = vld [vmem:[#allocation2 + $0x50] sm:$0xff]
      %v1327 = vld [vmem:[#allocation2 + $0x58] sm:$0xff]
      %v1328 = vld [vmem:[#allocation2 + $0x80] sm:$0xff]
      %v1329 = vld [vmem:[#allocation2 + $0x88] sm:$0xff]
      %v1330 = vld [vmem:[#allocation2 + $0xb0] sm:$0xff]
      %v1331 = vld [vmem:[#allocation2 + $0xb8] sm:$0xff]
      %v1332 = vpack.c.bf16 %v1326, %v1324
      %v1333 = vpack.c.bf16 %v1327, %v1325
      %v1334 = vpack.c.bf16 %v1330, %v1328
      %v1335 = vpack.c.bf16 %v1331, %v1329
      %v1340 = vunpack.c.l.b16 %v1332
      %v1341 = vunpack.c.l.b16 %v1333
      %v1342 = vunpack.c.h.b16 %v1332
      %v1343 = vunpack.c.h.b16 %v1333
      %v1344 = vunpack.c.l.b16 %v1334
      %v1345 = vunpack.c.l.b16 %v1335
      %v1346 = vunpack.c.h.b16 %v1334
      %v1347 = vunpack.c.h.b16 %v1335
      %v1348 = vpack.c.b16 %v1341, %v1340
      %v1349 = vpack.c.b16 %v1343, %v1342
      %v1350 = vpack.c.b16 %v1345, %v1344
      %v1351 = vpack.c.b16 %v1347, %v1346
      %1352 = vrot.lane.b32.xlu0 %v1348, 15
      %v1353 = vpop.permute.xlu0 %1352
      %1354 = vrot.lane.b32.xlu0 %v1349, 15
      %v1355 = vpop.permute.xlu0 %1354
      %1356 = vrot.lane.b32.xlu0 %v1350, 15
      %v1357 = vpop.permute.xlu0 %1356
      %1358 = vrot.lane.b32.xlu0 %v1351, 15
      %v1359 = vpop.permute.xlu0 %1358
      %v1360 = vrot.slane %v1353, 4
      %v1361 = vrot.slane %v1355, 4
      %v1362 = vrot.slane %v1357, 4
      %v1363 = vrot.slane %v1359, 4
      %vm1364 = vcmask 121856
      %v1365 = vsel %vm1364, %v1360, %v1353
      %v1366 = vsel %vm1364, %v1361, %v1355
      %v1367 = vsel %vm1364, %v1362, %v1357
      %v1368 = vsel %vm1364, %v1363, %v1359
      %1373 = vst.msk [vmem:[#allocation3 + $0x194] sm:$0xff] %vm1076, %v1365
      %1374 = vst.msk [vmem:[#allocation3 + $0x1a8] sm:$0xff] %vm1076, %v1366
      %1375 = vst.msk [vmem:[#allocation3 + $0x1bc] sm:$0xff] %vm1076, %v1367
      %1376 = vst.msk [vmem:[#allocation3 + $0x1d0] sm:$0xff] %vm1076, %v1368
      %v1377 = vld [vmem:[#allocation2 + $0x8] sm:$0xff]
      %v1378 = vld [vmem:[#allocation2 + $0x10] sm:$0xff]
      %v1379 = vld [vmem:[#allocation2 + $0x38] sm:$0xff]
      %v1380 = vld [vmem:[#allocation2 + $0x40] sm:$0xff]
      %v1381 = vld [vmem:[#allocation2 + $0x68] sm:$0xff]
      %v1382 = vld [vmem:[#allocation2 + $0x70] sm:$0xff]
      %v1383 = vld [vmem:[#allocation2 + $0x98] sm:$0xff]
      %v1384 = vld [vmem:[#allocation2 + $0xa0] sm:$0xff]
      %v1385 = vpack.c.bf16 %v1379, %v1377
      %v1386 = vpack.c.bf16 %v1380, %v1378
      %v1387 = vpack.c.bf16 %v1383, %v1381
      %v1388 = vpack.c.bf16 %v1384, %v1382
      %v1393 = vunpack.c.l.b16 %v1385
      %v1394 = vunpack.c.l.b16 %v1386
      %v1395 = vunpack.c.h.b16 %v1385
      %v1396 = vunpack.c.h.b16 %v1386
      %v1397 = vunpack.c.l.b16 %v1387
      %v1398 = vunpack.c.l.b16 %v1388
      %v1399 = vunpack.c.h.b16 %v1387
      %v1400 = vunpack.c.h.b16 %v1388
      %v1401 = vpack.c.b16 %v1394, %v1393
      %v1402 = vpack.c.b16 %v1396, %v1395
      %v1403 = vpack.c.b16 %v1398, %v1397
      %v1404 = vpack.c.b16 %v1400, %v1399
      %1405 = vrot.lane.b32.xlu0 %v1401, 99
      %v1406 = vpop.permute.xlu0 %1405
      %1407 = vrot.lane.b32.xlu0 %v1402, 99
      %v1408 = vpop.permute.xlu0 %1407
      %1409 = vrot.lane.b32.xlu0 %v1403, 99
      %v1410 = vpop.permute.xlu0 %1409
      %1411 = vrot.lane.b32.xlu0 %v1404, 99
      %v1412 = vpop.permute.xlu0 %1411
      %v1413 = vrot.slane %v1406, 4
      %v1414 = vrot.slane %v1408, 4
      %v1415 = vrot.slane %v1410, 4
      %v1416 = vrot.slane %v1412, 4
      %vm1417 = vcmask 809984
      %v1418 = vsel %vm1417, %v1406, %v1413
      %v1419 = vsel %vm1417, %v1408, %v1414
      %v1420 = vsel %vm1417, %v1410, %v1415
      %v1421 = vsel %vm1417, %v1412, %v1416
      %1426 = vst.msk [vmem:[#allocation3 + $0x1e4] sm:$0xff] %vm1076, %v1418
      %1427 = vst.msk [vmem:[#allocation3 + $0x1f8] sm:$0xff] %vm1076, %v1419
      %1428 = vst.msk [vmem:[#allocation3 + $0x20c] sm:$0xff] %vm1076, %v1420
      %1429 = vst.msk [vmem:[#allocation3 + $0x220] sm:$0xff] %vm1076, %v1421
      %v1430 = vld [vmem:[#allocation2] sm:$0xff]
      %v1431 = vld [vmem:[#allocation2 + $0x8] sm:$0xff]
      %v1432 = vld [vmem:[#allocation2 + $0x30] sm:$0xff]
      %v1433 = vld [vmem:[#allocation2 + $0x38] sm:$0xff]
      %v1434 = vld [vmem:[#allocation2 + $0x60] sm:$0xff]
      %v1435 = vld [vmem:[#allocation2 + $0x68] sm:$0xff]
      %v1436 = vld [vmem:[#allocation2 + $0x90] sm:$0xff]
      %v1437 = vld [vmem:[#allocation2 + $0x98] sm:$0xff]
      %v1438 = vpack.c.bf16 %v1432, %v1430
      %v1439 = vpack.c.bf16 %v1433, %v1431
      %v1440 = vpack.c.bf16 %v1436, %v1434
      %v1441 = vpack.c.bf16 %v1437, %v1435
      %v1446 = vunpack.c.l.b16 %v1438
      %v1447 = vunpack.c.l.b16 %v1439
      %v1448 = vunpack.c.h.b16 %v1438
      %v1449 = vunpack.c.h.b16 %v1439
      %v1450 = vunpack.c.l.b16 %v1440
      %v1451 = vunpack.c.l.b16 %v1441
      %v1452 = vunpack.c.h.b16 %v1440
      %v1453 = vunpack.c.h.b16 %v1441
      %v1454 = vpack.c.b16 %v1447, %v1446
      %v1455 = vpack.c.b16 %v1449, %v1448
      %v1456 = vpack.c.b16 %v1451, %v1450
      %v1457 = vpack.c.b16 %v1453, %v1452
      %1458 = vrot.lane.b32.xlu0 %v1454, 18
      %v1459 = vpop.permute.xlu0 %1458
      %1460 = vrot.lane.b32.xlu0 %v1455, 18
      %v1461 = vpop.permute.xlu0 %1460
      %1462 = vrot.lane.b32.xlu0 %v1456, 18
      %v1463 = vpop.permute.xlu0 %1462
      %1464 = vrot.lane.b32.xlu0 %v1457, 18
      %v1465 = vpop.permute.xlu0 %1464
      %v1466 = vrot.slane %v1459, 4
      %v1467 = vrot.slane %v1461, 4
      %v1468 = vrot.slane %v1463, 4
      %v1469 = vrot.slane %v1465, 4
      %vm1470 = vcmask 146432
      %v1471 = vsel %vm1470, %v1466, %v1459
      %v1472 = vsel %vm1470, %v1467, %v1461
      %v1473 = vsel %vm1470, %v1468, %v1463
      %v1474 = vsel %vm1470, %v1469, %v1465
      %1479 = vst.msk [vmem:[#allocation3 + $0x234] sm:$0xff] %vm1076, %v1471
      %1480 = vst.msk [vmem:[#allocation3 + $0x248] sm:$0xff] %vm1076, %v1472
      %1481 = vst.msk [vmem:[#allocation3 + $0x25c] sm:$0xff] %vm1076, %v1473
      %1482 = vst.msk [vmem:[#allocation3 + $0x270] sm:$0xff] %vm1076, %v1474
      %v1483 = vld [vmem:[#allocation2 + $0x8] sm:$0xff]
      %v1484 = vld [vmem:[#allocation2 + $0x10] sm:$0xff]
      %v1485 = vld [vmem:[#allocation2 + $0x38] sm:$0xff]
      %v1486 = vld [vmem:[#allocation2 + $0x40] sm:$0xff]
      %v1487 = vld [vmem:[#allocation2 + $0x68] sm:$0xff]
      %v1488 = vld [vmem:[#allocation2 + $0x70] sm:$0xff]
      %v1489 = vld [vmem:[#allocation2 + $0x98] sm:$0xff]
      %v1490 = vld [vmem:[#allocation2 + $0xa0] sm:$0xff]
      %v1491 = vpack.c.bf16 %v1485, %v1483
      %v1492 = vpack.c.bf16 %v1486, %v1484
      %v1493 = vpack.c.bf16 %v1489, %v1487
      %v1494 = vpack.c.bf16 %v1490, %v1488
      %v1499 = vunpack.c.l.b16 %v1491
      %v1500 = vunpack.c.l.b16 %v1492
      %v1501 = vunpack.c.h.b16 %v1491
      %v1502 = vunpack.c.h.b16 %v1492
      %v1503 = vunpack.c.l.b16 %v1493
      %v1504 = vunpack.c.l.b16 %v1494
      %v1505 = vunpack.c.h.b16 %v1493
      %v1506 = vunpack.c.h.b16 %v1494
      %v1507 = vpack.c.b16 %v1500, %v1499
      %v1508 = vpack.c.b16 %v1502, %v1501
      %v1509 = vpack.c.b16 %v1504, %v1503
      %v1510 = vpack.c.b16 %v1506, %v1505
      %1511 = vrot.lane.b32.xlu0 %v1507, 98
      %v1512 = vpop.permute.xlu0 %1511
      %1513 = vrot.lane.b32.xlu0 %v1508, 98
      %v1514 = vpop.permute.xlu0 %1513
      %1515 = vrot.lane.b32.xlu0 %v1509, 98
      %v1516 = vpop.permute.xlu0 %1515
      %1517 = vrot.lane.b32.xlu0 %v1510, 98
      %v1518 = vpop.permute.xlu0 %1517
      %v1519 = vrot.slane %v1512, 4
      %v1520 = vrot.slane %v1514, 4
      %v1521 = vrot.slane %v1516, 4
      %v1522 = vrot.slane %v1518, 4
      %vm1523 = vcmask 801792
      %v1524 = vsel %vm1523, %v1512, %v1519
      %v1525 = vsel %vm1523, %v1514, %v1520
      %v1526 = vsel %vm1523, %v1516, %v1521
      %v1527 = vsel %vm1523, %v1518, %v1522
      %1532 = vst.msk [vmem:[#allocation3 + $0x284] sm:$0xff] %vm1076, %v1524
      %1533 = vst.msk [vmem:[#allocation3 + $0x298] sm:$0xff] %vm1076, %v1525
      %1534 = vst.msk [vmem:[#allocation3 + $0x2ac] sm:$0xff] %vm1076, %v1526
      %1535 = vst.msk [vmem:[#allocation3 + $0x2c0] sm:$0xff] %vm1076, %v1527
      %v1536 = vld [vmem:[#allocation2 + $0x10] sm:$0xff]
      %v1537 = vld [vmem:[#allocation2 + $0x18] sm:$0xff]
      %v1538 = vld [vmem:[#allocation2 + $0x40] sm:$0xff]
      %v1539 = vld [vmem:[#allocation2 + $0x48] sm:$0xff]
      %v1540 = vld [vmem:[#allocation2 + $0x70] sm:$0xff]
      %v1541 = vld [vmem:[#allocation2 + $0x78] sm:$0xff]
      %v1542 = vld [vmem:[#allocation2 + $0xa0] sm:$0xff]
      %v1543 = vld [vmem:[#allocation2 + $0xa8] sm:$0xff]
      %v1544 = vpack.c.bf16 %v1538, %v1536
      %v1545 = vpack.c.bf16 %v1539, %v1537
      %v1546 = vpack.c.bf16 %v1542, %v1540
      %v1547 = vpack.c.bf16 %v1543, %v1541
      %v1552 = vunpack.c.l.b16 %v1544
      %v1553 = vunpack.c.l.b16 %v1545
      %v1554 = vunpack.c.h.b16 %v1544
      %v1555 = vunpack.c.h.b16 %v1545
      %v1556 = vunpack.c.l.b16 %v1546
      %v1557 = vunpack.c.l.b16 %v1547
      %v1558 = vunpack.c.h.b16 %v1546
      %v1559 = vunpack.c.h.b16 %v1547
      %v1560 = vpack.c.b16 %v1553, %v1552
      %v1561 = vpack.c.b16 %v1555, %v1554
      %v1562 = vpack.c.b16 %v1557, %v1556
      %v1563 = vpack.c.b16 %v1559, %v1558
      %1564 = vrot.lane.b32.xlu0 %v1560, 96
      %v1565 = vpop.permute.xlu0 %1564
      %1566 = vrot.lane.b32.xlu0 %v1561, 96
      %v1567 = vpop.permute.xlu0 %1566
      %1568 = vrot.lane.b32.xlu0 %v1562, 96
      %v1569 = vpop.permute.xlu0 %1568
      %1570 = vrot.lane.b32.xlu0 %v1563, 96
      %v1571 = vpop.permute.xlu0 %1570
      %v1572 = vrot.slane %v1565, 4
      %v1573 = vrot.slane %v1567, 4
      %v1574 = vrot.slane %v1569, 4
      %v1575 = vrot.slane %v1571, 4
      %vm1576 = vcmask 785408
      %v1577 = vsel %vm1576, %v1565, %v1572
      %v1578 = vsel %vm1576, %v1567, %v1573
      %v1579 = vsel %vm1576, %v1569, %v1574
      %v1580 = vsel %vm1576, %v1571, %v1575
      %vm1585 = vcmask 1043968
      %vm1586 = vcmask 785412
      %vm1587 = vmor %vm1586, %vm1585
      %1588 = vst.msk [vmem:[#allocation3 + $0x8] sm:$0xff] %vm1587, %v1577
      %1589 = vst.msk [vmem:[#allocation3 + $0x1c] sm:$0xff] %vm1587, %v1578
      %1590 = vst.msk [vmem:[#allocation3 + $0x30] sm:$0xff] %vm1587, %v1579
      %1591 = vst.msk [vmem:[#allocation3 + $0x44] sm:$0xff] %vm1587, %v1580
      %v1592 = vld [vmem:[#allocation2 + $0x20] sm:$0xff]
      %v1593 = vld [vmem:[#allocation2 + $0x28] sm:$0xff]
      %v1594 = vld [vmem:[#allocation2 + $0x50] sm:$0xff]
      %v1595 = vld [vmem:[#allocation2 + $0x58] sm:$0xff]
      %v1596 = vld [vmem:[#allocation2 + $0x80] sm:$0xff]
      %v1597 = vld [vmem:[#allocation2 + $0x88] sm:$0xff]
      %v1598 = vld [vmem:[#allocation2 + $0xb0] sm:$0xff]
      %v1599 = vld [vmem:[#allocation2 + $0xb8] sm:$0xff]
      %v1600 = vpack.c.bf16 %v1594, %v1592
      %v1601 = vpack.c.bf16 %v1595, %v1593
      %v1602 = vpack.c.bf16 %v1598, %v1596
      %v1603 = vpack.c.bf16 %v1599, %v1597
      %v1608 = vunpack.c.l.b16 %v1600
      %v1609 = vunpack.c.l.b16 %v1601
      %v1610 = vunpack.c.h.b16 %v1600
      %v1611 = vunpack.c.h.b16 %v1601
      %v1612 = vunpack.c.l.b16 %v1602
      %v1613 = vunpack.c.l.b16 %v1603
      %v1614 = vunpack.c.h.b16 %v1602
      %v1615 = vunpack.c.h.b16 %v1603
      %v1616 = vpack.c.b16 %v1609, %v1608
      %v1617 = vpack.c.b16 %v1611, %v1610
      %v1618 = vpack.c.b16 %v1613, %v1612
      %v1619 = vpack.c.b16 %v1615, %v1614
      %1620 = vrot.lane.b32.xlu0 %v1616, 48
      %v1621 = vpop.permute.xlu0 %1620
      %1622 = vrot.lane.b32.xlu0 %v1617, 48
      %v1623 = vpop.permute.xlu0 %1622
      %1624 = vrot.lane.b32.xlu0 %v1618, 48
      %v1625 = vpop.permute.xlu0 %1624
      %1626 = vrot.lane.b32.xlu0 %v1619, 48
      %v1627 = vpop.permute.xlu0 %1626
      %v1628 = vrot.slane %v1621, 4
      %v1629 = vrot.slane %v1623, 4
      %v1630 = vrot.slane %v1625, 4
      %v1631 = vrot.slane %v1627, 4
      %vm1632 = vcmask 392192
      %v1633 = vsel %vm1632, %v1628, %v1621
      %v1634 = vsel %vm1632, %v1629, %v1623
      %v1635 = vsel %vm1632, %v1630, %v1625
      %v1636 = vsel %vm1632, %v1631, %v1627
      %1641 = vst.msk [vmem:[#allocation3 + $0x58] sm:$0xff] %vm1587, %v1633
      %1642 = vst.msk [vmem:[#allocation3 + $0x6c] sm:$0xff] %vm1587, %v1634
      %1643 = vst.msk [vmem:[#allocation3 + $0x80] sm:$0xff] %vm1587, %v1635
      %1644 = vst.msk [vmem:[#allocation3 + $0x94] sm:$0xff] %vm1587, %v1636
      %v1645 = vld [vmem:[#allocation2 + $0x10] sm:$0xff]
      %v1646 = vld [vmem:[#allocation2 + $0x18] sm:$0xff]
      %v1647 = vld [vmem:[#allocation2 + $0x20] sm:$0xff]
      %v1648 = vld [vmem:[#allocation2 + $0x40] sm:$0xff]
      %v1649 = vld [vmem:[#allocation2 + $0x48] sm:$0xff]
      %v1650 = vld [vmem:[#allocation2 + $0x50] sm:$0xff]
      %v1651 = vld [vmem:[#allocation2 + $0x70] sm:$0xff]
      %v1652 = vld [vmem:[#allocation2 + $0x78] sm:$0xff]
      %v1653 = vld [vmem:[#allocation2 + $0x80] sm:$0xff]
      %v1654 = vld [vmem:[#allocation2 + $0xa0] sm:$0xff]
      %v1655 = vld [vmem:[#allocation2 + $0xa8] sm:$0xff]
      %v1656 = vld [vmem:[#allocation2 + $0xb0] sm:$0xff]
      %v1657 = vpack.c.bf16 %v1648, %v1645
      %v1658 = vpack.c.bf16 %v1649, %v1646
      %v1659 = vpack.c.bf16 %v1650, %v1647
      %v1660 = vpack.c.bf16 %v1654, %v1651
      %v1661 = vpack.c.bf16 %v1655, %v1652
      %v1662 = vpack.c.bf16 %v1656, %v1653
      %v1669 = vunpack.c.l.b16 %v1657
      %v1670 = vunpack.c.l.b16 %v1658
      %v1671 = vunpack.c.l.b16 %v1659
      %v1672 = vunpack.c.h.b16 %v1657
      %v1673 = vunpack.c.h.b16 %v1658
      %v1674 = vunpack.c.h.b16 %v1659
      %v1675 = vunpack.c.l.b16 %v1660
      %v1676 = vunpack.c.l.b16 %v1661
      %v1677 = vunpack.c.l.b16 %v1662
      %v1678 = vunpack.c.h.b16 %v1660
      %v1679 = vunpack.c.h.b16 %v1661
      %v1680 = vunpack.c.h.b16 %v1662
      %v1681 = vpack.c.b16 %v1670, %v1669
      %v1682 = vpack.c.b16 %v1671, %v1671
      %v1683 = vpack.c.b16 %v1673, %v1672
      %v1684 = vpack.c.b16 %v1674, %v1674
      %v1685 = vpack.c.b16 %v1676, %v1675
      %v1686 = vpack.c.b16 %v1677, %v1677
      %v1687 = vpack.c.b16 %v1679, %v1678
      %v1688 = vpack.c.b16 %v1680, %v1680
      %1689 = vrot.lane.b32.xlu0 %v1681, 95
      %v1690 = vpop.permute.xlu0 %1689
      %1691 = vrot.lane.b32.xlu0 %v1682, 95
      %v1692 = vpop.permute.xlu0 %1691
      %1693 = vrot.lane.b32.xlu0 %v1683, 95
      %v1694 = vpop.permute.xlu0 %1693
      %1695 = vrot.lane.b32.xlu0 %v1684, 95
      %v1696 = vpop.permute.xlu0 %1695
      %1697 = vrot.lane.b32.xlu0 %v1685, 95
      %v1698 = vpop.permute.xlu0 %1697
      %1699 = vrot.lane.b32.xlu0 %v1686, 95
      %v1700 = vpop.permute.xlu0 %1699
      %1701 = vrot.lane.b32.xlu0 %v1687, 95
      %v1702 = vpop.permute.xlu0 %1701
      %1703 = vrot.lane.b32.xlu0 %v1688, 95
      %v1704 = vpop.permute.xlu0 %1703
      %v1705 = vrot.slane %v1690, 4
      %v1706 = vrot.slane %v1692, 4
      %v1707 = vrot.slane %v1694, 4
      %v1708 = vrot.slane %v1696, 4
      %v1709 = vrot.slane %v1698, 4
      %v1710 = vrot.slane %v1700, 4
      %v1711 = vrot.slane %v1702, 4
      %v1712 = vrot.slane %v1704, 4
      %v1713 = vsel %vm849, %v1705, %v1706
      %vm1714 = vcmask 777216
      %v1715 = vsel %vm1714, %v1690, %v1713
      %v1716 = vsel %vm849, %v1707, %v1708
      %v1717 = vsel %vm1714, %v1694, %v1716
      %v1718 = vsel %vm849, %v1709, %v1710
      %v1719 = vsel %vm1714, %v1698, %v1718
      %v1720 = vsel %vm849, %v1711, %v1712
      %v1721 = vsel %vm1714, %v1702, %v1720
      %1726 = vst.msk [vmem:[#allocation3 + $0xa8] sm:$0xff] %vm1587, %v1715
      %1727 = vst.msk [vmem:[#allocation3 + $0xbc] sm:$0xff] %vm1587, %v1717
      %1728 = vst.msk [vmem:[#allocation3 + $0xd0] sm:$0xff] %vm1587, %v1719
      %1729 = vst.msk [vmem:[#allocation3 + $0xe4] sm:$0xff] %vm1587, %v1721
      %v1730 = vld [vmem:[#allocation2] sm:$0xff]
      %v1731 = vld [vmem:[#allocation2 + $0x8] sm:$0xff]
      %v1732 = vld [vmem:[#allocation2 + $0x30] sm:$0xff]
      %v1733 = vld [vmem:[#allocation2 + $0x38] sm:$0xff]
      %v1734 = vld [vmem:[#allocation2 + $0x60] sm:$0xff]
      %v1735 = vld [vmem:[#allocation2 + $0x68] sm:$0xff]
      %v1736 = vld [vmem:[#allocation2 + $0x90] sm:$0xff]
      %v1737 = vld [vmem:[#allocation2 + $0x98] sm:$0xff]
      %v1738 = vpack.c.bf16 %v1732, %v1730
      %v1739 = vpack.c.bf16 %v1733, %v1731
      %v1740 = vpack.c.bf16 %v1736, %v1734
      %v1741 = vpack.c.bf16 %v1737, %v1735
      %v1746 = vunpack.c.l.b16 %v1738
      %v1747 = vunpack.c.l.b16 %v1739
      %v1748 = vunpack.c.h.b16 %v1738
      %v1749 = vunpack.c.h.b16 %v1739
      %v1750 = vunpack.c.l.b16 %v1740
      %v1751 = vunpack.c.l.b16 %v1741
      %v1752 = vunpack.c.h.b16 %v1740
      %v1753 = vunpack.c.h.b16 %v1741
      %v1754 = vpack.c.b16 %v1747, %v1746
      %v1755 = vpack.c.b16 %v1749, %v1748
      %v1756 = vpack.c.b16 %v1751, %v1750
      %v1757 = vpack.c.b16 %v1753, %v1752
      %1758 = vrot.lane.b32.xlu0 %v1754, 51
      %v1759 = vpop.permute.xlu0 %1758
      %1760 = vrot.lane.b32.xlu0 %v1755, 51
      %v1761 = vpop.permute.xlu0 %1760
      %1762 = vrot.lane.b32.xlu0 %v1756, 51
      %v1763 = vpop.permute.xlu0 %1762
      %1764 = vrot.lane.b32.xlu0 %v1757, 51
      %v1765 = vpop.permute.xlu0 %1764
      %v1766 = vrot.slane %v1759, 4
      %v1767 = vrot.slane %v1761, 4
      %v1768 = vrot.slane %v1763, 4
      %v1769 = vrot.slane %v1765, 4
      %vm1770 = vcmask 416768
      %v1771 = vsel %vm1770, %v1766, %v1759
      %v1772 = vsel %vm1770, %v1767, %v1761
      %v1773 = vsel %vm1770, %v1768, %v1763
      %v1774 = vsel %vm1770, %v1769, %v1765
      %1779 = vst.msk [vmem:[#allocation3 + $0xf8] sm:$0xff] %vm1587, %v1771
      %1780 = vst.msk [vmem:[#allocation3 + $0x10c] sm:$0xff] %vm1587, %v1772
      %1781 = vst.msk [vmem:[#allocation3 + $0x120] sm:$0xff] %vm1587, %v1773
      %1782 = vst.msk [vmem:[#allocation3 + $0x134] sm:$0xff] %vm1587, %v1774
      %v1783 = vld [vmem:[#allocation2 + $0x8] sm:$0xff]
      %v1784 = vld [vmem:[#allocation2 + $0x10] sm:$0xff]
      %v1785 = vld [vmem:[#allocation2 + $0x38] sm:$0xff]
      %v1786 = vld [vmem:[#allocation2 + $0x40] sm:$0xff]
      %v1787 = vld [vmem:[#allocation2 + $0x68] sm:$0xff]
      %v1788 = vld [vmem:[#allocation2 + $0x70] sm:$0xff]
      %v1789 = vld [vmem:[#allocation2 + $0x98] sm:$0xff]
      %v1790 = vld [vmem:[#allocation2 + $0xa0] sm:$0xff]
      %v1791 = vpack.c.bf16 %v1785, %v1783
      %v1792 = vpack.c.bf16 %v1786, %v1784
      %v1793 = vpack.c.bf16 %v1789, %v1787
      %v1794 = vpack.c.bf16 %v1790, %v1788
      %v1799 = vunpack.c.l.b16 %v1791
      %v1800 = vunpack.c.l.b16 %v1792
      %v1801 = vunpack.c.h.b16 %v1791
      %v1802 = vunpack.c.h.b16 %v1792
      %v1803 = vunpack.c.l.b16 %v1793
      %v1804 = vunpack.c.l.b16 %v1794
      %v1805 = vunpack.c.h.b16 %v1793
      %v1806 = vunpack.c.h.b16 %v1794
      %v1807 = vpack.c.b16 %v1800, %v1799
      %v1808 = vpack.c.b16 %v1802, %v1801
      %v1809 = vpack.c.b16 %v1804, %v1803
      %v1810 = vpack.c.b16 %v1806, %v1805
      %1811 = vrot.lane.b32.xlu0 %v1807, 3
      %v1812 = vpop.permute.xlu0 %1811
      %1813 = vrot.lane.b32.xlu0 %v1808, 3
      %v1814 = vpop.permute.xlu0 %1813
      %1815 = vrot.lane.b32.xlu0 %v1809, 3
      %v1816 = vpop.permute.xlu0 %1815
      %1817 = vrot.lane.b32.xlu0 %v1810, 3
      %v1818 = vpop.permute.xlu0 %1817
      %v1819 = vrot.slane %v1812, 4
      %v1820 = vrot.slane %v1814, 4
      %v1821 = vrot.slane %v1816, 4
      %v1822 = vrot.slane %v1818, 4
      %vm1823 = vcmask 23552
      %v1824 = vsel %vm1823, %v1819, %v1812
      %v1825 = vsel %vm1823, %v1820, %v1814
      %v1826 = vsel %vm1823, %v1821, %v1816
      %v1827 = vsel %vm1823, %v1822, %v1818
      %1832 = vst.msk [vmem:[#allocation3 + $0x148] sm:$0xff] %vm1587, %v1824
      %1833 = vst.msk [vmem:[#allocation3 + $0x15c] sm:$0xff] %vm1587, %v1825
      %1834 = vst.msk [vmem:[#allocation3 + $0x170] sm:$0xff] %vm1587, %v1826
      %1835 = vst.msk [vmem:[#allocation3 + $0x184] sm:$0xff] %vm1587, %v1827
      %v1836 = vld [vmem:[#allocation2] sm:$0xff]
      %v1837 = vld [vmem:[#allocation2 + $0x8] sm:$0xff]
      %v1838 = vld [vmem:[#allocation2 + $0x30] sm:$0xff]
      %v1839 = vld [vmem:[#allocation2 + $0x38] sm:$0xff]
      %v1840 = vld [vmem:[#allocation2 + $0x60] sm:$0xff]
      %v1841 = vld [vmem:[#allocation2 + $0x68] sm:$0xff]
      %v1842 = vld [vmem:[#allocation2 + $0x90] sm:$0xff]
      %v1843 = vld [vmem:[#allocation2 + $0x98] sm:$0xff]
      %v1844 = vpack.c.bf16 %v1838, %v1836
      %v1845 = vpack.c.bf16 %v1839, %v1837
      %v1846 = vpack.c.bf16 %v1842, %v1840
      %v1847 = vpack.c.bf16 %v1843, %v1841
      %v1852 = vunpack.c.l.b16 %v1844
      %v1853 = vunpack.c.l.b16 %v1845
      %v1854 = vunpack.c.h.b16 %v1844
      %v1855 = vunpack.c.h.b16 %v1845
      %v1856 = vunpack.c.l.b16 %v1846
      %v1857 = vunpack.c.l.b16 %v1847
      %v1858 = vunpack.c.h.b16 %v1846
      %v1859 = vunpack.c.h.b16 %v1847
      %v1860 = vpack.c.b16 %v1853, %v1852
      %v1861 = vpack.c.b16 %v1855, %v1854
      %v1862 = vpack.c.b16 %v1857, %v1856
      %v1863 = vpack.c.b16 %v1859, %v1858
      %1864 = vrot.lane.b32.xlu0 %v1860, 50
      %v1865 = vpop.permute.xlu0 %1864
      %1866 = vrot.lane.b32.xlu0 %v1861, 50
      %v1867 = vpop.permute.xlu0 %1866
      %1868 = vrot.lane.b32.xlu0 %v1862, 50
      %v1869 = vpop.permute.xlu0 %1868
      %1870 = vrot.lane.b32.xlu0 %v1863, 50
      %v1871 = vpop.permute.xlu0 %1870
      %v1872 = vrot.slane %v1865, 4
      %v1873 = vrot.slane %v1867, 4
      %v1874 = vrot.slane %v1869, 4
      %v1875 = vrot.slane %v1871, 4
      %vm1876 = vcmask 408576
      %v1877 = vsel %vm1876, %v1872, %v1865
      %v1878 = vsel %vm1876, %v1873, %v1867
      %v1879 = vsel %vm1876, %v1874, %v1869
      %v1880 = vsel %vm1876, %v1875, %v1871
      %1885 = vst.msk [vmem:[#allocation3 + $0x198] sm:$0xff] %vm1587, %v1877
      %1886 = vst.msk [vmem:[#allocation3 + $0x1ac] sm:$0xff] %vm1587, %v1878
      %1887 = vst.msk [vmem:[#allocation3 + $0x1c0] sm:$0xff] %vm1587, %v1879
      %1888 = vst.msk [vmem:[#allocation3 + $0x1d4] sm:$0xff] %vm1587, %v1880
      %v1889 = vld [vmem:[#allocation2 + $0x10] sm:$0xff]
      %v1890 = vld [vmem:[#allocation2 + $0x18] sm:$0xff]
      %v1891 = vld [vmem:[#allocation2 + $0x20] sm:$0xff]
      %v1892 = vld [vmem:[#allocation2 + $0x40] sm:$0xff]
      %v1893 = vld [vmem:[#allocation2 + $0x48] sm:$0xff]
      %v1894 = vld [vmem:[#allocation2 + $0x50] sm:$0xff]
      %v1895 = vld [vmem:[#allocation2 + $0x70] sm:$0xff]
      %v1896 = vld [vmem:[#allocation2 + $0x78] sm:$0xff]
      %v1897 = vld [vmem:[#allocation2 + $0x80] sm:$0xff]
      %v1898 = vld [vmem:[#allocation2 + $0xa0] sm:$0xff]
      %v1899 = vld [vmem:[#allocation2 + $0xa8] sm:$0xff]
      %v1900 = vld [vmem:[#allocation2 + $0xb0] sm:$0xff]
      %v1901 = vpack.c.bf16 %v1892, %v1889
      %v1902 = vpack.c.bf16 %v1893, %v1890
      %v1903 = vpack.c.bf16 %v1894, %v1891
      %v1904 = vpack.c.bf16 %v1898, %v1895
      %v1905 = vpack.c.bf16 %v1899, %v1896
      %v1906 = vpack.c.bf16 %v1900, %v1897
      %v1913 = vunpack.c.l.b16 %v1901
      %v1914 = vunpack.c.l.b16 %v1902
      %v1915 = vunpack.c.l.b16 %v1903
      %v1916 = vunpack.c.h.b16 %v1901
      %v1917 = vunpack.c.h.b16 %v1902
      %v1918 = vunpack.c.h.b16 %v1903
      %v1919 = vunpack.c.l.b16 %v1904
      %v1920 = vunpack.c.l.b16 %v1905
      %v1921 = vunpack.c.l.b16 %v1906
      %v1922 = vunpack.c.h.b16 %v1904
      %v1923 = vunpack.c.h.b16 %v1905
      %v1924 = vunpack.c.h.b16 %v1906
      %v1925 = vpack.c.b16 %v1914, %v1913
      %v1926 = vpack.c.b16 %v1915, %v1915
      %v1927 = vpack.c.b16 %v1917, %v1916
      %v1928 = vpack.c.b16 %v1918, %v1918
      %v1929 = vpack.c.b16 %v1920, %v1919
      %v1930 = vpack.c.b16 %v1921, %v1921
      %v1931 = vpack.c.b16 %v1923, %v1922
      %v1932 = vpack.c.b16 %v1924, %v1924
      %1933 = vrot.lane.b32.xlu0 %v1925, 83
      %v1934 = vpop.permute.xlu0 %1933
      %1935 = vrot.lane.b32.xlu0 %v1926, 83
      %v1936 = vpop.permute.xlu0 %1935
      %1937 = vrot.lane.b32.xlu0 %v1927, 83
      %v1938 = vpop.permute.xlu0 %1937
      %1939 = vrot.lane.b32.xlu0 %v1928, 83
      %v1940 = vpop.permute.xlu0 %1939
      %1941 = vrot.lane.b32.xlu0 %v1929, 83
      %v1942 = vpop.permute.xlu0 %1941
      %1943 = vrot.lane.b32.xlu0 %v1930, 83
      %v1944 = vpop.permute.xlu0 %1943
      %1945 = vrot.lane.b32.xlu0 %v1931, 83
      %v1946 = vpop.permute.xlu0 %1945
      %1947 = vrot.lane.b32.xlu0 %v1932, 83
      %v1948 = vpop.permute.xlu0 %1947
      %v1949 = vrot.slane %v1934, 4
      %v1950 = vrot.slane %v1936, 4
      %v1951 = vrot.slane %v1938, 4
      %v1952 = vrot.slane %v1940, 4
      %v1953 = vrot.slane %v1942, 4
      %v1954 = vrot.slane %v1944, 4
      %v1955 = vrot.slane %v1946, 4
      %v1956 = vrot.slane %v1948, 4
      %v1957 = vsel %vm849, %v1949, %v1950
      %vm1958 = vcmask 678912
      %v1959 = vsel %vm1958, %v1934, %v1957
      %v1960 = vsel %vm849, %v1951, %v1952
      %v1961 = vsel %vm1958, %v1938, %v1960
      %v1962 = vsel %vm849, %v1953, %v1954
      %v1963 = vsel %vm1958, %v1942, %v1962
      %v1964 = vsel %vm849, %v1955, %v1956
      %v1965 = vsel %vm1958, %v1946, %v1964
      %1970 = vst.msk [vmem:[#allocation3 + $0x1e8] sm:$0xff] %vm1587, %v1959
      %1971 = vst.msk [vmem:[#allocation3 + $0x1fc] sm:$0xff] %vm1587, %v1961
      %1972 = vst.msk [vmem:[#allocation3 + $0x210] sm:$0xff] %vm1587, %v1963
      %1973 = vst.msk [vmem:[#allocation3 + $0x224] sm:$0xff] %vm1587, %v1965
      %v1974 = vld [vmem:[#allocation2 + $0x20] sm:$0xff]
      %v1975 = vld [vmem:[#allocation2 + $0x28] sm:$0xff]
      %v1976 = vld [vmem:[#allocation2 + $0x50] sm:$0xff]
      %v1977 = vld [vmem:[#allocation2 + $0x58] sm:$0xff]
      %v1978 = vld [vmem:[#allocation2 + $0x80] sm:$0xff]
      %v1979 = vld [vmem:[#allocation2 + $0x88] sm:$0xff]
      %v1980 = vld [vmem:[#allocation2 + $0xb0] sm:$0xff]
      %v1981 = vld [vmem:[#allocation2 + $0xb8] sm:$0xff]
      %v1982 = vpack.c.bf16 %v1976, %v1974
      %v1983 = vpack.c.bf16 %v1977, %v1975
      %v1984 = vpack.c.bf16 %v1980, %v1978
      %v1985 = vpack.c.bf16 %v1981, %v1979
      %v1990 = vunpack.c.l.b16 %v1982
      %v1991 = vunpack.c.l.b16 %v1983
      %v1992 = vunpack.c.h.b16 %v1982
      %v1993 = vunpack.c.h.b16 %v1983
      %v1994 = vunpack.c.l.b16 %v1984
      %v1995 = vunpack.c.l.b16 %v1985
      %v1996 = vunpack.c.h.b16 %v1984
      %v1997 = vunpack.c.h.b16 %v1985
      %v1998 = vpack.c.b16 %v1991, %v1990
      %v1999 = vpack.c.b16 %v1993, %v1992
      %v2000 = vpack.c.b16 %v1995, %v1994
      %v2001 = vpack.c.b16 %v1997, %v1996
      %2002 = vrot.lane.b32.xlu0 %v1998, 35
      %v2003 = vpop.permute.xlu0 %2002
      %2004 = vrot.lane.b32.xlu0 %v1999, 35
      %v2005 = vpop.permute.xlu0 %2004
      %2006 = vrot.lane.b32.xlu0 %v2000, 35
      %v2007 = vpop.permute.xlu0 %2006
      %2008 = vrot.lane.b32.xlu0 %v2001, 35
      %v2009 = vpop.permute.xlu0 %2008
      %v2010 = vrot.slane %v2003, 4
      %v2011 = vrot.slane %v2005, 4
      %v2012 = vrot.slane %v2007, 4
      %v2013 = vrot.slane %v2009, 4
      %vm2014 = vcmask 285696
      %v2015 = vsel %vm2014, %v2010, %v2003
      %v2016 = vsel %vm2014, %v2011, %v2005
      %v2017 = vsel %vm2014, %v2012, %v2007
      %v2018 = vsel %vm2014, %v2013, %v2009
      %2023 = vst.msk [vmem:[#allocation3 + $0x238] sm:$0xff] %vm1587, %v2015
      %2024 = vst.msk [vmem:[#allocation3 + $0x24c] sm:$0xff] %vm1587, %v2016
      %2025 = vst.msk [vmem:[#allocation3 + $0x260] sm:$0xff] %vm1587, %v2017
      %2026 = vst.msk [vmem:[#allocation3 + $0x274] sm:$0xff] %vm1587, %v2018
      %v2027 = vld [vmem:[#allocation2 + $0x10] sm:$0xff]
      %v2028 = vld [vmem:[#allocation2 + $0x18] sm:$0xff]
      %v2029 = vld [vmem:[#allocation2 + $0x20] sm:$0xff]
      %v2030 = vld [vmem:[#allocation2 + $0x40] sm:$0xff]
      %v2031 = vld [vmem:[#allocation2 + $0x48] sm:$0xff]
      %v2032 = vld [vmem:[#allocation2 + $0x50] sm:$0xff]
      %v2033 = vld [vmem:[#allocation2 + $0x70] sm:$0xff]
      %v2034 = vld [vmem:[#allocation2 + $0x78] sm:$0xff]
      %v2035 = vld [vmem:[#allocation2 + $0x80] sm:$0xff]
      %v2036 = vld [vmem:[#allocation2 + $0xa0] sm:$0xff]
      %v2037 = vld [vmem:[#allocation2 + $0xa8] sm:$0xff]
      %v2038 = vld [vmem:[#allocation2 + $0xb0] sm:$0xff]
      %v2039 = vpack.c.bf16 %v2030, %v2027
      %v2040 = vpack.c.bf16 %v2031, %v2028
      %v2041 = vpack.c.bf16 %v2032, %v2029
      %v2042 = vpack.c.bf16 %v2036, %v2033
      %v2043 = vpack.c.bf16 %v2037, %v2034
      %v2044 = vpack.c.bf16 %v2038, %v2035
      %v2051 = vunpack.c.l.b16 %v2039
      %v2052 = vunpack.c.l.b16 %v2040
      %v2053 = vunpack.c.l.b16 %v2041
      %v2054 = vunpack.c.h.b16 %v2039
      %v2055 = vunpack.c.h.b16 %v2040
      %v2056 = vunpack.c.h.b16 %v2041
      %v2057 = vunpack.c.l.b16 %v2042
      %v2058 = vunpack.c.l.b16 %v2043
      %v2059 = vunpack.c.l.b16 %v2044
      %v2060 = vunpack.c.h.b16 %v2042
      %v2061 = vunpack.c.h.b16 %v2043
      %v2062 = vunpack.c.h.b16 %v2044
      %v2063 = vpack.c.b16 %v2052, %v2051
      %v2064 = vpack.c.b16 %v2053, %v2053
      %v2065 = vpack.c.b16 %v2055, %v2054
      %v2066 = vpack.c.b16 %v2056, %v2056
      %v2067 = vpack.c.b16 %v2058, %v2057
      %v2068 = vpack.c.b16 %v2059, %v2059
      %v2069 = vpack.c.b16 %v2061, %v2060
      %v2070 = vpack.c.b16 %v2062, %v2062
      %2071 = vrot.lane.b32.xlu0 %v2063, 82
      %v2072 = vpop.permute.xlu0 %2071
      %2073 = vrot.lane.b32.xlu0 %v2064, 82
      %v2074 = vpop.permute.xlu0 %2073
      %2075 = vrot.lane.b32.xlu0 %v2065, 82
      %v2076 = vpop.permute.xlu0 %2075
      %2077 = vrot.lane.b32.xlu0 %v2066, 82
      %v2078 = vpop.permute.xlu0 %2077
      %2079 = vrot.lane.b32.xlu0 %v2067, 82
      %v2080 = vpop.permute.xlu0 %2079
      %2081 = vrot.lane.b32.xlu0 %v2068, 82
      %v2082 = vpop.permute.xlu0 %2081
      %2083 = vrot.lane.b32.xlu0 %v2069, 82
      %v2084 = vpop.permute.xlu0 %2083
      %2085 = vrot.lane.b32.xlu0 %v2070, 82
      %v2086 = vpop.permute.xlu0 %2085
      %v2087 = vrot.slane %v2072, 4
      %v2088 = vrot.slane %v2074, 4
      %v2089 = vrot.slane %v2076, 4
      %v2090 = vrot.slane %v2078, 4
      %v2091 = vrot.slane %v2080, 4
      %v2092 = vrot.slane %v2082, 4
      %v2093 = vrot.slane %v2084, 4
      %v2094 = vrot.slane %v2086, 4
      %v2095 = vsel %vm849, %v2087, %v2088
      %vm2096 = vcmask 670720
      %v2097 = vsel %vm2096, %v2072, %v2095
      %v2098 = vsel %vm849, %v2089, %v2090
      %v2099 = vsel %vm2096, %v2076, %v2098
      %v2100 = vsel %vm849, %v2091, %v2092
      %v2101 = vsel %vm2096, %v2080, %v2100
      %v2102 = vsel %vm849, %v2093, %v2094
      %v2103 = vsel %vm2096, %v2084, %v2102
      %2108 = vst.msk [vmem:[#allocation3 + $0x288] sm:$0xff] %vm1587, %v2097
      %2109 = vst.msk [vmem:[#allocation3 + $0x29c] sm:$0xff] %vm1587, %v2099
      %2110 = vst.msk [vmem:[#allocation3 + $0x2b0] sm:$0xff] %vm1587, %v2101
      %2111 = vst.msk [vmem:[#allocation3 + $0x2c4] sm:$0xff] %vm1587, %v2103
      %v2112 = vld [vmem:[#allocation2 + $0x20] sm:$0xff]
      %v2113 = vld [vmem:[#allocation2 + $0x28] sm:$0xff]
      %v2114 = vld [vmem:[#allocation2 + $0x50] sm:$0xff]
      %v2115 = vld [vmem:[#allocation2 + $0x58] sm:$0xff]
      %v2116 = vld [vmem:[#allocation2 + $0x80] sm:$0xff]
      %v2117 = vld [vmem:[#allocation2 + $0x88] sm:$0xff]
      %v2118 = vld [vmem:[#allocation2 + $0xb0] sm:$0xff]
      %v2119 = vld [vmem:[#allocation2 + $0xb8] sm:$0xff]
      %v2120 = vpack.c.bf16 %v2114, %v2112
      %v2121 = vpack.c.bf16 %v2115, %v2113
      %v2122 = vpack.c.bf16 %v2118, %v2116
      %v2123 = vpack.c.bf16 %v2119, %v2117
      %v2128 = vunpack.c.l.b16 %v2120
      %v2129 = vunpack.c.l.b16 %v2121
      %v2130 = vunpack.c.h.b16 %v2120
      %v2131 = vunpack.c.h.b16 %v2121
      %v2132 = vunpack.c.l.b16 %v2122
      %v2133 = vunpack.c.l.b16 %v2123
      %v2134 = vunpack.c.h.b16 %v2122
      %v2135 = vunpack.c.h.b16 %v2123
      %v2136 = vpack.c.b16 %v2129, %v2128
      %v2137 = vpack.c.b16 %v2131, %v2130
      %v2138 = vpack.c.b16 %v2133, %v2132
      %v2139 = vpack.c.b16 %v2135, %v2134
      %2140 = vrot.lane.b32.xlu0 %v2136, 80
      %v2141 = vpop.permute.xlu0 %2140
      %2142 = vrot.lane.b32.xlu0 %v2137, 80
      %v2143 = vpop.permute.xlu0 %2142
      %2144 = vrot.lane.b32.xlu0 %v2138, 80
      %v2145 = vpop.permute.xlu0 %2144
      %2146 = vrot.lane.b32.xlu0 %v2139, 80
      %v2147 = vpop.permute.xlu0 %2146
      %v2148 = vrot.slane %v2141, 4
      %v2149 = vrot.slane %v2143, 4
      %v2150 = vrot.slane %v2145, 4
      %v2151 = vrot.slane %v2147, 4
      %v2152 = vsel %vm609, %v2148, %v2141
      %v2153 = vsel %vm609, %v2149, %v2143
      %v2154 = vsel %vm609, %v2150, %v2145
      %v2155 = vsel %vm609, %v2151, %v2147
      %vm2160 = vcmask 1044224
      %vm2161 = vcmask 1047556
      %vm2162 = vmor %vm2161, %vm2160
      %2163 = vst.msk [vmem:[#allocation3 + $0xc] sm:$0xff] %vm2162, %v2152
      %2164 = vst.msk [vmem:[#allocation3 + $0x20] sm:$0xff] %vm2162, %v2153
      %2165 = vst.msk [vmem:[#allocation3 + $0x34] sm:$0xff] %vm2162, %v2154
      %2166 = vst.msk [vmem:[#allocation3 + $0x48] sm:$0xff] %vm2162, %v2155
      %v2167 = vld [vmem:[#allocation2 + $0x10] sm:$0xff]
      %v2168 = vld [vmem:[#allocation2 + $0x18] sm:$0xff]
      %v2169 = vld [vmem:[#allocation2 + $0x20] sm:$0xff]
      %v2170 = vld [vmem:[#allocation2 + $0x40] sm:$0xff]
      %v2171 = vld [vmem:[#allocation2 + $0x48] sm:$0xff]
      %v2172 = vld [vmem:[#allocation2 + $0x50] sm:$0xff]
      %v2173 = vld [vmem:[#allocation2 + $0x70] sm:$0xff]
      %v2174 = vld [vmem:[#allocation2 + $0x78] sm:$0xff]
      %v2175 = vld [vmem:[#allocation2 + $0x80] sm:$0xff]
      %v2176 = vld [vmem:[#allocation2 + $0xa0] sm:$0xff]
      %v2177 = vld [vmem:[#allocation2 + $0xa8] sm:$0xff]
      %v2178 = vld [vmem:[#allocation2 + $0xb0] sm:$0xff]
      %v2179 = vpack.c.bf16 %v2170, %v2167
      %v2180 = vpack.c.bf16 %v2171, %v2168
      %v2181 = vpack.c.bf16 %v2172, %v2169
      %v2182 = vpack.c.bf16 %v2176, %v2173
      %v2183 = vpack.c.bf16 %v2177, %v2174
      %v2184 = vpack.c.bf16 %v2178, %v2175
      %v2191 = vunpack.c.l.b16 %v2179
      %v2192 = vunpack.c.l.b16 %v2180
      %v2193 = vunpack.c.l.b16 %v2181
      %v2194 = vunpack.c.h.b16 %v2179
      %v2195 = vunpack.c.h.b16 %v2180
      %v2196 = vunpack.c.h.b16 %v2181
      %v2197 = vunpack.c.l.b16 %v2182
      %v2198 = vunpack.c.l.b16 %v2183
      %v2199 = vunpack.c.l.b16 %v2184
      %v2200 = vunpack.c.h.b16 %v2182
      %v2201 = vunpack.c.h.b16 %v2183
      %v2202 = vunpack.c.h.b16 %v2184
      %v2203 = vpack.c.b16 %v2192, %v2191
      %v2204 = vpack.c.b16 %v2193, %v2193
      %v2205 = vpack.c.b16 %v2195, %v2194
      %v2206 = vpack.c.b16 %v2196, %v2196
      %v2207 = vpack.c.b16 %v2198, %v2197
      %v2208 = vpack.c.b16 %v2199, %v2199
      %v2209 = vpack.c.b16 %v2201, %v2200
      %v2210 = vpack.c.b16 %v2202, %v2202
      %2211 = vrot.lane.b32.xlu0 %v2203, 127
      %v2212 = vpop.permute.xlu0 %2211
      %2213 = vrot.lane.b32.xlu0 %v2204, 127
      %v2214 = vpop.permute.xlu0 %2213
      %2215 = vrot.lane.b32.xlu0 %v2205, 127
      %v2216 = vpop.permute.xlu0 %2215
      %2217 = vrot.lane.b32.xlu0 %v2206, 127
      %v2218 = vpop.permute.xlu0 %2217
      %2219 = vrot.lane.b32.xlu0 %v2207, 127
      %v2220 = vpop.permute.xlu0 %2219
      %2221 = vrot.lane.b32.xlu0 %v2208, 127
      %v2222 = vpop.permute.xlu0 %2221
      %2223 = vrot.lane.b32.xlu0 %v2209, 127
      %v2224 = vpop.permute.xlu0 %2223
      %2225 = vrot.lane.b32.xlu0 %v2210, 127
      %v2226 = vpop.permute.xlu0 %2225
      %v2227 = vrot.slane %v2212, 4
      %v2228 = vrot.slane %v2214, 4
      %v2229 = vrot.slane %v2216, 4
      %v2230 = vrot.slane %v2218, 4
      %v2231 = vrot.slane %v2220, 4
      %v2232 = vrot.slane %v2222, 4
      %v2233 = vrot.slane %v2224, 4
      %v2234 = vrot.slane %v2226, 4
      %v2235 = vsel %vm849, %v2227, %v2228
      %v2236 = vsel %vm662, %v2212, %v2235
      %v2237 = vsel %vm849, %v2229, %v2230
      %v2238 = vsel %vm662, %v2216, %v2237
      %v2239 = vsel %vm849, %v2231, %v2232
      %v2240 = vsel %vm662, %v2220, %v2239
      %v2241 = vsel %vm849, %v2233, %v2234
      %v2242 = vsel %vm662, %v2224, %v2241
      %2247 = vst.msk [vmem:[#allocation3 + $0x5c] sm:$0xff] %vm2162, %v2236
      %2248 = vst.msk [vmem:[#allocation3 + $0x70] sm:$0xff] %vm2162, %v2238
      %2249 = vst.msk [vmem:[#allocation3 + $0x84] sm:$0xff] %vm2162, %v2240
      %2250 = vst.msk [vmem:[#allocation3 + $0x98] sm:$0xff] %vm2162, %v2242
      %v2251 = vld [vmem:[#allocation2 + $0x20] sm:$0xff]
      %v2252 = vld [vmem:[#allocation2 + $0x28] sm:$0xff]
      %v2253 = vld [vmem:[#allocation2 + $0x50] sm:$0xff]
      %v2254 = vld [vmem:[#allocation2 + $0x58] sm:$0xff]
      %v2255 = vld [vmem:[#allocation2 + $0x80] sm:$0xff]
      %v2256 = vld [vmem:[#allocation2 + $0x88] sm:$0xff]
      %v2257 = vld [vmem:[#allocation2 + $0xb0] sm:$0xff]
      %v2258 = vld [vmem:[#allocation2 + $0xb8] sm:$0xff]
      %v2259 = vpack.c.bf16 %v2253, %v2251
      %v2260 = vpack.c.bf16 %v2254, %v2252
      %v2261 = vpack.c.bf16 %v2257, %v2255
      %v2262 = vpack.c.bf16 %v2258, %v2256
      %v2267 = vunpack.c.l.b16 %v2259
      %v2268 = vunpack.c.l.b16 %v2260
      %v2269 = vunpack.c.h.b16 %v2259
      %v2270 = vunpack.c.h.b16 %v2260
      %v2271 = vunpack.c.l.b16 %v2261
      %v2272 = vunpack.c.l.b16 %v2262
      %v2273 = vunpack.c.h.b16 %v2261
      %v2274 = vunpack.c.h.b16 %v2262
      %v2275 = vpack.c.b16 %v2268, %v2267
      %v2276 = vpack.c.b16 %v2270, %v2269
      %v2277 = vpack.c.b16 %v2272, %v2271
      %v2278 = vpack.c.b16 %v2274, %v2273
      %2279 = vrot.lane.b32.xlu0 %v2275, 79
      %v2280 = vpop.permute.xlu0 %2279
      %2281 = vrot.lane.b32.xlu0 %v2276, 79
      %v2282 = vpop.permute.xlu0 %2281
      %2283 = vrot.lane.b32.xlu0 %v2277, 79
      %v2284 = vpop.permute.xlu0 %2283
      %2285 = vrot.lane.b32.xlu0 %v2278, 79
      %v2286 = vpop.permute.xlu0 %2285
      %v2287 = vrot.slane %v2280, 4
      %v2288 = vrot.slane %v2282, 4
      %v2289 = vrot.slane %v2284, 4
      %v2290 = vrot.slane %v2286, 4
      %vm2291 = vcmask 646144
      %v2292 = vsel %vm2291, %v2287, %v2280
      %v2293 = vsel %vm2291, %v2288, %v2282
      %v2294 = vsel %vm2291, %v2289, %v2284
      %v2295 = vsel %vm2291, %v2290, %v2286
      %2300 = vst.msk [vmem:[#allocation3 + $0xac] sm:$0xff] %vm2162, %v2292
      %2301 = vst.msk [vmem:[#allocation3 + $0xc0] sm:$0xff] %vm2162, %v2293
      %2302 = vst.msk [vmem:[#allocation3 + $0xd4] sm:$0xff] %vm2162, %v2294
      %2303 = vst.msk [vmem:[#allocation3 + $0xe8] sm:$0xff] %vm2162, %v2295
      %v2304 = vld [vmem:[#allocation2 + $0x8] sm:$0xff]
      %v2305 = vld [vmem:[#allocation2 + $0x10] sm:$0xff]
      %v2306 = vld [vmem:[#allocation2 + $0x38] sm:$0xff]
      %v2307 = vld [vmem:[#allocation2 + $0x40] sm:$0xff]
      %v2308 = vld [vmem:[#allocation2 + $0x68] sm:$0xff]
      %v2309 = vld [vmem:[#allocation2 + $0x70] sm:$0xff]
      %v2310 = vld [vmem:[#allocation2 + $0x98] sm:$0xff]
      %v2311 = vld [vmem:[#allocation2 + $0xa0] sm:$0xff]
      %v2312 = vpack.c.bf16 %v2306, %v2304
      %v2313 = vpack.c.bf16 %v2307, %v2305
      %v2314 = vpack.c.bf16 %v2310, %v2308
      %v2315 = vpack.c.bf16 %v2311, %v2309
      %v2320 = vunpack.c.l.b16 %v2312
      %v2321 = vunpack.c.l.b16 %v2313
      %v2322 = vunpack.c.h.b16 %v2312
      %v2323 = vunpack.c.h.b16 %v2313
      %v2324 = vunpack.c.l.b16 %v2314
      %v2325 = vunpack.c.l.b16 %v2315
      %v2326 = vunpack.c.h.b16 %v2314
      %v2327 = vunpack.c.h.b16 %v2315
      %v2328 = vpack.c.b16 %v2321, %v2320
      %v2329 = vpack.c.b16 %v2323, %v2322
      %v2330 = vpack.c.b16 %v2325, %v2324
      %v2331 = vpack.c.b16 %v2327, %v2326
      %2332 = vrot.lane.b32.xlu0 %v2328, 35
      %v2333 = vpop.permute.xlu0 %2332
      %2334 = vrot.lane.b32.xlu0 %v2329, 35
      %v2335 = vpop.permute.xlu0 %2334
      %2336 = vrot.lane.b32.xlu0 %v2330, 35
      %v2337 = vpop.permute.xlu0 %2336
      %2338 = vrot.lane.b32.xlu0 %v2331, 35
      %v2339 = vpop.permute.xlu0 %2338
      %v2340 = vrot.slane %v2333, 4
      %v2341 = vrot.slane %v2335, 4
      %v2342 = vrot.slane %v2337, 4
      %v2343 = vrot.slane %v2339, 4
      %v2344 = vsel %vm2014, %v2340, %v2333
      %v2345 = vsel %vm2014, %v2341, %v2335
      %v2346 = vsel %vm2014, %v2342, %v2337
      %v2347 = vsel %vm2014, %v2343, %v2339
      %2352 = vst.msk [vmem:[#allocation3 + $0xfc] sm:$0xff] %vm2162, %v2344
      %2353 = vst.msk [vmem:[#allocation3 + $0x110] sm:$0xff] %vm2162, %v2345
      %2354 = vst.msk [vmem:[#allocation3 + $0x124] sm:$0xff] %vm2162, %v2346
      %2355 = vst.msk [vmem:[#allocation3 + $0x138] sm:$0xff] %vm2162, %v2347
      %v2356 = vld [vmem:[#allocation2] sm:$0xff]
      %v2357 = vld [vmem:[#allocation2 + $0x8] sm:$0xff]
      %v2358 = vld [vmem:[#allocation2 + $0x30] sm:$0xff]
      %v2359 = vld [vmem:[#allocation2 + $0x38] sm:$0xff]
      %v2360 = vld [vmem:[#allocation2 + $0x60] sm:$0xff]
      %v2361 = vld [vmem:[#allocation2 + $0x68] sm:$0xff]
      %v2362 = vld [vmem:[#allocation2 + $0x90] sm:$0xff]
      %v2363 = vld [vmem:[#allocation2 + $0x98] sm:$0xff]
      %v2364 = vpack.c.bf16 %v2358, %v2356
      %v2365 = vpack.c.bf16 %v2359, %v2357
      %v2366 = vpack.c.bf16 %v2362, %v2360
      %v2367 = vpack.c.bf16 %v2363, %v2361
      %v2372 = vunpack.c.l.b16 %v2364
      %v2373 = vunpack.c.l.b16 %v2365
      %v2374 = vunpack.c.h.b16 %v2364
      %v2375 = vunpack.c.h.b16 %v2365
      %v2376 = vunpack.c.l.b16 %v2366
      %v2377 = vunpack.c.l.b16 %v2367
      %v2378 = vunpack.c.h.b16 %v2366
      %v2379 = vunpack.c.h.b16 %v2367
      %v2380 = vpack.c.b16 %v2373, %v2372
      %v2381 = vpack.c.b16 %v2375, %v2374
      %v2382 = vpack.c.b16 %v2377, %v2376
      %v2383 = vpack.c.b16 %v2379, %v2378
      %2384 = vrot.lane.b32.xlu0 %v2380, 82
      %v2385 = vpop.permute.xlu0 %2384
      %2386 = vrot.lane.b32.xlu0 %v2381, 82
      %v2387 = vpop.permute.xlu0 %2386
      %2388 = vrot.lane.b32.xlu0 %v2382, 82
      %v2389 = vpop.permute.xlu0 %2388
      %2390 = vrot.lane.b32.xlu0 %v2383, 82
      %v2391 = vpop.permute.xlu0 %2390
      %v2392 = vrot.slane %v2385, 4
      %v2393 = vrot.slane %v2387, 4
      %v2394 = vrot.slane %v2389, 4
      %v2395 = vrot.slane %v2391, 4
      %v2396 = vsel %vm2096, %v2392, %v2385
      %v2397 = vsel %vm2096, %v2393, %v2387
      %v2398 = vsel %vm2096, %v2394, %v2389
      %v2399 = vsel %vm2096, %v2395, %v2391
      %2404 = vst.msk [vmem:[#allocation3 + $0x14c] sm:$0xff] %vm2162, %v2396
      %2405 = vst.msk [vmem:[#allocation3 + $0x160] sm:$0xff] %vm2162, %v2397
      %2406 = vst.msk [vmem:[#allocation3 + $0x174] sm:$0xff] %vm2162, %v2398
      %2407 = vst.msk [vmem:[#allocation3 + $0x188] sm:$0xff] %vm2162, %v2399
      %v2408 = vld [vmem:[#allocation2 + $0x8] sm:$0xff]
      %v2409 = vld [vmem:[#allocation2 + $0x10] sm:$0xff]
      %v2410 = vld [vmem:[#allocation2 + $0x38] sm:$0xff]
      %v2411 = vld [vmem:[#allocation2 + $0x40] sm:$0xff]
      %v2412 = vld [vmem:[#allocation2 + $0x68] sm:$0xff]
      %v2413 = vld [vmem:[#allocation2 + $0x70] sm:$0xff]
      %v2414 = vld [vmem:[#allocation2 + $0x98] sm:$0xff]
      %v2415 = vld [vmem:[#allocation2 + $0xa0] sm:$0xff]
      %v2416 = vpack.c.bf16 %v2410, %v2408
      %v2417 = vpack.c.bf16 %v2411, %v2409
      %v2418 = vpack.c.bf16 %v2414, %v2412
      %v2419 = vpack.c.bf16 %v2415, %v2413
      %v2424 = vunpack.c.l.b16 %v2416
      %v2425 = vunpack.c.l.b16 %v2417
      %v2426 = vunpack.c.h.b16 %v2416
      %v2427 = vunpack.c.h.b16 %v2417
      %v2428 = vunpack.c.l.b16 %v2418
      %v2429 = vunpack.c.l.b16 %v2419
      %v2430 = vunpack.c.h.b16 %v2418
      %v2431 = vunpack.c.h.b16 %v2419
      %v2432 = vpack.c.b16 %v2425, %v2424
      %v2433 = vpack.c.b16 %v2427, %v2426
      %v2434 = vpack.c.b16 %v2429, %v2428
      %v2435 = vpack.c.b16 %v2431, %v2430
      %2436 = vrot.lane.b32.xlu0 %v2432, 34
      %v2437 = vpop.permute.xlu0 %2436
      %2438 = vrot.lane.b32.xlu0 %v2433, 34
      %v2439 = vpop.permute.xlu0 %2438
      %2440 = vrot.lane.b32.xlu0 %v2434, 34
      %v2441 = vpop.permute.xlu0 %2440
      %2442 = vrot.lane.b32.xlu0 %v2435, 34
      %v2443 = vpop.permute.xlu0 %2442
      %v2444 = vrot.slane %v2437, 4
      %v2445 = vrot.slane %v2439, 4
      %v2446 = vrot.slane %v2441, 4
      %v2447 = vrot.slane %v2443, 4
      %vm2448 = vcmask 277504
      %v2449 = vsel %vm2448, %v2444, %v2437
      %v2450 = vsel %vm2448, %v2445, %v2439
      %v2451 = vsel %vm2448, %v2446, %v2441
      %v2452 = vsel %vm2448, %v2447, %v2443
      %2457 = vst.msk [vmem:[#allocation3 + $0x19c] sm:$0xff] %vm2162, %v2449
      %2458 = vst.msk [vmem:[#allocation3 + $0x1b0] sm:$0xff] %vm2162, %v2450
      %2459 = vst.msk [vmem:[#allocation3 + $0x1c4] sm:$0xff] %vm2162, %v2451
      %2460 = vst.msk [vmem:[#allocation3 + $0x1d8] sm:$0xff] %vm2162, %v2452
      %v2461 = vld [vmem:[#allocation2 + $0x20] sm:$0xff]
      %v2462 = vld [vmem:[#allocation2 + $0x28] sm:$0xff]
      %v2463 = vld [vmem:[#allocation2 + $0x50] sm:$0xff]
      %v2464 = vld [vmem:[#allocation2 + $0x58] sm:$0xff]
      %v2465 = vld [vmem:[#allocation2 + $0x80] sm:$0xff]
      %v2466 = vld [vmem:[#allocation2 + $0x88] sm:$0xff]
      %v2467 = vld [vmem:[#allocation2 + $0xb0] sm:$0xff]
      %v2468 = vld [vmem:[#allocation2 + $0xb8] sm:$0xff]
      %v2469 = vpack.c.bf16 %v2463, %v2461
      %v2470 = vpack.c.bf16 %v2464, %v2462
      %v2471 = vpack.c.bf16 %v2467, %v2465
      %v2472 = vpack.c.bf16 %v2468, %v2466
      %v2477 = vunpack.c.l.b16 %v2469
      %v2478 = vunpack.c.l.b16 %v2470
      %v2479 = vunpack.c.h.b16 %v2469
      %v2480 = vunpack.c.h.b16 %v2470
      %v2481 = vunpack.c.l.b16 %v2471
      %v2482 = vunpack.c.l.b16 %v2472
      %v2483 = vunpack.c.h.b16 %v2471
      %v2484 = vunpack.c.h.b16 %v2472
      %v2485 = vpack.c.b16 %v2478, %v2477
      %v2486 = vpack.c.b16 %v2480, %v2479
      %v2487 = vpack.c.b16 %v2482, %v2481
      %v2488 = vpack.c.b16 %v2484, %v2483
      %2489 = vrot.lane.b32.xlu0 %v2485, 67
      %v2490 = vpop.permute.xlu0 %2489
      %2491 = vrot.lane.b32.xlu0 %v2486, 67
      %v2492 = vpop.permute.xlu0 %2491
      %2493 = vrot.lane.b32.xlu0 %v2487, 67
      %v2494 = vpop.permute.xlu0 %2493
      %2495 = vrot.lane.b32.xlu0 %v2488, 67
      %v2496 = vpop.permute.xlu0 %2495
      %v2497 = vrot.slane %v2490, 4
      %v2498 = vrot.slane %v2492, 4
      %v2499 = vrot.slane %v2494, 4
      %v2500 = vrot.slane %v2496, 4
      %v2501 = vsel %vm960, %v2497, %v2490
      %v2502 = vsel %vm960, %v2498, %v2492
      %v2503 = vsel %vm960, %v2499, %v2494
      %v2504 = vsel %vm960, %v2500, %v2496
      %2509 = vst.msk [vmem:[#allocation3 + $0x1ec] sm:$0xff] %vm2162, %v2501
      %2510 = vst.msk [vmem:[#allocation3 + $0x200] sm:$0xff] %vm2162, %v2502
      %2511 = vst.msk [vmem:[#allocation3 + $0x214] sm:$0xff] %vm2162, %v2503
      %2512 = vst.msk [vmem:[#allocation3 + $0x228] sm:$0xff] %vm2162, %v2504
      %v2513 = vld [vmem:[#allocation2 + $0x10] sm:$0xff]
      %v2514 = vld [vmem:[#allocation2 + $0x18] sm:$0xff]
      %v2515 = vld [vmem:[#allocation2 + $0x20] sm:$0xff]
      %v2516 = vld [vmem:[#allocation2 + $0x40] sm:$0xff]
      %v2517 = vld [vmem:[#allocation2 + $0x48] sm:$0xff]
      %v2518 = vld [vmem:[#allocation2 + $0x50] sm:$0xff]
      %v2519 = vld [vmem:[#allocation2 + $0x70] sm:$0xff]
      %v2520 = vld [vmem:[#allocation2 + $0x78] sm:$0xff]
      %v2521 = vld [vmem:[#allocation2 + $0x80] sm:$0xff]
      %v2522 = vld [vmem:[#allocation2 + $0xa0] sm:$0xff]
      %v2523 = vld [vmem:[#allocation2 + $0xa8] sm:$0xff]
      %v2524 = vld [vmem:[#allocation2 + $0xb0] sm:$0xff]
      %v2525 = vpack.c.bf16 %v2516, %v2513
      %v2526 = vpack.c.bf16 %v2517, %v2514
      %v2527 = vpack.c.bf16 %v2518, %v2515
      %v2528 = vpack.c.bf16 %v2522, %v2519
      %v2529 = vpack.c.bf16 %v2523, %v2520
      %v2530 = vpack.c.bf16 %v2524, %v2521
      %v2537 = vunpack.c.l.b16 %v2525
      %v2538 = vunpack.c.l.b16 %v2526
      %v2539 = vunpack.c.l.b16 %v2527
      %v2540 = vunpack.c.h.b16 %v2525
      %v2541 = vunpack.c.h.b16 %v2526
      %v2542 = vunpack.c.h.b16 %v2527
      %v2543 = vunpack.c.l.b16 %v2528
      %v2544 = vunpack.c.l.b16 %v2529
      %v2545 = vunpack.c.l.b16 %v2530
      %v2546 = vunpack.c.h.b16 %v2528
      %v2547 = vunpack.c.h.b16 %v2529
      %v2548 = vunpack.c.h.b16 %v2530
      %v2549 = vpack.c.b16 %v2538, %v2537
      %v2550 = vpack.c.b16 %v2539, %v2539
      %v2551 = vpack.c.b16 %v2541, %v2540
      %v2552 = vpack.c.b16 %v2542, %v2542
      %v2553 = vpack.c.b16 %v2544, %v2543
      %v2554 = vpack.c.b16 %v2545, %v2545
      %v2555 = vpack.c.b16 %v2547, %v2546
      %v2556 = vpack.c.b16 %v2548, %v2548
      %2557 = vrot.lane.b32.xlu0 %v2549, 114
      %v2558 = vpop.permute.xlu0 %2557
      %2559 = vrot.lane.b32.xlu0 %v2550, 114
      %v2560 = vpop.permute.xlu0 %2559
      %2561 = vrot.lane.b32.xlu0 %v2551, 114
      %v2562 = vpop.permute.xlu0 %2561
      %2563 = vrot.lane.b32.xlu0 %v2552, 114
      %v2564 = vpop.permute.xlu0 %2563
      %2565 = vrot.lane.b32.xlu0 %v2553, 114
      %v2566 = vpop.permute.xlu0 %2565
      %2567 = vrot.lane.b32.xlu0 %v2554, 114
      %v2568 = vpop.permute.xlu0 %2567
      %2569 = vrot.lane.b32.xlu0 %v2555, 114
      %v2570 = vpop.permute.xlu0 %2569
      %2571 = vrot.lane.b32.xlu0 %v2556, 114
      %v2572 = vpop.permute.xlu0 %2571
      %v2573 = vrot.slane %v2558, 4
      %v2574 = vrot.slane %v2560, 4
      %v2575 = vrot.slane %v2562, 4
      %v2576 = vrot.slane %v2564, 4
      %v2577 = vrot.slane %v2566, 4
      %v2578 = vrot.slane %v2568, 4
      %v2579 = vrot.slane %v2570, 4
      %v2580 = vrot.slane %v2572, 4
      %v2581 = vsel %vm849, %v2573, %v2574
      %v2582 = vsel %vm1013, %v2558, %v2581
      %v2583 = vsel %vm849, %v2575, %v2576
      %v2584 = vsel %vm1013, %v2562, %v2583
      %v2585 = vsel %vm849, %v2577, %v2578
      %v2586 = vsel %vm1013, %v2566, %v2585
      %v2587 = vsel %vm849, %v2579, %v2580
      %v2588 = vsel %vm1013, %v2570, %v2587
      %2593 = vst.msk [vmem:[#allocation3 + $0x23c] sm:$0xff] %vm2162, %v2582
      %2594 = vst.msk [vmem:[#allocation3 + $0x250] sm:$0xff] %vm2162, %v2584
      %2595 = vst.msk [vmem:[#allocation3 + $0x264] sm:$0xff] %vm2162, %v2586
      %2596 = vst.msk [vmem:[#allocation3 + $0x278] sm:$0xff] %vm2162, %v2588
      %v2597 = vld [vmem:[#allocation2 + $0x20] sm:$0xff]
      %v2598 = vld [vmem:[#allocation2 + $0x28] sm:$0xff]
      %v2599 = vld [vmem:[#allocation2 + $0x50] sm:$0xff]
      %v2600 = vld [vmem:[#allocation2 + $0x58] sm:$0xff]
      %v2601 = vld [vmem:[#allocation2 + $0x80] sm:$0xff]
      %v2602 = vld [vmem:[#allocation2 + $0x88] sm:$0xff]
      %v2603 = vld [vmem:[#allocation2 + $0xb0] sm:$0xff]
      %v2604 = vld [vmem:[#allocation2 + $0xb8] sm:$0xff]
      %v2605 = vpack.c.bf16 %v2599, %v2597
      %v2606 = vpack.c.bf16 %v2600, %v2598
      %v2607 = vpack.c.bf16 %v2603, %v2601
      %v2608 = vpack.c.bf16 %v2604, %v2602
      %v2613 = vunpack.c.l.b16 %v2605
      %v2614 = vunpack.c.l.b16 %v2606
      %v2615 = vunpack.c.h.b16 %v2605
      %v2616 = vunpack.c.h.b16 %v2606
      %v2617 = vunpack.c.l.b16 %v2607
      %v2618 = vunpack.c.l.b16 %v2608
      %v2619 = vunpack.c.h.b16 %v2607
      %v2620 = vunpack.c.h.b16 %v2608
      %v2621 = vpack.c.b16 %v2614, %v2613
      %v2622 = vpack.c.b16 %v2616, %v2615
      %v2623 = vpack.c.b16 %v2618, %v2617
      %v2624 = vpack.c.b16 %v2620, %v2619
      %2625 = vrot.lane.b32.xlu0 %v2621, 66
      %v2626 = vpop.permute.xlu0 %2625
      %2627 = vrot.lane.b32.xlu0 %v2622, 66
      %v2628 = vpop.permute.xlu0 %2627
      %2629 = vrot.lane.b32.xlu0 %v2623, 66
      %v2630 = vpop.permute.xlu0 %2629
      %2631 = vrot.lane.b32.xlu0 %v2624, 66
      %v2632 = vpop.permute.xlu0 %2631
      %v2633 = vrot.slane %v2626, 4
      %v2634 = vrot.slane %v2628, 4
      %v2635 = vrot.slane %v2630, 4
      %v2636 = vrot.slane %v2632, 4
      %vm2637 = vcmask 539648
      %v2638 = vsel %vm2637, %v2633, %v2626
      %v2639 = vsel %vm2637, %v2634, %v2628
      %v2640 = vsel %vm2637, %v2635, %v2630
      %v2641 = vsel %vm2637, %v2636, %v2632
      %2646 = vst.msk [vmem:[#allocation3 + $0x28c] sm:$0xff] %vm2162, %v2638
      %2647 = vst.msk [vmem:[#allocation3 + $0x2a0] sm:$0xff] %vm2162, %v2639
      %2648 = vst.msk [vmem:[#allocation3 + $0x2b4] sm:$0xff] %vm2162, %v2640
      %2649 = vst.msk [vmem:[#allocation3 + $0x2c8] sm:$0xff] %vm2162, %v2641
      %v2650 = vld [vmem:[%s3] sm:$0xff]
      %v2651 = vld [vmem:[%s3 + $0x8] sm:$0xf]
      %v2652 = vld [vmem:[%s3 + $0xc] sm:$0xff]
      %v2653 = vld [vmem:[%s3 + $0x14] sm:$0xf]
      %v2654 = vld [vmem:[%s3 + $0x18] sm:$0xff]
      %v2655 = vld [vmem:[%s3 + $0x20] sm:$0xf]
      %v2656 = vld [vmem:[%s3 + $0x24] sm:$0xff]
      %v2657 = vld [vmem:[%s3 + $0x2c] sm:$0xf]
      %v2658 = vld [vmem:[%s3 + $0x30] sm:$0xff]
      %v2659 = vld [vmem:[%s3 + $0x38] sm:$0xf]
      %v2660 = vld [vmem:[%s3 + $0x3c] sm:$0xff]
      %v2661 = vld [vmem:[%s3 + $0x44] sm:$0xf]
      %v2662 = vld [vmem:[%s3 + $0x48] sm:$0xff]
      %v2663 = vld [vmem:[%s3 + $0x50] sm:$0xf]
      %v2664 = vld [vmem:[%s3 + $0x54] sm:$0xff]
      %v2665 = vld [vmem:[%s3 + $0x5c] sm:$0xf]
      %v2666 = vld [vmem:[#allocation3] sm:$0xff]
      %v2667 = vld [vmem:[#allocation3 + $0x8] sm:$0xff]
      %v2668 = vld [vmem:[#allocation3 + $0x10] sm:$0xf]
      %v2669 = vld [vmem:[#allocation3 + $0x14] sm:$0xff]
      %v2670 = vld [vmem:[#allocation3 + $0x1c] sm:$0xff]
      %v2671 = vld [vmem:[#allocation3 + $0x24] sm:$0xf]
      %v2672 = vld [vmem:[#allocation3 + $0x28] sm:$0xff]
      %v2673 = vld [vmem:[#allocation3 + $0x30] sm:$0xff]
      %v2674 = vld [vmem:[#allocation3 + $0x38] sm:$0xf]
      %v2675 = vld [vmem:[#allocation3 + $0x3c] sm:$0xff]
      %v2676 = vld [vmem:[#allocation3 + $0x44] sm:$0xff]
      %v2677 = vld [vmem:[#allocation3 + $0x4c] sm:$0xf]
      %v2678 = vld [vmem:[#allocation3 + $0x50] sm:$0xff]
      %v2679 = vld [vmem:[#allocation3 + $0x58] sm:$0xff]
      %v2680 = vld [vmem:[#allocation3 + $0x60] sm:$0xf]
      %v2681 = vld [vmem:[#allocation3 + $0x64] sm:$0xff]
      %v2682 = vld [vmem:[#allocation3 + $0x6c] sm:$0xff]
      %v2683 = vld [vmem:[#allocation3 + $0x74] sm:$0xf]
      %v2684 = vld [vmem:[#allocation3 + $0x78] sm:$0xff]
      %v2685 = vld [vmem:[#allocation3 + $0x80] sm:$0xff]
      %v2686 = vld [vmem:[#allocation3 + $0x88] sm:$0xf]
      %v2687 = vld [vmem:[#allocation3 + $0x8c] sm:$0xff]
      %v2688 = vld [vmem:[#allocation3 + $0x94] sm:$0xff]
      %v2689 = vld [vmem:[#allocation3 + $0x9c] sm:$0xf]
      %v2690 = vld [vmem:[#allocation3 + $0xa0] sm:$0xff]
      %v2691 = vld [vmem:[#allocation3 + $0xa8] sm:$0xff]
      %v2692 = vld [vmem:[#allocation3 + $0xb0] sm:$0xf]
      %v2693 = vld [vmem:[#allocation3 + $0xb4] sm:$0xff]
      %v2694 = vld [vmem:[#allocation3 + $0xbc] sm:$0xff]
      %v2695 = vld [vmem:[#allocation3 + $0xc4] sm:$0xf]
      %v2696 = vld [vmem:[#allocation3 + $0xc8] sm:$0xff]
      %v2697 = vld [vmem:[#allocation3 + $0xd0] sm:$0xff]
      %v2698 = vld [vmem:[#allocation3 + $0xd8] sm:$0xf]
      %v2699 = vld [vmem:[#allocation3 + $0xdc] sm:$0xff]
      %v2700 = vld [vmem:[#allocation3 + $0xe4] sm:$0xff]
      %v2701 = vld [vmem:[#allocation3 + $0xec] sm:$0xf]
      %v2702 = vld [vmem:[#allocation3 + $0xf0] sm:$0xff]
      %v2703 = vld [vmem:[#allocation3 + $0xf8] sm:$0xff]
      %v2704 = vld [vmem:[#allocation3 + $0x100] sm:$0xf]
      %v2705 = vld [vmem:[#allocation3 + $0x104] sm:$0xff]
      %v2706 = vld [vmem:[#allocation3 + $0x10c] sm:$0xff]
      %v2707 = vld [vmem:[#allocation3 + $0x114] sm:$0xf]
      %v2708 = vld [vmem:[#allocation3 + $0x118] sm:$0xff]
      %v2709 = vld [vmem:[#allocation3 + $0x120] sm:$0xff]
      %v2710 = vld [vmem:[#allocation3 + $0x128] sm:$0xf]
      %v2711 = vld [vmem:[#allocation3 + $0x12c] sm:$0xff]
      %v2712 = vld [vmem:[#allocation3 + $0x134] sm:$0xff]
      %v2713 = vld [vmem:[#allocation3 + $0x13c] sm:$0xf]
      %v2714 = vld [vmem:[#allocation3 + $0x140] sm:$0xff]
      %v2715 = vld [vmem:[#allocation3 + $0x148] sm:$0xff]
      %v2716 = vld [vmem:[#allocation3 + $0x150] sm:$0xf]
      %v2717 = vld [vmem:[#allocation3 + $0x154] sm:$0xff]
      %v2718 = vld [vmem:[#allocation3 + $0x15c] sm:$0xff]
      %v2719 = vld [vmem:[#allocation3 + $0x164] sm:$0xf]
      %v2720 = vld [vmem:[#allocation3 + $0x168] sm:$0xff]
      %v2721 = vld [vmem:[#allocation3 + $0x170] sm:$0xff]
      %v2722 = vld [vmem:[#allocation3 + $0x178] sm:$0xf]
      %v2723 = vld [vmem:[#allocation3 + $0x17c] sm:$0xff]
      %v2724 = vld [vmem:[#allocation3 + $0x184] sm:$0xff]
      %v2725 = vld [vmem:[#allocation3 + $0x18c] sm:$0xf]
      %v2726 = vld [vmem:[#allocation3 + $0x190] sm:$0xff]
      %v2727 = vld [vmem:[#allocation3 + $0x198] sm:$0xff]
      %v2728 = vld [vmem:[#allocation3 + $0x1a0] sm:$0xf]
      %v2729 = vld [vmem:[#allocation3 + $0x1a4] sm:$0xff]
      %v2730 = vld [vmem:[#allocation3 + $0x1ac] sm:$0xff]
      %v2731 = vld [vmem:[#allocation3 + $0x1b4] sm:$0xf]
      %v2732 = vld [vmem:[#allocation3 + $0x1b8] sm:$0xff]
      %v2733 = vld [vmem:[#allocation3 + $0x1c0] sm:$0xff]
      %v2734 = vld [vmem:[#allocation3 + $0x1c8] sm:$0xf]
      %v2735 = vld [vmem:[#allocation3 + $0x1cc] sm:$0xff]
      %v2736 = vld [vmem:[#allocation3 + $0x1d4] sm:$0xff]
      %v2737 = vld [vmem:[#allocation3 + $0x1dc] sm:$0xf]
      %v2738 = vld [vmem:[#allocation3 + $0x1e0] sm:$0xff]
      %v2739 = vld [vmem:[#allocation3 + $0x1e8] sm:$0xff]
      %v2740 = vld [vmem:[#allocation3 + $0x1f0] sm:$0xf]
      %v2741 = vld [vmem:[#allocation3 + $0x1f4] sm:$0xff]
      %v2742 = vld [vmem:[#allocation3 + $0x1fc] sm:$0xff]
      %v2743 = vld [vmem:[#allocation3 + $0x204] sm:$0xf]
      %v2744 = vld [vmem:[#allocation3 + $0x208] sm:$0xff]
      %v2745 = vld [vmem:[#allocation3 + $0x210] sm:$0xff]
      %v2746 = vld [vmem:[#allocation3 + $0x218] sm:$0xf]
      %v2747 = vld [vmem:[#allocation3 + $0x21c] sm:$0xff]
      %v2748 = vld [vmem:[#allocation3 + $0x224] sm:$0xff]
      %v2749 = vld [vmem:[#allocation3 + $0x22c] sm:$0xf]
      %v2750 = vld [vmem:[#allocation3 + $0x230] sm:$0xff]
      %v2751 = vld [vmem:[#allocation3 + $0x238] sm:$0xff]
      %v2752 = vld [vmem:[#allocation3 + $0x240] sm:$0xf]
      %v2753 = vld [vmem:[#allocation3 + $0x244] sm:$0xff]
      %v2754 = vld [vmem:[#allocation3 + $0x24c] sm:$0xff]
      %v2755 = vld [vmem:[#allocation3 + $0x254] sm:$0xf]
      %v2756 = vld [vmem:[#allocation3 + $0x258] sm:$0xff]
      %v2757 = vld [vmem:[#allocation3 + $0x260] sm:$0xff]
      %v2758 = vld [vmem:[#allocation3 + $0x268] sm:$0xf]
      %v2759 = vld [vmem:[#allocation3 + $0x26c] sm:$0xff]
      %v2760 = vld [vmem:[#allocation3 + $0x274] sm:$0xff]
      %v2761 = vld [vmem:[#allocation3 + $0x27c] sm:$0xf]
      %v2762 = vld [vmem:[#allocation3 + $0x280] sm:$0xff]
      %v2763 = vld [vmem:[#allocation3 + $0x288] sm:$0xff]
      %v2764 = vld [vmem:[#allocation3 + $0x290] sm:$0xf]
      %v2765 = vld [vmem:[#allocation3 + $0x294] sm:$0xff]
      %v2766 = vld [vmem:[#allocation3 + $0x29c] sm:$0xff]
      %v2767 = vld [vmem:[#allocation3 + $0x2a4] sm:$0xf]
      %v2768 = vld [vmem:[#allocation3 + $0x2a8] sm:$0xff]
      %v2769 = vld [vmem:[#allocation3 + $0x2b0] sm:$0xff]
      %v2770 = vld [vmem:[#allocation3 + $0x2b8] sm:$0xf]
      %v2771 = vld [vmem:[#allocation3 + $0x2bc] sm:$0xff]
      %v2772 = vld [vmem:[#allocation3 + $0x2c4] sm:$0xff]
      %v2773 = vld [vmem:[#allocation3 + $0x2cc] sm:$0xf]
      %v2790 = vunpack.c.l.b16 %v2650
      %v2791 = vunpack.c.h.b16 %v2650
      %v2792 = vunpack.c.l.b16 %v2651
      %v2793 = vunpack.c.l.b16 %v2652
      %v2794 = vunpack.c.h.b16 %v2652
      %v2795 = vunpack.c.l.b16 %v2653
      %v2796 = vunpack.c.l.b16 %v2654
      %v2797 = vunpack.c.h.b16 %v2654
      %v2798 = vunpack.c.l.b16 %v2655
      %v2799 = vunpack.c.l.b16 %v2656
      %v2800 = vunpack.c.h.b16 %v2656
      %v2801 = vunpack.c.l.b16 %v2657
      %v2802 = vunpack.c.l.b16 %v2658
      %v2803 = vunpack.c.h.b16 %v2658
      %v2804 = vunpack.c.l.b16 %v2659
      %v2805 = vunpack.c.l.b16 %v2660
      %v2806 = vunpack.c.h.b16 %v2660
      %v2807 = vunpack.c.l.b16 %v2661
      %v2808 = vunpack.c.l.b16 %v2662
      %v2809 = vunpack.c.h.b16 %v2662
      %v2810 = vunpack.c.l.b16 %v2663
      %v2811 = vunpack.c.l.b16 %v2664
      %v2812 = vunpack.c.h.b16 %v2664
      %v2813 = vunpack.c.l.b16 %v2665
      %v2814 = vpack.c.b16 %v2793, %v2790
      %v2815 = vpack.c.b16 %v2794, %v2791
      %v2816 = vpack.c.b16 %v2795, %v2792
      %v2817 = vpack.c.b16 %v2799, %v2796
      %v2818 = vpack.c.b16 %v2800, %v2797
      %v2819 = vpack.c.b16 %v2801, %v2798
      %v2820 = vpack.c.b16 %v2805, %v2802
      %v2821 = vpack.c.b16 %v2806, %v2803
      %v2822 = vpack.c.b16 %v2807, %v2804
      %v2823 = vpack.c.b16 %v2811, %v2808
      %v2824 = vpack.c.b16 %v2812, %v2809
      %v2825 = vpack.c.b16 %v2813, %v2810
      %v2942 = vunpack.c.l.b16 %v2666
      %v2943 = vunpack.c.h.b16 %v2666
      %v2944 = vunpack.c.l.b16 %v2667
      %v2945 = vunpack.c.h.b16 %v2667
      %v2946 = vunpack.c.l.b16 %v2668
      %v2947 = vunpack.c.l.b16 %v2669
      %v2948 = vunpack.c.h.b16 %v2669
      %v2949 = vunpack.c.l.b16 %v2670
      %v2950 = vunpack.c.h.b16 %v2670
      %v2951 = vunpack.c.l.b16 %v2671
      %v2952 = vunpack.c.l.b16 %v2672
      %v2953 = vunpack.c.h.b16 %v2672
      %v2954 = vunpack.c.l.b16 %v2673
      %v2955 = vunpack.c.h.b16 %v2673
      %v2956 = vunpack.c.l.b16 %v2674
      %v2957 = vunpack.c.l.b16 %v2675
      %v2958 = vunpack.c.h.b16 %v2675
      %v2959 = vunpack.c.l.b16 %v2676
      %v2960 = vunpack.c.h.b16 %v2676
      %v2961 = vunpack.c.l.b16 %v2677
      %v2962 = vunpack.c.l.b16 %v2678
      %v2963 = vunpack.c.h.b16 %v2678
      %v2964 = vunpack.c.l.b16 %v2679
      %v2965 = vunpack.c.h.b16 %v2679
      %v2966 = vunpack.c.l.b16 %v2680
      %v2967 = vunpack.c.l.b16 %v2681
      %v2968 = vunpack.c.h.b16 %v2681
      %v2969 = vunpack.c.l.b16 %v2682
      %v2970 = vunpack.c.h.b16 %v2682
      %v2971 = vunpack.c.l.b16 %v2683
      %v2972 = vunpack.c.l.b16 %v2684
      %v2973 = vunpack.c.h.b16 %v2684
      %v2974 = vunpack.c.l.b16 %v2685
      %v2975 = vunpack.c.h.b16 %v2685
      %v2976 = vunpack.c.l.b16 %v2686
      %v2977 = vunpack.c.l.b16 %v2687
      %v2978 = vunpack.c.h.b16 %v2687
      %v2979 = vunpack.c.l.b16 %v2688
      %v2980 = vunpack.c.h.b16 %v2688
      %v2981 = vunpack.c.l.b16 %v2689
      %v2982 = vunpack.c.l.b16 %v2690
      %v2983 = vunpack.c.h.b16 %v2690
      %v2984 = vunpack.c.l.b16 %v2691
      %v2985 = vunpack.c.h.b16 %v2691
      %v2986 = vunpack.c.l.b16 %v2692
      %v2987 = vunpack.c.l.b16 %v2693
      %v2988 = vunpack.c.h.b16 %v2693
      %v2989 = vunpack.c.l.b16 %v2694
      %v2990 = vunpack.c.h.b16 %v2694
      %v2991 = vunpack.c.l.b16 %v2695
      %v2992 = vunpack.c.l.b16 %v2696
      %v2993 = vunpack.c.h.b16 %v2696
      %v2994 = vunpack.c.l.b16 %v2697
      %v2995 = vunpack.c.h.b16 %v2697
      %v2996 = vunpack.c.l.b16 %v2698
      %v2997 = vunpack.c.l.b16 %v2699
      %v2998 = vunpack.c.h.b16 %v2699
      %v2999 = vunpack.c.l.b16 %v2700
      %v3000 = vunpack.c.h.b16 %v2700
      %v3001 = vunpack.c.l.b16 %v2701
      %v3002 = vunpack.c.l.b16 %v2702
      %v3003 = vunpack.c.h.b16 %v2702
      %v3004 = vunpack.c.l.b16 %v2703
      %v3005 = vunpack.c.h.b16 %v2703
      %v3006 = vunpack.c.l.b16 %v2704
      %v3007 = vunpack.c.l.b16 %v2705
      %v3008 = vunpack.c.h.b16 %v2705
      %v3009 = vunpack.c.l.b16 %v2706
      %v3010 = vunpack.c.h.b16 %v2706
      %v3011 = vunpack.c.l.b16 %v2707
      %v3012 = vunpack.c.l.b16 %v2708
      %v3013 = vunpack.c.h.b16 %v2708
      %v3014 = vunpack.c.l.b16 %v2709
      %v3015 = vunpack.c.h.b16 %v2709
      %v3016 = vunpack.c.l.b16 %v2710
      %v3017 = vunpack.c.l.b16 %v2711
      %v3018 = vunpack.c.h.b16 %v2711
      %v3019 = vunpack.c.l.b16 %v2712
      %v3020 = vunpack.c.h.b16 %v2712
      %v3021 = vunpack.c.l.b16 %v2713
      %v3022 = vunpack.c.l.b16 %v2714
      %v3023 = vunpack.c.h.b16 %v2714
      %v3024 = vunpack.c.l.b16 %v2715
      %v3025 = vunpack.c.h.b16 %v2715
      %v3026 = vunpack.c.l.b16 %v2716
      %v3027 = vunpack.c.l.b16 %v2717
      %v3028 = vunpack.c.h.b16 %v2717
      %v3029 = vunpack.c.l.b16 %v2718
      %v3030 = vunpack.c.h.b16 %v2718
      %v3031 = vunpack.c.l.b16 %v2719
      %v3032 = vunpack.c.l.b16 %v2720
      %v3033 = vunpack.c.h.b16 %v2720
      %v3034 = vunpack.c.l.b16 %v2721
      %v3035 = vunpack.c.h.b16 %v2721
      %v3036 = vunpack.c.l.b16 %v2722
      %v3037 = vunpack.c.l.b16 %v2723
      %v3038 = vunpack.c.h.b16 %v2723
      %v3039 = vunpack.c.l.b16 %v2724
      %v3040 = vunpack.c.h.b16 %v2724
      %v3041 = vunpack.c.l.b16 %v2725
      %v3042 = vunpack.c.l.b16 %v2726
      %v3043 = vunpack.c.h.b16 %v2726
      %v3044 = vunpack.c.l.b16 %v2727
      %v3045 = vunpack.c.h.b16 %v2727
      %v3046 = vunpack.c.l.b16 %v2728
      %v3047 = vunpack.c.l.b16 %v2729
      %v3048 = vunpack.c.h.b16 %v2729
      %v3049 = vunpack.c.l.b16 %v2730
      %v3050 = vunpack.c.h.b16 %v2730
      %v3051 = vunpack.c.l.b16 %v2731
      %v3052 = vunpack.c.l.b16 %v2732
      %v3053 = vunpack.c.h.b16 %v2732
      %v3054 = vunpack.c.l.b16 %v2733
      %v3055 = vunpack.c.h.b16 %v2733
      %v3056 = vunpack.c.l.b16 %v2734
      %v3057 = vunpack.c.l.b16 %v2735
      %v3058 = vunpack.c.h.b16 %v2735
      %v3059 = vunpack.c.l.b16 %v2736
      %v3060 = vunpack.c.h.b16 %v2736
      %v3061 = vunpack.c.l.b16 %v2737
      %v3062 = vunpack.c.l.b16 %v2738
      %v3063 = vunpack.c.h.b16 %v2738
      %v3064 = vunpack.c.l.b16 %v2739
      %v3065 = vunpack.c.h.b16 %v2739
      %v3066 = vunpack.c.l.b16 %v2740
      %v3067 = vunpack.c.l.b16 %v2741
      %v3068 = vunpack.c.h.b16 %v2741
      %v3069 = vunpack.c.l.b16 %v2742
      %v3070 = vunpack.c.h.b16 %v2742
      %v3071 = vunpack.c.l.b16 %v2743
      %v3072 = vunpack.c.l.b16 %v2744
      %v3073 = vunpack.c.h.b16 %v2744
      %v3074 = vunpack.c.l.b16 %v2745
      %v3075 = vunpack.c.h.b16 %v2745
      %v3076 = vunpack.c.l.b16 %v2746
      %v3077 = vunpack.c.l.b16 %v2747
      %v3078 = vunpack.c.h.b16 %v2747
      %v3079 = vunpack.c.l.b16 %v2748
      %v3080 = vunpack.c.h.b16 %v2748
      %v3081 = vunpack.c.l.b16 %v2749
      %v3082 = vunpack.c.l.b16 %v2750
      %v3083 = vunpack.c.h.b16 %v2750
      %v3084 = vunpack.c.l.b16 %v2751
      %v3085 = vunpack.c.h.b16 %v2751
      %v3086 = vunpack.c.l.b16 %v2752
      %v3087 = vunpack.c.l.b16 %v2753
      %v3088 = vunpack.c.h.b16 %v2753
      %v3089 = vunpack.c.l.b16 %v2754
      %v3090 = vunpack.c.h.b16 %v2754
      %v3091 = vunpack.c.l.b16 %v2755
      %v3092 = vunpack.c.l.b16 %v2756
      %v3093 = vunpack.c.h.b16 %v2756
      %v3094 = vunpack.c.l.b16 %v2757
      %v3095 = vunpack.c.h.b16 %v2757
      %v3096 = vunpack.c.l.b16 %v2758
      %v3097 = vunpack.c.l.b16 %v2759
      %v3098 = vunpack.c.h.b16 %v2759
      %v3099 = vunpack.c.l.b16 %v2760
      %v3100 = vunpack.c.h.b16 %v2760
      %v3101 = vunpack.c.l.b16 %v2761
      %v3102 = vunpack.c.l.b16 %v2762
      %v3103 = vunpack.c.h.b16 %v2762
      %v3104 = vunpack.c.l.b16 %v2763
      %v3105 = vunpack.c.h.b16 %v2763
      %v3106 = vunpack.c.l.b16 %v2764
      %v3107 = vunpack.c.l.b16 %v2765
      %v3108 = vunpack.c.h.b16 %v2765
      %v3109 = vunpack.c.l.b16 %v2766
      %v3110 = vunpack.c.h.b16 %v2766
      %v3111 = vunpack.c.l.b16 %v2767
      %v3112 = vunpack.c.l.b16 %v2768
      %v3113 = vunpack.c.h.b16 %v2768
      %v3114 = vunpack.c.l.b16 %v2769
      %v3115 = vunpack.c.h.b16 %v2769
      %v3116 = vunpack.c.l.b16 %v2770
      %v3117 = vunpack.c.l.b16 %v2771
      %v3118 = vunpack.c.h.b16 %v2771
      %v3119 = vunpack.c.l.b16 %v2772
      %v3120 = vunpack.c.h.b16 %v2772
      %v3121 = vunpack.c.l.b16 %v2773
      %v3122 = vpack.c.b16 %v2947, %v2942
      %v3123 = vpack.c.b16 %v2948, %v2943
      %v3124 = vpack.c.b16 %v2949, %v2944
      %v3125 = vpack.c.b16 %v2950, %v2945
      %v3126 = vpack.c.b16 %v2951, %v2946
      %v3127 = vpack.c.b16 %v2957, %v2952
      %v3128 = vpack.c.b16 %v2958, %v2953
      %v3129 = vpack.c.b16 %v2959, %v2954
      %v3130 = vpack.c.b16 %v2960, %v2955
      %v3131 = vpack.c.b16 %v2961, %v2956
      %v3132 = vpack.c.b16 %v2967, %v2962
      %v3133 = vpack.c.b16 %v2968, %v2963
      %v3134 = vpack.c.b16 %v2969, %v2964
      %v3135 = vpack.c.b16 %v2970, %v2965
      %v3136 = vpack.c.b16 %v2971, %v2966
      %v3137 = vpack.c.b16 %v2977, %v2972
      %v3138 = vpack.c.b16 %v2978, %v2973
      %v3139 = vpack.c.b16 %v2979, %v2974
      %v3140 = vpack.c.b16 %v2980, %v2975
      %v3141 = vpack.c.b16 %v2981, %v2976
      %v3142 = vpack.c.b16 %v2987, %v2982
      %v3143 = vpack.c.b16 %v2988, %v2983
      %v3144 = vpack.c.b16 %v2989, %v2984
      %v3145 = vpack.c.b16 %v2990, %v2985
      %v3146 = vpack.c.b16 %v2991, %v2986
      %v3147 = vpack.c.b16 %v2997, %v2992
      %v3148 = vpack.c.b16 %v2998, %v2993
      %v3149 = vpack.c.b16 %v2999, %v2994
      %v3150 = vpack.c.b16 %v3000, %v2995
      %v3151 = vpack.c.b16 %v3001, %v2996
      %v3152 = vpack.c.b16 %v3007, %v3002
      %v3153 = vpack.c.b16 %v3008, %v3003
      %v3154 = vpack.c.b16 %v3009, %v3004
      %v3155 = vpack.c.b16 %v3010, %v3005
      %v3156 = vpack.c.b16 %v3011, %v3006
      %v3157 = vpack.c.b16 %v3017, %v3012
      %v3158 = vpack.c.b16 %v3018, %v3013
      %v3159 = vpack.c.b16 %v3019, %v3014
      %v3160 = vpack.c.b16 %v3020, %v3015
      %v3161 = vpack.c.b16 %v3021, %v3016
      %v3162 = vpack.c.b16 %v3027, %v3022
      %v3163 = vpack.c.b16 %v3028, %v3023
      %v3164 = vpack.c.b16 %v3029, %v3024
      %v3165 = vpack.c.b16 %v3030, %v3025
      %v3166 = vpack.c.b16 %v3031, %v3026
      %v3167 = vpack.c.b16 %v3037, %v3032
      %v3168 = vpack.c.b16 %v3038, %v3033
      %v3169 = vpack.c.b16 %v3039, %v3034
      %v3170 = vpack.c.b16 %v3040, %v3035
      %v3171 = vpack.c.b16 %v3041, %v3036
      %v3172 = vpack.c.b16 %v3047, %v3042
      %v3173 = vpack.c.b16 %v3048, %v3043
      %v3174 = vpack.c.b16 %v3049, %v3044
      %v3175 = vpack.c.b16 %v3050, %v3045
      %v3176 = vpack.c.b16 %v3051, %v3046
      %v3177 = vpack.c.b16 %v3057, %v3052
      %v3178 = vpack.c.b16 %v3058, %v3053
      %v3179 = vpack.c.b16 %v3059, %v3054
      %v3180 = vpack.c.b16 %v3060, %v3055
      %v3181 = vpack.c.b16 %v3061, %v3056
      %v3182 = vpack.c.b16 %v3067, %v3062
      %v3183 = vpack.c.b16 %v3068, %v3063
      %v3184 = vpack.c.b16 %v3069, %v3064
      %v3185 = vpack.c.b16 %v3070, %v3065
      %v3186 = vpack.c.b16 %v3071, %v3066
      %v3187 = vpack.c.b16 %v3077, %v3072
      %v3188 = vpack.c.b16 %v3078, %v3073
      %v3189 = vpack.c.b16 %v3079, %v3074
      %v3190 = vpack.c.b16 %v3080, %v3075
      %v3191 = vpack.c.b16 %v3081, %v3076
      %v3192 = vpack.c.b16 %v3087, %v3082
      %v3193 = vpack.c.b16 %v3088, %v3083
      %v3194 = vpack.c.b16 %v3089, %v3084
      %v3195 = vpack.c.b16 %v3090, %v3085
      %v3196 = vpack.c.b16 %v3091, %v3086
      %v3197 = vpack.c.b16 %v3097, %v3092
      %v3198 = vpack.c.b16 %v3098, %v3093
      %v3199 = vpack.c.b16 %v3099, %v3094
      %v3200 = vpack.c.b16 %v3100, %v3095
      %v3201 = vpack.c.b16 %v3101, %v3096
      %v3202 = vpack.c.b16 %v3107, %v3102
      %v3203 = vpack.c.b16 %v3108, %v3103
      %v3204 = vpack.c.b16 %v3109, %v3104
      %v3205 = vpack.c.b16 %v3110, %v3105
      %v3206 = vpack.c.b16 %v3111, %v3106
      %v3207 = vpack.c.b16 %v3117, %v3112
      %v3208 = vpack.c.b16 %v3118, %v3113
      %v3209 = vpack.c.b16 %v3119, %v3114
      %v3210 = vpack.c.b16 %v3120, %v3115
      %v3211 = vpack.c.b16 %v3121, %v3116
      %vm3302 = vcmask 261120
      %v3304 = vsel %vm3302, %v2816, 0
      %v3307 = vsel %vm3302, %v2819, 0
      %v3310 = vsel %vm3302, %v2822, 0
      %v3313 = vsel %vm3302, %v2825, 0
      %3315 = vmatprep.subr.bf16.mxu0 %v3158
      %3316 = vmatpush1.bf16.msra.mxu0 %v3157
      %3317 = vmatprep.subr.bf16.mxu0 %v3153
      %3318 = vmatpush1.bf16.msra.mxu0 %v3152
      %3319 = vmatprep.subr.bf16.mxu0 %v3148
      %3320 = vmatpush1.bf16.msra.mxu0 %v3147
      %3321 = vmatprep.subr.bf16.mxu0 %v3143
      %3322 = vmatpush1.bf16.msra.mxu0 %v3142
      %3323 = vmatprep.subr.bf16.mxu0 %v3138
      %3324 = vmatpush1.bf16.msra.mxu0 %v3137
      %3325 = vmatprep.subr.bf16.mxu0 %v3133
      %3326 = vmatpush1.bf16.msra.mxu0 %v3132
      %3327 = vmatprep.subr.bf16.mxu0 %v3128
      %3328 = vmatpush1.bf16.msra.mxu0 %v3127
      %3329 = vmatprep.subr.bf16.mxu0 %v3123
      %3330 = vmatpush1.bf16.msra.mxu0 %v3122
      %3331 = vmatprep.subr.bf16.mxu0 %v3198
      %3332 = vmatpush2.bf16.msra.mxu0 %v3197
      %3333 = vmatprep.subr.bf16.mxu0 %v3193
      %3334 = vmatpush2.bf16.msra.mxu0 %v3192
      %3335 = vmatprep.subr.bf16.mxu0 %v3188
      %3336 = vmatpush2.bf16.msra.mxu0 %v3187
      %3337 = vmatprep.subr.bf16.mxu0 %v3183
      %3338 = vmatpush2.bf16.msra.mxu0 %v3182
      %3339 = vmatprep.subr.bf16.mxu0 %v3178
      %3340 = vmatpush2.bf16.msra.mxu0 %v3177
      %3341 = vmatprep.subr.bf16.mxu0 %v3173
      %3342 = vmatpush2.bf16.msra.mxu0 %v3172
      %3343 = vmatprep.subr.bf16.mxu0 %v3168
      %3344 = vmatpush2.bf16.msra.mxu0 %v3167
      %3345 = vmatprep.subr.bf16.mxu0 %v3163
      %3346 = vmatpush2.bf16.msra.mxu0 %v3162
      %3347 = vmatprep.mubr.bf16.mxu0 %v2815
      %3348 = vmatmul.mubr.bf16.gmra.mxu0 %v2814
      %v3349 = vpop.f32.mrf.mxu0
      %v3350 = vadd.f32 0.0, %v3349
      %v3351 = vpop.f32.mrf.mxu0
      %v3352 = vadd.f32 0.0, %v3351
      %v3353 = vpop.f32.mrf.mxu0
      %v3354 = vadd.f32 0.0, %v3353
      %v3355 = vpop.f32.mrf.mxu0
      %v3356 = vadd.f32 0.0, %v3355
      %3357 = vmatprep.mubr.bf16.mxu0 %v2818
      %3358 = vmatmul.mubr.bf16.gmra.mxu0 %v2817
      %v3359 = vpop.f32.mrf.mxu0
      %v3360 = vadd.f32 0.0, %v3359
      %v3361 = vpop.f32.mrf.mxu0
      %v3362 = vadd.f32 0.0, %v3361
      %v3363 = vpop.f32.mrf.mxu0
      %v3364 = vadd.f32 0.0, %v3363
      %v3365 = vpop.f32.mrf.mxu0
      %v3366 = vadd.f32 0.0, %v3365
      %3367 = vmatprep.mubr.bf16.mxu0 %v2821
      %3368 = vmatmul.mubr.bf16.gmra.mxu0 %v2820
      %v3369 = vpop.f32.mrf.mxu0
      %v3370 = vadd.f32 0.0, %v3369
      %v3371 = vpop.f32.mrf.mxu0
      %v3372 = vadd.f32 0.0, %v3371
      %v3373 = vpop.f32.mrf.mxu0
      %v3374 = vadd.f32 0.0, %v3373
      %v3375 = vpop.f32.mrf.mxu0
      %v3376 = vadd.f32 0.0, %v3375
      %3377 = vmatprep.mubr.bf16.mxu0 %v2824
      %3378 = vmatmul.mubr.bf16.gmra.mxu0 %v2823
      %v3379 = vpop.f32.mrf.mxu0
      %v3380 = vadd.f32 0.0, %v3379
      %v3381 = vpop.f32.mrf.mxu0
      %v3382 = vadd.f32 0.0, %v3381
      %v3383 = vpop.f32.mrf.mxu0
      %v3384 = vadd.f32 0.0, %v3383
      %v3385 = vpop.f32.mrf.mxu0
      %v3386 = vadd.f32 0.0, %v3385
      %3387 = vdwg.mxu0
      %3388 = vmatprep.subr.bf16.mxu0 0
      %3389 = vmatpush1.bf16.msra.mxu0 0
      %3390 = vmatprep.subr.bf16.mxu0 0
      %3391 = vmatpush1.bf16.msra.mxu0 0
      %3392 = vmatprep.subr.bf16.mxu0 0
      %3393 = vmatpush1.bf16.msra.mxu0 0
      %3394 = vmatprep.subr.bf16.mxu0 0
      %3395 = vmatpush1.bf16.msra.mxu0 0
      %3396 = vmatprep.subr.bf16.mxu0 0
      %3397 = vmatpush1.bf16.msra.mxu0 0
      %3398 = vmatprep.subr.bf16.mxu0 0
      %3399 = vmatpush1.bf16.msra.mxu0 0
      %3400 = vmatprep.subr.bf16.mxu0 %v3208
      %3401 = vmatpush1.bf16.msra.mxu0 %v3207
      %3402 = vmatprep.subr.bf16.mxu0 %v3203
      %3403 = vmatpush1.bf16.msra.mxu0 %v3202
      %3404 = vmatprep.subr.bf16.mxu0 0
      %3405 = vmatpush2.bf16.msra.mxu0 0
      %3406 = vmatprep.subr.bf16.mxu0 0
      %3407 = vmatpush2.bf16.msra.mxu0 0
      %3408 = vmatprep.subr.bf16.mxu0 0
      %3409 = vmatpush2.bf16.msra.mxu0 0
      %3410 = vmatprep.subr.bf16.mxu0 0
      %3411 = vmatpush2.bf16.msra.mxu0 0
      %3412 = vmatprep.subr.bf16.mxu0 0
      %3413 = vmatpush2.bf16.msra.mxu0 0
      %3414 = vmatprep.subr.bf16.mxu0 0
      %3415 = vmatpush2.bf16.msra.mxu0 0
      %3416 = vmatprep.subr.bf16.mxu0 0
      %3417 = vmatpush2.bf16.msra.mxu0 0
      %3418 = vmatprep.subr.bf16.mxu0 0
      %3419 = vmatpush2.bf16.msra.mxu0 0
      %3420 = vmatprep.mubr.bf16.mxu0 0
      %3421 = vmatmul.mubr.bf16.gmra.mxu0 %v3304
      %v3422 = vpop.f32.mrf.mxu0
      %v3423 = vadd.f32 %v3350, %v3422
      %v3424 = vpop.f32.mrf.mxu0
      %v3425 = vadd.f32 %v3352, %v3424
      %v3426 = vpop.f32.mrf.mxu0
      %v3427 = vadd.f32 %v3354, %v3426
      %v3428 = vpop.f32.mrf.mxu0
      %v3429 = vadd.f32 %v3356, %v3428
      %3430 = vmatprep.mubr.bf16.mxu0 0
      %3431 = vmatmul.mubr.bf16.gmra.mxu0 %v3307
      %v3432 = vpop.f32.mrf.mxu0
      %v3433 = vadd.f32 %v3360, %v3432
      %v3434 = vpop.f32.mrf.mxu0
      %v3435 = vadd.f32 %v3362, %v3434
      %v3436 = vpop.f32.mrf.mxu0
      %v3437 = vadd.f32 %v3364, %v3436
      %v3438 = vpop.f32.mrf.mxu0
      %v3439 = vadd.f32 %v3366, %v3438
      %3440 = vmatprep.mubr.bf16.mxu0 0
      %3441 = vmatmul.mubr.bf16.gmra.mxu0 %v3310
      %v3442 = vpop.f32.mrf.mxu0
      %v3443 = vadd.f32 %v3370, %v3442
      %v3444 = vpop.f32.mrf.mxu0
      %v3445 = vadd.f32 %v3372, %v3444
      %v3446 = vpop.f32.mrf.mxu0
      %v3447 = vadd.f32 %v3374, %v3446
      %v3448 = vpop.f32.mrf.mxu0
      %v3449 = vadd.f32 %v3376, %v3448
      %3450 = vmatprep.mubr.bf16.mxu0 0
      %3451 = vmatmul.mubr.bf16.gmra.mxu0 %v3313
      %v3452 = vpop.f32.mrf.mxu0
      %v3453 = vadd.f32 %v3380, %v3452
      %v3454 = vpop.f32.mrf.mxu0
      %v3455 = vadd.f32 %v3382, %v3454
      %v3456 = vpop.f32.mrf.mxu0
      %v3457 = vadd.f32 %v3384, %v3456
      %v3458 = vpop.f32.mrf.mxu0
      %v3459 = vadd.f32 %v3386, %v3458
      %3460 = vdwg.mxu0
      %3461 = vmatprep.subr.bf16.mxu0 %v3160
      %3462 = vmatpush1.bf16.msra.mxu0 %v3159
      %3463 = vmatprep.subr.bf16.mxu0 %v3155
      %3464 = vmatpush1.bf16.msra.mxu0 %v3154
      %3465 = vmatprep.subr.bf16.mxu0 %v3150
      %3466 = vmatpush1.bf16.msra.mxu0 %v3149
      %3467 = vmatprep.subr.bf16.mxu0 %v3145
      %3468 = vmatpush1.bf16.msra.mxu0 %v3144
      %3469 = vmatprep.subr.bf16.mxu0 %v3140
      %3470 = vmatpush1.bf16.msra.mxu0 %v3139
      %3471 = vmatprep.subr.bf16.mxu0 %v3135
      %3472 = vmatpush1.bf16.msra.mxu0 %v3134
      %3473 = vmatprep.subr.bf16.mxu0 %v3130
      %3474 = vmatpush1.bf16.msra.mxu0 %v3129
      %3475 = vmatprep.subr.bf16.mxu0 %v3125
      %3476 = vmatpush1.bf16.msra.mxu0 %v3124
      %3477 = vmatprep.subr.bf16.mxu0 %v3200
      %3478 = vmatpush2.bf16.msra.mxu0 %v3199
      %3479 = vmatprep.subr.bf16.mxu0 %v3195
      %3480 = vmatpush2.bf16.msra.mxu0 %v3194
      %3481 = vmatprep.subr.bf16.mxu0 %v3190
      %3482 = vmatpush2.bf16.msra.mxu0 %v3189
      %3483 = vmatprep.subr.bf16.mxu0 %v3185
      %3484 = vmatpush2.bf16.msra.mxu0 %v3184
      %3485 = vmatprep.subr.bf16.mxu0 %v3180
      %3486 = vmatpush2.bf16.msra.mxu0 %v3179
      %3487 = vmatprep.subr.bf16.mxu0 %v3175
      %3488 = vmatpush2.bf16.msra.mxu0 %v3174
      %3489 = vmatprep.subr.bf16.mxu0 %v3170
      %3490 = vmatpush2.bf16.msra.mxu0 %v3169
      %3491 = vmatprep.subr.bf16.mxu0 %v3165
      %3492 = vmatpush2.bf16.msra.mxu0 %v3164
      %3493 = vmatprep.mubr.bf16.mxu0 %v2815
      %3494 = vmatmul.mubr.bf16.gmra.mxu0 %v2814
      %v3495 = vpop.f32.mrf.mxu0
      %v3496 = vadd.f32 0.0, %v3495
      %v3497 = vpop.f32.mrf.mxu0
      %v3498 = vadd.f32 0.0, %v3497
      %v3499 = vpop.f32.mrf.mxu0
      %v3500 = vadd.f32 0.0, %v3499
      %v3501 = vpop.f32.mrf.mxu0
      %v3502 = vadd.f32 0.0, %v3501
      %3503 = vmatprep.mubr.bf16.mxu0 %v2818
      %3504 = vmatmul.mubr.bf16.gmra.mxu0 %v2817
      %v3505 = vpop.f32.mrf.mxu0
      %v3506 = vadd.f32 0.0, %v3505
      %v3507 = vpop.f32.mrf.mxu0
      %v3508 = vadd.f32 0.0, %v3507
      %v3509 = vpop.f32.mrf.mxu0
      %v3510 = vadd.f32 0.0, %v3509
      %v3511 = vpop.f32.mrf.mxu0
      %v3512 = vadd.f32 0.0, %v3511
      %3513 = vmatprep.mubr.bf16.mxu0 %v2821
      %3514 = vmatmul.mubr.bf16.gmra.mxu0 %v2820
      %v3515 = vpop.f32.mrf.mxu0
      %v3516 = vadd.f32 0.0, %v3515
      %v3517 = vpop.f32.mrf.mxu0
      %v3518 = vadd.f32 0.0, %v3517
      %v3519 = vpop.f32.mrf.mxu0
      %v3520 = vadd.f32 0.0, %v3519
      %v3521 = vpop.f32.mrf.mxu0
      %v3522 = vadd.f32 0.0, %v3521
      %3523 = vmatprep.mubr.bf16.mxu0 %v2824
      %3524 = vmatmul.mubr.bf16.gmra.mxu0 %v2823
      %v3525 = vpop.f32.mrf.mxu0
      %v3526 = vadd.f32 0.0, %v3525
      %v3527 = vpop.f32.mrf.mxu0
      %v3528 = vadd.f32 0.0, %v3527
      %v3529 = vpop.f32.mrf.mxu0
      %v3530 = vadd.f32 0.0, %v3529
      %v3531 = vpop.f32.mrf.mxu0
      %v3532 = vadd.f32 0.0, %v3531
      %3533 = vdwg.mxu0
      %3534 = vmatprep.subr.bf16.mxu0 0
      %3535 = vmatpush1.bf16.msra.mxu0 0
      %3536 = vmatprep.subr.bf16.mxu0 0
      %3537 = vmatpush1.bf16.msra.mxu0 0
      %3538 = vmatprep.subr.bf16.mxu0 0
      %3539 = vmatpush1.bf16.msra.mxu0 0
      %3540 = vmatprep.subr.bf16.mxu0 0
      %3541 = vmatpush1.bf16.msra.mxu0 0
      %3542 = vmatprep.subr.bf16.mxu0 0
      %3543 = vmatpush1.bf16.msra.mxu0 0
      %3544 = vmatprep.subr.bf16.mxu0 0
      %3545 = vmatpush1.bf16.msra.mxu0 0
      %3546 = vmatprep.subr.bf16.mxu0 %v3210
      %3547 = vmatpush1.bf16.msra.mxu0 %v3209
      %3548 = vmatprep.subr.bf16.mxu0 %v3205
      %3549 = vmatpush1.bf16.msra.mxu0 %v3204
      %3550 = vmatprep.subr.bf16.mxu0 0
      %3551 = vmatpush2.bf16.msra.mxu0 0
      %3552 = vmatprep.subr.bf16.mxu0 0
      %3553 = vmatpush2.bf16.msra.mxu0 0
      %3554 = vmatprep.subr.bf16.mxu0 0
      %3555 = vmatpush2.bf16.msra.mxu0 0
      %3556 = vmatprep.subr.bf16.mxu0 0
      %3557 = vmatpush2.bf16.msra.mxu0 0
      %3558 = vmatprep.subr.bf16.mxu0 0
      %3559 = vmatpush2.bf16.msra.mxu0 0
      %3560 = vmatprep.subr.bf16.mxu0 0
      %3561 = vmatpush2.bf16.msra.mxu0 0
      %3562 = vmatprep.subr.bf16.mxu0 0
      %3563 = vmatpush2.bf16.msra.mxu0 0
      %3564 = vmatprep.subr.bf16.mxu0 0
      %3565 = vmatpush2.bf16.msra.mxu0 0
      %3566 = vmatprep.mubr.bf16.mxu0 0
      %3567 = vmatmul.mubr.bf16.gmra.mxu0 %v3304
      %v3568 = vpop.f32.mrf.mxu0
      %v3569 = vadd.f32 %v3496, %v3568
      %v3570 = vpop.f32.mrf.mxu0
      %v3571 = vadd.f32 %v3498, %v3570
      %v3572 = vpop.f32.mrf.mxu0
      %v3573 = vadd.f32 %v3500, %v3572
      %v3574 = vpop.f32.mrf.mxu0
      %v3575 = vadd.f32 %v3502, %v3574
      %3576 = vmatprep.mubr.bf16.mxu0 0
      %3577 = vmatmul.mubr.bf16.gmra.mxu0 %v3307
      %v3578 = vpop.f32.mrf.mxu0
      %v3579 = vadd.f32 %v3506, %v3578
      %v3580 = vpop.f32.mrf.mxu0
      %v3581 = vadd.f32 %v3508, %v3580
      %v3582 = vpop.f32.mrf.mxu0
      %v3583 = vadd.f32 %v3510, %v3582
      %v3584 = vpop.f32.mrf.mxu0
      %v3585 = vadd.f32 %v3512, %v3584
      %3586 = vmatprep.mubr.bf16.mxu0 0
      %3587 = vmatmul.mubr.bf16.gmra.mxu0 %v3310
      %v3588 = vpop.f32.mrf.mxu0
      %v3589 = vadd.f32 %v3516, %v3588
      %v3590 = vpop.f32.mrf.mxu0
      %v3591 = vadd.f32 %v3518, %v3590
      %v3592 = vpop.f32.mrf.mxu0
      %v3593 = vadd.f32 %v3520, %v3592
      %v3594 = vpop.f32.mrf.mxu0
      %v3595 = vadd.f32 %v3522, %v3594
      %3596 = vmatprep.mubr.bf16.mxu0 0
      %3597 = vmatmul.mubr.bf16.gmra.mxu0 %v3313
      %v3598 = vpop.f32.mrf.mxu0
      %v3599 = vadd.f32 %v3526, %v3598
      %v3600 = vpop.f32.mrf.mxu0
      %v3601 = vadd.f32 %v3528, %v3600
      %v3602 = vpop.f32.mrf.mxu0
      %v3603 = vadd.f32 %v3530, %v3602
      %v3604 = vpop.f32.mrf.mxu0
      %v3605 = vadd.f32 %v3532, %v3604
      %3606 = vdwg.mxu0
      %3607 = vmatprep.subr.bf16.mxu0 0
      %3608 = vmatpush1.bf16.msra.mxu0 %v3161
      %3609 = vmatprep.subr.bf16.mxu0 0
      %3610 = vmatpush1.bf16.msra.mxu0 %v3156
      %3611 = vmatprep.subr.bf16.mxu0 0
      %3612 = vmatpush1.bf16.msra.mxu0 %v3151
      %3613 = vmatprep.subr.bf16.mxu0 0
      %3614 = vmatpush1.bf16.msra.mxu0 %v3146
      %3615 = vmatprep.subr.bf16.mxu0 0
      %3616 = vmatpush1.bf16.msra.mxu0 %v3141
      %3617 = vmatprep.subr.bf16.mxu0 0
      %3618 = vmatpush1.bf16.msra.mxu0 %v3136
      %3619 = vmatprep.subr.bf16.mxu0 0
      %3620 = vmatpush1.bf16.msra.mxu0 %v3131
      %3621 = vmatprep.subr.bf16.mxu0 0
      %3622 = vmatpush1.bf16.msra.mxu0 %v3126
      %3623 = vmatprep.subr.bf16.mxu0 0
      %3624 = vmatpush2.bf16.msra.mxu0 %v3201
      %3625 = vmatprep.subr.bf16.mxu0 0
      %3626 = vmatpush2.bf16.msra.mxu0 %v3196
      %3627 = vmatprep.subr.bf16.mxu0 0
      %3628 = vmatpush2.bf16.msra.mxu0 %v3191
      %3629 = vmatprep.subr.bf16.mxu0 0
      %3630 = vmatpush2.bf16.msra.mxu0 %v3186
      %3631 = vmatprep.subr.bf16.mxu0 0
      %3632 = vmatpush2.bf16.msra.mxu0 %v3181
      %3633 = vmatprep.subr.bf16.mxu0 0
      %3634 = vmatpush2.bf16.msra.mxu0 %v3176
      %3635 = vmatprep.subr.bf16.mxu0 0
      %3636 = vmatpush2.bf16.msra.mxu0 %v3171
      %3637 = vmatprep.subr.bf16.mxu0 0
      %3638 = vmatpush2.bf16.msra.mxu0 %v3166
      %3639 = vmatprep.mubr.bf16.mxu0 %v2815
      %3640 = vmatmul.mubr.bf16.gmra.mxu0 %v2814
      %v3641 = vpop.f32.mrf.mxu0
      %v3642 = vadd.f32 0.0, %v3641
      %v3643 = vpop.f32.mrf.mxu0
      %v3644 = vpop.f32.mrf.mxu0
      %v3645 = vadd.f32 0.0, %v3644
      %v3646 = vpop.f32.mrf.mxu0
      %3647 = vmatprep.mubr.bf16.mxu0 %v2818
      %3648 = vmatmul.mubr.bf16.gmra.mxu0 %v2817
      %v3649 = vpop.f32.mrf.mxu0
      %v3650 = vadd.f32 0.0, %v3649
      %v3651 = vpop.f32.mrf.mxu0
      %v3652 = vpop.f32.mrf.mxu0
      %v3653 = vadd.f32 0.0, %v3652
      %v3654 = vpop.f32.mrf.mxu0
      %3655 = vmatprep.mubr.bf16.mxu0 %v2821
      %3656 = vmatmul.mubr.bf16.gmra.mxu0 %v2820
      %v3657 = vpop.f32.mrf.mxu0
      %v3658 = vadd.f32 0.0, %v3657
      %v3659 = vpop.f32.mrf.mxu0
      %v3660 = vpop.f32.mrf.mxu0
      %v3661 = vadd.f32 0.0, %v3660
      %v3662 = vpop.f32.mrf.mxu0
      %3663 = vmatprep.mubr.bf16.mxu0 %v2824
      %3664 = vmatmul.mubr.bf16.gmra.mxu0 %v2823
      %v3665 = vpop.f32.mrf.mxu0
      %v3666 = vadd.f32 0.0, %v3665
      %v3667 = vpop.f32.mrf.mxu0
      %v3668 = vpop.f32.mrf.mxu0
      %v3669 = vadd.f32 0.0, %v3668
      %v3670 = vpop.f32.mrf.mxu0
      %3671 = vdwg.mxu0
      %3672 = vmatprep.subr.bf16.mxu0 0
      %3673 = vmatpush1.bf16.msra.mxu0 0
      %3674 = vmatprep.subr.bf16.mxu0 0
      %3675 = vmatpush1.bf16.msra.mxu0 0
      %3676 = vmatprep.subr.bf16.mxu0 0
      %3677 = vmatpush1.bf16.msra.mxu0 0
      %3678 = vmatprep.subr.bf16.mxu0 0
      %3679 = vmatpush1.bf16.msra.mxu0 0
      %3680 = vmatprep.subr.bf16.mxu0 0
      %3681 = vmatpush1.bf16.msra.mxu0 0
      %3682 = vmatprep.subr.bf16.mxu0 0
      %3683 = vmatpush1.bf16.msra.mxu0 0
      %3684 = vmatprep.subr.bf16.mxu0 0
      %3685 = vmatpush1.bf16.msra.mxu0 %v3211
      %3686 = vmatprep.subr.bf16.mxu0 0
      %3687 = vmatpush1.bf16.msra.mxu0 %v3206
      %3688 = vmatprep.subr.bf16.mxu0 0
      %3689 = vmatpush2.bf16.msra.mxu0 0
      %3690 = vmatprep.subr.bf16.mxu0 0
      %3691 = vmatpush2.bf16.msra.mxu0 0
      %3692 = vmatprep.subr.bf16.mxu0 0
      %3693 = vmatpush2.bf16.msra.mxu0 0
      %3694 = vmatprep.subr.bf16.mxu0 0
      %3695 = vmatpush2.bf16.msra.mxu0 0
      %3696 = vmatprep.subr.bf16.mxu0 0
      %3697 = vmatpush2.bf16.msra.mxu0 0
      %3698 = vmatprep.subr.bf16.mxu0 0
      %3699 = vmatpush2.bf16.msra.mxu0 0
      %3700 = vmatprep.subr.bf16.mxu0 0
      %3701 = vmatpush2.bf16.msra.mxu0 0
      %3702 = vmatprep.subr.bf16.mxu0 0
      %3703 = vmatpush2.bf16.msra.mxu0 0
      %3704 = vmatprep.mubr.bf16.mxu0 0
      %3705 = vmatmul.mubr.bf16.gmra.mxu0 %v3304
      %v3706 = vpop.f32.mrf.mxu0
      %v3707 = vadd.f32 %v3642, %v3706
      %v3708 = vpop.f32.mrf.mxu0
      %v3709 = vpop.f32.mrf.mxu0
      %v3710 = vadd.f32 %v3645, %v3709
      %v3711 = vpop.f32.mrf.mxu0
      %3712 = vmatprep.mubr.bf16.mxu0 0
      %3713 = vmatmul.mubr.bf16.gmra.mxu0 %v3307
      %v3714 = vpop.f32.mrf.mxu0
      %v3715 = vadd.f32 %v3650, %v3714
      %v3716 = vpop.f32.mrf.mxu0
      %v3717 = vpop.f32.mrf.mxu0
      %v3718 = vadd.f32 %v3653, %v3717
      %v3719 = vpop.f32.mrf.mxu0
      %3720 = vmatprep.mubr.bf16.mxu0 0
      %3721 = vmatmul.mubr.bf16.gmra.mxu0 %v3310
      %v3722 = vpop.f32.mrf.mxu0
      %v3723 = vadd.f32 %v3658, %v3722
      %v3724 = vpop.f32.mrf.mxu0
      %v3725 = vpop.f32.mrf.mxu0
      %v3726 = vadd.f32 %v3661, %v3725
      %v3727 = vpop.f32.mrf.mxu0
      %3728 = vmatprep.mubr.bf16.mxu0 0
      %3729 = vmatmul.mubr.bf16.gmra.mxu0 %v3313
      %v3730 = vpop.f32.mrf.mxu0
      %v3731 = vadd.f32 %v3666, %v3730
      %v3732 = vpop.f32.mrf.mxu0
      %v3733 = vpop.f32.mrf.mxu0
      %v3734 = vadd.f32 %v3669, %v3733
      %v3735 = vpop.f32.mrf.mxu0
      %3736 = vdwg.mxu0
      %3753 = vrot.lane.b32.xlu0 %v3425, 96
      %v3754 = vpop.permute.xlu0 %3753
      %3755 = vrot.lane.b32.xlu0 %v3569, 96
      %v3756 = vpop.permute.xlu0 %3755
      %3757 = vrot.lane.b32.xlu0 %v3429, 96
      %v3758 = vpop.permute.xlu0 %3757
      %3759 = vrot.lane.b32.xlu0 %v3573, 96
      %v3760 = vpop.permute.xlu0 %3759
      %3761 = vrot.lane.b32.xlu0 %v3435, 96
      %v3762 = vpop.permute.xlu0 %3761
      %3763 = vrot.lane.b32.xlu0 %v3579, 96
      %v3764 = vpop.permute.xlu0 %3763
      %3765 = vrot.lane.b32.xlu0 %v3439, 96
      %v3766 = vpop.permute.xlu0 %3765
      %3767 = vrot.lane.b32.xlu0 %v3583, 96
      %v3768 = vpop.permute.xlu0 %3767
      %3769 = vrot.lane.b32.xlu0 %v3445, 96
      %v3770 = vpop.permute.xlu0 %3769
      %3771 = vrot.lane.b32.xlu0 %v3589, 96
      %v3772 = vpop.permute.xlu0 %3771
      %3773 = vrot.lane.b32.xlu0 %v3449, 96
      %v3774 = vpop.permute.xlu0 %3773
      %3775 = vrot.lane.b32.xlu0 %v3593, 96
      %v3776 = vpop.permute.xlu0 %3775
      %3777 = vrot.lane.b32.xlu0 %v3455, 96
      %v3778 = vpop.permute.xlu0 %3777
      %3779 = vrot.lane.b32.xlu0 %v3599, 96
      %v3780 = vpop.permute.xlu0 %3779
      %3781 = vrot.lane.b32.xlu0 %v3459, 96
      %v3782 = vpop.permute.xlu0 %3781
      %3783 = vrot.lane.b32.xlu0 %v3603, 96
      %v3784 = vpop.permute.xlu0 %3783
      %vm3785 = vcmask 785408
      %v3786 = vsel %vm3785, %v3754, %v3756
      %v3787 = vsel %vm3785, %v3758, %v3760
      %v3788 = vsel %vm3785, %v3762, %v3764
      %v3789 = vsel %vm3785, %v3766, %v3768
      %v3790 = vsel %vm3785, %v3770, %v3772
      %v3791 = vsel %vm3785, %v3774, %v3776
      %v3792 = vsel %vm3785, %v3778, %v3780
      %v3793 = vsel %vm3785, %v3782, %v3784
      %v3810 = vmax.f32 %v3423, %v3786
      %v3811 = vmax.f32 %v3425, %v3756
      %v3812 = vmax.f32 %v3427, %v3787
      %v3813 = vmax.f32 %v3429, %v3760
      %v3814 = vmax.f32 %v3433, %v3788
      %v3815 = vmax.f32 %v3435, %v3764
      %v3816 = vmax.f32 %v3437, %v3789
      %v3817 = vmax.f32 %v3439, %v3768
      %v3818 = vmax.f32 %v3443, %v3790
      %v3819 = vmax.f32 %v3445, %v3772
      %v3820 = vmax.f32 %v3447, %v3791
      %v3821 = vmax.f32 %v3449, %v3776
      %v3822 = vmax.f32 %v3453, %v3792
      %v3823 = vmax.f32 %v3455, %v3780
      %v3824 = vmax.f32 %v3457, %v3793
      %v3825 = vmax.f32 %v3459, %v3784
      %3842 = vrot.lane.b32.xlu0 %v3571, 96
      %v3843 = vpop.permute.xlu0 %3842
      %3844 = vrot.lane.b32.xlu0 %v3707, 96
      %v3845 = vpop.permute.xlu0 %3844
      %3846 = vrot.lane.b32.xlu0 %v3575, 96
      %v3847 = vpop.permute.xlu0 %3846
      %3848 = vrot.lane.b32.xlu0 %v3710, 96
      %v3849 = vpop.permute.xlu0 %3848
      %3850 = vrot.lane.b32.xlu0 %v3581, 96
      %v3851 = vpop.permute.xlu0 %3850
      %3852 = vrot.lane.b32.xlu0 %v3715, 96
      %v3853 = vpop.permute.xlu0 %3852
      %3854 = vrot.lane.b32.xlu0 %v3585, 96
      %v3855 = vpop.permute.xlu0 %3854
      %3856 = vrot.lane.b32.xlu0 %v3718, 96
      %v3857 = vpop.permute.xlu0 %3856
      %3858 = vrot.lane.b32.xlu0 %v3591, 96
      %v3859 = vpop.permute.xlu0 %3858
      %3860 = vrot.lane.b32.xlu0 %v3723, 96
      %v3861 = vpop.permute.xlu0 %3860
      %3862 = vrot.lane.b32.xlu0 %v3595, 96
      %v3863 = vpop.permute.xlu0 %3862
      %3864 = vrot.lane.b32.xlu0 %v3726, 96
      %v3865 = vpop.permute.xlu0 %3864
      %3866 = vrot.lane.b32.xlu0 %v3601, 96
      %v3867 = vpop.permute.xlu0 %3866
      %3868 = vrot.lane.b32.xlu0 %v3731, 96
      %v3869 = vpop.permute.xlu0 %3868
      %3870 = vrot.lane.b32.xlu0 %v3605, 96
      %v3871 = vpop.permute.xlu0 %3870
      %3872 = vrot.lane.b32.xlu0 %v3734, 96
      %v3873 = vpop.permute.xlu0 %3872
      %v3874 = vsel %vm3785, %v3843, %v3845
      %v3875 = vsel %vm3785, %v3847, %v3849
      %v3876 = vsel %vm3785, %v3851, %v3853
      %v3877 = vsel %vm3785, %v3855, %v3857
      %v3878 = vsel %vm3785, %v3859, %v3861
      %v3879 = vsel %vm3785, %v3863, %v3865
      %v3880 = vsel %vm3785, %v3867, %v3869
      %v3881 = vsel %vm3785, %v3871, %v3873
      %v3898 = vmax.f32 %v3569, %v3874
      %v3899 = vmax.f32 %v3571, %v3845
      %v3900 = vmax.f32 %v3573, %v3875
      %v3901 = vmax.f32 %v3575, %v3849
      %v3902 = vmax.f32 %v3579, %v3876
      %v3903 = vmax.f32 %v3581, %v3853
      %v3904 = vmax.f32 %v3583, %v3877
      %v3905 = vmax.f32 %v3585, %v3857
      %v3906 = vmax.f32 %v3589, %v3878
      %v3907 = vmax.f32 %v3591, %v3861
      %v3908 = vmax.f32 %v3593, %v3879
      %v3909 = vmax.f32 %v3595, %v3865
      %v3910 = vmax.f32 %v3599, %v3880
      %v3911 = vmax.f32 %v3601, %v3869
      %v3912 = vmax.f32 %v3603, %v3881
      %v3913 = vmax.f32 %v3605, %v3873
      %3930 = vrot.lane.b32.xlu0 %v3898, 64
      %v3931 = vpop.permute.xlu0 %3930
      %3932 = vrot.lane.b32.xlu0 %v3899, 64
      %v3933 = vpop.permute.xlu0 %3932
      %3934 = vrot.lane.b32.xlu0 %v3900, 64
      %v3935 = vpop.permute.xlu0 %3934
      %3936 = vrot.lane.b32.xlu0 %v3901, 64
      %v3937 = vpop.permute.xlu0 %3936
      %3938 = vrot.lane.b32.xlu0 %v3902, 64
      %v3939 = vpop.permute.xlu0 %3938
      %3940 = vrot.lane.b32.xlu0 %v3903, 64
      %v3941 = vpop.permute.xlu0 %3940
      %3942 = vrot.lane.b32.xlu0 %v3904, 64
      %v3943 = vpop.permute.xlu0 %3942
      %3944 = vrot.lane.b32.xlu0 %v3905, 64
      %v3945 = vpop.permute.xlu0 %3944
      %3946 = vrot.lane.b32.xlu0 %v3906, 64
      %v3947 = vpop.permute.xlu0 %3946
      %3948 = vrot.lane.b32.xlu0 %v3907, 64
      %v3949 = vpop.permute.xlu0 %3948
      %3950 = vrot.lane.b32.xlu0 %v3908, 64
      %v3951 = vpop.permute.xlu0 %3950
      %3952 = vrot.lane.b32.xlu0 %v3909, 64
      %v3953 = vpop.permute.xlu0 %3952
      %3954 = vrot.lane.b32.xlu0 %v3910, 64
      %v3955 = vpop.permute.xlu0 %3954
      %3956 = vrot.lane.b32.xlu0 %v3911, 64
      %v3957 = vpop.permute.xlu0 %3956
      %3958 = vrot.lane.b32.xlu0 %v3912, 64
      %v3959 = vpop.permute.xlu0 %3958
      %3960 = vrot.lane.b32.xlu0 %v3913, 64
      %v3961 = vpop.permute.xlu0 %3960
      %v3962 = vsel %vm511, %v3931, %v3933
      %v3963 = vsel %vm511, %v3935, %v3937
      %v3964 = vsel %vm511, %v3939, %v3941
      %v3965 = vsel %vm511, %v3943, %v3945
      %v3966 = vsel %vm511, %v3947, %v3949
      %v3967 = vsel %vm511, %v3951, %v3953
      %v3968 = vsel %vm511, %v3955, %v3957
      %v3969 = vsel %vm511, %v3959, %v3961
      %v3986 = vmax.f32 %v3810, %v3962
      %v3987 = vmax.f32 %v3811, %v3933
      %v3988 = vmax.f32 %v3812, %v3963
      %v3989 = vmax.f32 %v3813, %v3937
      %v3990 = vmax.f32 %v3814, %v3964
      %v3991 = vmax.f32 %v3815, %v3941
      %v3992 = vmax.f32 %v3816, %v3965
      %v3993 = vmax.f32 %v3817, %v3945
      %v3994 = vmax.f32 %v3818, %v3966
      %v3995 = vmax.f32 %v3819, %v3949
      %v3996 = vmax.f32 %v3820, %v3967
      %v3997 = vmax.f32 %v3821, %v3953
      %v3998 = vmax.f32 %v3822, %v3968
      %v3999 = vmax.f32 %v3823, %v3957
      %v4000 = vmax.f32 %v3824, %v3969
      %v4001 = vmax.f32 %v3825, %v3961
      %v4002 = vld [vmem:[%s4] sm:$0xff]
      %v4003 = vld [vmem:[%s4 + $0x8] sm:$0xff]
      %v4004 = vld [vmem:[%s4 + $0x10] sm:$0xff]
      %v4005 = vld [vmem:[%s4 + $0x18] sm:$0xff]
      %v4006 = vld [vmem:[%s4 + $0x20] sm:$0xff]
      %v4007 = vld [vmem:[%s4 + $0x28] sm:$0xff]
      %v4008 = vld [vmem:[%s4 + $0x30] sm:$0xff]
      %v4009 = vld [vmem:[%s4 + $0x38] sm:$0xff]
      %4011 = vset.pattern.permute.xlu0 0
      %4012 = vperm.xlu0 %4011, %v4002
      %v4013 = vpop.permute.xlu0 %4012
      %4016 = vset.pattern.permute.xlu0 0
      %4017 = vperm.xlu0 %4016, %v4003
      %v4018 = vpop.permute.xlu0 %4017
      %4021 = vset.pattern.permute.xlu0 0
      %4022 = vperm.xlu0 %4021, %v4004
      %v4023 = vpop.permute.xlu0 %4022
      %4026 = vset.pattern.permute.xlu0 0
      %4027 = vperm.xlu0 %4026, %v4005
      %v4028 = vpop.permute.xlu0 %4027
      %4031 = vset.pattern.permute.xlu0 0
      %4032 = vperm.xlu0 %4031, %v4006
      %v4033 = vpop.permute.xlu0 %4032
      %4036 = vset.pattern.permute.xlu0 0
      %4037 = vperm.xlu0 %4036, %v4007
      %v4038 = vpop.permute.xlu0 %4037
      %4041 = vset.pattern.permute.xlu0 0
      %4042 = vperm.xlu0 %4041, %v4008
      %v4043 = vpop.permute.xlu0 %4042
      %4046 = vset.pattern.permute.xlu0 0
      %4047 = vperm.xlu0 %4046, %v4009
      %v4048 = vpop.permute.xlu0 %4047
      %v4050 = vadd.f32 %v3986, %v4013
      %v4051 = vadd.f32 %v3987, %v4013
      %v4052 = vadd.f32 %v3988, %v4018
      %v4053 = vadd.f32 %v3989, %v4018
      %v4054 = vadd.f32 %v3990, %v4023
      %v4055 = vadd.f32 %v3991, %v4023
      %v4056 = vadd.f32 %v3992, %v4028
      %v4057 = vadd.f32 %v3993, %v4028
      %v4058 = vadd.f32 %v3994, %v4033
      %v4059 = vadd.f32 %v3995, %v4033
      %v4060 = vadd.f32 %v3996, %v4038
      %v4061 = vadd.f32 %v3997, %v4038
      %v4062 = vadd.f32 %v3998, %v4043
      %v4063 = vadd.f32 %v3999, %v4043
      %v4064 = vadd.f32 %v4000, %v4048
      %v4065 = vadd.f32 %v4001, %v4048
      %v4066 = vpack.c.bf16 %v4052, %v4050
      %v4067 = vpack.c.bf16 %v4053, %v4051
      %v4068 = vpack.c.bf16 %v4056, %v4054
      %v4069 = vpack.c.bf16 %v4057, %v4055
      %v4070 = vpack.c.bf16 %v4060, %v4058
      %v4071 = vpack.c.bf16 %v4061, %v4059
      %v4072 = vpack.c.bf16 %v4064, %v4062
      %v4073 = vpack.c.bf16 %v4065, %v4063
      %v4082 = vunpack.c.l.b16 %v4066
      %v4083 = vunpack.c.l.b16 %v4067
      %v4084 = vunpack.c.h.b16 %v4066
      %v4085 = vunpack.c.h.b16 %v4067
      %v4086 = vunpack.c.l.b16 %v4068
      %v4087 = vunpack.c.l.b16 %v4069
      %v4088 = vunpack.c.h.b16 %v4068
      %v4089 = vunpack.c.h.b16 %v4069
      %v4090 = vunpack.c.l.b16 %v4070
      %v4091 = vunpack.c.l.b16 %v4071
      %v4092 = vunpack.c.h.b16 %v4070
      %v4093 = vunpack.c.h.b16 %v4071
      %v4094 = vunpack.c.l.b16 %v4072
      %v4095 = vunpack.c.l.b16 %v4073
      %v4096 = vunpack.c.h.b16 %v4072
      %v4097 = vunpack.c.h.b16 %v4073
      %v4098 = vpack.c.b16 %v4083, %v4082
      %v4099 = vpack.c.b16 %v4085, %v4084
      %v4100 = vpack.c.b16 %v4087, %v4086
      %v4101 = vpack.c.b16 %v4089, %v4088
      %v4102 = vpack.c.b16 %v4091, %v4090
      %v4103 = vpack.c.b16 %v4093, %v4092
      %v4104 = vpack.c.b16 %v4095, %v4094
      %v4105 = vpack.c.b16 %v4097, %v4096
      %4114 = vst.msk [vmem:[%s224] sm:$0xff] %vm564, %v4098
      %4115 = vst.msk [vmem:[%s224 + $0x8] sm:$0xff] %vm564, %v4099
      %4116 = vst.msk [vmem:[%s224 + $0x10] sm:$0xff] %vm564, %v4100
      %4117 = vst.msk [vmem:[%s224 + $0x18] sm:$0xff] %vm564, %v4101
      %4118 = vst.msk [vmem:[%s224 + $0x20] sm:$0xff] %vm564, %v4102
      %4119 = vst.msk [vmem:[%s224 + $0x28] sm:$0xff] %vm564, %v4103
      %4120 = vst.msk [vmem:[%s224 + $0x30] sm:$0xff] %vm564, %v4104
      %4121 = vst.msk [vmem:[%s224 + $0x38] sm:$0xff] %vm564, %v4105
      %p4122 = scmp.lt.s32.totalorder %s16, 1
      %s4123 = scalar_select %p4122, %s16, 1
      %s4124 = smul.addr %s4123, 16
      %s4125 = smul.addr %s4124, 4
      %s4126 = scalar_lea.vmem %s5, %s4125
      // Predicated region
      $region41: #{net_forward.2} parent=39 // pred_check
        %p4127 = pneg %p144
      $region42: #{net_forward.2} parent=39 // pred_check_branch
        %4129 = sbr.rel (%p4127) target = $region44
      $region43: #{net_forward.2} parent=39 // pred_region
        _
      $region44: #{net_forward.2} parent=39 // pred_fallthru
        _
    $region40: #{net_forward.2} parent=5 // pred_fallthru
      _
    %p4130 = scmp.le.s32.totalorder 2, %s11
    // Predicated region
    $region45: #{net_forward.2} parent=5 // pred_check
      %p4131 = pneg %p4130
    $region46: #{net_forward.2} parent=5 // pred_check_branch
      %4133 = sbr.rel (%p4131) target = $region48
    $region47: #{net_forward.2} parent=5 // pred_region
      %s4134 = ssub.s32 %s11, 2
      // Predicated region
      $region49: #{net_forward.2} parent=47 // pred_check
        %p4135 = pneg %p150
      $region50: #{net_forward.2} parent=47 // pred_check_branch
        %4137 = sbr.rel (%p4135) target = $region52
      $region51: #{net_forward.2} parent=47 // pred_region
        %p4138 = scmp.lt.s32.totalorder %s17, 1
        %s4139 = scalar_select %p4138, %s17, 1
        %s4140 = smul.addr %s4139, 16
        %s4141 = smul.addr %s4140, 4
        %s4142 = scalar_lea.vmem %s5, %s4141
      $region52: #{net_forward.2} parent=47 // pred_fallthru
        _
    $region48: #{net_forward.2} parent=5 // pred_fallthru
      _
  $region6: #{net_forward.2} parent=0 // loop_footer
    %s15 = sadd.s32 1, %s11
  $region7: #{net_forward.2} parent=0 // loop_footer_branch
    %10 = sbr.rel target = $region3
  $region8: #{net_forward.2} parent=0 // loop_exit
    _

// kernel: net_forward.3
$region0: #{net_forward.3}
  #allocation0 [shape = 'u32[]', space=smem, size = 0x4, offset = 0x4, fixed_abs, tag = 'smem constant byte address 0x4 - core index']
  #allocation1 [shape = 'u32[144,128]{1,0:T(1,128)}', space=vmem, size = 0x12000, scoped, tag = 'internal scratch']
  %s0 = inlined_call_operand.vmem [shape: bf16[2,10240], index: 0, kind: input, shape index: {}]
  %s1 = inlined_call_operand.vmem [shape: bf16[10240,128], index: 1, kind: input, shape index: {}]
  %s2 = inlined_call_operand.vmem [shape: f32[1,128], index: 2, kind: input, shape index: {}]
  %s3 = inlined_call_operand.vmem [shape: bf16[128,128], index: 3, kind: input, shape index: {}]
  %s4 = inlined_call_operand.vmem [shape: f32[1,128], index: 4, kind: input, shape index: {}]
  %s5 = inlined_call_operand.hbm [shape: f32[2,128], index: 5, kind: output, shape index: {}]
  %s6 = sld [smem:[#allocation0]]
  $region30: #{net_forward.3} parent=0
    _
  %s8 = ssub.s32 1, %s6
  %s9 = scalar_select 0, %s8, %s6
  $region1: #{net_forward.3} parent=0
    #allocation2 [shape = 'u8[1024]{0}', space=vmem, size = 0x400, scoped, tag = 'output window, operand 0, single buffered']
    #allocation3 [shape = 's32[1]{0}', space=sflag, size = 0x4, scoped, tag = 'scoped memory for net_forward.3']
    %10 = vsyncpa [#allocation3], 0
    // Predicated region
    $region2: #{net_forward.3} parent=1 // pred_check
      _
    $region3: #{net_forward.3} parent=1 // pred_check_branch
      %12 = sbr.rel (0) target = $region5
    $region4: #{net_forward.3} parent=1 // pred_region
      _
    $region5: #{net_forward.3} parent=1 // pred_fallthru
      _
    // Predicated region
    $region6: #{net_forward.3} parent=1 // pred_check
      _
    $region7: #{net_forward.3} parent=1 // pred_check_branch
      %14 = sbr.rel (0) target = $region9
    $region8: #{net_forward.3} parent=1 // pred_region
      _
    $region9: #{net_forward.3} parent=1 // pred_fallthru
      _
    // Predicated region
    $region10: #{net_forward.3} parent=1 // pred_check
      _
    $region11: #{net_forward.3} parent=1 // pred_check_branch
      %16 = sbr.rel (0) target = $region13
    $region12: #{net_forward.3} parent=1 // pred_region
      _
    $region13: #{net_forward.3} parent=1 // pred_fallthru
      _
    // Predicated region
    $region14: #{net_forward.3} parent=1 // pred_check
      _
    $region15: #{net_forward.3} parent=1 // pred_check_branch
      %18 = sbr.rel (0) target = $region17
    $region16: #{net_forward.3} parent=1 // pred_region
      _
    $region17: #{net_forward.3} parent=1 // pred_fallthru
      _
    // Predicated region
    $region18: #{net_forward.3} parent=1 // pred_check
      _
    $region19: #{net_forward.3} parent=1 // pred_check_branch
      %20 = sbr.rel (0) target = $region21
    $region20: #{net_forward.3} parent=1 // pred_region
      _
    $region21: #{net_forward.3} parent=1 // pred_fallthru
      _
    %v22 = vld [vmem:[%s0] sm:$0xff]
    %v23 = vld [vmem:[%s0 + $0x8] sm:$0xff]
    %v24 = vld [vmem:[%s0 + $0x10] sm:$0xff]
    %v25 = vld [vmem:[%s0 + $0x18] sm:$0xff]
    %v26 = vld [vmem:[%s0 + $0x20] sm:$0xff]
    %v27 = vld [vmem:[%s0 + $0x28] sm:$0xff]
    %v28 = vld [vmem:[%s0 + $0x30] sm:$0xff]
    %v29 = vld [vmem:[%s0 + $0x38] sm:$0xff]
    %v30 = vld [vmem:[%s0 + $0x40] sm:$0xff]
    %v31 = vld [vmem:[%s0 + $0x48] sm:$0xff]
    %v32 = vld [vmem:[%s1] sm:$0xf]
    %v33 = vld [vmem:[%s1 + $0x4] sm:$0xf]
    %v34 = vld [vmem:[%s1 + $0x8] sm:$0xf]
    %v35 = vld [vmem:[%s1 + $0xc] sm:$0xf]
    %v36 = vld [vmem:[%s1 + $0x10] sm:$0xf]
    %v37 = vld [vmem:[%s1 + $0x14] sm:$0xf]
    %v38 = vld [vmem:[%s1 + $0x18] sm:$0xf]
    %v39 = vld [vmem:[%s1 + $0x1c] sm:$0xf]
    %v40 = vld [vmem:[%s1 + $0x20] sm:$0xf]
    %v41 = vld [vmem:[%s1 + $0x24] sm:$0xf]
    %v42 = vld [vmem:[%s1 + $0x28] sm:$0xf]
    %v43 = vld [vmem:[%s1 + $0x2c] sm:$0xf]
    %v44 = vld [vmem:[%s1 + $0x30] sm:$0xf]
    %v45 = vld [vmem:[%s1 + $0x34] sm:$0xf]
    %v46 = vld [vmem:[%s1 + $0x38] sm:$0xf]
    %v47 = vld [vmem:[%s1 + $0x3c] sm:$0xf]
    %v48 = vld [vmem:[%s1 + $0x40] sm:$0xf]
    %v49 = vld [vmem:[%s1 + $0x44] sm:$0xf]
    %v50 = vld [vmem:[%s1 + $0x48] sm:$0xf]
    %v51 = vld [vmem:[%s1 + $0x4c] sm:$0xf]
    %v52 = vld [vmem:[%s1 + $0x50] sm:$0xf]
    %v53 = vld [vmem:[%s1 + $0x54] sm:$0xf]
    %v54 = vld [vmem:[%s1 + $0x58] sm:$0xf]
    %v55 = vld [vmem:[%s1 + $0x5c] sm:$0xf]
    %v56 = vld [vmem:[%s1 + $0x60] sm:$0xf]
    %v57 = vld [vmem:[%s1 + $0x64] sm:$0xf]
    %v58 = vld [vmem:[%s1 + $0x68] sm:$0xf]
    %v59 = vld [vmem:[%s1 + $0x6c] sm:$0xf]
    %v60 = vld [vmem:[%s1 + $0x70] sm:$0xf]
    %v61 = vld [vmem:[%s1 + $0x74] sm:$0xf]
    %v62 = vld [vmem:[%s1 + $0x78] sm:$0xf]
    %v63 = vld [vmem:[%s1 + $0x7c] sm:$0xf]
    %v64 = vld [vmem:[%s1 + $0x80] sm:$0xf]
    %v65 = vld [vmem:[%s1 + $0x84] sm:$0xf]
    %v66 = vld [vmem:[%s1 + $0x88] sm:$0xf]
    %v67 = vld [vmem:[%s1 + $0x8c] sm:$0xf]
    %v68 = vld [vmem:[%s1 + $0x90] sm:$0xf]
    %v69 = vld [vmem:[%s1 + $0x94] sm:$0xf]
    %v70 = vld [vmem:[%s1 + $0x98] sm:$0xf]
    %v71 = vld [vmem:[%s1 + $0x9c] sm:$0xf]
    %v72 = vld [vmem:[%s1 + $0xa0] sm:$0xf]
    %v73 = vld [vmem:[%s1 + $0xa4] sm:$0xf]
    %v74 = vld [vmem:[%s1 + $0xa8] sm:$0xf]
    %v75 = vld [vmem:[%s1 + $0xac] sm:$0xf]
    %v76 = vld [vmem:[%s1 + $0xb0] sm:$0xf]
    %v77 = vld [vmem:[%s1 + $0xb4] sm:$0xf]
    %v78 = vld [vmem:[%s1 + $0xb8] sm:$0xf]
    %v79 = vld [vmem:[%s1 + $0xbc] sm:$0xf]
    %v80 = vld [vmem:[%s1 + $0xc0] sm:$0xf]
    %v81 = vld [vmem:[%s1 + $0xc4] sm:$0xf]
    %v82 = vld [vmem:[%s1 + $0xc8] sm:$0xf]
    %v83 = vld [vmem:[%s1 + $0xcc] sm:$0xf]
    %v84 = vld [vmem:[%s1 + $0xd0] sm:$0xf]
    %v85 = vld [vmem:[%s1 + $0xd4] sm:$0xf]
    %v86 = vld [vmem:[%s1 + $0xd8] sm:$0xf]
    %v87 = vld [vmem:[%s1 + $0xdc] sm:$0xf]
    %v88 = vld [vmem:[%s1 + $0xe0] sm:$0xf]
    %v89 = vld [vmem:[%s1 + $0xe4] sm:$0xf]
    %v90 = vld [vmem:[%s1 + $0xe8] sm:$0xf]
    %v91 = vld [vmem:[%s1 + $0xec] sm:$0xf]
    %v92 = vld [vmem:[%s1 + $0xf0] sm:$0xf]
    %v93 = vld [vmem:[%s1 + $0xf4] sm:$0xf]
    %v94 = vld [vmem:[%s1 + $0xf8] sm:$0xf]
    %v95 = vld [vmem:[%s1 + $0xfc] sm:$0xf]
    %v96 = vld [vmem:[%s1 + $0x100] sm:$0xf]
    %v97 = vld [vmem:[%s1 + $0x104] sm:$0xf]
    %v98 = vld [vmem:[%s1 + $0x108] sm:$0xf]
    %v99 = vld [vmem:[%s1 + $0x10c] sm:$0xf]
    %v100 = vld [vmem:[%s1 + $0x110] sm:$0xf]
    %v101 = vld [vmem:[%s1 + $0x114] sm:$0xf]
    %v102 = vld [vmem:[%s1 + $0x118] sm:$0xf]
    %v103 = vld [vmem:[%s1 + $0x11c] sm:$0xf]
    %v104 = vld [vmem:[%s1 + $0x120] sm:$0xf]
    %v105 = vld [vmem:[%s1 + $0x124] sm:$0xf]
    %v106 = vld [vmem:[%s1 + $0x128] sm:$0xf]
    %v107 = vld [vmem:[%s1 + $0x12c] sm:$0xf]
    %v108 = vld [vmem:[%s1 + $0x130] sm:$0xf]
    %v109 = vld [vmem:[%s1 + $0x134] sm:$0xf]
    %v110 = vld [vmem:[%s1 + $0x138] sm:$0xf]
    %v111 = vld [vmem:[%s1 + $0x13c] sm:$0xf]
    %v112 = vld [vmem:[%s1 + $0x140] sm:$0xf]
    %v113 = vld [vmem:[%s1 + $0x144] sm:$0xf]
    %v114 = vld [vmem:[%s1 + $0x148] sm:$0xf]
    %v115 = vld [vmem:[%s1 + $0x14c] sm:$0xf]
    %v116 = vld [vmem:[%s1 + $0x150] sm:$0xf]
    %v117 = vld [vmem:[%s1 + $0x154] sm:$0xf]
    %v118 = vld [vmem:[%s1 + $0x158] sm:$0xf]
    %v119 = vld [vmem:[%s1 + $0x15c] sm:$0xf]
    %v120 = vld [vmem:[%s1 + $0x160] sm:$0xf]
    %v121 = vld [vmem:[%s1 + $0x164] sm:$0xf]
    %v122 = vld [vmem:[%s1 + $0x168] sm:$0xf]
    %v123 = vld [vmem:[%s1 + $0x16c] sm:$0xf]
    %v124 = vld [vmem:[%s1 + $0x170] sm:$0xf]
    %v125 = vld [vmem:[%s1 + $0x174] sm:$0xf]
    %v126 = vld [vmem:[%s1 + $0x178] sm:$0xf]
    %v127 = vld [vmem:[%s1 + $0x17c] sm:$0xf]
    %v128 = vld [vmem:[%s1 + $0x180] sm:$0xf]
    %v129 = vld [vmem:[%s1 + $0x184] sm:$0xf]
    %v130 = vld [vmem:[%s1 + $0x188] sm:$0xf]
    %v131 = vld [vmem:[%s1 + $0x18c] sm:$0xf]
    %v132 = vld [vmem:[%s1 + $0x190] sm:$0xf]
    %v133 = vld [vmem:[%s1 + $0x194] sm:$0xf]
    %v134 = vld [vmem:[%s1 + $0x198] sm:$0xf]
    %v135 = vld [vmem:[%s1 + $0x19c] sm:$0xf]
    %v136 = vld [vmem:[%s1 + $0x1a0] sm:$0xf]
    %v137 = vld [vmem:[%s1 + $0x1a4] sm:$0xf]
    %v138 = vld [vmem:[%s1 + $0x1a8] sm:$0xf]
    %v139 = vld [vmem:[%s1 + $0x1ac] sm:$0xf]
    %v140 = vld [vmem:[%s1 + $0x1b0] sm:$0xf]
    %v141 = vld [vmem:[%s1 + $0x1b4] sm:$0xf]
    %v142 = vld [vmem:[%s1 + $0x1b8] sm:$0xf]
    %v143 = vld [vmem:[%s1 + $0x1bc] sm:$0xf]
    %v144 = vld [vmem:[%s1 + $0x1c0] sm:$0xf]
    %v145 = vld [vmem:[%s1 + $0x1c4] sm:$0xf]
    %v146 = vld [vmem:[%s1 + $0x1c8] sm:$0xf]
    %v147 = vld [vmem:[%s1 + $0x1cc] sm:$0xf]
    %v148 = vld [vmem:[%s1 + $0x1d0] sm:$0xf]
    %v149 = vld [vmem:[%s1 + $0x1d4] sm:$0xf]
    %v150 = vld [vmem:[%s1 + $0x1d8] sm:$0xf]
    %v151 = vld [vmem:[%s1 + $0x1dc] sm:$0xf]
    %v152 = vld [vmem:[%s1 + $0x1e0] sm:$0xf]
    %v153 = vld [vmem:[%s1 + $0x1e4] sm:$0xf]
    %v154 = vld [vmem:[%s1 + $0x1e8] sm:$0xf]
    %v155 = vld [vmem:[%s1 + $0x1ec] sm:$0xf]
    %v156 = vld [vmem:[%s1 + $0x1f0] sm:$0xf]
    %v157 = vld [vmem:[%s1 + $0x1f4] sm:$0xf]
    %v158 = vld [vmem:[%s1 + $0x1f8] sm:$0xf]
    %v159 = vld [vmem:[%s1 + $0x1fc] sm:$0xf]
    %v160 = vld [vmem:[%s1 + $0x200] sm:$0xf]
    %v161 = vld [vmem:[%s1 + $0x204] sm:$0xf]
    %v162 = vld [vmem:[%s1 + $0x208] sm:$0xf]
    %v163 = vld [vmem:[%s1 + $0x20c] sm:$0xf]
    %v164 = vld [vmem:[%s1 + $0x210] sm:$0xf]
    %v165 = vld [vmem:[%s1 + $0x214] sm:$0xf]
    %v166 = vld [vmem:[%s1 + $0x218] sm:$0xf]
    %v167 = vld [vmem:[%s1 + $0x21c] sm:$0xf]
    %v168 = vld [vmem:[%s1 + $0x220] sm:$0xf]
    %v169 = vld [vmem:[%s1 + $0x224] sm:$0xf]
    %v170 = vld [vmem:[%s1 + $0x228] sm:$0xf]
    %v171 = vld [vmem:[%s1 + $0x22c] sm:$0xf]
    %v172 = vld [vmem:[%s1 + $0x230] sm:$0xf]
    %v173 = vld [vmem:[%s1 + $0x234] sm:$0xf]
    %v174 = vld [vmem:[%s1 + $0x238] sm:$0xf]
    %v175 = vld [vmem:[%s1 + $0x23c] sm:$0xf]
    %v176 = vld [vmem:[%s1 + $0x240] sm:$0xf]
    %v177 = vld [vmem:[%s1 + $0x244] sm:$0xf]
    %v178 = vld [vmem:[%s1 + $0x248] sm:$0xf]
    %v179 = vld [vmem:[%s1 + $0x24c] sm:$0xf]
    %v180 = vld [vmem:[%s1 + $0x250] sm:$0xf]
    %v181 = vld [vmem:[%s1 + $0x254] sm:$0xf]
    %v182 = vld [vmem:[%s1 + $0x258] sm:$0xf]
    %v183 = vld [vmem:[%s1 + $0x25c] sm:$0xf]
    %v184 = vld [vmem:[%s1 + $0x260] sm:$0xf]
    %v185 = vld [vmem:[%s1 + $0x264] sm:$0xf]
    %v186 = vld [vmem:[%s1 + $0x268] sm:$0xf]
    %v187 = vld [vmem:[%s1 + $0x26c] sm:$0xf]
    %v188 = vld [vmem:[%s1 + $0x270] sm:$0xf]
    %v189 = vld [vmem:[%s1 + $0x274] sm:$0xf]
    %v190 = vld [vmem:[%s1 + $0x278] sm:$0xf]
    %v191 = vld [vmem:[%s1 + $0x27c] sm:$0xf]
    %v192 = vld [vmem:[%s1 + $0x280] sm:$0xf]
    %v193 = vld [vmem:[%s1 + $0x284] sm:$0xf]
    %v194 = vld [vmem:[%s1 + $0x288] sm:$0xf]
    %v195 = vld [vmem:[%s1 + $0x28c] sm:$0xf]
    %v196 = vld [vmem:[%s1 + $0x290] sm:$0xf]
    %v197 = vld [vmem:[%s1 + $0x294] sm:$0xf]
    %v198 = vld [vmem:[%s1 + $0x298] sm:$0xf]
    %v199 = vld [vmem:[%s1 + $0x29c] sm:$0xf]
    %v200 = vld [vmem:[%s1 + $0x2a0] sm:$0xf]
    %v201 = vld [vmem:[%s1 + $0x2a4] sm:$0xf]
    %v202 = vld [vmem:[%s1 + $0x2a8] sm:$0xf]
    %v203 = vld [vmem:[%s1 + $0x2ac] sm:$0xf]
    %v204 = vld [vmem:[%s1 + $0x2b0] sm:$0xf]
    %v205 = vld [vmem:[%s1 + $0x2b4] sm:$0xf]
    %v206 = vld [vmem:[%s1 + $0x2b8] sm:$0xf]
    %v207 = vld [vmem:[%s1 + $0x2bc] sm:$0xf]
    %v208 = vld [vmem:[%s1 + $0x2c0] sm:$0xf]
    %v209 = vld [vmem:[%s1 + $0x2c4] sm:$0xf]
    %v210 = vld [vmem:[%s1 + $0x2c8] sm:$0xf]
    %v211 = vld [vmem:[%s1 + $0x2cc] sm:$0xf]
    %v212 = vld [vmem:[%s1 + $0x2d0] sm:$0xf]
    %v213 = vld [vmem:[%s1 + $0x2d4] sm:$0xf]
    %v214 = vld [vmem:[%s1 + $0x2d8] sm:$0xf]
    %v215 = vld [vmem:[%s1 + $0x2dc] sm:$0xf]
    %v216 = vld [vmem:[%s1 + $0x2e0] sm:$0xf]
    %v217 = vld [vmem:[%s1 + $0x2e4] sm:$0xf]
    %v218 = vld [vmem:[%s1 + $0x2e8] sm:$0xf]
    %v219 = vld [vmem:[%s1 + $0x2ec] sm:$0xf]
    %v220 = vld [vmem:[%s1 + $0x2f0] sm:$0xf]
    %v221 = vld [vmem:[%s1 + $0x2f4] sm:$0xf]
    %v222 = vld [vmem:[%s1 + $0x2f8] sm:$0xf]
    %v223 = vld [vmem:[%s1 + $0x2fc] sm:$0xf]
    %v224 = vld [vmem:[%s1 + $0x300] sm:$0xf]
    %v225 = vld [vmem:[%s1 + $0x304] sm:$0xf]
    %v226 = vld [vmem:[%s1 + $0x308] sm:$0xf]
    %v227 = vld [vmem:[%s1 + $0x30c] sm:$0xf]
    %v228 = vld [vmem:[%s1 + $0x310] sm:$0xf]
    %v229 = vld [vmem:[%s1 + $0x314] sm:$0xf]
    %v230 = vld [vmem:[%s1 + $0x318] sm:$0xf]
    %v231 = vld [vmem:[%s1 + $0x31c] sm:$0xf]
    %v232 = vld [vmem:[%s1 + $0x320] sm:$0xf]
    %v233 = vld [vmem:[%s1 + $0x324] sm:$0xf]
    %v234 = vld [vmem:[%s1 + $0x328] sm:$0xf]
    %v235 = vld [vmem:[%s1 + $0x32c] sm:$0xf]
    %v236 = vld [vmem:[%s1 + $0x330] sm:$0xf]
    %v237 = vld [vmem:[%s1 + $0x334] sm:$0xf]
    %v238 = vld [vmem:[%s1 + $0x338] sm:$0xf]
    %v239 = vld [vmem:[%s1 + $0x33c] sm:$0xf]
    %v240 = vld [vmem:[%s1 + $0x340] sm:$0xf]
    %v241 = vld [vmem:[%s1 + $0x344] sm:$0xf]
    %v242 = vld [vmem:[%s1 + $0x348] sm:$0xf]
    %v243 = vld [vmem:[%s1 + $0x34c] sm:$0xf]
    %v244 = vld [vmem:[%s1 + $0x350] sm:$0xf]
    %v245 = vld [vmem:[%s1 + $0x354] sm:$0xf]
    %v246 = vld [vmem:[%s1 + $0x358] sm:$0xf]
    %v247 = vld [vmem:[%s1 + $0x35c] sm:$0xf]
    %v248 = vld [vmem:[%s1 + $0x360] sm:$0xf]
    %v249 = vld [vmem:[%s1 + $0x364] sm:$0xf]
    %v250 = vld [vmem:[%s1 + $0x368] sm:$0xf]
    %v251 = vld [vmem:[%s1 + $0x36c] sm:$0xf]
    %v252 = vld [vmem:[%s1 + $0x370] sm:$0xf]
    %v253 = vld [vmem:[%s1 + $0x374] sm:$0xf]
    %v254 = vld [vmem:[%s1 + $0x378] sm:$0xf]
    %v255 = vld [vmem:[%s1 + $0x37c] sm:$0xf]
    %v256 = vld [vmem:[%s1 + $0x380] sm:$0xf]
    %v257 = vld [vmem:[%s1 + $0x384] sm:$0xf]
    %v258 = vld [vmem:[%s1 + $0x388] sm:$0xf]
    %v259 = vld [vmem:[%s1 + $0x38c] sm:$0xf]
    %v260 = vld [vmem:[%s1 + $0x390] sm:$0xf]
    %v261 = vld [vmem:[%s1 + $0x394] sm:$0xf]
    %v262 = vld [vmem:[%s1 + $0x398] sm:$0xf]
    %v263 = vld [vmem:[%s1 + $0x39c] sm:$0xf]
    %v264 = vld [vmem:[%s1 + $0x3a0] sm:$0xf]
    %v265 = vld [vmem:[%s1 + $0x3a4] sm:$0xf]
    %v266 = vld [vmem:[%s1 + $0x3a8] sm:$0xf]
    %v267 = vld [vmem:[%s1 + $0x3ac] sm:$0xf]
    %v268 = vld [vmem:[%s1 + $0x3b0] sm:$0xf]
    %v269 = vld [vmem:[%s1 + $0x3b4] sm:$0xf]
    %v270 = vld [vmem:[%s1 + $0x3b8] sm:$0xf]
    %v271 = vld [vmem:[%s1 + $0x3bc] sm:$0xf]
    %v272 = vld [vmem:[%s1 + $0x3c0] sm:$0xf]
    %v273 = vld [vmem:[%s1 + $0x3c4] sm:$0xf]
    %v274 = vld [vmem:[%s1 + $0x3c8] sm:$0xf]
    %v275 = vld [vmem:[%s1 + $0x3cc] sm:$0xf]
    %v276 = vld [vmem:[%s1 + $0x3d0] sm:$0xf]
    %v277 = vld [vmem:[%s1 + $0x3d4] sm:$0xf]
    %v278 = vld [vmem:[%s1 + $0x3d8] sm:$0xf]
    %v279 = vld [vmem:[%s1 + $0x3dc] sm:$0xf]
    %v280 = vld [vmem:[%s1 + $0x3e0] sm:$0xf]
    %v281 = vld [vmem:[%s1 + $0x3e4] sm:$0xf]
    %v282 = vld [vmem:[%s1 + $0x3e8] sm:$0xf]
    %v283 = vld [vmem:[%s1 + $0x3ec] sm:$0xf]
    %v284 = vld [vmem:[%s1 + $0x3f0] sm:$0xf]
    %v285 = vld [vmem:[%s1 + $0x3f4] sm:$0xf]
    %v286 = vld [vmem:[%s1 + $0x3f8] sm:$0xf]
    %v287 = vld [vmem:[%s1 + $0x3fc] sm:$0xf]
    %v288 = vld [vmem:[%s1 + $0x400] sm:$0xf]
    %v289 = vld [vmem:[%s1 + $0x404] sm:$0xf]
    %v290 = vld [vmem:[%s1 + $0x408] sm:$0xf]
    %v291 = vld [vmem:[%s1 + $0x40c] sm:$0xf]
    %v292 = vld [vmem:[%s1 + $0x410] sm:$0xf]
    %v293 = vld [vmem:[%s1 + $0x414] sm:$0xf]
    %v294 = vld [vmem:[%s1 + $0x418] sm:$0xf]
    %v295 = vld [vmem:[%s1 + $0x41c] sm:$0xf]
    %v296 = vld [vmem:[%s1 + $0x420] sm:$0xf]
    %v297 = vld [vmem:[%s1 + $0x424] sm:$0xf]
    %v298 = vld [vmem:[%s1 + $0x428] sm:$0xf]
    %v299 = vld [vmem:[%s1 + $0x42c] sm:$0xf]
    %v300 = vld [vmem:[%s1 + $0x430] sm:$0xf]
    %v301 = vld [vmem:[%s1 + $0x434] sm:$0xf]
    %v302 = vld [vmem:[%s1 + $0x438] sm:$0xf]
    %v303 = vld [vmem:[%s1 + $0x43c] sm:$0xf]
    %v304 = vld [vmem:[%s1 + $0x440] sm:$0xf]
    %v305 = vld [vmem:[%s1 + $0x444] sm:$0xf]
    %v306 = vld [vmem:[%s1 + $0x448] sm:$0xf]
    %v307 = vld [vmem:[%s1 + $0x44c] sm:$0xf]
    %v308 = vld [vmem:[%s1 + $0x450] sm:$0xf]
    %v309 = vld [vmem:[%s1 + $0x454] sm:$0xf]
    %v310 = vld [vmem:[%s1 + $0x458] sm:$0xf]
    %v311 = vld [vmem:[%s1 + $0x45c] sm:$0xf]
    %v312 = vld [vmem:[%s1 + $0x460] sm:$0xf]
    %v313 = vld [vmem:[%s1 + $0x464] sm:$0xf]
    %v314 = vld [vmem:[%s1 + $0x468] sm:$0xf]
    %v315 = vld [vmem:[%s1 + $0x46c] sm:$0xf]
    %v316 = vld [vmem:[%s1 + $0x470] sm:$0xf]
    %v317 = vld [vmem:[%s1 + $0x474] sm:$0xf]
    %v318 = vld [vmem:[%s1 + $0x478] sm:$0xf]
    %v319 = vld [vmem:[%s1 + $0x47c] sm:$0xf]
    %v320 = vld [vmem:[%s1 + $0x480] sm:$0xf]
    %v321 = vld [vmem:[%s1 + $0x484] sm:$0xf]
    %v322 = vld [vmem:[%s1 + $0x488] sm:$0xf]
    %v323 = vld [vmem:[%s1 + $0x48c] sm:$0xf]
    %v324 = vld [vmem:[%s1 + $0x490] sm:$0xf]
    %v325 = vld [vmem:[%s1 + $0x494] sm:$0xf]
    %v326 = vld [vmem:[%s1 + $0x498] sm:$0xf]
    %v327 = vld [vmem:[%s1 + $0x49c] sm:$0xf]
    %v328 = vld [vmem:[%s1 + $0x4a0] sm:$0xf]
    %v329 = vld [vmem:[%s1 + $0x4a4] sm:$0xf]
    %v330 = vld [vmem:[%s1 + $0x4a8] sm:$0xf]
    %v331 = vld [vmem:[%s1 + $0x4ac] sm:$0xf]
    %v332 = vld [vmem:[%s1 + $0x4b0] sm:$0xf]
    %v333 = vld [vmem:[%s1 + $0x4b4] sm:$0xf]
    %v334 = vld [vmem:[%s1 + $0x4b8] sm:$0xf]
    %v335 = vld [vmem:[%s1 + $0x4bc] sm:$0xf]
    %v336 = vld [vmem:[%s1 + $0x4c0] sm:$0xf]
    %v337 = vld [vmem:[%s1 + $0x4c4] sm:$0xf]
    %v338 = vld [vmem:[%s1 + $0x4c8] sm:$0xf]
    %v339 = vld [vmem:[%s1 + $0x4cc] sm:$0xf]
    %v340 = vld [vmem:[%s1 + $0x4d0] sm:$0xf]
    %v341 = vld [vmem:[%s1 + $0x4d4] sm:$0xf]
    %v342 = vld [vmem:[%s1 + $0x4d8] sm:$0xf]
    %v343 = vld [vmem:[%s1 + $0x4dc] sm:$0xf]
    %v344 = vld [vmem:[%s1 + $0x4e0] sm:$0xf]
    %v345 = vld [vmem:[%s1 + $0x4e4] sm:$0xf]
    %v346 = vld [vmem:[%s1 + $0x4e8] sm:$0xf]
    %v347 = vld [vmem:[%s1 + $0x4ec] sm:$0xf]
    %v348 = vld [vmem:[%s1 + $0x4f0] sm:$0xf]
    %v349 = vld [vmem:[%s1 + $0x4f4] sm:$0xf]
    %v350 = vld [vmem:[%s1 + $0x4f8] sm:$0xf]
    %v351 = vld [vmem:[%s1 + $0x4fc] sm:$0xf]
    %v352 = vld [vmem:[%s1 + $0x500] sm:$0xf]
    %v353 = vld [vmem:[%s1 + $0x504] sm:$0xf]
    %v354 = vld [vmem:[%s1 + $0x508] sm:$0xf]
    %v355 = vld [vmem:[%s1 + $0x50c] sm:$0xf]
    %v356 = vld [vmem:[%s1 + $0x510] sm:$0xf]
    %v357 = vld [vmem:[%s1 + $0x514] sm:$0xf]
    %v358 = vld [vmem:[%s1 + $0x518] sm:$0xf]
    %v359 = vld [vmem:[%s1 + $0x51c] sm:$0xf]
    %v360 = vld [vmem:[%s1 + $0x520] sm:$0xf]
    %v361 = vld [vmem:[%s1 + $0x524] sm:$0xf]
    %v362 = vld [vmem:[%s1 + $0x528] sm:$0xf]
    %v363 = vld [vmem:[%s1 + $0x52c] sm:$0xf]
    %v364 = vld [vmem:[%s1 + $0x530] sm:$0xf]
    %v365 = vld [vmem:[%s1 + $0x534] sm:$0xf]
    %v366 = vld [vmem:[%s1 + $0x538] sm:$0xf]
    %v367 = vld [vmem:[%s1 + $0x53c] sm:$0xf]
    %v368 = vld [vmem:[%s1 + $0x540] sm:$0xf]
    %v369 = vld [vmem:[%s1 + $0x544] sm:$0xf]
    %v370 = vld [vmem:[%s1 + $0x548] sm:$0xf]
    %v371 = vld [vmem:[%s1 + $0x54c] sm:$0xf]
    %v372 = vld [vmem:[%s1 + $0x550] sm:$0xf]
    %v373 = vld [vmem:[%s1 + $0x554] sm:$0xf]
    %v374 = vld [vmem:[%s1 + $0x558] sm:$0xf]
    %v375 = vld [vmem:[%s1 + $0x55c] sm:$0xf]
    %v376 = vld [vmem:[%s1 + $0x560] sm:$0xf]
    %v377 = vld [vmem:[%s1 + $0x564] sm:$0xf]
    %v378 = vld [vmem:[%s1 + $0x568] sm:$0xf]
    %v379 = vld [vmem:[%s1 + $0x56c] sm:$0xf]
    %v380 = vld [vmem:[%s1 + $0x570] sm:$0xf]
    %v381 = vld [vmem:[%s1 + $0x574] sm:$0xf]
    %v382 = vld [vmem:[%s1 + $0x578] sm:$0xf]
    %v383 = vld [vmem:[%s1 + $0x57c] sm:$0xf]
    %v384 = vld [vmem:[%s1 + $0x580] sm:$0xf]
    %v385 = vld [vmem:[%s1 + $0x584] sm:$0xf]
    %v386 = vld [vmem:[%s1 + $0x588] sm:$0xf]
    %v387 = vld [vmem:[%s1 + $0x58c] sm:$0xf]
    %v388 = vld [vmem:[%s1 + $0x590] sm:$0xf]
    %v389 = vld [vmem:[%s1 + $0x594] sm:$0xf]
    %v390 = vld [vmem:[%s1 + $0x598] sm:$0xf]
    %v391 = vld [vmem:[%s1 + $0x59c] sm:$0xf]
    %v392 = vld [vmem:[%s1 + $0x5a0] sm:$0xf]
    %v393 = vld [vmem:[%s1 + $0x5a4] sm:$0xf]
    %v394 = vld [vmem:[%s1 + $0x5a8] sm:$0xf]
    %v395 = vld [vmem:[%s1 + $0x5ac] sm:$0xf]
    %v396 = vld [vmem:[%s1 + $0x5b0] sm:$0xf]
    %v397 = vld [vmem:[%s1 + $0x5b4] sm:$0xf]
    %v398 = vld [vmem:[%s1 + $0x5b8] sm:$0xf]
    %v399 = vld [vmem:[%s1 + $0x5bc] sm:$0xf]
    %v400 = vld [vmem:[%s1 + $0x5c0] sm:$0xf]
    %v401 = vld [vmem:[%s1 + $0x5c4] sm:$0xf]
    %v402 = vld [vmem:[%s1 + $0x5c8] sm:$0xf]
    %v403 = vld [vmem:[%s1 + $0x5cc] sm:$0xf]
    %v404 = vld [vmem:[%s1 + $0x5d0] sm:$0xf]
    %v405 = vld [vmem:[%s1 + $0x5d4] sm:$0xf]
    %v406 = vld [vmem:[%s1 + $0x5d8] sm:$0xf]
    %v407 = vld [vmem:[%s1 + $0x5dc] sm:$0xf]
    %v408 = vld [vmem:[%s1 + $0x5e0] sm:$0xf]
    %v409 = vld [vmem:[%s1 + $0x5e4] sm:$0xf]
    %v410 = vld [vmem:[%s1 + $0x5e8] sm:$0xf]
    %v411 = vld [vmem:[%s1 + $0x5ec] sm:$0xf]
    %v412 = vld [vmem:[%s1 + $0x5f0] sm:$0xf]
    %v413 = vld [vmem:[%s1 + $0x5f4] sm:$0xf]
    %v414 = vld [vmem:[%s1 + $0x5f8] sm:$0xf]
    %v415 = vld [vmem:[%s1 + $0x5fc] sm:$0xf]
    %v416 = vld [vmem:[%s1 + $0x600] sm:$0xf]
    %v417 = vld [vmem:[%s1 + $0x604] sm:$0xf]
    %v418 = vld [vmem:[%s1 + $0x608] sm:$0xf]
    %v419 = vld [vmem:[%s1 + $0x60c] sm:$0xf]
    %v420 = vld [vmem:[%s1 + $0x610] sm:$0xf]
    %v421 = vld [vmem:[%s1 + $0x614] sm:$0xf]
    %v422 = vld [vmem:[%s1 + $0x618] sm:$0xf]
    %v423 = vld [vmem:[%s1 + $0x61c] sm:$0xf]
    %v424 = vld [vmem:[%s1 + $0x620] sm:$0xf]
    %v425 = vld [vmem:[%s1 + $0x624] sm:$0xf]
    %v426 = vld [vmem:[%s1 + $0x628] sm:$0xf]
    %v427 = vld [vmem:[%s1 + $0x62c] sm:$0xf]
    %v428 = vld [vmem:[%s1 + $0x630] sm:$0xf]
    %v429 = vld [vmem:[%s1 + $0x634] sm:$0xf]
    %v430 = vld [vmem:[%s1 + $0x638] sm:$0xf]
    %v431 = vld [vmem:[%s1 + $0x63c] sm:$0xf]
    %v432 = vld [vmem:[%s1 + $0x640] sm:$0xf]
    %v433 = vld [vmem:[%s1 + $0x644] sm:$0xf]
    %v434 = vld [vmem:[%s1 + $0x648] sm:$0xf]
    %v435 = vld [vmem:[%s1 + $0x64c] sm:$0xf]
    %v436 = vld [vmem:[%s1 + $0x650] sm:$0xf]
    %v437 = vld [vmem:[%s1 + $0x654] sm:$0xf]
    %v438 = vld [vmem:[%s1 + $0x658] sm:$0xf]
    %v439 = vld [vmem:[%s1 + $0x65c] sm:$0xf]
    %v440 = vld [vmem:[%s1 + $0x660] sm:$0xf]
    %v441 = vld [vmem:[%s1 + $0x664] sm:$0xf]
    %v442 = vld [vmem:[%s1 + $0x668] sm:$0xf]
    %v443 = vld [vmem:[%s1 + $0x66c] sm:$0xf]
    %v444 = vld [vmem:[%s1 + $0x670] sm:$0xf]
    %v445 = vld [vmem:[%s1 + $0x674] sm:$0xf]
    %v446 = vld [vmem:[%s1 + $0x678] sm:$0xf]
    %v447 = vld [vmem:[%s1 + $0x67c] sm:$0xf]
    %v448 = vld [vmem:[%s1 + $0x680] sm:$0xf]
    %v449 = vld [vmem:[%s1 + $0x684] sm:$0xf]
    %v450 = vld [vmem:[%s1 + $0x688] sm:$0xf]
    %v451 = vld [vmem:[%s1 + $0x68c] sm:$0xf]
    %v452 = vld [vmem:[%s1 + $0x690] sm:$0xf]
    %v453 = vld [vmem:[%s1 + $0x694] sm:$0xf]
    %v454 = vld [vmem:[%s1 + $0x698] sm:$0xf]
    %v455 = vld [vmem:[%s1 + $0x69c] sm:$0xf]
    %v456 = vld [vmem:[%s1 + $0x6a0] sm:$0xf]
    %v457 = vld [vmem:[%s1 + $0x6a4] sm:$0xf]
    %v458 = vld [vmem:[%s1 + $0x6a8] sm:$0xf]
    %v459 = vld [vmem:[%s1 + $0x6ac] sm:$0xf]
    %v460 = vld [vmem:[%s1 + $0x6b0] sm:$0xf]
    %v461 = vld [vmem:[%s1 + $0x6b4] sm:$0xf]
    %v462 = vld [vmem:[%s1 + $0x6b8] sm:$0xf]
    %v463 = vld [vmem:[%s1 + $0x6bc] sm:$0xf]
    %v464 = vld [vmem:[%s1 + $0x6c0] sm:$0xf]
    %v465 = vld [vmem:[%s1 + $0x6c4] sm:$0xf]
    %v466 = vld [vmem:[%s1 + $0x6c8] sm:$0xf]
    %v467 = vld [vmem:[%s1 + $0x6cc] sm:$0xf]
    %v468 = vld [vmem:[%s1 + $0x6d0] sm:$0xf]
    %v469 = vld [vmem:[%s1 + $0x6d4] sm:$0xf]
    %v470 = vld [vmem:[%s1 + $0x6d8] sm:$0xf]
    %v471 = vld [vmem:[%s1 + $0x6dc] sm:$0xf]
    %v472 = vld [vmem:[%s1 + $0x6e0] sm:$0xf]
    %v473 = vld [vmem:[%s1 + $0x6e4] sm:$0xf]
    %v474 = vld [vmem:[%s1 + $0x6e8] sm:$0xf]
    %v475 = vld [vmem:[%s1 + $0x6ec] sm:$0xf]
    %v476 = vld [vmem:[%s1 + $0x6f0] sm:$0xf]
    %v477 = vld [vmem:[%s1 + $0x6f4] sm:$0xf]
    %v478 = vld [vmem:[%s1 + $0x6f8] sm:$0xf]
    %v479 = vld [vmem:[%s1 + $0x6fc] sm:$0xf]
    %v480 = vld [vmem:[%s1 + $0x700] sm:$0xf]
    %v481 = vld [vmem:[%s1 + $0x704] sm:$0xf]
    %v482 = vld [vmem:[%s1 + $0x708] sm:$0xf]
    %v483 = vld [vmem:[%s1 + $0x70c] sm:$0xf]
    %v484 = vld [vmem:[%s1 + $0x710] sm:$0xf]
    %v485 = vld [vmem:[%s1 + $0x714] sm:$0xf]
    %v486 = vld [vmem:[%s1 + $0x718] sm:$0xf]
    %v487 = vld [vmem:[%s1 + $0x71c] sm:$0xf]
    %v488 = vld [vmem:[%s1 + $0x720] sm:$0xf]
    %v489 = vld [vmem:[%s1 + $0x724] sm:$0xf]
    %v490 = vld [vmem:[%s1 + $0x728] sm:$0xf]
    %v491 = vld [vmem:[%s1 + $0x72c] sm:$0xf]
    %v492 = vld [vmem:[%s1 + $0x730] sm:$0xf]
    %v493 = vld [vmem:[%s1 + $0x734] sm:$0xf]
    %v494 = vld [vmem:[%s1 + $0x738] sm:$0xf]
    %v495 = vld [vmem:[%s1 + $0x73c] sm:$0xf]
    %v496 = vld [vmem:[%s1 + $0x740] sm:$0xf]
    %v497 = vld [vmem:[%s1 + $0x744] sm:$0xf]
    %v498 = vld [vmem:[%s1 + $0x748] sm:$0xf]
    %v499 = vld [vmem:[%s1 + $0x74c] sm:$0xf]
    %v500 = vld [vmem:[%s1 + $0x750] sm:$0xf]
    %v501 = vld [vmem:[%s1 + $0x754] sm:$0xf]
    %v502 = vld [vmem:[%s1 + $0x758] sm:$0xf]
    %v503 = vld [vmem:[%s1 + $0x75c] sm:$0xf]
    %v504 = vld [vmem:[%s1 + $0x760] sm:$0xf]
    %v505 = vld [vmem:[%s1 + $0x764] sm:$0xf]
    %v506 = vld [vmem:[%s1 + $0x768] sm:$0xf]
    %v507 = vld [vmem:[%s1 + $0x76c] sm:$0xf]
    %v508 = vld [vmem:[%s1 + $0x770] sm:$0xf]
    %v509 = vld [vmem:[%s1 + $0x774] sm:$0xf]
    %v510 = vld [vmem:[%s1 + $0x778] sm:$0xf]
    %v511 = vld [vmem:[%s1 + $0x77c] sm:$0xf]
    %v512 = vld [vmem:[%s1 + $0x780] sm:$0xf]
    %v513 = vld [vmem:[%s1 + $0x784] sm:$0xf]
    %v514 = vld [vmem:[%s1 + $0x788] sm:$0xf]
    %v515 = vld [vmem:[%s1 + $0x78c] sm:$0xf]
    %v516 = vld [vmem:[%s1 + $0x790] sm:$0xf]
    %v517 = vld [vmem:[%s1 + $0x794] sm:$0xf]
    %v518 = vld [vmem:[%s1 + $0x798] sm:$0xf]
    %v519 = vld [vmem:[%s1 + $0x79c] sm:$0xf]
    %v520 = vld [vmem:[%s1 + $0x7a0] sm:$0xf]
    %v521 = vld [vmem:[%s1 + $0x7a4] sm:$0xf]
    %v522 = vld [vmem:[%s1 + $0x7a8] sm:$0xf]
    %v523 = vld [vmem:[%s1 + $0x7ac] sm:$0xf]
    %v524 = vld [vmem:[%s1 + $0x7b0] sm:$0xf]
    %v525 = vld [vmem:[%s1 + $0x7b4] sm:$0xf]
    %v526 = vld [vmem:[%s1 + $0x7b8] sm:$0xf]
    %v527 = vld [vmem:[%s1 + $0x7bc] sm:$0xf]
    %v528 = vld [vmem:[%s1 + $0x7c0] sm:$0xf]
    %v529 = vld [vmem:[%s1 + $0x7c4] sm:$0xf]
    %v530 = vld [vmem:[%s1 + $0x7c8] sm:$0xf]
    %v531 = vld [vmem:[%s1 + $0x7cc] sm:$0xf]
    %v532 = vld [vmem:[%s1 + $0x7d0] sm:$0xf]
    %v533 = vld [vmem:[%s1 + $0x7d4] sm:$0xf]
    %v534 = vld [vmem:[%s1 + $0x7d8] sm:$0xf]
    %v535 = vld [vmem:[%s1 + $0x7dc] sm:$0xf]
    %v536 = vld [vmem:[%s1 + $0x7e0] sm:$0xf]
    %v537 = vld [vmem:[%s1 + $0x7e4] sm:$0xf]
    %v538 = vld [vmem:[%s1 + $0x7e8] sm:$0xf]
    %v539 = vld [vmem:[%s1 + $0x7ec] sm:$0xf]
    %v540 = vld [vmem:[%s1 + $0x7f0] sm:$0xf]
    %v541 = vld [vmem:[%s1 + $0x7f4] sm:$0xf]
    %v542 = vld [vmem:[%s1 + $0x7f8] sm:$0xf]
    %v543 = vld [vmem:[%s1 + $0x7fc] sm:$0xf]
    %v544 = vld [vmem:[%s1 + $0x800] sm:$0xf]
    %v545 = vld [vmem:[%s1 + $0x804] sm:$0xf]
    %v546 = vld [vmem:[%s1 + $0x808] sm:$0xf]
    %v547 = vld [vmem:[%s1 + $0x80c] sm:$0xf]
    %v548 = vld [vmem:[%s1 + $0x810] sm:$0xf]
    %v549 = vld [vmem:[%s1 + $0x814] sm:$0xf]
    %v550 = vld [vmem:[%s1 + $0x818] sm:$0xf]
    %v551 = vld [vmem:[%s1 + $0x81c] sm:$0xf]
    %v552 = vld [vmem:[%s1 + $0x820] sm:$0xf]
    %v553 = vld [vmem:[%s1 + $0x824] sm:$0xf]
    %v554 = vld [vmem:[%s1 + $0x828] sm:$0xf]
    %v555 = vld [vmem:[%s1 + $0x82c] sm:$0xf]
    %v556 = vld [vmem:[%s1 + $0x830] sm:$0xf]
    %v557 = vld [vmem:[%s1 + $0x834] sm:$0xf]
    %v558 = vld [vmem:[%s1 + $0x838] sm:$0xf]
    %v559 = vld [vmem:[%s1 + $0x83c] sm:$0xf]
    %v560 = vld [vmem:[%s1 + $0x840] sm:$0xf]
    %v561 = vld [vmem:[%s1 + $0x844] sm:$0xf]
    %v562 = vld [vmem:[%s1 + $0x848] sm:$0xf]
    %v563 = vld [vmem:[%s1 + $0x84c] sm:$0xf]
    %v564 = vld [vmem:[%s1 + $0x850] sm:$0xf]
    %v565 = vld [vmem:[%s1 + $0x854] sm:$0xf]
    %v566 = vld [vmem:[%s1 + $0x858] sm:$0xf]
    %v567 = vld [vmem:[%s1 + $0x85c] sm:$0xf]
    %v568 = vld [vmem:[%s1 + $0x860] sm:$0xf]
    %v569 = vld [vmem:[%s1 + $0x864] sm:$0xf]
    %v570 = vld [vmem:[%s1 + $0x868] sm:$0xf]
    %v571 = vld [vmem:[%s1 + $0x86c] sm:$0xf]
    %v572 = vld [vmem:[%s1 + $0x870] sm:$0xf]
    %v573 = vld [vmem:[%s1 + $0x874] sm:$0xf]
    %v574 = vld [vmem:[%s1 + $0x878] sm:$0xf]
    %v575 = vld [vmem:[%s1 + $0x87c] sm:$0xf]
    %v576 = vld [vmem:[%s1 + $0x880] sm:$0xf]
    %v577 = vld [vmem:[%s1 + $0x884] sm:$0xf]
    %v578 = vld [vmem:[%s1 + $0x888] sm:$0xf]
    %v579 = vld [vmem:[%s1 + $0x88c] sm:$0xf]
    %v580 = vld [vmem:[%s1 + $0x890] sm:$0xf]
    %v581 = vld [vmem:[%s1 + $0x894] sm:$0xf]
    %v582 = vld [vmem:[%s1 + $0x898] sm:$0xf]
    %v583 = vld [vmem:[%s1 + $0x89c] sm:$0xf]
    %v584 = vld [vmem:[%s1 + $0x8a0] sm:$0xf]
    %v585 = vld [vmem:[%s1 + $0x8a4] sm:$0xf]
    %v586 = vld [vmem:[%s1 + $0x8a8] sm:$0xf]
    %v587 = vld [vmem:[%s1 + $0x8ac] sm:$0xf]
    %v588 = vld [vmem:[%s1 + $0x8b0] sm:$0xf]
    %v589 = vld [vmem:[%s1 + $0x8b4] sm:$0xf]
    %v590 = vld [vmem:[%s1 + $0x8b8] sm:$0xf]
    %v591 = vld [vmem:[%s1 + $0x8bc] sm:$0xf]
    %v592 = vld [vmem:[%s1 + $0x8c0] sm:$0xf]
    %v593 = vld [vmem:[%s1 + $0x8c4] sm:$0xf]
    %v594 = vld [vmem:[%s1 + $0x8c8] sm:$0xf]
    %v595 = vld [vmem:[%s1 + $0x8cc] sm:$0xf]
    %v596 = vld [vmem:[%s1 + $0x8d0] sm:$0xf]
    %v597 = vld [vmem:[%s1 + $0x8d4] sm:$0xf]
    %v598 = vld [vmem:[%s1 + $0x8d8] sm:$0xf]
    %v599 = vld [vmem:[%s1 + $0x8dc] sm:$0xf]
    %v600 = vld [vmem:[%s1 + $0x8e0] sm:$0xf]
    %v601 = vld [vmem:[%s1 + $0x8e4] sm:$0xf]
    %v602 = vld [vmem:[%s1 + $0x8e8] sm:$0xf]
    %v603 = vld [vmem:[%s1 + $0x8ec] sm:$0xf]
    %v604 = vld [vmem:[%s1 + $0x8f0] sm:$0xf]
    %v605 = vld [vmem:[%s1 + $0x8f4] sm:$0xf]
    %v606 = vld [vmem:[%s1 + $0x8f8] sm:$0xf]
    %v607 = vld [vmem:[%s1 + $0x8fc] sm:$0xf]
    %v608 = vld [vmem:[%s1 + $0x900] sm:$0xf]
    %v609 = vld [vmem:[%s1 + $0x904] sm:$0xf]
    %v610 = vld [vmem:[%s1 + $0x908] sm:$0xf]
    %v611 = vld [vmem:[%s1 + $0x90c] sm:$0xf]
    %v612 = vld [vmem:[%s1 + $0x910] sm:$0xf]
    %v613 = vld [vmem:[%s1 + $0x914] sm:$0xf]
    %v614 = vld [vmem:[%s1 + $0x918] sm:$0xf]
    %v615 = vld [vmem:[%s1 + $0x91c] sm:$0xf]
    %v616 = vld [vmem:[%s1 + $0x920] sm:$0xf]
    %v617 = vld [vmem:[%s1 + $0x924] sm:$0xf]
    %v618 = vld [vmem:[%s1 + $0x928] sm:$0xf]
    %v619 = vld [vmem:[%s1 + $0x92c] sm:$0xf]
    %v620 = vld [vmem:[%s1 + $0x930] sm:$0xf]
    %v621 = vld [vmem:[%s1 + $0x934] sm:$0xf]
    %v622 = vld [vmem:[%s1 + $0x938] sm:$0xf]
    %v623 = vld [vmem:[%s1 + $0x93c] sm:$0xf]
    %v624 = vld [vmem:[%s1 + $0x940] sm:$0xf]
    %v625 = vld [vmem:[%s1 + $0x944] sm:$0xf]
    %v626 = vld [vmem:[%s1 + $0x948] sm:$0xf]
    %v627 = vld [vmem:[%s1 + $0x94c] sm:$0xf]
    %v628 = vld [vmem:[%s1 + $0x950] sm:$0xf]
    %v629 = vld [vmem:[%s1 + $0x954] sm:$0xf]
    %v630 = vld [vmem:[%s1 + $0x958] sm:$0xf]
    %v631 = vld [vmem:[%s1 + $0x95c] sm:$0xf]
    %v632 = vld [vmem:[%s1 + $0x960] sm:$0xf]
    %v633 = vld [vmem:[%s1 + $0x964] sm:$0xf]
    %v634 = vld [vmem:[%s1 + $0x968] sm:$0xf]
    %v635 = vld [vmem:[%s1 + $0x96c] sm:$0xf]
    %v636 = vld [vmem:[%s1 + $0x970] sm:$0xf]
    %v637 = vld [vmem:[%s1 + $0x974] sm:$0xf]
    %v638 = vld [vmem:[%s1 + $0x978] sm:$0xf]
    %v639 = vld [vmem:[%s1 + $0x97c] sm:$0xf]
    %v640 = vld [vmem:[%s1 + $0x980] sm:$0xf]
    %v641 = vld [vmem:[%s1 + $0x984] sm:$0xf]
    %v642 = vld [vmem:[%s1 + $0x988] sm:$0xf]
    %v643 = vld [vmem:[%s1 + $0x98c] sm:$0xf]
    %v644 = vld [vmem:[%s1 + $0x990] sm:$0xf]
    %v645 = vld [vmem:[%s1 + $0x994] sm:$0xf]
    %v646 = vld [vmem:[%s1 + $0x998] sm:$0xf]
    %v647 = vld [vmem:[%s1 + $0x99c] sm:$0xf]
    %v648 = vld [vmem:[%s1 + $0x9a0] sm:$0xf]
    %v649 = vld [vmem:[%s1 + $0x9a4] sm:$0xf]
    %v650 = vld [vmem:[%s1 + $0x9a8] sm:$0xf]
    %v651 = vld [vmem:[%s1 + $0x9ac] sm:$0xf]
    %v652 = vld [vmem:[%s1 + $0x9b0] sm:$0xf]
    %v653 = vld [vmem:[%s1 + $0x9b4] sm:$0xf]
    %v654 = vld [vmem:[%s1 + $0x9b8] sm:$0xf]
    %v655 = vld [vmem:[%s1 + $0x9bc] sm:$0xf]
    %v656 = vld [vmem:[%s1 + $0x9c0] sm:$0xf]
    %v657 = vld [vmem:[%s1 + $0x9c4] sm:$0xf]
    %v658 = vld [vmem:[%s1 + $0x9c8] sm:$0xf]
    %v659 = vld [vmem:[%s1 + $0x9cc] sm:$0xf]
    %v660 = vld [vmem:[%s1 + $0x9d0] sm:$0xf]
    %v661 = vld [vmem:[%s1 + $0x9d4] sm:$0xf]
    %v662 = vld [vmem:[%s1 + $0x9d8] sm:$0xf]
    %v663 = vld [vmem:[%s1 + $0x9dc] sm:$0xf]
    %v664 = vld [vmem:[%s1 + $0x9e0] sm:$0xf]
    %v665 = vld [vmem:[%s1 + $0x9e4] sm:$0xf]
    %v666 = vld [vmem:[%s1 + $0x9e8] sm:$0xf]
    %v667 = vld [vmem:[%s1 + $0x9ec] sm:$0xf]
    %v668 = vld [vmem:[%s1 + $0x9f0] sm:$0xf]
    %v669 = vld [vmem:[%s1 + $0x9f4] sm:$0xf]
    %v670 = vld [vmem:[%s1 + $0x9f8] sm:$0xf]
    %v671 = vld [vmem:[%s1 + $0x9fc] sm:$0xf]
    %v672 = vld [vmem:[%s1 + $0xa00] sm:$0xf]
    %v673 = vld [vmem:[%s1 + $0xa04] sm:$0xf]
    %v674 = vld [vmem:[%s1 + $0xa08] sm:$0xf]
    %v675 = vld [vmem:[%s1 + $0xa0c] sm:$0xf]
    %v676 = vld [vmem:[%s1 + $0xa10] sm:$0xf]
    %v677 = vld [vmem:[%s1 + $0xa14] sm:$0xf]
    %v678 = vld [vmem:[%s1 + $0xa18] sm:$0xf]
    %v679 = vld [vmem:[%s1 + $0xa1c] sm:$0xf]
    %v680 = vld [vmem:[%s1 + $0xa20] sm:$0xf]
    %v681 = vld [vmem:[%s1 + $0xa24] sm:$0xf]
    %v682 = vld [vmem:[%s1 + $0xa28] sm:$0xf]
    %v683 = vld [vmem:[%s1 + $0xa2c] sm:$0xf]
    %v684 = vld [vmem:[%s1 + $0xa30] sm:$0xf]
    %v685 = vld [vmem:[%s1 + $0xa34] sm:$0xf]
    %v686 = vld [vmem:[%s1 + $0xa38] sm:$0xf]
    %v687 = vld [vmem:[%s1 + $0xa3c] sm:$0xf]
    %v688 = vld [vmem:[%s1 + $0xa40] sm:$0xf]
    %v689 = vld [vmem:[%s1 + $0xa44] sm:$0xf]
    %v690 = vld [vmem:[%s1 + $0xa48] sm:$0xf]
    %v691 = vld [vmem:[%s1 + $0xa4c] sm:$0xf]
    %v692 = vld [vmem:[%s1 + $0xa50] sm:$0xf]
    %v693 = vld [vmem:[%s1 + $0xa54] sm:$0xf]
    %v694 = vld [vmem:[%s1 + $0xa58] sm:$0xf]
    %v695 = vld [vmem:[%s1 + $0xa5c] sm:$0xf]
    %v696 = vld [vmem:[%s1 + $0xa60] sm:$0xf]
    %v697 = vld [vmem:[%s1 + $0xa64] sm:$0xf]
    %v698 = vld [vmem:[%s1 + $0xa68] sm:$0xf]
    %v699 = vld [vmem:[%s1 + $0xa6c] sm:$0xf]
    %v700 = vld [vmem:[%s1 + $0xa70] sm:$0xf]
    %v701 = vld [vmem:[%s1 + $0xa74] sm:$0xf]
    %v702 = vld [vmem:[%s1 + $0xa78] sm:$0xf]
    %v703 = vld [vmem:[%s1 + $0xa7c] sm:$0xf]
    %v704 = vld [vmem:[%s1 + $0xa80] sm:$0xf]
    %v705 = vld [vmem:[%s1 + $0xa84] sm:$0xf]
    %v706 = vld [vmem:[%s1 + $0xa88] sm:$0xf]
    %v707 = vld [vmem:[%s1 + $0xa8c] sm:$0xf]
    %v708 = vld [vmem:[%s1 + $0xa90] sm:$0xf]
    %v709 = vld [vmem:[%s1 + $0xa94] sm:$0xf]
    %v710 = vld [vmem:[%s1 + $0xa98] sm:$0xf]
    %v711 = vld [vmem:[%s1 + $0xa9c] sm:$0xf]
    %v712 = vld [vmem:[%s1 + $0xaa0] sm:$0xf]
    %v713 = vld [vmem:[%s1 + $0xaa4] sm:$0xf]
    %v714 = vld [vmem:[%s1 + $0xaa8] sm:$0xf]
    %v715 = vld [vmem:[%s1 + $0xaac] sm:$0xf]
    %v716 = vld [vmem:[%s1 + $0xab0] sm:$0xf]
    %v717 = vld [vmem:[%s1 + $0xab4] sm:$0xf]
    %v718 = vld [vmem:[%s1 + $0xab8] sm:$0xf]
    %v719 = vld [vmem:[%s1 + $0xabc] sm:$0xf]
    %v720 = vld [vmem:[%s1 + $0xac0] sm:$0xf]
    %v721 = vld [vmem:[%s1 + $0xac4] sm:$0xf]
    %v722 = vld [vmem:[%s1 + $0xac8] sm:$0xf]
    %v723 = vld [vmem:[%s1 + $0xacc] sm:$0xf]
    %v724 = vld [vmem:[%s1 + $0xad0] sm:$0xf]
    %v725 = vld [vmem:[%s1 + $0xad4] sm:$0xf]
    %v726 = vld [vmem:[%s1 + $0xad8] sm:$0xf]
    %v727 = vld [vmem:[%s1 + $0xadc] sm:$0xf]
    %v728 = vld [vmem:[%s1 + $0xae0] sm:$0xf]
    %v729 = vld [vmem:[%s1 + $0xae4] sm:$0xf]
    %v730 = vld [vmem:[%s1 + $0xae8] sm:$0xf]
    %v731 = vld [vmem:[%s1 + $0xaec] sm:$0xf]
    %v732 = vld [vmem:[%s1 + $0xaf0] sm:$0xf]
    %v733 = vld [vmem:[%s1 + $0xaf4] sm:$0xf]
    %v734 = vld [vmem:[%s1 + $0xaf8] sm:$0xf]
    %v735 = vld [vmem:[%s1 + $0xafc] sm:$0xf]
    %v736 = vld [vmem:[%s1 + $0xb00] sm:$0xf]
    %v737 = vld [vmem:[%s1 + $0xb04] sm:$0xf]
    %v738 = vld [vmem:[%s1 + $0xb08] sm:$0xf]
    %v739 = vld [vmem:[%s1 + $0xb0c] sm:$0xf]
    %v740 = vld [vmem:[%s1 + $0xb10] sm:$0xf]
    %v741 = vld [vmem:[%s1 + $0xb14] sm:$0xf]
    %v742 = vld [vmem:[%s1 + $0xb18] sm:$0xf]
    %v743 = vld [vmem:[%s1 + $0xb1c] sm:$0xf]
    %v744 = vld [vmem:[%s1 + $0xb20] sm:$0xf]
    %v745 = vld [vmem:[%s1 + $0xb24] sm:$0xf]
    %v746 = vld [vmem:[%s1 + $0xb28] sm:$0xf]
    %v747 = vld [vmem:[%s1 + $0xb2c] sm:$0xf]
    %v748 = vld [vmem:[%s1 + $0xb30] sm:$0xf]
    %v749 = vld [vmem:[%s1 + $0xb34] sm:$0xf]
    %v750 = vld [vmem:[%s1 + $0xb38] sm:$0xf]
    %v751 = vld [vmem:[%s1 + $0xb3c] sm:$0xf]
    %v752 = vld [vmem:[%s1 + $0xb40] sm:$0xf]
    %v753 = vld [vmem:[%s1 + $0xb44] sm:$0xf]
    %v754 = vld [vmem:[%s1 + $0xb48] sm:$0xf]
    %v755 = vld [vmem:[%s1 + $0xb4c] sm:$0xf]
    %v756 = vld [vmem:[%s1 + $0xb50] sm:$0xf]
    %v757 = vld [vmem:[%s1 + $0xb54] sm:$0xf]
    %v758 = vld [vmem:[%s1 + $0xb58] sm:$0xf]
    %v759 = vld [vmem:[%s1 + $0xb5c] sm:$0xf]
    %v760 = vld [vmem:[%s1 + $0xb60] sm:$0xf]
    %v761 = vld [vmem:[%s1 + $0xb64] sm:$0xf]
    %v762 = vld [vmem:[%s1 + $0xb68] sm:$0xf]
    %v763 = vld [vmem:[%s1 + $0xb6c] sm:$0xf]
    %v764 = vld [vmem:[%s1 + $0xb70] sm:$0xf]
    %v765 = vld [vmem:[%s1 + $0xb74] sm:$0xf]
    %v766 = vld [vmem:[%s1 + $0xb78] sm:$0xf]
    %v767 = vld [vmem:[%s1 + $0xb7c] sm:$0xf]
    %v768 = vld [vmem:[%s1 + $0xb80] sm:$0xf]
    %v769 = vld [vmem:[%s1 + $0xb84] sm:$0xf]
    %v770 = vld [vmem:[%s1 + $0xb88] sm:$0xf]
    %v771 = vld [vmem:[%s1 + $0xb8c] sm:$0xf]
    %v772 = vld [vmem:[%s1 + $0xb90] sm:$0xf]
    %v773 = vld [vmem:[%s1 + $0xb94] sm:$0xf]
    %v774 = vld [vmem:[%s1 + $0xb98] sm:$0xf]
    %v775 = vld [vmem:[%s1 + $0xb9c] sm:$0xf]
    %v776 = vld [vmem:[%s1 + $0xba0] sm:$0xf]
    %v777 = vld [vmem:[%s1 + $0xba4] sm:$0xf]
    %v778 = vld [vmem:[%s1 + $0xba8] sm:$0xf]
    %v779 = vld [vmem:[%s1 + $0xbac] sm:$0xf]
    %v780 = vld [vmem:[%s1 + $0xbb0] sm:$0xf]
    %v781 = vld [vmem:[%s1 + $0xbb4] sm:$0xf]
    %v782 = vld [vmem:[%s1 + $0xbb8] sm:$0xf]
    %v783 = vld [vmem:[%s1 + $0xbbc] sm:$0xf]
    %v784 = vld [vmem:[%s1 + $0xbc0] sm:$0xf]
    %v785 = vld [vmem:[%s1 + $0xbc4] sm:$0xf]
    %v786 = vld [vmem:[%s1 + $0xbc8] sm:$0xf]
    %v787 = vld [vmem:[%s1 + $0xbcc] sm:$0xf]
    %v788 = vld [vmem:[%s1 + $0xbd0] sm:$0xf]
    %v789 = vld [vmem:[%s1 + $0xbd4] sm:$0xf]
    %v790 = vld [vmem:[%s1 + $0xbd8] sm:$0xf]
    %v791 = vld [vmem:[%s1 + $0xbdc] sm:$0xf]
    %v792 = vld [vmem:[%s1 + $0xbe0] sm:$0xf]
    %v793 = vld [vmem:[%s1 + $0xbe4] sm:$0xf]
    %v794 = vld [vmem:[%s1 + $0xbe8] sm:$0xf]
    %v795 = vld [vmem:[%s1 + $0xbec] sm:$0xf]
    %v796 = vld [vmem:[%s1 + $0xbf0] sm:$0xf]
    %v797 = vld [vmem:[%s1 + $0xbf4] sm:$0xf]
    %v798 = vld [vmem:[%s1 + $0xbf8] sm:$0xf]
    %v799 = vld [vmem:[%s1 + $0xbfc] sm:$0xf]
    %v800 = vld [vmem:[%s1 + $0xc00] sm:$0xf]
    %v801 = vld [vmem:[%s1 + $0xc04] sm:$0xf]
    %v802 = vld [vmem:[%s1 + $0xc08] sm:$0xf]
    %v803 = vld [vmem:[%s1 + $0xc0c] sm:$0xf]
    %v804 = vld [vmem:[%s1 + $0xc10] sm:$0xf]
    %v805 = vld [vmem:[%s1 + $0xc14] sm:$0xf]
    %v806 = vld [vmem:[%s1 + $0xc18] sm:$0xf]
    %v807 = vld [vmem:[%s1 + $0xc1c] sm:$0xf]
    %v808 = vld [vmem:[%s1 + $0xc20] sm:$0xf]
    %v809 = vld [vmem:[%s1 + $0xc24] sm:$0xf]
    %v810 = vld [vmem:[%s1 + $0xc28] sm:$0xf]
    %v811 = vld [vmem:[%s1 + $0xc2c] sm:$0xf]
    %v812 = vld [vmem:[%s1 + $0xc30] sm:$0xf]
    %v813 = vld [vmem:[%s1 + $0xc34] sm:$0xf]
    %v814 = vld [vmem:[%s1 + $0xc38] sm:$0xf]
    %v815 = vld [vmem:[%s1 + $0xc3c] sm:$0xf]
    %v816 = vld [vmem:[%s1 + $0xc40] sm:$0xf]
    %v817 = vld [vmem:[%s1 + $0xc44] sm:$0xf]
    %v818 = vld [vmem:[%s1 + $0xc48] sm:$0xf]
    %v819 = vld [vmem:[%s1 + $0xc4c] sm:$0xf]
    %v820 = vld [vmem:[%s1 + $0xc50] sm:$0xf]
    %v821 = vld [vmem:[%s1 + $0xc54] sm:$0xf]
    %v822 = vld [vmem:[%s1 + $0xc58] sm:$0xf]
    %v823 = vld [vmem:[%s1 + $0xc5c] sm:$0xf]
    %v824 = vld [vmem:[%s1 + $0xc60] sm:$0xf]
    %v825 = vld [vmem:[%s1 + $0xc64] sm:$0xf]
    %v826 = vld [vmem:[%s1 + $0xc68] sm:$0xf]
    %v827 = vld [vmem:[%s1 + $0xc6c] sm:$0xf]
    %v828 = vld [vmem:[%s1 + $0xc70] sm:$0xf]
    %v829 = vld [vmem:[%s1 + $0xc74] sm:$0xf]
    %v830 = vld [vmem:[%s1 + $0xc78] sm:$0xf]
    %v831 = vld [vmem:[%s1 + $0xc7c] sm:$0xf]
    %v832 = vld [vmem:[%s1 + $0xc80] sm:$0xf]
    %v833 = vld [vmem:[%s1 + $0xc84] sm:$0xf]
    %v834 = vld [vmem:[%s1 + $0xc88] sm:$0xf]
    %v835 = vld [vmem:[%s1 + $0xc8c] sm:$0xf]
    %v836 = vld [vmem:[%s1 + $0xc90] sm:$0xf]
    %v837 = vld [vmem:[%s1 + $0xc94] sm:$0xf]
    %v838 = vld [vmem:[%s1 + $0xc98] sm:$0xf]
    %v839 = vld [vmem:[%s1 + $0xc9c] sm:$0xf]
    %v840 = vld [vmem:[%s1 + $0xca0] sm:$0xf]
    %v841 = vld [vmem:[%s1 + $0xca4] sm:$0xf]
    %v842 = vld [vmem:[%s1 + $0xca8] sm:$0xf]
    %v843 = vld [vmem:[%s1 + $0xcac] sm:$0xf]
    %v844 = vld [vmem:[%s1 + $0xcb0] sm:$0xf]
    %v845 = vld [vmem:[%s1 + $0xcb4] sm:$0xf]
    %v846 = vld [vmem:[%s1 + $0xcb8] sm:$0xf]
    %v847 = vld [vmem:[%s1 + $0xcbc] sm:$0xf]
    %v848 = vld [vmem:[%s1 + $0xcc0] sm:$0xf]
    %v849 = vld [vmem:[%s1 + $0xcc4] sm:$0xf]
    %v850 = vld [vmem:[%s1 + $0xcc8] sm:$0xf]
    %v851 = vld [vmem:[%s1 + $0xccc] sm:$0xf]
    %v852 = vld [vmem:[%s1 + $0xcd0] sm:$0xf]
    %v853 = vld [vmem:[%s1 + $0xcd4] sm:$0xf]
    %v854 = vld [vmem:[%s1 + $0xcd8] sm:$0xf]
    %v855 = vld [vmem:[%s1 + $0xcdc] sm:$0xf]
    %v856 = vld [vmem:[%s1 + $0xce0] sm:$0xf]
    %v857 = vld [vmem:[%s1 + $0xce4] sm:$0xf]
    %v858 = vld [vmem:[%s1 + $0xce8] sm:$0xf]
    %v859 = vld [vmem:[%s1 + $0xcec] sm:$0xf]
    %v860 = vld [vmem:[%s1 + $0xcf0] sm:$0xf]
    %v861 = vld [vmem:[%s1 + $0xcf4] sm:$0xf]
    %v862 = vld [vmem:[%s1 + $0xcf8] sm:$0xf]
    %v863 = vld [vmem:[%s1 + $0xcfc] sm:$0xf]
    %v864 = vld [vmem:[%s1 + $0xd00] sm:$0xf]
    %v865 = vld [vmem:[%s1 + $0xd04] sm:$0xf]
    %v866 = vld [vmem:[%s1 + $0xd08] sm:$0xf]
    %v867 = vld [vmem:[%s1 + $0xd0c] sm:$0xf]
    %v868 = vld [vmem:[%s1 + $0xd10] sm:$0xf]
    %v869 = vld [vmem:[%s1 + $0xd14] sm:$0xf]
    %v870 = vld [vmem:[%s1 + $0xd18] sm:$0xf]
    %v871 = vld [vmem:[%s1 + $0xd1c] sm:$0xf]
    %v872 = vld [vmem:[%s1 + $0xd20] sm:$0xf]
    %v873 = vld [vmem:[%s1 + $0xd24] sm:$0xf]
    %v874 = vld [vmem:[%s1 + $0xd28] sm:$0xf]
    %v875 = vld [vmem:[%s1 + $0xd2c] sm:$0xf]
    %v876 = vld [vmem:[%s1 + $0xd30] sm:$0xf]
    %v877 = vld [vmem:[%s1 + $0xd34] sm:$0xf]
    %v878 = vld [vmem:[%s1 + $0xd38] sm:$0xf]
    %v879 = vld [vmem:[%s1 + $0xd3c] sm:$0xf]
    %v880 = vld [vmem:[%s1 + $0xd40] sm:$0xf]
    %v881 = vld [vmem:[%s1 + $0xd44] sm:$0xf]
    %v882 = vld [vmem:[%s1 + $0xd48] sm:$0xf]
    %v883 = vld [vmem:[%s1 + $0xd4c] sm:$0xf]
    %v884 = vld [vmem:[%s1 + $0xd50] sm:$0xf]
    %v885 = vld [vmem:[%s1 + $0xd54] sm:$0xf]
    %v886 = vld [vmem:[%s1 + $0xd58] sm:$0xf]
    %v887 = vld [vmem:[%s1 + $0xd5c] sm:$0xf]
    %v888 = vld [vmem:[%s1 + $0xd60] sm:$0xf]
    %v889 = vld [vmem:[%s1 + $0xd64] sm:$0xf]
    %v890 = vld [vmem:[%s1 + $0xd68] sm:$0xf]
    %v891 = vld [vmem:[%s1 + $0xd6c] sm:$0xf]
    %v892 = vld [vmem:[%s1 + $0xd70] sm:$0xf]
    %v893 = vld [vmem:[%s1 + $0xd74] sm:$0xf]
    %v894 = vld [vmem:[%s1 + $0xd78] sm:$0xf]
    %v895 = vld [vmem:[%s1 + $0xd7c] sm:$0xf]
    %v896 = vld [vmem:[%s1 + $0xd80] sm:$0xf]
    %v897 = vld [vmem:[%s1 + $0xd84] sm:$0xf]
    %v898 = vld [vmem:[%s1 + $0xd88] sm:$0xf]
    %v899 = vld [vmem:[%s1 + $0xd8c] sm:$0xf]
    %v900 = vld [vmem:[%s1 + $0xd90] sm:$0xf]
    %v901 = vld [vmem:[%s1 + $0xd94] sm:$0xf]
    %v902 = vld [vmem:[%s1 + $0xd98] sm:$0xf]
    %v903 = vld [vmem:[%s1 + $0xd9c] sm:$0xf]
    %v904 = vld [vmem:[%s1 + $0xda0] sm:$0xf]
    %v905 = vld [vmem:[%s1 + $0xda4] sm:$0xf]
    %v906 = vld [vmem:[%s1 + $0xda8] sm:$0xf]
    %v907 = vld [vmem:[%s1 + $0xdac] sm:$0xf]
    %v908 = vld [vmem:[%s1 + $0xdb0] sm:$0xf]
    %v909 = vld [vmem:[%s1 + $0xdb4] sm:$0xf]
    %v910 = vld [vmem:[%s1 + $0xdb8] sm:$0xf]
    %v911 = vld [vmem:[%s1 + $0xdbc] sm:$0xf]
    %v912 = vld [vmem:[%s1 + $0xdc0] sm:$0xf]
    %v913 = vld [vmem:[%s1 + $0xdc4] sm:$0xf]
    %v914 = vld [vmem:[%s1 + $0xdc8] sm:$0xf]
    %v915 = vld [vmem:[%s1 + $0xdcc] sm:$0xf]
    %v916 = vld [vmem:[%s1 + $0xdd0] sm:$0xf]
    %v917 = vld [vmem:[%s1 + $0xdd4] sm:$0xf]
    %v918 = vld [vmem:[%s1 + $0xdd8] sm:$0xf]
    %v919 = vld [vmem:[%s1 + $0xddc] sm:$0xf]
    %v920 = vld [vmem:[%s1 + $0xde0] sm:$0xf]
    %v921 = vld [vmem:[%s1 + $0xde4] sm:$0xf]
    %v922 = vld [vmem:[%s1 + $0xde8] sm:$0xf]
    %v923 = vld [vmem:[%s1 + $0xdec] sm:$0xf]
    %v924 = vld [vmem:[%s1 + $0xdf0] sm:$0xf]
    %v925 = vld [vmem:[%s1 + $0xdf4] sm:$0xf]
    %v926 = vld [vmem:[%s1 + $0xdf8] sm:$0xf]
    %v927 = vld [vmem:[%s1 + $0xdfc] sm:$0xf]
    %v928 = vld [vmem:[%s1 + $0xe00] sm:$0xf]
    %v929 = vld [vmem:[%s1 + $0xe04] sm:$0xf]
    %v930 = vld [vmem:[%s1 + $0xe08] sm:$0xf]
    %v931 = vld [vmem:[%s1 + $0xe0c] sm:$0xf]
    %v932 = vld [vmem:[%s1 + $0xe10] sm:$0xf]
    %v933 = vld [vmem:[%s1 + $0xe14] sm:$0xf]
    %v934 = vld [vmem:[%s1 + $0xe18] sm:$0xf]
    %v935 = vld [vmem:[%s1 + $0xe1c] sm:$0xf]
    %v936 = vld [vmem:[%s1 + $0xe20] sm:$0xf]
    %v937 = vld [vmem:[%s1 + $0xe24] sm:$0xf]
    %v938 = vld [vmem:[%s1 + $0xe28] sm:$0xf]
    %v939 = vld [vmem:[%s1 + $0xe2c] sm:$0xf]
    %v940 = vld [vmem:[%s1 + $0xe30] sm:$0xf]
    %v941 = vld [vmem:[%s1 + $0xe34] sm:$0xf]
    %v942 = vld [vmem:[%s1 + $0xe38] sm:$0xf]
    %v943 = vld [vmem:[%s1 + $0xe3c] sm:$0xf]
    %v944 = vld [vmem:[%s1 + $0xe40] sm:$0xf]
    %v945 = vld [vmem:[%s1 + $0xe44] sm:$0xf]
    %v946 = vld [vmem:[%s1 + $0xe48] sm:$0xf]
    %v947 = vld [vmem:[%s1 + $0xe4c] sm:$0xf]
    %v948 = vld [vmem:[%s1 + $0xe50] sm:$0xf]
    %v949 = vld [vmem:[%s1 + $0xe54] sm:$0xf]
    %v950 = vld [vmem:[%s1 + $0xe58] sm:$0xf]
    %v951 = vld [vmem:[%s1 + $0xe5c] sm:$0xf]
    %v952 = vld [vmem:[%s1 + $0xe60] sm:$0xf]
    %v953 = vld [vmem:[%s1 + $0xe64] sm:$0xf]
    %v954 = vld [vmem:[%s1 + $0xe68] sm:$0xf]
    %v955 = vld [vmem:[%s1 + $0xe6c] sm:$0xf]
    %v956 = vld [vmem:[%s1 + $0xe70] sm:$0xf]
    %v957 = vld [vmem:[%s1 + $0xe74] sm:$0xf]
    %v958 = vld [vmem:[%s1 + $0xe78] sm:$0xf]
    %v959 = vld [vmem:[%s1 + $0xe7c] sm:$0xf]
    %v960 = vld [vmem:[%s1 + $0xe80] sm:$0xf]
    %v961 = vld [vmem:[%s1 + $0xe84] sm:$0xf]
    %v962 = vld [vmem:[%s1 + $0xe88] sm:$0xf]
    %v963 = vld [vmem:[%s1 + $0xe8c] sm:$0xf]
    %v964 = vld [vmem:[%s1 + $0xe90] sm:$0xf]
    %v965 = vld [vmem:[%s1 + $0xe94] sm:$0xf]
    %v966 = vld [vmem:[%s1 + $0xe98] sm:$0xf]
    %v967 = vld [vmem:[%s1 + $0xe9c] sm:$0xf]
    %v968 = vld [vmem:[%s1 + $0xea0] sm:$0xf]
    %v969 = vld [vmem:[%s1 + $0xea4] sm:$0xf]
    %v970 = vld [vmem:[%s1 + $0xea8] sm:$0xf]
    %v971 = vld [vmem:[%s1 + $0xeac] sm:$0xf]
    %v972 = vld [vmem:[%s1 + $0xeb0] sm:$0xf]
    %v973 = vld [vmem:[%s1 + $0xeb4] sm:$0xf]
    %v974 = vld [vmem:[%s1 + $0xeb8] sm:$0xf]
    %v975 = vld [vmem:[%s1 + $0xebc] sm:$0xf]
    %v976 = vld [vmem:[%s1 + $0xec0] sm:$0xf]
    %v977 = vld [vmem:[%s1 + $0xec4] sm:$0xf]
    %v978 = vld [vmem:[%s1 + $0xec8] sm:$0xf]
    %v979 = vld [vmem:[%s1 + $0xecc] sm:$0xf]
    %v980 = vld [vmem:[%s1 + $0xed0] sm:$0xf]
    %v981 = vld [vmem:[%s1 + $0xed4] sm:$0xf]
    %v982 = vld [vmem:[%s1 + $0xed8] sm:$0xf]
    %v983 = vld [vmem:[%s1 + $0xedc] sm:$0xf]
    %v984 = vld [vmem:[%s1 + $0xee0] sm:$0xf]
    %v985 = vld [vmem:[%s1 + $0xee4] sm:$0xf]
    %v986 = vld [vmem:[%s1 + $0xee8] sm:$0xf]
    %v987 = vld [vmem:[%s1 + $0xeec] sm:$0xf]
    %v988 = vld [vmem:[%s1 + $0xef0] sm:$0xf]
    %v989 = vld [vmem:[%s1 + $0xef4] sm:$0xf]
    %v990 = vld [vmem:[%s1 + $0xef8] sm:$0xf]
    %v991 = vld [vmem:[%s1 + $0xefc] sm:$0xf]
    %v992 = vld [vmem:[%s1 + $0xf00] sm:$0xf]
    %v993 = vld [vmem:[%s1 + $0xf04] sm:$0xf]
    %v994 = vld [vmem:[%s1 + $0xf08] sm:$0xf]
    %v995 = vld [vmem:[%s1 + $0xf0c] sm:$0xf]
    %v996 = vld [vmem:[%s1 + $0xf10] sm:$0xf]
    %v997 = vld [vmem:[%s1 + $0xf14] sm:$0xf]
    %v998 = vld [vmem:[%s1 + $0xf18] sm:$0xf]
    %v999 = vld [vmem:[%s1 + $0xf1c] sm:$0xf]
    %v1000 = vld [vmem:[%s1 + $0xf20] sm:$0xf]
    %v1001 = vld [vmem:[%s1 + $0xf24] sm:$0xf]
    %v1002 = vld [vmem:[%s1 + $0xf28] sm:$0xf]
    %v1003 = vld [vmem:[%s1 + $0xf2c] sm:$0xf]
    %v1004 = vld [vmem:[%s1 + $0xf30] sm:$0xf]
    %v1005 = vld [vmem:[%s1 + $0xf34] sm:$0xf]
    %v1006 = vld [vmem:[%s1 + $0xf38] sm:$0xf]
    %v1007 = vld [vmem:[%s1 + $0xf3c] sm:$0xf]
    %v1008 = vld [vmem:[%s1 + $0xf40] sm:$0xf]
    %v1009 = vld [vmem:[%s1 + $0xf44] sm:$0xf]
    %v1010 = vld [vmem:[%s1 + $0xf48] sm:$0xf]
    %v1011 = vld [vmem:[%s1 + $0xf4c] sm:$0xf]
    %v1012 = vld [vmem:[%s1 + $0xf50] sm:$0xf]
    %v1013 = vld [vmem:[%s1 + $0xf54] sm:$0xf]
    %v1014 = vld [vmem:[%s1 + $0xf58] sm:$0xf]
    %v1015 = vld [vmem:[%s1 + $0xf5c] sm:$0xf]
    %v1016 = vld [vmem:[%s1 + $0xf60] sm:$0xf]
    %v1017 = vld [vmem:[%s1 + $0xf64] sm:$0xf]
    %v1018 = vld [vmem:[%s1 + $0xf68] sm:$0xf]
    %v1019 = vld [vmem:[%s1 + $0xf6c] sm:$0xf]
    %v1020 = vld [vmem:[%s1 + $0xf70] sm:$0xf]
    %v1021 = vld [vmem:[%s1 + $0xf74] sm:$0xf]
    %v1022 = vld [vmem:[%s1 + $0xf78] sm:$0xf]
    %v1023 = vld [vmem:[%s1 + $0xf7c] sm:$0xf]
    %v1024 = vld [vmem:[%s1 + $0xf80] sm:$0xf]
    %v1025 = vld [vmem:[%s1 + $0xf84] sm:$0xf]
    %v1026 = vld [vmem:[%s1 + $0xf88] sm:$0xf]
    %v1027 = vld [vmem:[%s1 + $0xf8c] sm:$0xf]
    %v1028 = vld [vmem:[%s1 + $0xf90] sm:$0xf]
    %v1029 = vld [vmem:[%s1 + $0xf94] sm:$0xf]
    %v1030 = vld [vmem:[%s1 + $0xf98] sm:$0xf]
    %v1031 = vld [vmem:[%s1 + $0xf9c] sm:$0xf]
    %v1032 = vld [vmem:[%s1 + $0xfa0] sm:$0xf]
    %v1033 = vld [vmem:[%s1 + $0xfa4] sm:$0xf]
    %v1034 = vld [vmem:[%s1 + $0xfa8] sm:$0xf]
    %v1035 = vld [vmem:[%s1 + $0xfac] sm:$0xf]
    %v1036 = vld [vmem:[%s1 + $0xfb0] sm:$0xf]
    %v1037 = vld [vmem:[%s1 + $0xfb4] sm:$0xf]
    %v1038 = vld [vmem:[%s1 + $0xfb8] sm:$0xf]
    %v1039 = vld [vmem:[%s1 + $0xfbc] sm:$0xf]
    %v1040 = vld [vmem:[%s1 + $0xfc0] sm:$0xf]
    %v1041 = vld [vmem:[%s1 + $0xfc4] sm:$0xf]
    %v1042 = vld [vmem:[%s1 + $0xfc8] sm:$0xf]
    %v1043 = vld [vmem:[%s1 + $0xfcc] sm:$0xf]
    %v1044 = vld [vmem:[%s1 + $0xfd0] sm:$0xf]
    %v1045 = vld [vmem:[%s1 + $0xfd4] sm:$0xf]
    %v1046 = vld [vmem:[%s1 + $0xfd8] sm:$0xf]
    %v1047 = vld [vmem:[%s1 + $0xfdc] sm:$0xf]
    %v1048 = vld [vmem:[%s1 + $0xfe0] sm:$0xf]
    %v1049 = vld [vmem:[%s1 + $0xfe4] sm:$0xf]
    %v1050 = vld [vmem:[%s1 + $0xfe8] sm:$0xf]
    %v1051 = vld [vmem:[%s1 + $0xfec] sm:$0xf]
    %v1052 = vld [vmem:[%s1 + $0xff0] sm:$0xf]
    %v1053 = vld [vmem:[%s1 + $0xff4] sm:$0xf]
    %v1054 = vld [vmem:[%s1 + $0xff8] sm:$0xf]
    %v1055 = vld [vmem:[%s1 + $0xffc] sm:$0xf]
    %v1056 = vld [vmem:[%s1 + $0x1000] sm:$0xf]
    %v1057 = vld [vmem:[%s1 + $0x1004] sm:$0xf]
    %v1058 = vld [vmem:[%s1 + $0x1008] sm:$0xf]
    %v1059 = vld [vmem:[%s1 + $0x100c] sm:$0xf]
    %v1060 = vld [vmem:[%s1 + $0x1010] sm:$0xf]
    %v1061 = vld [vmem:[%s1 + $0x1014] sm:$0xf]
    %v1062 = vld [vmem:[%s1 + $0x1018] sm:$0xf]
    %v1063 = vld [vmem:[%s1 + $0x101c] sm:$0xf]
    %v1064 = vld [vmem:[%s1 + $0x1020] sm:$0xf]
    %v1065 = vld [vmem:[%s1 + $0x1024] sm:$0xf]
    %v1066 = vld [vmem:[%s1 + $0x1028] sm:$0xf]
    %v1067 = vld [vmem:[%s1 + $0x102c] sm:$0xf]
    %v1068 = vld [vmem:[%s1 + $0x1030] sm:$0xf]
    %v1069 = vld [vmem:[%s1 + $0x1034] sm:$0xf]
    %v1070 = vld [vmem:[%s1 + $0x1038] sm:$0xf]
    %v1071 = vld [vmem:[%s1 + $0x103c] sm:$0xf]
    %v1072 = vld [vmem:[%s1 + $0x1040] sm:$0xf]
    %v1073 = vld [vmem:[%s1 + $0x1044] sm:$0xf]
    %v1074 = vld [vmem:[%s1 + $0x1048] sm:$0xf]
    %v1075 = vld [vmem:[%s1 + $0x104c] sm:$0xf]
    %v1076 = vld [vmem:[%s1 + $0x1050] sm:$0xf]
    %v1077 = vld [vmem:[%s1 + $0x1054] sm:$0xf]
    %v1078 = vld [vmem:[%s1 + $0x1058] sm:$0xf]
    %v1079 = vld [vmem:[%s1 + $0x105c] sm:$0xf]
    %v1080 = vld [vmem:[%s1 + $0x1060] sm:$0xf]
    %v1081 = vld [vmem:[%s1 + $0x1064] sm:$0xf]
    %v1082 = vld [vmem:[%s1 + $0x1068] sm:$0xf]
    %v1083 = vld [vmem:[%s1 + $0x106c] sm:$0xf]
    %v1084 = vld [vmem:[%s1 + $0x1070] sm:$0xf]
    %v1085 = vld [vmem:[%s1 + $0x1074] sm:$0xf]
    %v1086 = vld [vmem:[%s1 + $0x1078] sm:$0xf]
    %v1087 = vld [vmem:[%s1 + $0x107c] sm:$0xf]
    %v1088 = vld [vmem:[%s1 + $0x1080] sm:$0xf]
    %v1089 = vld [vmem:[%s1 + $0x1084] sm:$0xf]
    %v1090 = vld [vmem:[%s1 + $0x1088] sm:$0xf]
    %v1091 = vld [vmem:[%s1 + $0x108c] sm:$0xf]
    %v1092 = vld [vmem:[%s1 + $0x1090] sm:$0xf]
    %v1093 = vld [vmem:[%s1 + $0x1094] sm:$0xf]
    %v1094 = vld [vmem:[%s1 + $0x1098] sm:$0xf]
    %v1095 = vld [vmem:[%s1 + $0x109c] sm:$0xf]
    %v1096 = vld [vmem:[%s1 + $0x10a0] sm:$0xf]
    %v1097 = vld [vmem:[%s1 + $0x10a4] sm:$0xf]
    %v1098 = vld [vmem:[%s1 + $0x10a8] sm:$0xf]
    %v1099 = vld [vmem:[%s1 + $0x10ac] sm:$0xf]
    %v1100 = vld [vmem:[%s1 + $0x10b0] sm:$0xf]
    %v1101 = vld [vmem:[%s1 + $0x10b4] sm:$0xf]
    %v1102 = vld [vmem:[%s1 + $0x10b8] sm:$0xf]
    %v1103 = vld [vmem:[%s1 + $0x10bc] sm:$0xf]
    %v1104 = vld [vmem:[%s1 + $0x10c0] sm:$0xf]
    %v1105 = vld [vmem:[%s1 + $0x10c4] sm:$0xf]
    %v1106 = vld [vmem:[%s1 + $0x10c8] sm:$0xf]
    %v1107 = vld [vmem:[%s1 + $0x10cc] sm:$0xf]
    %v1108 = vld [vmem:[%s1 + $0x10d0] sm:$0xf]
    %v1109 = vld [vmem:[%s1 + $0x10d4] sm:$0xf]
    %v1110 = vld [vmem:[%s1 + $0x10d8] sm:$0xf]
    %v1111 = vld [vmem:[%s1 + $0x10dc] sm:$0xf]
    %v1112 = vld [vmem:[%s1 + $0x10e0] sm:$0xf]
    %v1113 = vld [vmem:[%s1 + $0x10e4] sm:$0xf]
    %v1114 = vld [vmem:[%s1 + $0x10e8] sm:$0xf]
    %v1115 = vld [vmem:[%s1 + $0x10ec] sm:$0xf]
    %v1116 = vld [vmem:[%s1 + $0x10f0] sm:$0xf]
    %v1117 = vld [vmem:[%s1 + $0x10f4] sm:$0xf]
    %v1118 = vld [vmem:[%s1 + $0x10f8] sm:$0xf]
    %v1119 = vld [vmem:[%s1 + $0x10fc] sm:$0xf]
    %v1120 = vld [vmem:[%s1 + $0x1100] sm:$0xf]
    %v1121 = vld [vmem:[%s1 + $0x1104] sm:$0xf]
    %v1122 = vld [vmem:[%s1 + $0x1108] sm:$0xf]
    %v1123 = vld [vmem:[%s1 + $0x110c] sm:$0xf]
    %v1124 = vld [vmem:[%s1 + $0x1110] sm:$0xf]
    %v1125 = vld [vmem:[%s1 + $0x1114] sm:$0xf]
    %v1126 = vld [vmem:[%s1 + $0x1118] sm:$0xf]
    %v1127 = vld [vmem:[%s1 + $0x111c] sm:$0xf]
    %v1128 = vld [vmem:[%s1 + $0x1120] sm:$0xf]
    %v1129 = vld [vmem:[%s1 + $0x1124] sm:$0xf]
    %v1130 = vld [vmem:[%s1 + $0x1128] sm:$0xf]
    %v1131 = vld [vmem:[%s1 + $0x112c] sm:$0xf]
    %v1132 = vld [vmem:[%s1 + $0x1130] sm:$0xf]
    %v1133 = vld [vmem:[%s1 + $0x1134] sm:$0xf]
    %v1134 = vld [vmem:[%s1 + $0x1138] sm:$0xf]
    %v1135 = vld [vmem:[%s1 + $0x113c] sm:$0xf]
    %v1136 = vld [vmem:[%s1 + $0x1140] sm:$0xf]
    %v1137 = vld [vmem:[%s1 + $0x1144] sm:$0xf]
    %v1138 = vld [vmem:[%s1 + $0x1148] sm:$0xf]
    %v1139 = vld [vmem:[%s1 + $0x114c] sm:$0xf]
    %v1140 = vld [vmem:[%s1 + $0x1150] sm:$0xf]
    %v1141 = vld [vmem:[%s1 + $0x1154] sm:$0xf]
    %v1142 = vld [vmem:[%s1 + $0x1158] sm:$0xf]
    %v1143 = vld [vmem:[%s1 + $0x115c] sm:$0xf]
    %v1144 = vld [vmem:[%s1 + $0x1160] sm:$0xf]
    %v1145 = vld [vmem:[%s1 + $0x1164] sm:$0xf]
    %v1146 = vld [vmem:[%s1 + $0x1168] sm:$0xf]
    %v1147 = vld [vmem:[%s1 + $0x116c] sm:$0xf]
    %v1148 = vld [vmem:[%s1 + $0x1170] sm:$0xf]
    %v1149 = vld [vmem:[%s1 + $0x1174] sm:$0xf]
    %v1150 = vld [vmem:[%s1 + $0x1178] sm:$0xf]
    %v1151 = vld [vmem:[%s1 + $0x117c] sm:$0xf]
    %v1152 = vld [vmem:[%s1 + $0x1180] sm:$0xf]
    %v1153 = vld [vmem:[%s1 + $0x1184] sm:$0xf]
    %v1154 = vld [vmem:[%s1 + $0x1188] sm:$0xf]
    %v1155 = vld [vmem:[%s1 + $0x118c] sm:$0xf]
    %v1156 = vld [vmem:[%s1 + $0x1190] sm:$0xf]
    %v1157 = vld [vmem:[%s1 + $0x1194] sm:$0xf]
    %v1158 = vld [vmem:[%s1 + $0x1198] sm:$0xf]
    %v1159 = vld [vmem:[%s1 + $0x119c] sm:$0xf]
    %v1160 = vld [vmem:[%s1 + $0x11a0] sm:$0xf]
    %v1161 = vld [vmem:[%s1 + $0x11a4] sm:$0xf]
    %v1162 = vld [vmem:[%s1 + $0x11a8] sm:$0xf]
    %v1163 = vld [vmem:[%s1 + $0x11ac] sm:$0xf]
    %v1164 = vld [vmem:[%s1 + $0x11b0] sm:$0xf]
    %v1165 = vld [vmem:[%s1 + $0x11b4] sm:$0xf]
    %v1166 = vld [vmem:[%s1 + $0x11b8] sm:$0xf]
    %v1167 = vld [vmem:[%s1 + $0x11bc] sm:$0xf]
    %v1168 = vld [vmem:[%s1 + $0x11c0] sm:$0xf]
    %v1169 = vld [vmem:[%s1 + $0x11c4] sm:$0xf]
    %v1170 = vld [vmem:[%s1 + $0x11c8] sm:$0xf]
    %v1171 = vld [vmem:[%s1 + $0x11cc] sm:$0xf]
    %v1172 = vld [vmem:[%s1 + $0x11d0] sm:$0xf]
    %v1173 = vld [vmem:[%s1 + $0x11d4] sm:$0xf]
    %v1174 = vld [vmem:[%s1 + $0x11d8] sm:$0xf]
    %v1175 = vld [vmem:[%s1 + $0x11dc] sm:$0xf]
    %v1176 = vld [vmem:[%s1 + $0x11e0] sm:$0xf]
    %v1177 = vld [vmem:[%s1 + $0x11e4] sm:$0xf]
    %v1178 = vld [vmem:[%s1 + $0x11e8] sm:$0xf]
    %v1179 = vld [vmem:[%s1 + $0x11ec] sm:$0xf]
    %v1180 = vld [vmem:[%s1 + $0x11f0] sm:$0xf]
    %v1181 = vld [vmem:[%s1 + $0x11f4] sm:$0xf]
    %v1182 = vld [vmem:[%s1 + $0x11f8] sm:$0xf]
    %v1183 = vld [vmem:[%s1 + $0x11fc] sm:$0xf]
    %v1184 = vld [vmem:[%s1 + $0x1200] sm:$0xf]
    %v1185 = vld [vmem:[%s1 + $0x1204] sm:$0xf]
    %v1186 = vld [vmem:[%s1 + $0x1208] sm:$0xf]
    %v1187 = vld [vmem:[%s1 + $0x120c] sm:$0xf]
    %v1188 = vld [vmem:[%s1 + $0x1210] sm:$0xf]
    %v1189 = vld [vmem:[%s1 + $0x1214] sm:$0xf]
    %v1190 = vld [vmem:[%s1 + $0x1218] sm:$0xf]
    %v1191 = vld [vmem:[%s1 + $0x121c] sm:$0xf]
    %v1192 = vld [vmem:[%s1 + $0x1220] sm:$0xf]
    %v1193 = vld [vmem:[%s1 + $0x1224] sm:$0xf]
    %v1194 = vld [vmem:[%s1 + $0x1228] sm:$0xf]
    %v1195 = vld [vmem:[%s1 + $0x122c] sm:$0xf]
    %v1196 = vld [vmem:[%s1 + $0x1230] sm:$0xf]
    %v1197 = vld [vmem:[%s1 + $0x1234] sm:$0xf]
    %v1198 = vld [vmem:[%s1 + $0x1238] sm:$0xf]
    %v1199 = vld [vmem:[%s1 + $0x123c] sm:$0xf]
    %v1200 = vld [vmem:[%s1 + $0x1240] sm:$0xf]
    %v1201 = vld [vmem:[%s1 + $0x1244] sm:$0xf]
    %v1202 = vld [vmem:[%s1 + $0x1248] sm:$0xf]
    %v1203 = vld [vmem:[%s1 + $0x124c] sm:$0xf]
    %v1204 = vld [vmem:[%s1 + $0x1250] sm:$0xf]
    %v1205 = vld [vmem:[%s1 + $0x1254] sm:$0xf]
    %v1206 = vld [vmem:[%s1 + $0x1258] sm:$0xf]
    %v1207 = vld [vmem:[%s1 + $0x125c] sm:$0xf]
    %v1208 = vld [vmem:[%s1 + $0x1260] sm:$0xf]
    %v1209 = vld [vmem:[%s1 + $0x1264] sm:$0xf]
    %v1210 = vld [vmem:[%s1 + $0x1268] sm:$0xf]
    %v1211 = vld [vmem:[%s1 + $0x126c] sm:$0xf]
    %v1212 = vld [vmem:[%s1 + $0x1270] sm:$0xf]
    %v1213 = vld [vmem:[%s1 + $0x1274] sm:$0xf]
    %v1214 = vld [vmem:[%s1 + $0x1278] sm:$0xf]
    %v1215 = vld [vmem:[%s1 + $0x127c] sm:$0xf]
    %v1216 = vld [vmem:[%s1 + $0x1280] sm:$0xf]
    %v1217 = vld [vmem:[%s1 + $0x1284] sm:$0xf]
    %v1218 = vld [vmem:[%s1 + $0x1288] sm:$0xf]
    %v1219 = vld [vmem:[%s1 + $0x128c] sm:$0xf]
    %v1220 = vld [vmem:[%s1 + $0x1290] sm:$0xf]
    %v1221 = vld [vmem:[%s1 + $0x1294] sm:$0xf]
    %v1222 = vld [vmem:[%s1 + $0x1298] sm:$0xf]
    %v1223 = vld [vmem:[%s1 + $0x129c] sm:$0xf]
    %v1224 = vld [vmem:[%s1 + $0x12a0] sm:$0xf]
    %v1225 = vld [vmem:[%s1 + $0x12a4] sm:$0xf]
    %v1226 = vld [vmem:[%s1 + $0x12a8] sm:$0xf]
    %v1227 = vld [vmem:[%s1 + $0x12ac] sm:$0xf]
    %v1228 = vld [vmem:[%s1 + $0x12b0] sm:$0xf]
    %v1229 = vld [vmem:[%s1 + $0x12b4] sm:$0xf]
    %v1230 = vld [vmem:[%s1 + $0x12b8] sm:$0xf]
    %v1231 = vld [vmem:[%s1 + $0x12bc] sm:$0xf]
    %v1232 = vld [vmem:[%s1 + $0x12c0] sm:$0xf]
    %v1233 = vld [vmem:[%s1 + $0x12c4] sm:$0xf]
    %v1234 = vld [vmem:[%s1 + $0x12c8] sm:$0xf]
    %v1235 = vld [vmem:[%s1 + $0x12cc] sm:$0xf]
    %v1236 = vld [vmem:[%s1 + $0x12d0] sm:$0xf]
    %v1237 = vld [vmem:[%s1 + $0x12d4] sm:$0xf]
    %v1238 = vld [vmem:[%s1 + $0x12d8] sm:$0xf]
    %v1239 = vld [vmem:[%s1 + $0x12dc] sm:$0xf]
    %v1240 = vld [vmem:[%s1 + $0x12e0] sm:$0xf]
    %v1241 = vld [vmem:[%s1 + $0x12e4] sm:$0xf]
    %v1242 = vld [vmem:[%s1 + $0x12e8] sm:$0xf]
    %v1243 = vld [vmem:[%s1 + $0x12ec] sm:$0xf]
    %v1244 = vld [vmem:[%s1 + $0x12f0] sm:$0xf]
    %v1245 = vld [vmem:[%s1 + $0x12f4] sm:$0xf]
    %v1246 = vld [vmem:[%s1 + $0x12f8] sm:$0xf]
    %v1247 = vld [vmem:[%s1 + $0x12fc] sm:$0xf]
    %v1248 = vld [vmem:[%s1 + $0x1300] sm:$0xf]
    %v1249 = vld [vmem:[%s1 + $0x1304] sm:$0xf]
    %v1250 = vld [vmem:[%s1 + $0x1308] sm:$0xf]
    %v1251 = vld [vmem:[%s1 + $0x130c] sm:$0xf]
    %v1252 = vld [vmem:[%s1 + $0x1310] sm:$0xf]
    %v1253 = vld [vmem:[%s1 + $0x1314] sm:$0xf]
    %v1254 = vld [vmem:[%s1 + $0x1318] sm:$0xf]
    %v1255 = vld [vmem:[%s1 + $0x131c] sm:$0xf]
    %v1256 = vld [vmem:[%s1 + $0x1320] sm:$0xf]
    %v1257 = vld [vmem:[%s1 + $0x1324] sm:$0xf]
    %v1258 = vld [vmem:[%s1 + $0x1328] sm:$0xf]
    %v1259 = vld [vmem:[%s1 + $0x132c] sm:$0xf]
    %v1260 = vld [vmem:[%s1 + $0x1330] sm:$0xf]
    %v1261 = vld [vmem:[%s1 + $0x1334] sm:$0xf]
    %v1262 = vld [vmem:[%s1 + $0x1338] sm:$0xf]
    %v1263 = vld [vmem:[%s1 + $0x133c] sm:$0xf]
    %v1264 = vld [vmem:[%s1 + $0x1340] sm:$0xf]
    %v1265 = vld [vmem:[%s1 + $0x1344] sm:$0xf]
    %v1266 = vld [vmem:[%s1 + $0x1348] sm:$0xf]
    %v1267 = vld [vmem:[%s1 + $0x134c] sm:$0xf]
    %v1268 = vld [vmem:[%s1 + $0x1350] sm:$0xf]
    %v1269 = vld [vmem:[%s1 + $0x1354] sm:$0xf]
    %v1270 = vld [vmem:[%s1 + $0x1358] sm:$0xf]
    %v1271 = vld [vmem:[%s1 + $0x135c] sm:$0xf]
    %v1272 = vld [vmem:[%s1 + $0x1360] sm:$0xf]
    %v1273 = vld [vmem:[%s1 + $0x1364] sm:$0xf]
    %v1274 = vld [vmem:[%s1 + $0x1368] sm:$0xf]
    %v1275 = vld [vmem:[%s1 + $0x136c] sm:$0xf]
    %v1276 = vld [vmem:[%s1 + $0x1370] sm:$0xf]
    %v1277 = vld [vmem:[%s1 + $0x1374] sm:$0xf]
    %v1278 = vld [vmem:[%s1 + $0x1378] sm:$0xf]
    %v1279 = vld [vmem:[%s1 + $0x137c] sm:$0xf]
    %v1280 = vld [vmem:[%s1 + $0x1380] sm:$0xf]
    %v1281 = vld [vmem:[%s1 + $0x1384] sm:$0xf]
    %v1282 = vld [vmem:[%s1 + $0x1388] sm:$0xf]
    %v1283 = vld [vmem:[%s1 + $0x138c] sm:$0xf]
    %v1284 = vld [vmem:[%s1 + $0x1390] sm:$0xf]
    %v1285 = vld [vmem:[%s1 + $0x1394] sm:$0xf]
    %v1286 = vld [vmem:[%s1 + $0x1398] sm:$0xf]
    %v1287 = vld [vmem:[%s1 + $0x139c] sm:$0xf]
    %v1288 = vld [vmem:[%s1 + $0x13a0] sm:$0xf]
    %v1289 = vld [vmem:[%s1 + $0x13a4] sm:$0xf]
    %v1290 = vld [vmem:[%s1 + $0x13a8] sm:$0xf]
    %v1291 = vld [vmem:[%s1 + $0x13ac] sm:$0xf]
    %v1292 = vld [vmem:[%s1 + $0x13b0] sm:$0xf]
    %v1293 = vld [vmem:[%s1 + $0x13b4] sm:$0xf]
    %v1294 = vld [vmem:[%s1 + $0x13b8] sm:$0xf]
    %v1295 = vld [vmem:[%s1 + $0x13bc] sm:$0xf]
    %v1296 = vld [vmem:[%s1 + $0x13c0] sm:$0xf]
    %v1297 = vld [vmem:[%s1 + $0x13c4] sm:$0xf]
    %v1298 = vld [vmem:[%s1 + $0x13c8] sm:$0xf]
    %v1299 = vld [vmem:[%s1 + $0x13cc] sm:$0xf]
    %v1300 = vld [vmem:[%s1 + $0x13d0] sm:$0xf]
    %v1301 = vld [vmem:[%s1 + $0x13d4] sm:$0xf]
    %v1302 = vld [vmem:[%s1 + $0x13d8] sm:$0xf]
    %v1303 = vld [vmem:[%s1 + $0x13dc] sm:$0xf]
    %v1304 = vld [vmem:[%s1 + $0x13e0] sm:$0xf]
    %v1305 = vld [vmem:[%s1 + $0x13e4] sm:$0xf]
    %v1306 = vld [vmem:[%s1 + $0x13e8] sm:$0xf]
    %v1307 = vld [vmem:[%s1 + $0x13ec] sm:$0xf]
    %v1308 = vld [vmem:[%s1 + $0x13f0] sm:$0xf]
    %v1309 = vld [vmem:[%s1 + $0x13f4] sm:$0xf]
    %v1310 = vld [vmem:[%s1 + $0x13f8] sm:$0xf]
    %v1311 = vld [vmem:[%s1 + $0x13fc] sm:$0xf]
    %v1312 = vld [vmem:[%s2] sm:$0x1]
    %v1314 = vlaneseq
    %v1315 = vshrl.u32 %v1314, 7
    %v1316 = vsub.s32 0, %v1315
    %v1317 = vrot.slane %v1312, %v1316
    %v1329 = vcombine.high %v22, %v22
    %v1331 = vunpack.c.l.s4 1966171168
    %v1332 = vunpack.c.0.s8 %v1331
    %v1333 = vlaneseq
    %v1334 = vshrl.u32 %v1333, 7
    %v1335 = vsub.s32 %v1332, %v1334
    %v1336 = vrot.slane %v22, %v1335
    %v1338 = vunpack.c.l.s4 1966171168
    %v1339 = vunpack.c.0.s8 %v1338
    %v1340 = vlaneseq
    %v1341 = vshrl.u32 %v1340, 7
    %v1342 = vsub.s32 %v1339, %v1341
    %v1343 = vrot.slane %v1329, %v1342
    %v1344 = vcombine.high %v1336, %v1336
    %v1345 = vcombine.high %v1343, %v1343
    %v1347 = vunpack.c.l.s4 1966171168
    %v1348 = vunpack.c.0.s8 %v1347
    %v1349 = vlaneseq
    %v1350 = vshrl.u32 %v1349, 7
    %v1351 = vsub.s32 %v1348, %v1350
    %v1352 = vrot.slane %v1336, %v1351
    %v1354 = vunpack.c.l.s4 1966171168
    %v1355 = vunpack.c.0.s8 %v1354
    %v1356 = vlaneseq
    %v1357 = vshrl.u32 %v1356, 7
    %v1358 = vsub.s32 %v1355, %v1357
    %v1359 = vrot.slane %v1343, %v1358
    %v1361 = vunpack.c.l.s4 1966171168
    %v1362 = vunpack.c.0.s8 %v1361
    %v1363 = vlaneseq
    %v1364 = vshrl.u32 %v1363, 7
    %v1365 = vsub.s32 %v1362, %v1364
    %v1366 = vrot.slane %v1344, %v1365
    %v1368 = vunpack.c.l.s4 1966171168
    %v1369 = vunpack.c.0.s8 %v1368
    %v1370 = vlaneseq
    %v1371 = vshrl.u32 %v1370, 7
    %v1372 = vsub.s32 %v1369, %v1371
    %v1373 = vrot.slane %v1345, %v1372
    %v1374 = vcombine.high %v1352, %v1352
    %v1375 = vcombine.high %v1359, %v1359
    %v1376 = vcombine.high %v1366, %v1366
    %v1377 = vcombine.high %v1373, %v1373
    %v1378 = vcombine.high %v23, %v23
    %v1380 = vunpack.c.l.s4 1966171168
    %v1381 = vunpack.c.0.s8 %v1380
    %v1382 = vlaneseq
    %v1383 = vshrl.u32 %v1382, 7
    %v1384 = vsub.s32 %v1381, %v1383
    %v1385 = vrot.slane %v23, %v1384
    %v1387 = vunpack.c.l.s4 1966171168
    %v1388 = vunpack.c.0.s8 %v1387
    %v1389 = vlaneseq
    %v1390 = vshrl.u32 %v1389, 7
    %v1391 = vsub.s32 %v1388, %v1390
    %v1392 = vrot.slane %v1378, %v1391
    %v1393 = vcombine.high %v1385, %v1385
    %v1394 = vcombine.high %v1392, %v1392
    %v1396 = vunpack.c.l.s4 1966171168
    %v1397 = vunpack.c.0.s8 %v1396
    %v1398 = vlaneseq
    %v1399 = vshrl.u32 %v1398, 7
    %v1400 = vsub.s32 %v1397, %v1399
    %v1401 = vrot.slane %v1385, %v1400
    %v1403 = vunpack.c.l.s4 1966171168
    %v1404 = vunpack.c.0.s8 %v1403
    %v1405 = vlaneseq
    %v1406 = vshrl.u32 %v1405, 7
    %v1407 = vsub.s32 %v1404, %v1406
    %v1408 = vrot.slane %v1392, %v1407
    %v1410 = vunpack.c.l.s4 1966171168
    %v1411 = vunpack.c.0.s8 %v1410
    %v1412 = vlaneseq
    %v1413 = vshrl.u32 %v1412, 7
    %v1414 = vsub.s32 %v1411, %v1413
    %v1415 = vrot.slane %v1393, %v1414
    %v1417 = vunpack.c.l.s4 1966171168
    %v1418 = vunpack.c.0.s8 %v1417
    %v1419 = vlaneseq
    %v1420 = vshrl.u32 %v1419, 7
    %v1421 = vsub.s32 %v1418, %v1420
    %v1422 = vrot.slane %v1394, %v1421
    %v1423 = vcombine.high %v1401, %v1401
    %v1424 = vcombine.high %v1408, %v1408
    %v1425 = vcombine.high %v1415, %v1415
    %v1426 = vcombine.high %v1422, %v1422
    %v1427 = vcombine.high %v24, %v24
    %v1429 = vunpack.c.l.s4 1966171168
    %v1430 = vunpack.c.0.s8 %v1429
    %v1431 = vlaneseq
    %v1432 = vshrl.u32 %v1431, 7
    %v1433 = vsub.s32 %v1430, %v1432
    %v1434 = vrot.slane %v24, %v1433
    %v1436 = vunpack.c.l.s4 1966171168
    %v1437 = vunpack.c.0.s8 %v1436
    %v1438 = vlaneseq
    %v1439 = vshrl.u32 %v1438, 7
    %v1440 = vsub.s32 %v1437, %v1439
    %v1441 = vrot.slane %v1427, %v1440
    %v1442 = vcombine.high %v1434, %v1434
    %v1443 = vcombine.high %v1441, %v1441
    %v1445 = vunpack.c.l.s4 1966171168
    %v1446 = vunpack.c.0.s8 %v1445
    %v1447 = vlaneseq
    %v1448 = vshrl.u32 %v1447, 7
    %v1449 = vsub.s32 %v1446, %v1448
    %v1450 = vrot.slane %v1434, %v1449
    %v1452 = vunpack.c.l.s4 1966171168
    %v1453 = vunpack.c.0.s8 %v1452
    %v1454 = vlaneseq
    %v1455 = vshrl.u32 %v1454, 7
    %v1456 = vsub.s32 %v1453, %v1455
    %v1457 = vrot.slane %v1441, %v1456
    %v1459 = vunpack.c.l.s4 1966171168
    %v1460 = vunpack.c.0.s8 %v1459
    %v1461 = vlaneseq
    %v1462 = vshrl.u32 %v1461, 7
    %v1463 = vsub.s32 %v1460, %v1462
    %v1464 = vrot.slane %v1442, %v1463
    %v1466 = vunpack.c.l.s4 1966171168
    %v1467 = vunpack.c.0.s8 %v1466
    %v1468 = vlaneseq
    %v1469 = vshrl.u32 %v1468, 7
    %v1470 = vsub.s32 %v1467, %v1469
    %v1471 = vrot.slane %v1443, %v1470
    %v1472 = vcombine.high %v1450, %v1450
    %v1473 = vcombine.high %v1457, %v1457
    %v1474 = vcombine.high %v1464, %v1464
    %v1475 = vcombine.high %v1471, %v1471
    %v1476 = vcombine.high %v25, %v25
    %v1478 = vunpack.c.l.s4 1966171168
    %v1479 = vunpack.c.0.s8 %v1478
    %v1480 = vlaneseq
    %v1481 = vshrl.u32 %v1480, 7
    %v1482 = vsub.s32 %v1479, %v1481
    %v1483 = vrot.slane %v25, %v1482
    %v1485 = vunpack.c.l.s4 1966171168
    %v1486 = vunpack.c.0.s8 %v1485
    %v1487 = vlaneseq
    %v1488 = vshrl.u32 %v1487, 7
    %v1489 = vsub.s32 %v1486, %v1488
    %v1490 = vrot.slane %v1476, %v1489
    %v1491 = vcombine.high %v1483, %v1483
    %v1492 = vcombine.high %v1490, %v1490
    %v1494 = vunpack.c.l.s4 1966171168
    %v1495 = vunpack.c.0.s8 %v1494
    %v1496 = vlaneseq
    %v1497 = vshrl.u32 %v1496, 7
    %v1498 = vsub.s32 %v1495, %v1497
    %v1499 = vrot.slane %v1483, %v1498
    %v1501 = vunpack.c.l.s4 1966171168
    %v1502 = vunpack.c.0.s8 %v1501
    %v1503 = vlaneseq
    %v1504 = vshrl.u32 %v1503, 7
    %v1505 = vsub.s32 %v1502, %v1504
    %v1506 = vrot.slane %v1490, %v1505
    %v1508 = vunpack.c.l.s4 1966171168
    %v1509 = vunpack.c.0.s8 %v1508
    %v1510 = vlaneseq
    %v1511 = vshrl.u32 %v1510, 7
    %v1512 = vsub.s32 %v1509, %v1511
    %v1513 = vrot.slane %v1491, %v1512
    %v1515 = vunpack.c.l.s4 1966171168
    %v1516 = vunpack.c.0.s8 %v1515
    %v1517 = vlaneseq
    %v1518 = vshrl.u32 %v1517, 7
    %v1519 = vsub.s32 %v1516, %v1518
    %v1520 = vrot.slane %v1492, %v1519
    %v1521 = vcombine.high %v1499, %v1499
    %v1522 = vcombine.high %v1506, %v1506
    %v1523 = vcombine.high %v1513, %v1513
    %v1524 = vcombine.high %v1520, %v1520
    %v1525 = vcombine.high %v26, %v26
    %v1527 = vunpack.c.l.s4 1966171168
    %v1528 = vunpack.c.0.s8 %v1527
    %v1529 = vlaneseq
    %v1530 = vshrl.u32 %v1529, 7
    %v1531 = vsub.s32 %v1528, %v1530
    %v1532 = vrot.slane %v26, %v1531
    %v1534 = vunpack.c.l.s4 1966171168
    %v1535 = vunpack.c.0.s8 %v1534
    %v1536 = vlaneseq
    %v1537 = vshrl.u32 %v1536, 7
    %v1538 = vsub.s32 %v1535, %v1537
    %v1539 = vrot.slane %v1525, %v1538
    %v1540 = vcombine.high %v1532, %v1532
    %v1541 = vcombine.high %v1539, %v1539
    %v1543 = vunpack.c.l.s4 1966171168
    %v1544 = vunpack.c.0.s8 %v1543
    %v1545 = vlaneseq
    %v1546 = vshrl.u32 %v1545, 7
    %v1547 = vsub.s32 %v1544, %v1546
    %v1548 = vrot.slane %v1532, %v1547
    %v1550 = vunpack.c.l.s4 1966171168
    %v1551 = vunpack.c.0.s8 %v1550
    %v1552 = vlaneseq
    %v1553 = vshrl.u32 %v1552, 7
    %v1554 = vsub.s32 %v1551, %v1553
    %v1555 = vrot.slane %v1539, %v1554
    %v1557 = vunpack.c.l.s4 1966171168
    %v1558 = vunpack.c.0.s8 %v1557
    %v1559 = vlaneseq
    %v1560 = vshrl.u32 %v1559, 7
    %v1561 = vsub.s32 %v1558, %v1560
    %v1562 = vrot.slane %v1540, %v1561
    %v1564 = vunpack.c.l.s4 1966171168
    %v1565 = vunpack.c.0.s8 %v1564
    %v1566 = vlaneseq
    %v1567 = vshrl.u32 %v1566, 7
    %v1568 = vsub.s32 %v1565, %v1567
    %v1569 = vrot.slane %v1541, %v1568
    %v1570 = vcombine.high %v1548, %v1548
    %v1571 = vcombine.high %v1555, %v1555
    %v1572 = vcombine.high %v1562, %v1562
    %v1573 = vcombine.high %v1569, %v1569
    %v1574 = vcombine.high %v27, %v27
    %v1576 = vunpack.c.l.s4 1966171168
    %v1577 = vunpack.c.0.s8 %v1576
    %v1578 = vlaneseq
    %v1579 = vshrl.u32 %v1578, 7
    %v1580 = vsub.s32 %v1577, %v1579
    %v1581 = vrot.slane %v27, %v1580
    %v1583 = vunpack.c.l.s4 1966171168
    %v1584 = vunpack.c.0.s8 %v1583
    %v1585 = vlaneseq
    %v1586 = vshrl.u32 %v1585, 7
    %v1587 = vsub.s32 %v1584, %v1586
    %v1588 = vrot.slane %v1574, %v1587
    %v1589 = vcombine.high %v1581, %v1581
    %v1590 = vcombine.high %v1588, %v1588
    %v1592 = vunpack.c.l.s4 1966171168
    %v1593 = vunpack.c.0.s8 %v1592
    %v1594 = vlaneseq
    %v1595 = vshrl.u32 %v1594, 7
    %v1596 = vsub.s32 %v1593, %v1595
    %v1597 = vrot.slane %v1581, %v1596
    %v1599 = vunpack.c.l.s4 1966171168
    %v1600 = vunpack.c.0.s8 %v1599
    %v1601 = vlaneseq
    %v1602 = vshrl.u32 %v1601, 7
    %v1603 = vsub.s32 %v1600, %v1602
    %v1604 = vrot.slane %v1588, %v1603
    %v1606 = vunpack.c.l.s4 1966171168
    %v1607 = vunpack.c.0.s8 %v1606
    %v1608 = vlaneseq
    %v1609 = vshrl.u32 %v1608, 7
    %v1610 = vsub.s32 %v1607, %v1609
    %v1611 = vrot.slane %v1589, %v1610
    %v1613 = vunpack.c.l.s4 1966171168
    %v1614 = vunpack.c.0.s8 %v1613
    %v1615 = vlaneseq
    %v1616 = vshrl.u32 %v1615, 7
    %v1617 = vsub.s32 %v1614, %v1616
    %v1618 = vrot.slane %v1590, %v1617
    %v1619 = vcombine.high %v1597, %v1597
    %v1620 = vcombine.high %v1604, %v1604
    %v1621 = vcombine.high %v1611, %v1611
    %v1622 = vcombine.high %v1618, %v1618
    %v1623 = vcombine.high %v28, %v28
    %v1625 = vunpack.c.l.s4 1966171168
    %v1626 = vunpack.c.0.s8 %v1625
    %v1627 = vlaneseq
    %v1628 = vshrl.u32 %v1627, 7
    %v1629 = vsub.s32 %v1626, %v1628
    %v1630 = vrot.slane %v28, %v1629
    %v1632 = vunpack.c.l.s4 1966171168
    %v1633 = vunpack.c.0.s8 %v1632
    %v1634 = vlaneseq
    %v1635 = vshrl.u32 %v1634, 7
    %v1636 = vsub.s32 %v1633, %v1635
    %v1637 = vrot.slane %v1623, %v1636
    %v1638 = vcombine.high %v1630, %v1630
    %v1639 = vcombine.high %v1637, %v1637
    %v1641 = vunpack.c.l.s4 1966171168
    %v1642 = vunpack.c.0.s8 %v1641
    %v1643 = vlaneseq
    %v1644 = vshrl.u32 %v1643, 7
    %v1645 = vsub.s32 %v1642, %v1644
    %v1646 = vrot.slane %v1630, %v1645
    %v1648 = vunpack.c.l.s4 1966171168
    %v1649 = vunpack.c.0.s8 %v1648
    %v1650 = vlaneseq
    %v1651 = vshrl.u32 %v1650, 7
    %v1652 = vsub.s32 %v1649, %v1651
    %v1653 = vrot.slane %v1637, %v1652
    %v1655 = vunpack.c.l.s4 1966171168
    %v1656 = vunpack.c.0.s8 %v1655
    %v1657 = vlaneseq
    %v1658 = vshrl.u32 %v1657, 7
    %v1659 = vsub.s32 %v1656, %v1658
    %v1660 = vrot.slane %v1638, %v1659
    %v1662 = vunpack.c.l.s4 1966171168
    %v1663 = vunpack.c.0.s8 %v1662
    %v1664 = vlaneseq
    %v1665 = vshrl.u32 %v1664, 7
    %v1666 = vsub.s32 %v1663, %v1665
    %v1667 = vrot.slane %v1639, %v1666
    %v1668 = vcombine.high %v1646, %v1646
    %v1669 = vcombine.high %v1653, %v1653
    %v1670 = vcombine.high %v1660, %v1660
    %v1671 = vcombine.high %v1667, %v1667
    %v1672 = vcombine.high %v29, %v29
    %v1674 = vunpack.c.l.s4 1966171168
    %v1675 = vunpack.c.0.s8 %v1674
    %v1676 = vlaneseq
    %v1677 = vshrl.u32 %v1676, 7
    %v1678 = vsub.s32 %v1675, %v1677
    %v1679 = vrot.slane %v29, %v1678
    %v1681 = vunpack.c.l.s4 1966171168
    %v1682 = vunpack.c.0.s8 %v1681
    %v1683 = vlaneseq
    %v1684 = vshrl.u32 %v1683, 7
    %v1685 = vsub.s32 %v1682, %v1684
    %v1686 = vrot.slane %v1672, %v1685
    %v1687 = vcombine.high %v1679, %v1679
    %v1688 = vcombine.high %v1686, %v1686
    %v1690 = vunpack.c.l.s4 1966171168
    %v1691 = vunpack.c.0.s8 %v1690
    %v1692 = vlaneseq
    %v1693 = vshrl.u32 %v1692, 7
    %v1694 = vsub.s32 %v1691, %v1693
    %v1695 = vrot.slane %v1679, %v1694
    %v1697 = vunpack.c.l.s4 1966171168
    %v1698 = vunpack.c.0.s8 %v1697
    %v1699 = vlaneseq
    %v1700 = vshrl.u32 %v1699, 7
    %v1701 = vsub.s32 %v1698, %v1700
    %v1702 = vrot.slane %v1686, %v1701
    %v1704 = vunpack.c.l.s4 1966171168
    %v1705 = vunpack.c.0.s8 %v1704
    %v1706 = vlaneseq
    %v1707 = vshrl.u32 %v1706, 7
    %v1708 = vsub.s32 %v1705, %v1707
    %v1709 = vrot.slane %v1687, %v1708
    %v1711 = vunpack.c.l.s4 1966171168
    %v1712 = vunpack.c.0.s8 %v1711
    %v1713 = vlaneseq
    %v1714 = vshrl.u32 %v1713, 7
    %v1715 = vsub.s32 %v1712, %v1714
    %v1716 = vrot.slane %v1688, %v1715
    %v1717 = vcombine.high %v1695, %v1695
    %v1718 = vcombine.high %v1702, %v1702
    %v1719 = vcombine.high %v1709, %v1709
    %v1720 = vcombine.high %v1716, %v1716
    %v1721 = vcombine.high %v30, %v30
    %v1723 = vunpack.c.l.s4 1966171168
    %v1724 = vunpack.c.0.s8 %v1723
    %v1725 = vlaneseq
    %v1726 = vshrl.u32 %v1725, 7
    %v1727 = vsub.s32 %v1724, %v1726
    %v1728 = vrot.slane %v30, %v1727
    %v1730 = vunpack.c.l.s4 1966171168
    %v1731 = vunpack.c.0.s8 %v1730
    %v1732 = vlaneseq
    %v1733 = vshrl.u32 %v1732, 7
    %v1734 = vsub.s32 %v1731, %v1733
    %v1735 = vrot.slane %v1721, %v1734
    %v1736 = vcombine.high %v1728, %v1728
    %v1737 = vcombine.high %v1735, %v1735
    %v1739 = vunpack.c.l.s4 1966171168
    %v1740 = vunpack.c.0.s8 %v1739
    %v1741 = vlaneseq
    %v1742 = vshrl.u32 %v1741, 7
    %v1743 = vsub.s32 %v1740, %v1742
    %v1744 = vrot.slane %v1728, %v1743
    %v1746 = vunpack.c.l.s4 1966171168
    %v1747 = vunpack.c.0.s8 %v1746
    %v1748 = vlaneseq
    %v1749 = vshrl.u32 %v1748, 7
    %v1750 = vsub.s32 %v1747, %v1749
    %v1751 = vrot.slane %v1735, %v1750
    %v1753 = vunpack.c.l.s4 1966171168
    %v1754 = vunpack.c.0.s8 %v1753
    %v1755 = vlaneseq
    %v1756 = vshrl.u32 %v1755, 7
    %v1757 = vsub.s32 %v1754, %v1756
    %v1758 = vrot.slane %v1736, %v1757
    %v1760 = vunpack.c.l.s4 1966171168
    %v1761 = vunpack.c.0.s8 %v1760
    %v1762 = vlaneseq
    %v1763 = vshrl.u32 %v1762, 7
    %v1764 = vsub.s32 %v1761, %v1763
    %v1765 = vrot.slane %v1737, %v1764
    %v1766 = vcombine.high %v1744, %v1744
    %v1767 = vcombine.high %v1751, %v1751
    %v1768 = vcombine.high %v1758, %v1758
    %v1769 = vcombine.high %v1765, %v1765
    %v1770 = vcombine.high %v31, %v31
    %v1772 = vunpack.c.l.s4 1966171168
    %v1773 = vunpack.c.0.s8 %v1772
    %v1774 = vlaneseq
    %v1775 = vshrl.u32 %v1774, 7
    %v1776 = vsub.s32 %v1773, %v1775
    %v1777 = vrot.slane %v31, %v1776
    %v1779 = vunpack.c.l.s4 1966171168
    %v1780 = vunpack.c.0.s8 %v1779
    %v1781 = vlaneseq
    %v1782 = vshrl.u32 %v1781, 7
    %v1783 = vsub.s32 %v1780, %v1782
    %v1784 = vrot.slane %v1770, %v1783
    %v1785 = vcombine.high %v1777, %v1777
    %v1786 = vcombine.high %v1784, %v1784
    %v1788 = vunpack.c.l.s4 1966171168
    %v1789 = vunpack.c.0.s8 %v1788
    %v1790 = vlaneseq
    %v1791 = vshrl.u32 %v1790, 7
    %v1792 = vsub.s32 %v1789, %v1791
    %v1793 = vrot.slane %v1777, %v1792
    %v1795 = vunpack.c.l.s4 1966171168
    %v1796 = vunpack.c.0.s8 %v1795
    %v1797 = vlaneseq
    %v1798 = vshrl.u32 %v1797, 7
    %v1799 = vsub.s32 %v1796, %v1798
    %v1800 = vrot.slane %v1784, %v1799
    %v1802 = vunpack.c.l.s4 1966171168
    %v1803 = vunpack.c.0.s8 %v1802
    %v1804 = vlaneseq
    %v1805 = vshrl.u32 %v1804, 7
    %v1806 = vsub.s32 %v1803, %v1805
    %v1807 = vrot.slane %v1785, %v1806
    %v1809 = vunpack.c.l.s4 1966171168
    %v1810 = vunpack.c.0.s8 %v1809
    %v1811 = vlaneseq
    %v1812 = vshrl.u32 %v1811, 7
    %v1813 = vsub.s32 %v1810, %v1812
    %v1814 = vrot.slane %v1786, %v1813
    %v1815 = vcombine.high %v1793, %v1793
    %v1816 = vcombine.high %v1800, %v1800
    %v1817 = vcombine.high %v1807, %v1807
    %v1818 = vcombine.high %v1814, %v1814
    %v3179 = vunpack.c.l.b16 %v32
    %v3180 = vunpack.c.l.b16 %v33
    %v3181 = vunpack.c.l.b16 %v34
    %v3182 = vunpack.c.l.b16 %v35
    %v3183 = vunpack.c.l.b16 %v36
    %v3184 = vunpack.c.l.b16 %v37
    %v3185 = vunpack.c.l.b16 %v38
    %v3186 = vunpack.c.l.b16 %v39
    %v3187 = vunpack.c.l.b16 %v40
    %v3188 = vunpack.c.l.b16 %v41
    %v3189 = vunpack.c.l.b16 %v42
    %v3190 = vunpack.c.l.b16 %v43
    %v3191 = vunpack.c.l.b16 %v44
    %v3192 = vunpack.c.l.b16 %v45
    %v3193 = vunpack.c.l.b16 %v46
    %v3194 = vunpack.c.l.b16 %v47
    %v3195 = vunpack.c.l.b16 %v48
    %v3196 = vunpack.c.l.b16 %v49
    %v3197 = vunpack.c.l.b16 %v50
    %v3198 = vunpack.c.l.b16 %v51
    %v3199 = vunpack.c.l.b16 %v52
    %v3200 = vunpack.c.l.b16 %v53
    %v3201 = vunpack.c.l.b16 %v54
    %v3202 = vunpack.c.l.b16 %v55
    %v3203 = vunpack.c.l.b16 %v56
    %v3204 = vunpack.c.l.b16 %v57
    %v3205 = vunpack.c.l.b16 %v58
    %v3206 = vunpack.c.l.b16 %v59
    %v3207 = vunpack.c.l.b16 %v60
    %v3208 = vunpack.c.l.b16 %v61
    %v3209 = vunpack.c.l.b16 %v62
    %v3210 = vunpack.c.l.b16 %v63
    %v3211 = vunpack.c.l.b16 %v64
    %v3212 = vunpack.c.l.b16 %v65
    %v3213 = vunpack.c.l.b16 %v66
    %v3214 = vunpack.c.l.b16 %v67
    %v3215 = vunpack.c.l.b16 %v68
    %v3216 = vunpack.c.l.b16 %v69
    %v3217 = vunpack.c.l.b16 %v70
    %v3218 = vunpack.c.l.b16 %v71
    %v3219 = vunpack.c.l.b16 %v72
    %v3220 = vunpack.c.l.b16 %v73
    %v3221 = vunpack.c.l.b16 %v74
    %v3222 = vunpack.c.l.b16 %v75
    %v3223 = vunpack.c.l.b16 %v76
    %v3224 = vunpack.c.l.b16 %v77
    %v3225 = vunpack.c.l.b16 %v78
    %v3226 = vunpack.c.l.b16 %v79
    %v3227 = vunpack.c.l.b16 %v80
    %v3228 = vunpack.c.l.b16 %v81
    %v3229 = vunpack.c.l.b16 %v82
    %v3230 = vunpack.c.l.b16 %v83
    %v3231 = vunpack.c.l.b16 %v84
    %v3232 = vunpack.c.l.b16 %v85
    %v3233 = vunpack.c.l.b16 %v86
    %v3234 = vunpack.c.l.b16 %v87
    %v3235 = vunpack.c.l.b16 %v88
    %v3236 = vunpack.c.l.b16 %v89
    %v3237 = vunpack.c.l.b16 %v90
    %v3238 = vunpack.c.l.b16 %v91
    %v3239 = vunpack.c.l.b16 %v92
    %v3240 = vunpack.c.l.b16 %v93
    %v3241 = vunpack.c.l.b16 %v94
    %v3242 = vunpack.c.l.b16 %v95
    %v3243 = vunpack.c.l.b16 %v96
    %v3244 = vunpack.c.l.b16 %v97
    %v3245 = vunpack.c.l.b16 %v98
    %v3246 = vunpack.c.l.b16 %v99
    %v3247 = vunpack.c.l.b16 %v100
    %v3248 = vunpack.c.l.b16 %v101
    %v3249 = vunpack.c.l.b16 %v102
    %v3250 = vunpack.c.l.b16 %v103
    %v3251 = vunpack.c.l.b16 %v104
    %v3252 = vunpack.c.l.b16 %v105
    %v3253 = vunpack.c.l.b16 %v106
    %v3254 = vunpack.c.l.b16 %v107
    %v3255 = vunpack.c.l.b16 %v108
    %v3256 = vunpack.c.l.b16 %v109
    %v3257 = vunpack.c.l.b16 %v110
    %v3258 = vunpack.c.l.b16 %v111
    %v3259 = vunpack.c.l.b16 %v112
    %v3260 = vunpack.c.l.b16 %v113
    %v3261 = vunpack.c.l.b16 %v114
    %v3262 = vunpack.c.l.b16 %v115
    %v3263 = vunpack.c.l.b16 %v116
    %v3264 = vunpack.c.l.b16 %v117
    %v3265 = vunpack.c.l.b16 %v118
    %v3266 = vunpack.c.l.b16 %v119
    %v3267 = vunpack.c.l.b16 %v120
    %v3268 = vunpack.c.l.b16 %v121
    %v3269 = vunpack.c.l.b16 %v122
    %v3270 = vunpack.c.l.b16 %v123
    %v3271 = vunpack.c.l.b16 %v124
    %v3272 = vunpack.c.l.b16 %v125
    %v3273 = vunpack.c.l.b16 %v126
    %v3274 = vunpack.c.l.b16 %v127
    %v3275 = vunpack.c.l.b16 %v128
    %v3276 = vunpack.c.l.b16 %v129
    %v3277 = vunpack.c.l.b16 %v130
    %v3278 = vunpack.c.l.b16 %v131
    %v3279 = vunpack.c.l.b16 %v132
    %v3280 = vunpack.c.l.b16 %v133
    %v3281 = vunpack.c.l.b16 %v134
    %v3282 = vunpack.c.l.b16 %v135
    %v3283 = vunpack.c.l.b16 %v136
    %v3284 = vunpack.c.l.b16 %v137
    %v3285 = vunpack.c.l.b16 %v138
    %v3286 = vunpack.c.l.b16 %v139
    %v3287 = vunpack.c.l.b16 %v140
    %v3288 = vunpack.c.l.b16 %v141
    %v3289 = vunpack.c.l.b16 %v142
    %v3290 = vunpack.c.l.b16 %v143
    %v3291 = vunpack.c.l.b16 %v144
    %v3292 = vunpack.c.l.b16 %v145
    %v3293 = vunpack.c.l.b16 %v146
    %v3294 = vunpack.c.l.b16 %v147
    %v3295 = vunpack.c.l.b16 %v148
    %v3296 = vunpack.c.l.b16 %v149
    %v3297 = vunpack.c.l.b16 %v150
    %v3298 = vunpack.c.l.b16 %v151
    %v3299 = vunpack.c.l.b16 %v152
    %v3300 = vunpack.c.l.b16 %v153
    %v3301 = vunpack.c.l.b16 %v154
    %v3302 = vunpack.c.l.b16 %v155
    %v3303 = vunpack.c.l.b16 %v156
    %v3304 = vunpack.c.l.b16 %v157
    %v3305 = vunpack.c.l.b16 %v158
    %v3306 = vunpack.c.l.b16 %v159
    %v3307 = vunpack.c.l.b16 %v160
    %v3308 = vunpack.c.l.b16 %v161
    %v3309 = vunpack.c.l.b16 %v162
    %v3310 = vunpack.c.l.b16 %v163
    %v3311 = vunpack.c.l.b16 %v164
    %v3312 = vunpack.c.l.b16 %v165
    %v3313 = vunpack.c.l.b16 %v166
    %v3314 = vunpack.c.l.b16 %v167
    %v3315 = vunpack.c.l.b16 %v168
    %v3316 = vunpack.c.l.b16 %v169
    %v3317 = vunpack.c.l.b16 %v170
    %v3318 = vunpack.c.l.b16 %v171
    %v3319 = vunpack.c.l.b16 %v172
    %v3320 = vunpack.c.l.b16 %v173
    %v3321 = vunpack.c.l.b16 %v174
    %v3322 = vunpack.c.l.b16 %v175
    %v3323 = vunpack.c.l.b16 %v176
    %v3324 = vunpack.c.l.b16 %v177
    %v3325 = vunpack.c.l.b16 %v178
    %v3326 = vunpack.c.l.b16 %v179
    %v3327 = vunpack.c.l.b16 %v180
    %v3328 = vunpack.c.l.b16 %v181
    %v3329 = vunpack.c.l.b16 %v182
    %v3330 = vunpack.c.l.b16 %v183
    %v3331 = vunpack.c.l.b16 %v184
    %v3332 = vunpack.c.l.b16 %v185
    %v3333 = vunpack.c.l.b16 %v186
    %v3334 = vunpack.c.l.b16 %v187
    %v3335 = vunpack.c.l.b16 %v188
    %v3336 = vunpack.c.l.b16 %v189
    %v3337 = vunpack.c.l.b16 %v190
    %v3338 = vunpack.c.l.b16 %v191
    %v3339 = vunpack.c.l.b16 %v192
    %v3340 = vunpack.c.l.b16 %v193
    %v3341 = vunpack.c.l.b16 %v194
    %v3342 = vunpack.c.l.b16 %v195
    %v3343 = vunpack.c.l.b16 %v196
    %v3344 = vunpack.c.l.b16 %v197
    %v3345 = vunpack.c.l.b16 %v198
    %v3346 = vunpack.c.l.b16 %v199
    %v3347 = vunpack.c.l.b16 %v200
    %v3348 = vunpack.c.l.b16 %v201
    %v3349 = vunpack.c.l.b16 %v202
    %v3350 = vunpack.c.l.b16 %v203
    %v3351 = vunpack.c.l.b16 %v204
    %v3352 = vunpack.c.l.b16 %v205
    %v3353 = vunpack.c.l.b16 %v206
    %v3354 = vunpack.c.l.b16 %v207
    %v3355 = vunpack.c.l.b16 %v208
    %v3356 = vunpack.c.l.b16 %v209
    %v3357 = vunpack.c.l.b16 %v210
    %v3358 = vunpack.c.l.b16 %v211
    %v3359 = vunpack.c.l.b16 %v212
    %v3360 = vunpack.c.l.b16 %v213
    %v3361 = vunpack.c.l.b16 %v214
    %v3362 = vunpack.c.l.b16 %v215
    %v3363 = vunpack.c.l.b16 %v216
    %v3364 = vunpack.c.l.b16 %v217
    %v3365 = vunpack.c.l.b16 %v218
    %v3366 = vunpack.c.l.b16 %v219
    %v3367 = vunpack.c.l.b16 %v220
    %v3368 = vunpack.c.l.b16 %v221
    %v3369 = vunpack.c.l.b16 %v222
    %v3370 = vunpack.c.l.b16 %v223
    %v3371 = vunpack.c.l.b16 %v224
    %v3372 = vunpack.c.l.b16 %v225
    %v3373 = vunpack.c.l.b16 %v226
    %v3374 = vunpack.c.l.b16 %v227
    %v3375 = vunpack.c.l.b16 %v228
    %v3376 = vunpack.c.l.b16 %v229
    %v3377 = vunpack.c.l.b16 %v230
    %v3378 = vunpack.c.l.b16 %v231
    %v3379 = vunpack.c.l.b16 %v232
    %v3380 = vunpack.c.l.b16 %v233
    %v3381 = vunpack.c.l.b16 %v234
    %v3382 = vunpack.c.l.b16 %v235
    %v3383 = vunpack.c.l.b16 %v236
    %v3384 = vunpack.c.l.b16 %v237
    %v3385 = vunpack.c.l.b16 %v238
    %v3386 = vunpack.c.l.b16 %v239
    %v3387 = vunpack.c.l.b16 %v240
    %v3388 = vunpack.c.l.b16 %v241
    %v3389 = vunpack.c.l.b16 %v242
    %v3390 = vunpack.c.l.b16 %v243
    %v3391 = vunpack.c.l.b16 %v244
    %v3392 = vunpack.c.l.b16 %v245
    %v3393 = vunpack.c.l.b16 %v246
    %v3394 = vunpack.c.l.b16 %v247
    %v3395 = vunpack.c.l.b16 %v248
    %v3396 = vunpack.c.l.b16 %v249
    %v3397 = vunpack.c.l.b16 %v250
    %v3398 = vunpack.c.l.b16 %v251
    %v3399 = vunpack.c.l.b16 %v252
    %v3400 = vunpack.c.l.b16 %v253
    %v3401 = vunpack.c.l.b16 %v254
    %v3402 = vunpack.c.l.b16 %v255
    %v3403 = vunpack.c.l.b16 %v256
    %v3404 = vunpack.c.l.b16 %v257
    %v3405 = vunpack.c.l.b16 %v258
    %v3406 = vunpack.c.l.b16 %v259
    %v3407 = vunpack.c.l.b16 %v260
    %v3408 = vunpack.c.l.b16 %v261
    %v3409 = vunpack.c.l.b16 %v262
    %v3410 = vunpack.c.l.b16 %v263
    %v3411 = vunpack.c.l.b16 %v264
    %v3412 = vunpack.c.l.b16 %v265
    %v3413 = vunpack.c.l.b16 %v266
    %v3414 = vunpack.c.l.b16 %v267
    %v3415 = vunpack.c.l.b16 %v268
    %v3416 = vunpack.c.l.b16 %v269
    %v3417 = vunpack.c.l.b16 %v270
    %v3418 = vunpack.c.l.b16 %v271
    %v3419 = vunpack.c.l.b16 %v272
    %v3420 = vunpack.c.l.b16 %v273
    %v3421 = vunpack.c.l.b16 %v274
    %v3422 = vunpack.c.l.b16 %v275
    %v3423 = vunpack.c.l.b16 %v276
    %v3424 = vunpack.c.l.b16 %v277
    %v3425 = vunpack.c.l.b16 %v278
    %v3426 = vunpack.c.l.b16 %v279
    %v3427 = vunpack.c.l.b16 %v280
    %v3428 = vunpack.c.l.b16 %v281
    %v3429 = vunpack.c.l.b16 %v282
    %v3430 = vunpack.c.l.b16 %v283
    %v3431 = vunpack.c.l.b16 %v284
    %v3432 = vunpack.c.l.b16 %v285
    %v3433 = vunpack.c.l.b16 %v286
    %v3434 = vunpack.c.l.b16 %v287
    %v3435 = vunpack.c.l.b16 %v288
    %v3436 = vunpack.c.l.b16 %v289
    %v3437 = vunpack.c.l.b16 %v290
    %v3438 = vunpack.c.l.b16 %v291
    %v3439 = vunpack.c.l.b16 %v292
    %v3440 = vunpack.c.l.b16 %v293
    %v3441 = vunpack.c.l.b16 %v294
    %v3442 = vunpack.c.l.b16 %v295
    %v3443 = vunpack.c.l.b16 %v296
    %v3444 = vunpack.c.l.b16 %v297
    %v3445 = vunpack.c.l.b16 %v298
    %v3446 = vunpack.c.l.b16 %v299
    %v3447 = vunpack.c.l.b16 %v300
    %v3448 = vunpack.c.l.b16 %v301
    %v3449 = vunpack.c.l.b16 %v302
    %v3450 = vunpack.c.l.b16 %v303
    %v3451 = vunpack.c.l.b16 %v304
    %v3452 = vunpack.c.l.b16 %v305
    %v3453 = vunpack.c.l.b16 %v306
    %v3454 = vunpack.c.l.b16 %v307
    %v3455 = vunpack.c.l.b16 %v308
    %v3456 = vunpack.c.l.b16 %v309
    %v3457 = vunpack.c.l.b16 %v310
    %v3458 = vunpack.c.l.b16 %v311
    %v3459 = vunpack.c.l.b16 %v312
    %v3460 = vunpack.c.l.b16 %v313
    %v3461 = vunpack.c.l.b16 %v314
    %v3462 = vunpack.c.l.b16 %v315
    %v3463 = vunpack.c.l.b16 %v316
    %v3464 = vunpack.c.l.b16 %v317
    %v3465 = vunpack.c.l.b16 %v318
    %v3466 = vunpack.c.l.b16 %v319
    %v3467 = vunpack.c.l.b16 %v320
    %v3468 = vunpack.c.l.b16 %v321
    %v3469 = vunpack.c.l.b16 %v322
    %v3470 = vunpack.c.l.b16 %v323
    %v3471 = vunpack.c.l.b16 %v324
    %v3472 = vunpack.c.l.b16 %v325
    %v3473 = vunpack.c.l.b16 %v326
    %v3474 = vunpack.c.l.b16 %v327
    %v3475 = vunpack.c.l.b16 %v328
    %v3476 = vunpack.c.l.b16 %v329
    %v3477 = vunpack.c.l.b16 %v330
    %v3478 = vunpack.c.l.b16 %v331
    %v3479 = vunpack.c.l.b16 %v332
    %v3480 = vunpack.c.l.b16 %v333
    %v3481 = vunpack.c.l.b16 %v334
    %v3482 = vunpack.c.l.b16 %v335
    %v3483 = vunpack.c.l.b16 %v336
    %v3484 = vunpack.c.l.b16 %v337
    %v3485 = vunpack.c.l.b16 %v338
    %v3486 = vunpack.c.l.b16 %v339
    %v3487 = vunpack.c.l.b16 %v340
    %v3488 = vunpack.c.l.b16 %v341
    %v3489 = vunpack.c.l.b16 %v342
    %v3490 = vunpack.c.l.b16 %v343
    %v3491 = vunpack.c.l.b16 %v344
    %v3492 = vunpack.c.l.b16 %v345
    %v3493 = vunpack.c.l.b16 %v346
    %v3494 = vunpack.c.l.b16 %v347
    %v3495 = vunpack.c.l.b16 %v348
    %v3496 = vunpack.c.l.b16 %v349
    %v3497 = vunpack.c.l.b16 %v350
    %v3498 = vunpack.c.l.b16 %v351
    %v3499 = vunpack.c.l.b16 %v352
    %v3500 = vunpack.c.l.b16 %v353
    %v3501 = vunpack.c.l.b16 %v354
    %v3502 = vunpack.c.l.b16 %v355
    %v3503 = vunpack.c.l.b16 %v356
    %v3504 = vunpack.c.l.b16 %v357
    %v3505 = vunpack.c.l.b16 %v358
    %v3506 = vunpack.c.l.b16 %v359
    %v3507 = vunpack.c.l.b16 %v360
    %v3508 = vunpack.c.l.b16 %v361
    %v3509 = vunpack.c.l.b16 %v362
    %v3510 = vunpack.c.l.b16 %v363
    %v3511 = vunpack.c.l.b16 %v364
    %v3512 = vunpack.c.l.b16 %v365
    %v3513 = vunpack.c.l.b16 %v366
    %v3514 = vunpack.c.l.b16 %v367
    %v3515 = vunpack.c.l.b16 %v368
    %v3516 = vunpack.c.l.b16 %v369
    %v3517 = vunpack.c.l.b16 %v370
    %v3518 = vunpack.c.l.b16 %v371
    %v3519 = vunpack.c.l.b16 %v372
    %v3520 = vunpack.c.l.b16 %v373
    %v3521 = vunpack.c.l.b16 %v374
    %v3522 = vunpack.c.l.b16 %v375
    %v3523 = vunpack.c.l.b16 %v376
    %v3524 = vunpack.c.l.b16 %v377
    %v3525 = vunpack.c.l.b16 %v378
    %v3526 = vunpack.c.l.b16 %v379
    %v3527 = vunpack.c.l.b16 %v380
    %v3528 = vunpack.c.l.b16 %v381
    %v3529 = vunpack.c.l.b16 %v382
    %v3530 = vunpack.c.l.b16 %v383
    %v3531 = vunpack.c.l.b16 %v384
    %v3532 = vunpack.c.l.b16 %v385
    %v3533 = vunpack.c.l.b16 %v386
    %v3534 = vunpack.c.l.b16 %v387
    %v3535 = vunpack.c.l.b16 %v388
    %v3536 = vunpack.c.l.b16 %v389
    %v3537 = vunpack.c.l.b16 %v390
    %v3538 = vunpack.c.l.b16 %v391
    %v3539 = vunpack.c.l.b16 %v392
    %v3540 = vunpack.c.l.b16 %v393
    %v3541 = vunpack.c.l.b16 %v394
    %v3542 = vunpack.c.l.b16 %v395
    %v3543 = vunpack.c.l.b16 %v396
    %v3544 = vunpack.c.l.b16 %v397
    %v3545 = vunpack.c.l.b16 %v398
    %v3546 = vunpack.c.l.b16 %v399
    %v3547 = vunpack.c.l.b16 %v400
    %v3548 = vunpack.c.l.b16 %v401
    %v3549 = vunpack.c.l.b16 %v402
    %v3550 = vunpack.c.l.b16 %v403
    %v3551 = vunpack.c.l.b16 %v404
    %v3552 = vunpack.c.l.b16 %v405
    %v3553 = vunpack.c.l.b16 %v406
    %v3554 = vunpack.c.l.b16 %v407
    %v3555 = vunpack.c.l.b16 %v408
    %v3556 = vunpack.c.l.b16 %v409
    %v3557 = vunpack.c.l.b16 %v410
    %v3558 = vunpack.c.l.b16 %v411
    %v3559 = vunpack.c.l.b16 %v412
    %v3560 = vunpack.c.l.b16 %v413
    %v3561 = vunpack.c.l.b16 %v414
    %v3562 = vunpack.c.l.b16 %v415
    %v3563 = vunpack.c.l.b16 %v416
    %v3564 = vunpack.c.l.b16 %v417
    %v3565 = vunpack.c.l.b16 %v418
    %v3566 = vunpack.c.l.b16 %v419
    %v3567 = vunpack.c.l.b16 %v420
    %v3568 = vunpack.c.l.b16 %v421
    %v3569 = vunpack.c.l.b16 %v422
    %v3570 = vunpack.c.l.b16 %v423
    %v3571 = vunpack.c.l.b16 %v424
    %v3572 = vunpack.c.l.b16 %v425
    %v3573 = vunpack.c.l.b16 %v426
    %v3574 = vunpack.c.l.b16 %v427
    %v3575 = vunpack.c.l.b16 %v428
    %v3576 = vunpack.c.l.b16 %v429
    %v3577 = vunpack.c.l.b16 %v430
    %v3578 = vunpack.c.l.b16 %v431
    %v3579 = vunpack.c.l.b16 %v432
    %v3580 = vunpack.c.l.b16 %v433
    %v3581 = vunpack.c.l.b16 %v434
    %v3582 = vunpack.c.l.b16 %v435
    %v3583 = vunpack.c.l.b16 %v436
    %v3584 = vunpack.c.l.b16 %v437
    %v3585 = vunpack.c.l.b16 %v438
    %v3586 = vunpack.c.l.b16 %v439
    %v3587 = vunpack.c.l.b16 %v440
    %v3588 = vunpack.c.l.b16 %v441
    %v3589 = vunpack.c.l.b16 %v442
    %v3590 = vunpack.c.l.b16 %v443
    %v3591 = vunpack.c.l.b16 %v444
    %v3592 = vunpack.c.l.b16 %v445
    %v3593 = vunpack.c.l.b16 %v446
    %v3594 = vunpack.c.l.b16 %v447
    %v3595 = vunpack.c.l.b16 %v448
    %v3596 = vunpack.c.l.b16 %v449
    %v3597 = vunpack.c.l.b16 %v450
    %v3598 = vunpack.c.l.b16 %v451
    %v3599 = vunpack.c.l.b16 %v452
    %v3600 = vunpack.c.l.b16 %v453
    %v3601 = vunpack.c.l.b16 %v454
    %v3602 = vunpack.c.l.b16 %v455
    %v3603 = vunpack.c.l.b16 %v456
    %v3604 = vunpack.c.l.b16 %v457
    %v3605 = vunpack.c.l.b16 %v458
    %v3606 = vunpack.c.l.b16 %v459
    %v3607 = vunpack.c.l.b16 %v460
    %v3608 = vunpack.c.l.b16 %v461
    %v3609 = vunpack.c.l.b16 %v462
    %v3610 = vunpack.c.l.b16 %v463
    %v3611 = vunpack.c.l.b16 %v464
    %v3612 = vunpack.c.l.b16 %v465
    %v3613 = vunpack.c.l.b16 %v466
    %v3614 = vunpack.c.l.b16 %v467
    %v3615 = vunpack.c.l.b16 %v468
    %v3616 = vunpack.c.l.b16 %v469
    %v3617 = vunpack.c.l.b16 %v470
    %v3618 = vunpack.c.l.b16 %v471
    %v3619 = vunpack.c.l.b16 %v472
    %v3620 = vunpack.c.l.b16 %v473
    %v3621 = vunpack.c.l.b16 %v474
    %v3622 = vunpack.c.l.b16 %v475
    %v3623 = vunpack.c.l.b16 %v476
    %v3624 = vunpack.c.l.b16 %v477
    %v3625 = vunpack.c.l.b16 %v478
    %v3626 = vunpack.c.l.b16 %v479
    %v3627 = vunpack.c.l.b16 %v480
    %v3628 = vunpack.c.l.b16 %v481
    %v3629 = vunpack.c.l.b16 %v482
    %v3630 = vunpack.c.l.b16 %v483
    %v3631 = vunpack.c.l.b16 %v484
    %v3632 = vunpack.c.l.b16 %v485
    %v3633 = vunpack.c.l.b16 %v486
    %v3634 = vunpack.c.l.b16 %v487
    %v3635 = vunpack.c.l.b16 %v488
    %v3636 = vunpack.c.l.b16 %v489
    %v3637 = vunpack.c.l.b16 %v490
    %v3638 = vunpack.c.l.b16 %v491
    %v3639 = vunpack.c.l.b16 %v492
    %v3640 = vunpack.c.l.b16 %v493
    %v3641 = vunpack.c.l.b16 %v494
    %v3642 = vunpack.c.l.b16 %v495
    %v3643 = vunpack.c.l.b16 %v496
    %v3644 = vunpack.c.l.b16 %v497
    %v3645 = vunpack.c.l.b16 %v498
    %v3646 = vunpack.c.l.b16 %v499
    %v3647 = vunpack.c.l.b16 %v500
    %v3648 = vunpack.c.l.b16 %v501
    %v3649 = vunpack.c.l.b16 %v502
    %v3650 = vunpack.c.l.b16 %v503
    %v3651 = vunpack.c.l.b16 %v504
    %v3652 = vunpack.c.l.b16 %v505
    %v3653 = vunpack.c.l.b16 %v506
    %v3654 = vunpack.c.l.b16 %v507
    %v3655 = vunpack.c.l.b16 %v508
    %v3656 = vunpack.c.l.b16 %v509
    %v3657 = vunpack.c.l.b16 %v510
    %v3658 = vunpack.c.l.b16 %v511
    %v3659 = vunpack.c.l.b16 %v512
    %v3660 = vunpack.c.l.b16 %v513
    %v3661 = vunpack.c.l.b16 %v514
    %v3662 = vunpack.c.l.b16 %v515
    %v3663 = vunpack.c.l.b16 %v516
    %v3664 = vunpack.c.l.b16 %v517
    %v3665 = vunpack.c.l.b16 %v518
    %v3666 = vunpack.c.l.b16 %v519
    %v3667 = vunpack.c.l.b16 %v520
    %v3668 = vunpack.c.l.b16 %v521
    %v3669 = vunpack.c.l.b16 %v522
    %v3670 = vunpack.c.l.b16 %v523
    %v3671 = vunpack.c.l.b16 %v524
    %v3672 = vunpack.c.l.b16 %v525
    %v3673 = vunpack.c.l.b16 %v526
    %v3674 = vunpack.c.l.b16 %v527
    %v3675 = vunpack.c.l.b16 %v528
    %v3676 = vunpack.c.l.b16 %v529
    %v3677 = vunpack.c.l.b16 %v530
    %v3678 = vunpack.c.l.b16 %v531
    %v3679 = vunpack.c.l.b16 %v532
    %v3680 = vunpack.c.l.b16 %v533
    %v3681 = vunpack.c.l.b16 %v534
    %v3682 = vunpack.c.l.b16 %v535
    %v3683 = vunpack.c.l.b16 %v536
    %v3684 = vunpack.c.l.b16 %v537
    %v3685 = vunpack.c.l.b16 %v538
    %v3686 = vunpack.c.l.b16 %v539
    %v3687 = vunpack.c.l.b16 %v540
    %v3688 = vunpack.c.l.b16 %v541
    %v3689 = vunpack.c.l.b16 %v542
    %v3690 = vunpack.c.l.b16 %v543
    %v3691 = vunpack.c.l.b16 %v544
    %v3692 = vunpack.c.l.b16 %v545
    %v3693 = vunpack.c.l.b16 %v546
    %v3694 = vunpack.c.l.b16 %v547
    %v3695 = vunpack.c.l.b16 %v548
    %v3696 = vunpack.c.l.b16 %v549
    %v3697 = vunpack.c.l.b16 %v550
    %v3698 = vunpack.c.l.b16 %v551
    %v3699 = vunpack.c.l.b16 %v552
    %v3700 = vunpack.c.l.b16 %v553
    %v3701 = vunpack.c.l.b16 %v554
    %v3702 = vunpack.c.l.b16 %v555
    %v3703 = vunpack.c.l.b16 %v556
    %v3704 = vunpack.c.l.b16 %v557
    %v3705 = vunpack.c.l.b16 %v558
    %v3706 = vunpack.c.l.b16 %v559
    %v3707 = vunpack.c.l.b16 %v560
    %v3708 = vunpack.c.l.b16 %v561
    %v3709 = vunpack.c.l.b16 %v562
    %v3710 = vunpack.c.l.b16 %v563
    %v3711 = vunpack.c.l.b16 %v564
    %v3712 = vunpack.c.l.b16 %v565
    %v3713 = vunpack.c.l.b16 %v566
    %v3714 = vunpack.c.l.b16 %v567
    %v3715 = vunpack.c.l.b16 %v568
    %v3716 = vunpack.c.l.b16 %v569
    %v3717 = vunpack.c.l.b16 %v570
    %v3718 = vunpack.c.l.b16 %v571
    %v3719 = vunpack.c.l.b16 %v572
    %v3720 = vunpack.c.l.b16 %v573
    %v3721 = vunpack.c.l.b16 %v574
    %v3722 = vunpack.c.l.b16 %v575
    %v3723 = vunpack.c.l.b16 %v576
    %v3724 = vunpack.c.l.b16 %v577
    %v3725 = vunpack.c.l.b16 %v578
    %v3726 = vunpack.c.l.b16 %v579
    %v3727 = vunpack.c.l.b16 %v580
    %v3728 = vunpack.c.l.b16 %v581
    %v3729 = vunpack.c.l.b16 %v582
    %v3730 = vunpack.c.l.b16 %v583
    %v3731 = vunpack.c.l.b16 %v584
    %v3732 = vunpack.c.l.b16 %v585
    %v3733 = vunpack.c.l.b16 %v586
    %v3734 = vunpack.c.l.b16 %v587
    %v3735 = vunpack.c.l.b16 %v588
    %v3736 = vunpack.c.l.b16 %v589
    %v3737 = vunpack.c.l.b16 %v590
    %v3738 = vunpack.c.l.b16 %v591
    %v3739 = vunpack.c.l.b16 %v592
    %v3740 = vunpack.c.l.b16 %v593
    %v3741 = vunpack.c.l.b16 %v594
    %v3742 = vunpack.c.l.b16 %v595
    %v3743 = vunpack.c.l.b16 %v596
    %v3744 = vunpack.c.l.b16 %v597
    %v3745 = vunpack.c.l.b16 %v598
    %v3746 = vunpack.c.l.b16 %v599
    %v3747 = vunpack.c.l.b16 %v600
    %v3748 = vunpack.c.l.b16 %v601
    %v3749 = vunpack.c.l.b16 %v602
    %v3750 = vunpack.c.l.b16 %v603
    %v3751 = vunpack.c.l.b16 %v604
    %v3752 = vunpack.c.l.b16 %v605
    %v3753 = vunpack.c.l.b16 %v606
    %v3754 = vunpack.c.l.b16 %v607
    %v3755 = vunpack.c.l.b16 %v608
    %v3756 = vunpack.c.l.b16 %v609
    %v3757 = vunpack.c.l.b16 %v610
    %v3758 = vunpack.c.l.b16 %v611
    %v3759 = vunpack.c.l.b16 %v612
    %v3760 = vunpack.c.l.b16 %v613
    %v3761 = vunpack.c.l.b16 %v614
    %v3762 = vunpack.c.l.b16 %v615
    %v3763 = vunpack.c.l.b16 %v616
    %v3764 = vunpack.c.l.b16 %v617
    %v3765 = vunpack.c.l.b16 %v618
    %v3766 = vunpack.c.l.b16 %v619
    %v3767 = vunpack.c.l.b16 %v620
    %v3768 = vunpack.c.l.b16 %v621
    %v3769 = vunpack.c.l.b16 %v622
    %v3770 = vunpack.c.l.b16 %v623
    %v3771 = vunpack.c.l.b16 %v624
    %v3772 = vunpack.c.l.b16 %v625
    %v3773 = vunpack.c.l.b16 %v626
    %v3774 = vunpack.c.l.b16 %v627
    %v3775 = vunpack.c.l.b16 %v628
    %v3776 = vunpack.c.l.b16 %v629
    %v3777 = vunpack.c.l.b16 %v630
    %v3778 = vunpack.c.l.b16 %v631
    %v3779 = vunpack.c.l.b16 %v632
    %v3780 = vunpack.c.l.b16 %v633
    %v3781 = vunpack.c.l.b16 %v634
    %v3782 = vunpack.c.l.b16 %v635
    %v3783 = vunpack.c.l.b16 %v636
    %v3784 = vunpack.c.l.b16 %v637
    %v3785 = vunpack.c.l.b16 %v638
    %v3786 = vunpack.c.l.b16 %v639
    %v3787 = vunpack.c.l.b16 %v640
    %v3788 = vunpack.c.l.b16 %v641
    %v3789 = vunpack.c.l.b16 %v642
    %v3790 = vunpack.c.l.b16 %v643
    %v3791 = vunpack.c.l.b16 %v644
    %v3792 = vunpack.c.l.b16 %v645
    %v3793 = vunpack.c.l.b16 %v646
    %v3794 = vunpack.c.l.b16 %v647
    %v3795 = vunpack.c.l.b16 %v648
    %v3796 = vunpack.c.l.b16 %v649
    %v3797 = vunpack.c.l.b16 %v650
    %v3798 = vunpack.c.l.b16 %v651
    %v3799 = vunpack.c.l.b16 %v652
    %v3800 = vunpack.c.l.b16 %v653
    %v3801 = vunpack.c.l.b16 %v654
    %v3802 = vunpack.c.l.b16 %v655
    %v3803 = vunpack.c.l.b16 %v656
    %v3804 = vunpack.c.l.b16 %v657
    %v3805 = vunpack.c.l.b16 %v658
    %v3806 = vunpack.c.l.b16 %v659
    %v3807 = vunpack.c.l.b16 %v660
    %v3808 = vunpack.c.l.b16 %v661
    %v3809 = vunpack.c.l.b16 %v662
    %v3810 = vunpack.c.l.b16 %v663
    %v3811 = vunpack.c.l.b16 %v664
    %v3812 = vunpack.c.l.b16 %v665
    %v3813 = vunpack.c.l.b16 %v666
    %v3814 = vunpack.c.l.b16 %v667
    %v3815 = vunpack.c.l.b16 %v668
    %v3816 = vunpack.c.l.b16 %v669
    %v3817 = vunpack.c.l.b16 %v670
    %v3818 = vunpack.c.l.b16 %v671
    %v3819 = vunpack.c.l.b16 %v672
    %v3820 = vunpack.c.l.b16 %v673
    %v3821 = vunpack.c.l.b16 %v674
    %v3822 = vunpack.c.l.b16 %v675
    %v3823 = vunpack.c.l.b16 %v676
    %v3824 = vunpack.c.l.b16 %v677
    %v3825 = vunpack.c.l.b16 %v678
    %v3826 = vunpack.c.l.b16 %v679
    %v3827 = vunpack.c.l.b16 %v680
    %v3828 = vunpack.c.l.b16 %v681
    %v3829 = vunpack.c.l.b16 %v682
    %v3830 = vunpack.c.l.b16 %v683
    %v3831 = vunpack.c.l.b16 %v684
    %v3832 = vunpack.c.l.b16 %v685
    %v3833 = vunpack.c.l.b16 %v686
    %v3834 = vunpack.c.l.b16 %v687
    %v3835 = vunpack.c.l.b16 %v688
    %v3836 = vunpack.c.l.b16 %v689
    %v3837 = vunpack.c.l.b16 %v690
    %v3838 = vunpack.c.l.b16 %v691
    %v3839 = vunpack.c.l.b16 %v692
    %v3840 = vunpack.c.l.b16 %v693
    %v3841 = vunpack.c.l.b16 %v694
    %v3842 = vunpack.c.l.b16 %v695
    %v3843 = vunpack.c.l.b16 %v696
    %v3844 = vunpack.c.l.b16 %v697
    %v3845 = vunpack.c.l.b16 %v698
    %v3846 = vunpack.c.l.b16 %v699
    %v3847 = vunpack.c.l.b16 %v700
    %v3848 = vunpack.c.l.b16 %v701
    %v3849 = vunpack.c.l.b16 %v702
    %v3850 = vunpack.c.l.b16 %v703
    %v3851 = vunpack.c.l.b16 %v704
    %v3852 = vunpack.c.l.b16 %v705
    %v3853 = vunpack.c.l.b16 %v706
    %v3854 = vunpack.c.l.b16 %v707
    %v3855 = vunpack.c.l.b16 %v708
    %v3856 = vunpack.c.l.b16 %v709
    %v3857 = vunpack.c.l.b16 %v710
    %v3858 = vunpack.c.l.b16 %v711
    %v3859 = vunpack.c.l.b16 %v712
    %v3860 = vunpack.c.l.b16 %v713
    %v3861 = vunpack.c.l.b16 %v714
    %v3862 = vunpack.c.l.b16 %v715
    %v3863 = vunpack.c.l.b16 %v716
    %v3864 = vunpack.c.l.b16 %v717
    %v3865 = vunpack.c.l.b16 %v718
    %v3866 = vunpack.c.l.b16 %v719
    %v3867 = vunpack.c.l.b16 %v720
    %v3868 = vunpack.c.l.b16 %v721
    %v3869 = vunpack.c.l.b16 %v722
    %v3870 = vunpack.c.l.b16 %v723
    %v3871 = vunpack.c.l.b16 %v724
    %v3872 = vunpack.c.l.b16 %v725
    %v3873 = vunpack.c.l.b16 %v726
    %v3874 = vunpack.c.l.b16 %v727
    %v3875 = vunpack.c.l.b16 %v728
    %v3876 = vunpack.c.l.b16 %v729
    %v3877 = vunpack.c.l.b16 %v730
    %v3878 = vunpack.c.l.b16 %v731
    %v3879 = vunpack.c.l.b16 %v732
    %v3880 = vunpack.c.l.b16 %v733
    %v3881 = vunpack.c.l.b16 %v734
    %v3882 = vunpack.c.l.b16 %v735
    %v3883 = vunpack.c.l.b16 %v736
    %v3884 = vunpack.c.l.b16 %v737
    %v3885 = vunpack.c.l.b16 %v738
    %v3886 = vunpack.c.l.b16 %v739
    %v3887 = vunpack.c.l.b16 %v740
    %v3888 = vunpack.c.l.b16 %v741
    %v3889 = vunpack.c.l.b16 %v742
    %v3890 = vunpack.c.l.b16 %v743
    %v3891 = vunpack.c.l.b16 %v744
    %v3892 = vunpack.c.l.b16 %v745
    %v3893 = vunpack.c.l.b16 %v746
    %v3894 = vunpack.c.l.b16 %v747
    %v3895 = vunpack.c.l.b16 %v748
    %v3896 = vunpack.c.l.b16 %v749
    %v3897 = vunpack.c.l.b16 %v750
    %v3898 = vunpack.c.l.b16 %v751
    %v3899 = vunpack.c.l.b16 %v752
    %v3900 = vunpack.c.l.b16 %v753
    %v3901 = vunpack.c.l.b16 %v754
    %v3902 = vunpack.c.l.b16 %v755
    %v3903 = vunpack.c.l.b16 %v756
    %v3904 = vunpack.c.l.b16 %v757
    %v3905 = vunpack.c.l.b16 %v758
    %v3906 = vunpack.c.l.b16 %v759
    %v3907 = vunpack.c.l.b16 %v760
    %v3908 = vunpack.c.l.b16 %v761
    %v3909 = vunpack.c.l.b16 %v762
    %v3910 = vunpack.c.l.b16 %v763
    %v3911 = vunpack.c.l.b16 %v764
    %v3912 = vunpack.c.l.b16 %v765
    %v3913 = vunpack.c.l.b16 %v766
    %v3914 = vunpack.c.l.b16 %v767
    %v3915 = vunpack.c.l.b16 %v768
    %v3916 = vunpack.c.l.b16 %v769
    %v3917 = vunpack.c.l.b16 %v770
    %v3918 = vunpack.c.l.b16 %v771
    %v3919 = vunpack.c.l.b16 %v772
    %v3920 = vunpack.c.l.b16 %v773
    %v3921 = vunpack.c.l.b16 %v774
    %v3922 = vunpack.c.l.b16 %v775
    %v3923 = vunpack.c.l.b16 %v776
    %v3924 = vunpack.c.l.b16 %v777
    %v3925 = vunpack.c.l.b16 %v778
    %v3926 = vunpack.c.l.b16 %v779
    %v3927 = vunpack.c.l.b16 %v780
    %v3928 = vunpack.c.l.b16 %v781
    %v3929 = vunpack.c.l.b16 %v782
    %v3930 = vunpack.c.l.b16 %v783
    %v3931 = vunpack.c.l.b16 %v784
    %v3932 = vunpack.c.l.b16 %v785
    %v3933 = vunpack.c.l.b16 %v786
    %v3934 = vunpack.c.l.b16 %v787
    %v3935 = vunpack.c.l.b16 %v788
    %v3936 = vunpack.c.l.b16 %v789
    %v3937 = vunpack.c.l.b16 %v790
    %v3938 = vunpack.c.l.b16 %v791
    %v3939 = vunpack.c.l.b16 %v792
    %v3940 = vunpack.c.l.b16 %v793
    %v3941 = vunpack.c.l.b16 %v794
    %v3942 = vunpack.c.l.b16 %v795
    %v3943 = vunpack.c.l.b16 %v796
    %v3944 = vunpack.c.l.b16 %v797
    %v3945 = vunpack.c.l.b16 %v798
    %v3946 = vunpack.c.l.b16 %v799
    %v3947 = vunpack.c.l.b16 %v800
    %v3948 = vunpack.c.l.b16 %v801
    %v3949 = vunpack.c.l.b16 %v802
    %v3950 = vunpack.c.l.b16 %v803
    %v3951 = vunpack.c.l.b16 %v804
    %v3952 = vunpack.c.l.b16 %v805
    %v3953 = vunpack.c.l.b16 %v806
    %v3954 = vunpack.c.l.b16 %v807
    %v3955 = vunpack.c.l.b16 %v808
    %v3956 = vunpack.c.l.b16 %v809
    %v3957 = vunpack.c.l.b16 %v810
    %v3958 = vunpack.c.l.b16 %v811
    %v3959 = vunpack.c.l.b16 %v812
    %v3960 = vunpack.c.l.b16 %v813
    %v3961 = vunpack.c.l.b16 %v814
    %v3962 = vunpack.c.l.b16 %v815
    %v3963 = vunpack.c.l.b16 %v816
    %v3964 = vunpack.c.l.b16 %v817
    %v3965 = vunpack.c.l.b16 %v818
    %v3966 = vunpack.c.l.b16 %v819
    %v3967 = vunpack.c.l.b16 %v820
    %v3968 = vunpack.c.l.b16 %v821
    %v3969 = vunpack.c.l.b16 %v822
    %v3970 = vunpack.c.l.b16 %v823
    %v3971 = vunpack.c.l.b16 %v824
    %v3972 = vunpack.c.l.b16 %v825
    %v3973 = vunpack.c.l.b16 %v826
    %v3974 = vunpack.c.l.b16 %v827
    %v3975 = vunpack.c.l.b16 %v828
    %v3976 = vunpack.c.l.b16 %v829
    %v3977 = vunpack.c.l.b16 %v830
    %v3978 = vunpack.c.l.b16 %v831
    %v3979 = vunpack.c.l.b16 %v832
    %v3980 = vunpack.c.l.b16 %v833
    %v3981 = vunpack.c.l.b16 %v834
    %v3982 = vunpack.c.l.b16 %v835
    %v3983 = vunpack.c.l.b16 %v836
    %v3984 = vunpack.c.l.b16 %v837
    %v3985 = vunpack.c.l.b16 %v838
    %v3986 = vunpack.c.l.b16 %v839
    %v3987 = vunpack.c.l.b16 %v840
    %v3988 = vunpack.c.l.b16 %v841
    %v3989 = vunpack.c.l.b16 %v842
    %v3990 = vunpack.c.l.b16 %v843
    %v3991 = vunpack.c.l.b16 %v844
    %v3992 = vunpack.c.l.b16 %v845
    %v3993 = vunpack.c.l.b16 %v846
    %v3994 = vunpack.c.l.b16 %v847
    %v3995 = vunpack.c.l.b16 %v848
    %v3996 = vunpack.c.l.b16 %v849
    %v3997 = vunpack.c.l.b16 %v850
    %v3998 = vunpack.c.l.b16 %v851
    %v3999 = vunpack.c.l.b16 %v852
    %v4000 = vunpack.c.l.b16 %v853
    %v4001 = vunpack.c.l.b16 %v854
    %v4002 = vunpack.c.l.b16 %v855
    %v4003 = vunpack.c.l.b16 %v856
    %v4004 = vunpack.c.l.b16 %v857
    %v4005 = vunpack.c.l.b16 %v858
    %v4006 = vunpack.c.l.b16 %v859
    %v4007 = vunpack.c.l.b16 %v860
    %v4008 = vunpack.c.l.b16 %v861
    %v4009 = vunpack.c.l.b16 %v862
    %v4010 = vunpack.c.l.b16 %v863
    %v4011 = vunpack.c.l.b16 %v864
    %v4012 = vunpack.c.l.b16 %v865
    %v4013 = vunpack.c.l.b16 %v866
    %v4014 = vunpack.c.l.b16 %v867
    %v4015 = vunpack.c.l.b16 %v868
    %v4016 = vunpack.c.l.b16 %v869
    %v4017 = vunpack.c.l.b16 %v870
    %v4018 = vunpack.c.l.b16 %v871
    %v4019 = vunpack.c.l.b16 %v872
    %v4020 = vunpack.c.l.b16 %v873
    %v4021 = vunpack.c.l.b16 %v874
    %v4022 = vunpack.c.l.b16 %v875
    %v4023 = vunpack.c.l.b16 %v876
    %v4024 = vunpack.c.l.b16 %v877
    %v4025 = vunpack.c.l.b16 %v878
    %v4026 = vunpack.c.l.b16 %v879
    %v4027 = vunpack.c.l.b16 %v880
    %v4028 = vunpack.c.l.b16 %v881
    %v4029 = vunpack.c.l.b16 %v882
    %v4030 = vunpack.c.l.b16 %v883
    %v4031 = vunpack.c.l.b16 %v884
    %v4032 = vunpack.c.l.b16 %v885
    %v4033 = vunpack.c.l.b16 %v886
    %v4034 = vunpack.c.l.b16 %v887
    %v4035 = vunpack.c.l.b16 %v888
    %v4036 = vunpack.c.l.b16 %v889
    %v4037 = vunpack.c.l.b16 %v890
    %v4038 = vunpack.c.l.b16 %v891
    %v4039 = vunpack.c.l.b16 %v892
    %v4040 = vunpack.c.l.b16 %v893
    %v4041 = vunpack.c.l.b16 %v894
    %v4042 = vunpack.c.l.b16 %v895
    %v4043 = vunpack.c.l.b16 %v896
    %v4044 = vunpack.c.l.b16 %v897
    %v4045 = vunpack.c.l.b16 %v898
    %v4046 = vunpack.c.l.b16 %v899
    %v4047 = vunpack.c.l.b16 %v900
    %v4048 = vunpack.c.l.b16 %v901
    %v4049 = vunpack.c.l.b16 %v902
    %v4050 = vunpack.c.l.b16 %v903
    %v4051 = vunpack.c.l.b16 %v904
    %v4052 = vunpack.c.l.b16 %v905
    %v4053 = vunpack.c.l.b16 %v906
    %v4054 = vunpack.c.l.b16 %v907
    %v4055 = vunpack.c.l.b16 %v908
    %v4056 = vunpack.c.l.b16 %v909
    %v4057 = vunpack.c.l.b16 %v910
    %v4058 = vunpack.c.l.b16 %v911
    %v4059 = vunpack.c.l.b16 %v912
    %v4060 = vunpack.c.l.b16 %v913
    %v4061 = vunpack.c.l.b16 %v914
    %v4062 = vunpack.c.l.b16 %v915
    %v4063 = vunpack.c.l.b16 %v916
    %v4064 = vunpack.c.l.b16 %v917
    %v4065 = vunpack.c.l.b16 %v918
    %v4066 = vunpack.c.l.b16 %v919
    %v4067 = vunpack.c.l.b16 %v920
    %v4068 = vunpack.c.l.b16 %v921
    %v4069 = vunpack.c.l.b16 %v922
    %v4070 = vunpack.c.l.b16 %v923
    %v4071 = vunpack.c.l.b16 %v924
    %v4072 = vunpack.c.l.b16 %v925
    %v4073 = vunpack.c.l.b16 %v926
    %v4074 = vunpack.c.l.b16 %v927
    %v4075 = vunpack.c.l.b16 %v928
    %v4076 = vunpack.c.l.b16 %v929
    %v4077 = vunpack.c.l.b16 %v930
    %v4078 = vunpack.c.l.b16 %v931
    %v4079 = vunpack.c.l.b16 %v932
    %v4080 = vunpack.c.l.b16 %v933
    %v4081 = vunpack.c.l.b16 %v934
    %v4082 = vunpack.c.l.b16 %v935
    %v4083 = vunpack.c.l.b16 %v936
    %v4084 = vunpack.c.l.b16 %v937
    %v4085 = vunpack.c.l.b16 %v938
    %v4086 = vunpack.c.l.b16 %v939
    %v4087 = vunpack.c.l.b16 %v940
    %v4088 = vunpack.c.l.b16 %v941
    %v4089 = vunpack.c.l.b16 %v942
    %v4090 = vunpack.c.l.b16 %v943
    %v4091 = vunpack.c.l.b16 %v944
    %v4092 = vunpack.c.l.b16 %v945
    %v4093 = vunpack.c.l.b16 %v946
    %v4094 = vunpack.c.l.b16 %v947
    %v4095 = vunpack.c.l.b16 %v948
    %v4096 = vunpack.c.l.b16 %v949
    %v4097 = vunpack.c.l.b16 %v950
    %v4098 = vunpack.c.l.b16 %v951
    %v4099 = vunpack.c.l.b16 %v952
    %v4100 = vunpack.c.l.b16 %v953
    %v4101 = vunpack.c.l.b16 %v954
    %v4102 = vunpack.c.l.b16 %v955
    %v4103 = vunpack.c.l.b16 %v956
    %v4104 = vunpack.c.l.b16 %v957
    %v4105 = vunpack.c.l.b16 %v958
    %v4106 = vunpack.c.l.b16 %v959
    %v4107 = vunpack.c.l.b16 %v960
    %v4108 = vunpack.c.l.b16 %v961
    %v4109 = vunpack.c.l.b16 %v962
    %v4110 = vunpack.c.l.b16 %v963
    %v4111 = vunpack.c.l.b16 %v964
    %v4112 = vunpack.c.l.b16 %v965
    %v4113 = vunpack.c.l.b16 %v966
    %v4114 = vunpack.c.l.b16 %v967
    %v4115 = vunpack.c.l.b16 %v968
    %v4116 = vunpack.c.l.b16 %v969
    %v4117 = vunpack.c.l.b16 %v970
    %v4118 = vunpack.c.l.b16 %v971
    %v4119 = vunpack.c.l.b16 %v972
    %v4120 = vunpack.c.l.b16 %v973
    %v4121 = vunpack.c.l.b16 %v974
    %v4122 = vunpack.c.l.b16 %v975
    %v4123 = vunpack.c.l.b16 %v976
    %v4124 = vunpack.c.l.b16 %v977
    %v4125 = vunpack.c.l.b16 %v978
    %v4126 = vunpack.c.l.b16 %v979
    %v4127 = vunpack.c.l.b16 %v980
    %v4128 = vunpack.c.l.b16 %v981
    %v4129 = vunpack.c.l.b16 %v982
    %v4130 = vunpack.c.l.b16 %v983
    %v4131 = vunpack.c.l.b16 %v984
    %v4132 = vunpack.c.l.b16 %v985
    %v4133 = vunpack.c.l.b16 %v986
    %v4134 = vunpack.c.l.b16 %v987
    %v4135 = vunpack.c.l.b16 %v988
    %v4136 = vunpack.c.l.b16 %v989
    %v4137 = vunpack.c.l.b16 %v990
    %v4138 = vunpack.c.l.b16 %v991
    %v4139 = vunpack.c.l.b16 %v992
    %v4140 = vunpack.c.l.b16 %v993
    %v4141 = vunpack.c.l.b16 %v994
    %v4142 = vunpack.c.l.b16 %v995
    %v4143 = vunpack.c.l.b16 %v996
    %v4144 = vunpack.c.l.b16 %v997
    %v4145 = vunpack.c.l.b16 %v998
    %v4146 = vunpack.c.l.b16 %v999
    %v4147 = vunpack.c.l.b16 %v1000
    %v4148 = vunpack.c.l.b16 %v1001
    %v4149 = vunpack.c.l.b16 %v1002
    %v4150 = vunpack.c.l.b16 %v1003
    %v4151 = vunpack.c.l.b16 %v1004
    %v4152 = vunpack.c.l.b16 %v1005
    %v4153 = vunpack.c.l.b16 %v1006
    %v4154 = vunpack.c.l.b16 %v1007
    %v4155 = vunpack.c.l.b16 %v1008
    %v4156 = vunpack.c.l.b16 %v1009
    %v4157 = vunpack.c.l.b16 %v1010
    %v4158 = vunpack.c.l.b16 %v1011
    %v4159 = vunpack.c.l.b16 %v1012
    %v4160 = vunpack.c.l.b16 %v1013
    %v4161 = vunpack.c.l.b16 %v1014
    %v4162 = vunpack.c.l.b16 %v1015
    %v4163 = vunpack.c.l.b16 %v1016
    %v4164 = vunpack.c.l.b16 %v1017
    %v4165 = vunpack.c.l.b16 %v1018
    %v4166 = vunpack.c.l.b16 %v1019
    %v4167 = vunpack.c.l.b16 %v1020
    %v4168 = vunpack.c.l.b16 %v1021
    %v4169 = vunpack.c.l.b16 %v1022
    %v4170 = vunpack.c.l.b16 %v1023
    %v4171 = vunpack.c.l.b16 %v1024
    %v4172 = vunpack.c.l.b16 %v1025
    %v4173 = vunpack.c.l.b16 %v1026
    %v4174 = vunpack.c.l.b16 %v1027
    %v4175 = vunpack.c.l.b16 %v1028
    %v4176 = vunpack.c.l.b16 %v1029
    %v4177 = vunpack.c.l.b16 %v1030
    %v4178 = vunpack.c.l.b16 %v1031
    %v4179 = vunpack.c.l.b16 %v1032
    %v4180 = vunpack.c.l.b16 %v1033
    %v4181 = vunpack.c.l.b16 %v1034
    %v4182 = vunpack.c.l.b16 %v1035
    %v4183 = vunpack.c.l.b16 %v1036
    %v4184 = vunpack.c.l.b16 %v1037
    %v4185 = vunpack.c.l.b16 %v1038
    %v4186 = vunpack.c.l.b16 %v1039
    %v4187 = vunpack.c.l.b16 %v1040
    %v4188 = vunpack.c.l.b16 %v1041
    %v4189 = vunpack.c.l.b16 %v1042
    %v4190 = vunpack.c.l.b16 %v1043
    %v4191 = vunpack.c.l.b16 %v1044
    %v4192 = vunpack.c.l.b16 %v1045
    %v4193 = vunpack.c.l.b16 %v1046
    %v4194 = vunpack.c.l.b16 %v1047
    %v4195 = vunpack.c.l.b16 %v1048
    %v4196 = vunpack.c.l.b16 %v1049
    %v4197 = vunpack.c.l.b16 %v1050
    %v4198 = vunpack.c.l.b16 %v1051
    %v4199 = vunpack.c.l.b16 %v1052
    %v4200 = vunpack.c.l.b16 %v1053
    %v4201 = vunpack.c.l.b16 %v1054
    %v4202 = vunpack.c.l.b16 %v1055
    %v4203 = vunpack.c.l.b16 %v1056
    %v4204 = vunpack.c.l.b16 %v1057
    %v4205 = vunpack.c.l.b16 %v1058
    %v4206 = vunpack.c.l.b16 %v1059
    %v4207 = vunpack.c.l.b16 %v1060
    %v4208 = vunpack.c.l.b16 %v1061
    %v4209 = vunpack.c.l.b16 %v1062
    %v4210 = vunpack.c.l.b16 %v1063
    %v4211 = vunpack.c.l.b16 %v1064
    %v4212 = vunpack.c.l.b16 %v1065
    %v4213 = vunpack.c.l.b16 %v1066
    %v4214 = vunpack.c.l.b16 %v1067
    %v4215 = vunpack.c.l.b16 %v1068
    %v4216 = vunpack.c.l.b16 %v1069
    %v4217 = vunpack.c.l.b16 %v1070
    %v4218 = vunpack.c.l.b16 %v1071
    %v4219 = vunpack.c.l.b16 %v1072
    %v4220 = vunpack.c.l.b16 %v1073
    %v4221 = vunpack.c.l.b16 %v1074
    %v4222 = vunpack.c.l.b16 %v1075
    %v4223 = vunpack.c.l.b16 %v1076
    %v4224 = vunpack.c.l.b16 %v1077
    %v4225 = vunpack.c.l.b16 %v1078
    %v4226 = vunpack.c.l.b16 %v1079
    %v4227 = vunpack.c.l.b16 %v1080
    %v4228 = vunpack.c.l.b16 %v1081
    %v4229 = vunpack.c.l.b16 %v1082
    %v4230 = vunpack.c.l.b16 %v1083
    %v4231 = vunpack.c.l.b16 %v1084
    %v4232 = vunpack.c.l.b16 %v1085
    %v4233 = vunpack.c.l.b16 %v1086
    %v4234 = vunpack.c.l.b16 %v1087
    %v4235 = vunpack.c.l.b16 %v1088
    %v4236 = vunpack.c.l.b16 %v1089
    %v4237 = vunpack.c.l.b16 %v1090
    %v4238 = vunpack.c.l.b16 %v1091
    %v4239 = vunpack.c.l.b16 %v1092
    %v4240 = vunpack.c.l.b16 %v1093
    %v4241 = vunpack.c.l.b16 %v1094
    %v4242 = vunpack.c.l.b16 %v1095
    %v4243 = vunpack.c.l.b16 %v1096
    %v4244 = vunpack.c.l.b16 %v1097
    %v4245 = vunpack.c.l.b16 %v1098
    %v4246 = vunpack.c.l.b16 %v1099
    %v4247 = vunpack.c.l.b16 %v1100
    %v4248 = vunpack.c.l.b16 %v1101
    %v4249 = vunpack.c.l.b16 %v1102
    %v4250 = vunpack.c.l.b16 %v1103
    %v4251 = vunpack.c.l.b16 %v1104
    %v4252 = vunpack.c.l.b16 %v1105
    %v4253 = vunpack.c.l.b16 %v1106
    %v4254 = vunpack.c.l.b16 %v1107
    %v4255 = vunpack.c.l.b16 %v1108
    %v4256 = vunpack.c.l.b16 %v1109
    %v4257 = vunpack.c.l.b16 %v1110
    %v4258 = vunpack.c.l.b16 %v1111
    %v4259 = vunpack.c.l.b16 %v1112
    %v4260 = vunpack.c.l.b16 %v1113
    %v4261 = vunpack.c.l.b16 %v1114
    %v4262 = vunpack.c.l.b16 %v1115
    %v4263 = vunpack.c.l.b16 %v1116
    %v4264 = vunpack.c.l.b16 %v1117
    %v4265 = vunpack.c.l.b16 %v1118
    %v4266 = vunpack.c.l.b16 %v1119
    %v4267 = vunpack.c.l.b16 %v1120
    %v4268 = vunpack.c.l.b16 %v1121
    %v4269 = vunpack.c.l.b16 %v1122
    %v4270 = vunpack.c.l.b16 %v1123
    %v4271 = vunpack.c.l.b16 %v1124
    %v4272 = vunpack.c.l.b16 %v1125
    %v4273 = vunpack.c.l.b16 %v1126
    %v4274 = vunpack.c.l.b16 %v1127
    %v4275 = vunpack.c.l.b16 %v1128
    %v4276 = vunpack.c.l.b16 %v1129
    %v4277 = vunpack.c.l.b16 %v1130
    %v4278 = vunpack.c.l.b16 %v1131
    %v4279 = vunpack.c.l.b16 %v1132
    %v4280 = vunpack.c.l.b16 %v1133
    %v4281 = vunpack.c.l.b16 %v1134
    %v4282 = vunpack.c.l.b16 %v1135
    %v4283 = vunpack.c.l.b16 %v1136
    %v4284 = vunpack.c.l.b16 %v1137
    %v4285 = vunpack.c.l.b16 %v1138
    %v4286 = vunpack.c.l.b16 %v1139
    %v4287 = vunpack.c.l.b16 %v1140
    %v4288 = vunpack.c.l.b16 %v1141
    %v4289 = vunpack.c.l.b16 %v1142
    %v4290 = vunpack.c.l.b16 %v1143
    %v4291 = vunpack.c.l.b16 %v1144
    %v4292 = vunpack.c.l.b16 %v1145
    %v4293 = vunpack.c.l.b16 %v1146
    %v4294 = vunpack.c.l.b16 %v1147
    %v4295 = vunpack.c.l.b16 %v1148
    %v4296 = vunpack.c.l.b16 %v1149
    %v4297 = vunpack.c.l.b16 %v1150
    %v4298 = vunpack.c.l.b16 %v1151
    %v4299 = vunpack.c.l.b16 %v1152
    %v4300 = vunpack.c.l.b16 %v1153
    %v4301 = vunpack.c.l.b16 %v1154
    %v4302 = vunpack.c.l.b16 %v1155
    %v4303 = vunpack.c.l.b16 %v1156
    %v4304 = vunpack.c.l.b16 %v1157
    %v4305 = vunpack.c.l.b16 %v1158
    %v4306 = vunpack.c.l.b16 %v1159
    %v4307 = vunpack.c.l.b16 %v1160
    %v4308 = vunpack.c.l.b16 %v1161
    %v4309 = vunpack.c.l.b16 %v1162
    %v4310 = vunpack.c.l.b16 %v1163
    %v4311 = vunpack.c.l.b16 %v1164
    %v4312 = vunpack.c.l.b16 %v1165
    %v4313 = vunpack.c.l.b16 %v1166
    %v4314 = vunpack.c.l.b16 %v1167
    %v4315 = vunpack.c.l.b16 %v1168
    %v4316 = vunpack.c.l.b16 %v1169
    %v4317 = vunpack.c.l.b16 %v1170
    %v4318 = vunpack.c.l.b16 %v1171
    %v4319 = vunpack.c.l.b16 %v1172
    %v4320 = vunpack.c.l.b16 %v1173
    %v4321 = vunpack.c.l.b16 %v1174
    %v4322 = vunpack.c.l.b16 %v1175
    %v4323 = vunpack.c.l.b16 %v1176
    %v4324 = vunpack.c.l.b16 %v1177
    %v4325 = vunpack.c.l.b16 %v1178
    %v4326 = vunpack.c.l.b16 %v1179
    %v4327 = vunpack.c.l.b16 %v1180
    %v4328 = vunpack.c.l.b16 %v1181
    %v4329 = vunpack.c.l.b16 %v1182
    %v4330 = vunpack.c.l.b16 %v1183
    %v4331 = vunpack.c.l.b16 %v1184
    %v4332 = vunpack.c.l.b16 %v1185
    %v4333 = vunpack.c.l.b16 %v1186
    %v4334 = vunpack.c.l.b16 %v1187
    %v4335 = vunpack.c.l.b16 %v1188
    %v4336 = vunpack.c.l.b16 %v1189
    %v4337 = vunpack.c.l.b16 %v1190
    %v4338 = vunpack.c.l.b16 %v1191
    %v4339 = vunpack.c.l.b16 %v1192
    %v4340 = vunpack.c.l.b16 %v1193
    %v4341 = vunpack.c.l.b16 %v1194
    %v4342 = vunpack.c.l.b16 %v1195
    %v4343 = vunpack.c.l.b16 %v1196
    %v4344 = vunpack.c.l.b16 %v1197
    %v4345 = vunpack.c.l.b16 %v1198
    %v4346 = vunpack.c.l.b16 %v1199
    %v4347 = vunpack.c.l.b16 %v1200
    %v4348 = vunpack.c.l.b16 %v1201
    %v4349 = vunpack.c.l.b16 %v1202
    %v4350 = vunpack.c.l.b16 %v1203
    %v4351 = vunpack.c.l.b16 %v1204
    %v4352 = vunpack.c.l.b16 %v1205
    %v4353 = vunpack.c.l.b16 %v1206
    %v4354 = vunpack.c.l.b16 %v1207
    %v4355 = vunpack.c.l.b16 %v1208
    %v4356 = vunpack.c.l.b16 %v1209
    %v4357 = vunpack.c.l.b16 %v1210
    %v4358 = vunpack.c.l.b16 %v1211
    %v4359 = vunpack.c.l.b16 %v1212
    %v4360 = vunpack.c.l.b16 %v1213
    %v4361 = vunpack.c.l.b16 %v1214
    %v4362 = vunpack.c.l.b16 %v1215
    %v4363 = vunpack.c.l.b16 %v1216
    %v4364 = vunpack.c.l.b16 %v1217
    %v4365 = vunpack.c.l.b16 %v1218
    %v4366 = vunpack.c.l.b16 %v1219
    %v4367 = vunpack.c.l.b16 %v1220
    %v4368 = vunpack.c.l.b16 %v1221
    %v4369 = vunpack.c.l.b16 %v1222
    %v4370 = vunpack.c.l.b16 %v1223
    %v4371 = vunpack.c.l.b16 %v1224
    %v4372 = vunpack.c.l.b16 %v1225
    %v4373 = vunpack.c.l.b16 %v1226
    %v4374 = vunpack.c.l.b16 %v1227
    %v4375 = vunpack.c.l.b16 %v1228
    %v4376 = vunpack.c.l.b16 %v1229
    %v4377 = vunpack.c.l.b16 %v1230
    %v4378 = vunpack.c.l.b16 %v1231
    %v4379 = vunpack.c.l.b16 %v1232
    %v4380 = vunpack.c.l.b16 %v1233
    %v4381 = vunpack.c.l.b16 %v1234
    %v4382 = vunpack.c.l.b16 %v1235
    %v4383 = vunpack.c.l.b16 %v1236
    %v4384 = vunpack.c.l.b16 %v1237
    %v4385 = vunpack.c.l.b16 %v1238
    %v4386 = vunpack.c.l.b16 %v1239
    %v4387 = vunpack.c.l.b16 %v1240
    %v4388 = vunpack.c.l.b16 %v1241
    %v4389 = vunpack.c.l.b16 %v1242
    %v4390 = vunpack.c.l.b16 %v1243
    %v4391 = vunpack.c.l.b16 %v1244
    %v4392 = vunpack.c.l.b16 %v1245
    %v4393 = vunpack.c.l.b16 %v1246
    %v4394 = vunpack.c.l.b16 %v1247
    %v4395 = vunpack.c.l.b16 %v1248
    %v4396 = vunpack.c.l.b16 %v1249
    %v4397 = vunpack.c.l.b16 %v1250
    %v4398 = vunpack.c.l.b16 %v1251
    %v4399 = vunpack.c.l.b16 %v1252
    %v4400 = vunpack.c.l.b16 %v1253
    %v4401 = vunpack.c.l.b16 %v1254
    %v4402 = vunpack.c.l.b16 %v1255
    %v4403 = vunpack.c.l.b16 %v1256
    %v4404 = vunpack.c.l.b16 %v1257
    %v4405 = vunpack.c.l.b16 %v1258
    %v4406 = vunpack.c.l.b16 %v1259
    %v4407 = vunpack.c.l.b16 %v1260
    %v4408 = vunpack.c.l.b16 %v1261
    %v4409 = vunpack.c.l.b16 %v1262
    %v4410 = vunpack.c.l.b16 %v1263
    %v4411 = vunpack.c.l.b16 %v1264
    %v4412 = vunpack.c.l.b16 %v1265
    %v4413 = vunpack.c.l.b16 %v1266
    %v4414 = vunpack.c.l.b16 %v1267
    %v4415 = vunpack.c.l.b16 %v1268
    %v4416 = vunpack.c.l.b16 %v1269
    %v4417 = vunpack.c.l.b16 %v1270
    %v4418 = vunpack.c.l.b16 %v1271
    %v4419 = vunpack.c.l.b16 %v1272
    %v4420 = vunpack.c.l.b16 %v1273
    %v4421 = vunpack.c.l.b16 %v1274
    %v4422 = vunpack.c.l.b16 %v1275
    %v4423 = vunpack.c.l.b16 %v1276
    %v4424 = vunpack.c.l.b16 %v1277
    %v4425 = vunpack.c.l.b16 %v1278
    %v4426 = vunpack.c.l.b16 %v1279
    %v4427 = vunpack.c.l.b16 %v1280
    %v4428 = vunpack.c.l.b16 %v1281
    %v4429 = vunpack.c.l.b16 %v1282
    %v4430 = vunpack.c.l.b16 %v1283
    %v4431 = vunpack.c.l.b16 %v1284
    %v4432 = vunpack.c.l.b16 %v1285
    %v4433 = vunpack.c.l.b16 %v1286
    %v4434 = vunpack.c.l.b16 %v1287
    %v4435 = vunpack.c.l.b16 %v1288
    %v4436 = vunpack.c.l.b16 %v1289
    %v4437 = vunpack.c.l.b16 %v1290
    %v4438 = vunpack.c.l.b16 %v1291
    %v4439 = vunpack.c.l.b16 %v1292
    %v4440 = vunpack.c.l.b16 %v1293
    %v4441 = vunpack.c.l.b16 %v1294
    %v4442 = vunpack.c.l.b16 %v1295
    %v4443 = vunpack.c.l.b16 %v1296
    %v4444 = vunpack.c.l.b16 %v1297
    %v4445 = vunpack.c.l.b16 %v1298
    %v4446 = vunpack.c.l.b16 %v1299
    %v4447 = vunpack.c.l.b16 %v1300
    %v4448 = vunpack.c.l.b16 %v1301
    %v4449 = vunpack.c.l.b16 %v1302
    %v4450 = vunpack.c.l.b16 %v1303
    %v4451 = vunpack.c.l.b16 %v1304
    %v4452 = vunpack.c.l.b16 %v1305
    %v4453 = vunpack.c.l.b16 %v1306
    %v4454 = vunpack.c.l.b16 %v1307
    %v4455 = vunpack.c.l.b16 %v1308
    %v4456 = vunpack.c.l.b16 %v1309
    %v4457 = vunpack.c.l.b16 %v1310
    %v4458 = vunpack.c.l.b16 %v1311
    %v4459 = vpack.c.b16 %v3180, %v3179
    %v4460 = vpack.c.b16 %v3182, %v3181
    %v4461 = vpack.c.b16 %v3184, %v3183
    %v4462 = vpack.c.b16 %v3186, %v3185
    %v4463 = vpack.c.b16 %v3188, %v3187
    %v4464 = vpack.c.b16 %v3190, %v3189
    %v4465 = vpack.c.b16 %v3192, %v3191
    %v4466 = vpack.c.b16 %v3194, %v3193
    %v4467 = vpack.c.b16 %v3196, %v3195
    %v4468 = vpack.c.b16 %v3198, %v3197
    %v4469 = vpack.c.b16 %v3200, %v3199
    %v4470 = vpack.c.b16 %v3202, %v3201
    %v4471 = vpack.c.b16 %v3204, %v3203
    %v4472 = vpack.c.b16 %v3206, %v3205
    %v4473 = vpack.c.b16 %v3208, %v3207
    %v4474 = vpack.c.b16 %v3210, %v3209
    %v4475 = vpack.c.b16 %v3212, %v3211
    %v4476 = vpack.c.b16 %v3214, %v3213
    %v4477 = vpack.c.b16 %v3216, %v3215
    %v4478 = vpack.c.b16 %v3218, %v3217
    %v4479 = vpack.c.b16 %v3220, %v3219
    %v4480 = vpack.c.b16 %v3222, %v3221
    %v4481 = vpack.c.b16 %v3224, %v3223
    %v4482 = vpack.c.b16 %v3226, %v3225
    %v4483 = vpack.c.b16 %v3228, %v3227
    %v4484 = vpack.c.b16 %v3230, %v3229
    %v4485 = vpack.c.b16 %v3232, %v3231
    %v4486 = vpack.c.b16 %v3234, %v3233
    %v4487 = vpack.c.b16 %v3236, %v3235
    %v4488 = vpack.c.b16 %v3238, %v3237
    %v4489 = vpack.c.b16 %v3240, %v3239
    %v4490 = vpack.c.b16 %v3242, %v3241
    %v4491 = vpack.c.b16 %v3244, %v3243
    %v4492 = vpack.c.b16 %v3246, %v3245
    %v4493 = vpack.c.b16 %v3248, %v3247
    %v4494 = vpack.c.b16 %v3250, %v3249
    %v4495 = vpack.c.b16 %v3252, %v3251
    %v4496 = vpack.c.b16 %v3254, %v3253
    %v4497 = vpack.c.b16 %v3256, %v3255
    %v4498 = vpack.c.b16 %v3258, %v3257
    %v4499 = vpack.c.b16 %v3260, %v3259
    %v4500 = vpack.c.b16 %v3262, %v3261
    %v4501 = vpack.c.b16 %v3264, %v3263
    %v4502 = vpack.c.b16 %v3266, %v3265
    %v4503 = vpack.c.b16 %v3268, %v3267
    %v4504 = vpack.c.b16 %v3270, %v3269
    %v4505 = vpack.c.b16 %v3272, %v3271
    %v4506 = vpack.c.b16 %v3274, %v3273
    %v4507 = vpack.c.b16 %v3276, %v3275
    %v4508 = vpack.c.b16 %v3278, %v3277
    %v4509 = vpack.c.b16 %v3280, %v3279
    %v4510 = vpack.c.b16 %v3282, %v3281
    %v4511 = vpack.c.b16 %v3284, %v3283
    %v4512 = vpack.c.b16 %v3286, %v3285
    %v4513 = vpack.c.b16 %v3288, %v3287
    %v4514 = vpack.c.b16 %v3290, %v3289
    %v4515 = vpack.c.b16 %v3292, %v3291
    %v4516 = vpack.c.b16 %v3294, %v3293
    %v4517 = vpack.c.b16 %v3296, %v3295
    %v4518 = vpack.c.b16 %v3298, %v3297
    %v4519 = vpack.c.b16 %v3300, %v3299
    %v4520 = vpack.c.b16 %v3302, %v3301
    %v4521 = vpack.c.b16 %v3304, %v3303
    %v4522 = vpack.c.b16 %v3306, %v3305
    %v4523 = vpack.c.b16 %v3308, %v3307
    %v4524 = vpack.c.b16 %v3310, %v3309
    %v4525 = vpack.c.b16 %v3312, %v3311
    %v4526 = vpack.c.b16 %v3314, %v3313
    %v4527 = vpack.c.b16 %v3316, %v3315
    %v4528 = vpack.c.b16 %v3318, %v3317
    %v4529 = vpack.c.b16 %v3320, %v3319
    %v4530 = vpack.c.b16 %v3322, %v3321
    %v4531 = vpack.c.b16 %v3324, %v3323
    %v4532 = vpack.c.b16 %v3326, %v3325
    %v4533 = vpack.c.b16 %v3328, %v3327
    %v4534 = vpack.c.b16 %v3330, %v3329
    %v4535 = vpack.c.b16 %v3332, %v3331
    %v4536 = vpack.c.b16 %v3334, %v3333
    %v4537 = vpack.c.b16 %v3336, %v3335
    %v4538 = vpack.c.b16 %v3338, %v3337
    %v4539 = vpack.c.b16 %v3340, %v3339
    %v4540 = vpack.c.b16 %v3342, %v3341
    %v4541 = vpack.c.b16 %v3344, %v3343
    %v4542 = vpack.c.b16 %v3346, %v3345
    %v4543 = vpack.c.b16 %v3348, %v3347
    %v4544 = vpack.c.b16 %v3350, %v3349
    %v4545 = vpack.c.b16 %v3352, %v3351
    %v4546 = vpack.c.b16 %v3354, %v3353
    %v4547 = vpack.c.b16 %v3356, %v3355
    %v4548 = vpack.c.b16 %v3358, %v3357
    %v4549 = vpack.c.b16 %v3360, %v3359
    %v4550 = vpack.c.b16 %v3362, %v3361
    %v4551 = vpack.c.b16 %v3364, %v3363
    %v4552 = vpack.c.b16 %v3366, %v3365
    %v4553 = vpack.c.b16 %v3368, %v3367
    %v4554 = vpack.c.b16 %v3370, %v3369
    %v4555 = vpack.c.b16 %v3372, %v3371
    %v4556 = vpack.c.b16 %v3374, %v3373
    %v4557 = vpack.c.b16 %v3376, %v3375
    %v4558 = vpack.c.b16 %v3378, %v3377
    %v4559 = vpack.c.b16 %v3380, %v3379
    %v4560 = vpack.c.b16 %v3382, %v3381
    %v4561 = vpack.c.b16 %v3384, %v3383
    %v4562 = vpack.c.b16 %v3386, %v3385
    %v4563 = vpack.c.b16 %v3388, %v3387
    %v4564 = vpack.c.b16 %v3390, %v3389
    %v4565 = vpack.c.b16 %v3392, %v3391
    %v4566 = vpack.c.b16 %v3394, %v3393
    %v4567 = vpack.c.b16 %v3396, %v3395
    %v4568 = vpack.c.b16 %v3398, %v3397
    %v4569 = vpack.c.b16 %v3400, %v3399
    %v4570 = vpack.c.b16 %v3402, %v3401
    %v4571 = vpack.c.b16 %v3404, %v3403
    %v4572 = vpack.c.b16 %v3406, %v3405
    %v4573 = vpack.c.b16 %v3408, %v3407
    %v4574 = vpack.c.b16 %v3410, %v3409
    %v4575 = vpack.c.b16 %v3412, %v3411
    %v4576 = vpack.c.b16 %v3414, %v3413
    %v4577 = vpack.c.b16 %v3416, %v3415
    %v4578 = vpack.c.b16 %v3418, %v3417
    %v4579 = vpack.c.b16 %v3420, %v3419
    %v4580 = vpack.c.b16 %v3422, %v3421
    %v4581 = vpack.c.b16 %v3424, %v3423
    %v4582 = vpack.c.b16 %v3426, %v3425
    %v4583 = vpack.c.b16 %v3428, %v3427
    %v4584 = vpack.c.b16 %v3430, %v3429
    %v4585 = vpack.c.b16 %v3432, %v3431
    %v4586 = vpack.c.b16 %v3434, %v3433
    %v4587 = vpack.c.b16 %v3436, %v3435
    %v4588 = vpack.c.b16 %v3438, %v3437
    %v4589 = vpack.c.b16 %v3440, %v3439
    %v4590 = vpack.c.b16 %v3442, %v3441
    %v4591 = vpack.c.b16 %v3444, %v3443
    %v4592 = vpack.c.b16 %v3446, %v3445
    %v4593 = vpack.c.b16 %v3448, %v3447
    %v4594 = vpack.c.b16 %v3450, %v3449
    %v4595 = vpack.c.b16 %v3452, %v3451
    %v4596 = vpack.c.b16 %v3454, %v3453
    %v4597 = vpack.c.b16 %v3456, %v3455
    %v4598 = vpack.c.b16 %v3458, %v3457
    %v4599 = vpack.c.b16 %v3460, %v3459
    %v4600 = vpack.c.b16 %v3462, %v3461
    %v4601 = vpack.c.b16 %v3464, %v3463
    %v4602 = vpack.c.b16 %v3466, %v3465
    %v4603 = vpack.c.b16 %v3468, %v3467
    %v4604 = vpack.c.b16 %v3470, %v3469
    %v4605 = vpack.c.b16 %v3472, %v3471
    %v4606 = vpack.c.b16 %v3474, %v3473
    %v4607 = vpack.c.b16 %v3476, %v3475
    %v4608 = vpack.c.b16 %v3478, %v3477
    %v4609 = vpack.c.b16 %v3480, %v3479
    %v4610 = vpack.c.b16 %v3482, %v3481
    %v4611 = vpack.c.b16 %v3484, %v3483
    %v4612 = vpack.c.b16 %v3486, %v3485
    %v4613 = vpack.c.b16 %v3488, %v3487
    %v4614 = vpack.c.b16 %v3490, %v3489
    %v4615 = vpack.c.b16 %v3492, %v3491
    %v4616 = vpack.c.b16 %v3494, %v3493
    %v4617 = vpack.c.b16 %v3496, %v3495
    %v4618 = vpack.c.b16 %v3498, %v3497
    %v4619 = vpack.c.b16 %v3500, %v3499
    %v4620 = vpack.c.b16 %v3502, %v3501
    %v4621 = vpack.c.b16 %v3504, %v3503
    %v4622 = vpack.c.b16 %v3506, %v3505
    %v4623 = vpack.c.b16 %v3508, %v3507
    %v4624 = vpack.c.b16 %v3510, %v3509
    %v4625 = vpack.c.b16 %v3512, %v3511
    %v4626 = vpack.c.b16 %v3514, %v3513
    %v4627 = vpack.c.b16 %v3516, %v3515
    %v4628 = vpack.c.b16 %v3518, %v3517
    %v4629 = vpack.c.b16 %v3520, %v3519
    %v4630 = vpack.c.b16 %v3522, %v3521
    %v4631 = vpack.c.b16 %v3524, %v3523
    %v4632 = vpack.c.b16 %v3526, %v3525
    %v4633 = vpack.c.b16 %v3528, %v3527
    %v4634 = vpack.c.b16 %v3530, %v3529
    %v4635 = vpack.c.b16 %v3532, %v3531
    %v4636 = vpack.c.b16 %v3534, %v3533
    %v4637 = vpack.c.b16 %v3536, %v3535
    %v4638 = vpack.c.b16 %v3538, %v3537
    %v4639 = vpack.c.b16 %v3540, %v3539
    %v4640 = vpack.c.b16 %v3542, %v3541
    %v4641 = vpack.c.b16 %v3544, %v3543
    %v4642 = vpack.c.b16 %v3546, %v3545
    %v4643 = vpack.c.b16 %v3548, %v3547
    %v4644 = vpack.c.b16 %v3550, %v3549
    %v4645 = vpack.c.b16 %v3552, %v3551
    %v4646 = vpack.c.b16 %v3554, %v3553
    %v4647 = vpack.c.b16 %v3556, %v3555
    %v4648 = vpack.c.b16 %v3558, %v3557
    %v4649 = vpack.c.b16 %v3560, %v3559
    %v4650 = vpack.c.b16 %v3562, %v3561
    %v4651 = vpack.c.b16 %v3564, %v3563
    %v4652 = vpack.c.b16 %v3566, %v3565
    %v4653 = vpack.c.b16 %v3568, %v3567
    %v4654 = vpack.c.b16 %v3570, %v3569
    %v4655 = vpack.c.b16 %v3572, %v3571
    %v4656 = vpack.c.b16 %v3574, %v3573
    %v4657 = vpack.c.b16 %v3576, %v3575
    %v4658 = vpack.c.b16 %v3578, %v3577
    %v4659 = vpack.c.b16 %v3580, %v3579
    %v4660 = vpack.c.b16 %v3582, %v3581
    %v4661 = vpack.c.b16 %v3584, %v3583
    %v4662 = vpack.c.b16 %v3586, %v3585
    %v4663 = vpack.c.b16 %v3588, %v3587
    %v4664 = vpack.c.b16 %v3590, %v3589
    %v4665 = vpack.c.b16 %v3592, %v3591
    %v4666 = vpack.c.b16 %v3594, %v3593
    %v4667 = vpack.c.b16 %v3596, %v3595
    %v4668 = vpack.c.b16 %v3598, %v3597
    %v4669 = vpack.c.b16 %v3600, %v3599
    %v4670 = vpack.c.b16 %v3602, %v3601
    %v4671 = vpack.c.b16 %v3604, %v3603
    %v4672 = vpack.c.b16 %v3606, %v3605
    %v4673 = vpack.c.b16 %v3608, %v3607
    %v4674 = vpack.c.b16 %v3610, %v3609
    %v4675 = vpack.c.b16 %v3612, %v3611
    %v4676 = vpack.c.b16 %v3614, %v3613
    %v4677 = vpack.c.b16 %v3616, %v3615
    %v4678 = vpack.c.b16 %v3618, %v3617
    %v4679 = vpack.c.b16 %v3620, %v3619
    %v4680 = vpack.c.b16 %v3622, %v3621
    %v4681 = vpack.c.b16 %v3624, %v3623
    %v4682 = vpack.c.b16 %v3626, %v3625
    %v4683 = vpack.c.b16 %v3628, %v3627
    %v4684 = vpack.c.b16 %v3630, %v3629
    %v4685 = vpack.c.b16 %v3632, %v3631
    %v4686 = vpack.c.b16 %v3634, %v3633
    %v4687 = vpack.c.b16 %v3636, %v3635
    %v4688 = vpack.c.b16 %v3638, %v3637
    %v4689 = vpack.c.b16 %v3640, %v3639
    %v4690 = vpack.c.b16 %v3642, %v3641
    %v4691 = vpack.c.b16 %v3644, %v3643
    %v4692 = vpack.c.b16 %v3646, %v3645
    %v4693 = vpack.c.b16 %v3648, %v3647
    %v4694 = vpack.c.b16 %v3650, %v3649
    %v4695 = vpack.c.b16 %v3652, %v3651
    %v4696 = vpack.c.b16 %v3654, %v3653
    %v4697 = vpack.c.b16 %v3656, %v3655
    %v4698 = vpack.c.b16 %v3658, %v3657
    %v4699 = vpack.c.b16 %v3660, %v3659
    %v4700 = vpack.c.b16 %v3662, %v3661
    %v4701 = vpack.c.b16 %v3664, %v3663
    %v4702 = vpack.c.b16 %v3666, %v3665
    %v4703 = vpack.c.b16 %v3668, %v3667
    %v4704 = vpack.c.b16 %v3670, %v3669
    %v4705 = vpack.c.b16 %v3672, %v3671
    %v4706 = vpack.c.b16 %v3674, %v3673
    %v4707 = vpack.c.b16 %v3676, %v3675
    %v4708 = vpack.c.b16 %v3678, %v3677
    %v4709 = vpack.c.b16 %v3680, %v3679
    %v4710 = vpack.c.b16 %v3682, %v3681
    %v4711 = vpack.c.b16 %v3684, %v3683
    %v4712 = vpack.c.b16 %v3686, %v3685
    %v4713 = vpack.c.b16 %v3688, %v3687
    %v4714 = vpack.c.b16 %v3690, %v3689
    %v4715 = vpack.c.b16 %v3692, %v3691
    %v4716 = vpack.c.b16 %v3694, %v3693
    %v4717 = vpack.c.b16 %v3696, %v3695
    %v4718 = vpack.c.b16 %v3698, %v3697
    %v4719 = vpack.c.b16 %v3700, %v3699
    %v4720 = vpack.c.b16 %v3702, %v3701
    %v4721 = vpack.c.b16 %v3704, %v3703
    %v4722 = vpack.c.b16 %v3706, %v3705
    %v4723 = vpack.c.b16 %v3708, %v3707
    %v4724 = vpack.c.b16 %v3710, %v3709
    %v4725 = vpack.c.b16 %v3712, %v3711
    %v4726 = vpack.c.b16 %v3714, %v3713
    %v4727 = vpack.c.b16 %v3716, %v3715
    %v4728 = vpack.c.b16 %v3718, %v3717
    %v4729 = vpack.c.b16 %v3720, %v3719
    %v4730 = vpack.c.b16 %v3722, %v3721
    %v4731 = vpack.c.b16 %v3724, %v3723
    %v4732 = vpack.c.b16 %v3726, %v3725
    %v4733 = vpack.c.b16 %v3728, %v3727
    %v4734 = vpack.c.b16 %v3730, %v3729
    %v4735 = vpack.c.b16 %v3732, %v3731
    %v4736 = vpack.c.b16 %v3734, %v3733
    %v4737 = vpack.c.b16 %v3736, %v3735
    %v4738 = vpack.c.b16 %v3738, %v3737
    %v4739 = vpack.c.b16 %v3740, %v3739
    %v4740 = vpack.c.b16 %v3742, %v3741
    %v4741 = vpack.c.b16 %v3744, %v3743
    %v4742 = vpack.c.b16 %v3746, %v3745
    %v4743 = vpack.c.b16 %v3748, %v3747
    %v4744 = vpack.c.b16 %v3750, %v3749
    %v4745 = vpack.c.b16 %v3752, %v3751
    %v4746 = vpack.c.b16 %v3754, %v3753
    %v4747 = vpack.c.b16 %v3756, %v3755
    %v4748 = vpack.c.b16 %v3758, %v3757
    %v4749 = vpack.c.b16 %v3760, %v3759
    %v4750 = vpack.c.b16 %v3762, %v3761
    %v4751 = vpack.c.b16 %v3764, %v3763
    %v4752 = vpack.c.b16 %v3766, %v3765
    %v4753 = vpack.c.b16 %v3768, %v3767
    %v4754 = vpack.c.b16 %v3770, %v3769
    %v4755 = vpack.c.b16 %v3772, %v3771
    %v4756 = vpack.c.b16 %v3774, %v3773
    %v4757 = vpack.c.b16 %v3776, %v3775
    %v4758 = vpack.c.b16 %v3778, %v3777
    %v4759 = vpack.c.b16 %v3780, %v3779
    %v4760 = vpack.c.b16 %v3782, %v3781
    %v4761 = vpack.c.b16 %v3784, %v3783
    %v4762 = vpack.c.b16 %v3786, %v3785
    %v4763 = vpack.c.b16 %v3788, %v3787
    %v4764 = vpack.c.b16 %v3790, %v3789
    %v4765 = vpack.c.b16 %v3792, %v3791
    %v4766 = vpack.c.b16 %v3794, %v3793
    %v4767 = vpack.c.b16 %v3796, %v3795
    %v4768 = vpack.c.b16 %v3798, %v3797
    %v4769 = vpack.c.b16 %v3800, %v3799
    %v4770 = vpack.c.b16 %v3802, %v3801
    %v4771 = vpack.c.b16 %v3804, %v3803
    %v4772 = vpack.c.b16 %v3806, %v3805
    %v4773 = vpack.c.b16 %v3808, %v3807
    %v4774 = vpack.c.b16 %v3810, %v3809
    %v4775 = vpack.c.b16 %v3812, %v3811
    %v4776 = vpack.c.b16 %v3814, %v3813
    %v4777 = vpack.c.b16 %v3816, %v3815
    %v4778 = vpack.c.b16 %v3818, %v3817
    %v4779 = vpack.c.b16 %v3820, %v3819
    %v4780 = vpack.c.b16 %v3822, %v3821
    %v4781 = vpack.c.b16 %v3824, %v3823
    %v4782 = vpack.c.b16 %v3826, %v3825
    %v4783 = vpack.c.b16 %v3828, %v3827
    %v4784 = vpack.c.b16 %v3830, %v3829
    %v4785 = vpack.c.b16 %v3832, %v3831
    %v4786 = vpack.c.b16 %v3834, %v3833
    %v4787 = vpack.c.b16 %v3836, %v3835
    %v4788 = vpack.c.b16 %v3838, %v3837
    %v4789 = vpack.c.b16 %v3840, %v3839
    %v4790 = vpack.c.b16 %v3842, %v3841
    %v4791 = vpack.c.b16 %v3844, %v3843
    %v4792 = vpack.c.b16 %v3846, %v3845
    %v4793 = vpack.c.b16 %v3848, %v3847
    %v4794 = vpack.c.b16 %v3850, %v3849
    %v4795 = vpack.c.b16 %v3852, %v3851
    %v4796 = vpack.c.b16 %v3854, %v3853
    %v4797 = vpack.c.b16 %v3856, %v3855
    %v4798 = vpack.c.b16 %v3858, %v3857
    %v4799 = vpack.c.b16 %v3860, %v3859
    %v4800 = vpack.c.b16 %v3862, %v3861
    %v4801 = vpack.c.b16 %v3864, %v3863
    %v4802 = vpack.c.b16 %v3866, %v3865
    %v4803 = vpack.c.b16 %v3868, %v3867
    %v4804 = vpack.c.b16 %v3870, %v3869
    %v4805 = vpack.c.b16 %v3872, %v3871
    %v4806 = vpack.c.b16 %v3874, %v3873
    %v4807 = vpack.c.b16 %v3876, %v3875
    %v4808 = vpack.c.b16 %v3878, %v3877
    %v4809 = vpack.c.b16 %v3880, %v3879
    %v4810 = vpack.c.b16 %v3882, %v3881
    %v4811 = vpack.c.b16 %v3884, %v3883
    %v4812 = vpack.c.b16 %v3886, %v3885
    %v4813 = vpack.c.b16 %v3888, %v3887
    %v4814 = vpack.c.b16 %v3890, %v3889
    %v4815 = vpack.c.b16 %v3892, %v3891
    %v4816 = vpack.c.b16 %v3894, %v3893
    %v4817 = vpack.c.b16 %v3896, %v3895
    %v4818 = vpack.c.b16 %v3898, %v3897
    %v4819 = vpack.c.b16 %v3900, %v3899
    %v4820 = vpack.c.b16 %v3902, %v3901
    %v4821 = vpack.c.b16 %v3904, %v3903
    %v4822 = vpack.c.b16 %v3906, %v3905
    %v4823 = vpack.c.b16 %v3908, %v3907
    %v4824 = vpack.c.b16 %v3910, %v3909
    %v4825 = vpack.c.b16 %v3912, %v3911
    %v4826 = vpack.c.b16 %v3914, %v3913
    %v4827 = vpack.c.b16 %v3916, %v3915
    %v4828 = vpack.c.b16 %v3918, %v3917
    %v4829 = vpack.c.b16 %v3920, %v3919
    %v4830 = vpack.c.b16 %v3922, %v3921
    %v4831 = vpack.c.b16 %v3924, %v3923
    %v4832 = vpack.c.b16 %v3926, %v3925
    %v4833 = vpack.c.b16 %v3928, %v3927
    %v4834 = vpack.c.b16 %v3930, %v3929
    %v4835 = vpack.c.b16 %v3932, %v3931
    %v4836 = vpack.c.b16 %v3934, %v3933
    %v4837 = vpack.c.b16 %v3936, %v3935
    %v4838 = vpack.c.b16 %v3938, %v3937
    %v4839 = vpack.c.b16 %v3940, %v3939
    %v4840 = vpack.c.b16 %v3942, %v3941
    %v4841 = vpack.c.b16 %v3944, %v3943
    %v4842 = vpack.c.b16 %v3946, %v3945
    %v4843 = vpack.c.b16 %v3948, %v3947
    %v4844 = vpack.c.b16 %v3950, %v3949
    %v4845 = vpack.c.b16 %v3952, %v3951
    %v4846 = vpack.c.b16 %v3954, %v3953
    %v4847 = vpack.c.b16 %v3956, %v3955
    %v4848 = vpack.c.b16 %v3958, %v3957
    %v4849 = vpack.c.b16 %v3960, %v3959
    %v4850 = vpack.c.b16 %v3962, %v3961
    %v4851 = vpack.c.b16 %v3964, %v3963
    %v4852 = vpack.c.b16 %v3966, %v3965
    %v4853 = vpack.c.b16 %v3968, %v3967
    %v4854 = vpack.c.b16 %v3970, %v3969
    %v4855 = vpack.c.b16 %v3972, %v3971
    %v4856 = vpack.c.b16 %v3974, %v3973
    %v4857 = vpack.c.b16 %v3976, %v3975
    %v4858 = vpack.c.b16 %v3978, %v3977
    %v4859 = vpack.c.b16 %v3980, %v3979
    %v4860 = vpack.c.b16 %v3982, %v3981
    %v4861 = vpack.c.b16 %v3984, %v3983
    %v4862 = vpack.c.b16 %v3986, %v3985
    %v4863 = vpack.c.b16 %v3988, %v3987
    %v4864 = vpack.c.b16 %v3990, %v3989
    %v4865 = vpack.c.b16 %v3992, %v3991
    %v4866 = vpack.c.b16 %v3994, %v3993
    %v4867 = vpack.c.b16 %v3996, %v3995
    %v4868 = vpack.c.b16 %v3998, %v3997
    %v4869 = vpack.c.b16 %v4000, %v3999
    %v4870 = vpack.c.b16 %v4002, %v4001
    %v4871 = vpack.c.b16 %v4004, %v4003
    %v4872 = vpack.c.b16 %v4006, %v4005
    %v4873 = vpack.c.b16 %v4008, %v4007
    %v4874 = vpack.c.b16 %v4010, %v4009
    %v4875 = vpack.c.b16 %v4012, %v4011
    %v4876 = vpack.c.b16 %v4014, %v4013
    %v4877 = vpack.c.b16 %v4016, %v4015
    %v4878 = vpack.c.b16 %v4018, %v4017
    %v4879 = vpack.c.b16 %v4020, %v4019
    %v4880 = vpack.c.b16 %v4022, %v4021
    %v4881 = vpack.c.b16 %v4024, %v4023
    %v4882 = vpack.c.b16 %v4026, %v4025
    %v4883 = vpack.c.b16 %v4028, %v4027
    %v4884 = vpack.c.b16 %v4030, %v4029
    %v4885 = vpack.c.b16 %v4032, %v4031
    %v4886 = vpack.c.b16 %v4034, %v4033
    %v4887 = vpack.c.b16 %v4036, %v4035
    %v4888 = vpack.c.b16 %v4038, %v4037
    %v4889 = vpack.c.b16 %v4040, %v4039
    %v4890 = vpack.c.b16 %v4042, %v4041
    %v4891 = vpack.c.b16 %v4044, %v4043
    %v4892 = vpack.c.b16 %v4046, %v4045
    %v4893 = vpack.c.b16 %v4048, %v4047
    %v4894 = vpack.c.b16 %v4050, %v4049
    %v4895 = vpack.c.b16 %v4052, %v4051
    %v4896 = vpack.c.b16 %v4054, %v4053
    %v4897 = vpack.c.b16 %v4056, %v4055
    %v4898 = vpack.c.b16 %v4058, %v4057
    %v4899 = vpack.c.b16 %v4060, %v4059
    %v4900 = vpack.c.b16 %v4062, %v4061
    %v4901 = vpack.c.b16 %v4064, %v4063
    %v4902 = vpack.c.b16 %v4066, %v4065
    %v4903 = vpack.c.b16 %v4068, %v4067
    %v4904 = vpack.c.b16 %v4070, %v4069
    %v4905 = vpack.c.b16 %v4072, %v4071
    %v4906 = vpack.c.b16 %v4074, %v4073
    %v4907 = vpack.c.b16 %v4076, %v4075
    %v4908 = vpack.c.b16 %v4078, %v4077
    %v4909 = vpack.c.b16 %v4080, %v4079
    %v4910 = vpack.c.b16 %v4082, %v4081
    %v4911 = vpack.c.b16 %v4084, %v4083
    %v4912 = vpack.c.b16 %v4086, %v4085
    %v4913 = vpack.c.b16 %v4088, %v4087
    %v4914 = vpack.c.b16 %v4090, %v4089
    %v4915 = vpack.c.b16 %v4092, %v4091
    %v4916 = vpack.c.b16 %v4094, %v4093
    %v4917 = vpack.c.b16 %v4096, %v4095
    %v4918 = vpack.c.b16 %v4098, %v4097
    %v4919 = vpack.c.b16 %v4100, %v4099
    %v4920 = vpack.c.b16 %v4102, %v4101
    %v4921 = vpack.c.b16 %v4104, %v4103
    %v4922 = vpack.c.b16 %v4106, %v4105
    %v4923 = vpack.c.b16 %v4108, %v4107
    %v4924 = vpack.c.b16 %v4110, %v4109
    %v4925 = vpack.c.b16 %v4112, %v4111
    %v4926 = vpack.c.b16 %v4114, %v4113
    %v4927 = vpack.c.b16 %v4116, %v4115
    %v4928 = vpack.c.b16 %v4118, %v4117
    %v4929 = vpack.c.b16 %v4120, %v4119
    %v4930 = vpack.c.b16 %v4122, %v4121
    %v4931 = vpack.c.b16 %v4124, %v4123
    %v4932 = vpack.c.b16 %v4126, %v4125
    %v4933 = vpack.c.b16 %v4128, %v4127
    %v4934 = vpack.c.b16 %v4130, %v4129
    %v4935 = vpack.c.b16 %v4132, %v4131
    %v4936 = vpack.c.b16 %v4134, %v4133
    %v4937 = vpack.c.b16 %v4136, %v4135
    %v4938 = vpack.c.b16 %v4138, %v4137
    %v4939 = vpack.c.b16 %v4140, %v4139
    %v4940 = vpack.c.b16 %v4142, %v4141
    %v4941 = vpack.c.b16 %v4144, %v4143
    %v4942 = vpack.c.b16 %v4146, %v4145
    %v4943 = vpack.c.b16 %v4148, %v4147
    %v4944 = vpack.c.b16 %v4150, %v4149
    %v4945 = vpack.c.b16 %v4152, %v4151
    %v4946 = vpack.c.b16 %v4154, %v4153
    %v4947 = vpack.c.b16 %v4156, %v4155
    %v4948 = vpack.c.b16 %v4158, %v4157
    %v4949 = vpack.c.b16 %v4160, %v4159
    %v4950 = vpack.c.b16 %v4162, %v4161
    %v4951 = vpack.c.b16 %v4164, %v4163
    %v4952 = vpack.c.b16 %v4166, %v4165
    %v4953 = vpack.c.b16 %v4168, %v4167
    %v4954 = vpack.c.b16 %v4170, %v4169
    %v4955 = vpack.c.b16 %v4172, %v4171
    %v4956 = vpack.c.b16 %v4174, %v4173
    %v4957 = vpack.c.b16 %v4176, %v4175
    %v4958 = vpack.c.b16 %v4178, %v4177
    %v4959 = vpack.c.b16 %v4180, %v4179
    %v4960 = vpack.c.b16 %v4182, %v4181
    %v4961 = vpack.c.b16 %v4184, %v4183
    %v4962 = vpack.c.b16 %v4186, %v4185
    %v4963 = vpack.c.b16 %v4188, %v4187
    %v4964 = vpack.c.b16 %v4190, %v4189
    %v4965 = vpack.c.b16 %v4192, %v4191
    %v4966 = vpack.c.b16 %v4194, %v4193
    %v4967 = vpack.c.b16 %v4196, %v4195
    %v4968 = vpack.c.b16 %v4198, %v4197
    %v4969 = vpack.c.b16 %v4200, %v4199
    %v4970 = vpack.c.b16 %v4202, %v4201
    %v4971 = vpack.c.b16 %v4204, %v4203
    %v4972 = vpack.c.b16 %v4206, %v4205
    %v4973 = vpack.c.b16 %v4208, %v4207
    %v4974 = vpack.c.b16 %v4210, %v4209
    %v4975 = vpack.c.b16 %v4212, %v4211
    %v4976 = vpack.c.b16 %v4214, %v4213
    %v4977 = vpack.c.b16 %v4216, %v4215
    %v4978 = vpack.c.b16 %v4218, %v4217
    %v4979 = vpack.c.b16 %v4220, %v4219
    %v4980 = vpack.c.b16 %v4222, %v4221
    %v4981 = vpack.c.b16 %v4224, %v4223
    %v4982 = vpack.c.b16 %v4226, %v4225
    %v4983 = vpack.c.b16 %v4228, %v4227
    %v4984 = vpack.c.b16 %v4230, %v4229
    %v4985 = vpack.c.b16 %v4232, %v4231
    %v4986 = vpack.c.b16 %v4234, %v4233
    %v4987 = vpack.c.b16 %v4236, %v4235
    %v4988 = vpack.c.b16 %v4238, %v4237
    %v4989 = vpack.c.b16 %v4240, %v4239
    %v4990 = vpack.c.b16 %v4242, %v4241
    %v4991 = vpack.c.b16 %v4244, %v4243
    %v4992 = vpack.c.b16 %v4246, %v4245
    %v4993 = vpack.c.b16 %v4248, %v4247
    %v4994 = vpack.c.b16 %v4250, %v4249
    %v4995 = vpack.c.b16 %v4252, %v4251
    %v4996 = vpack.c.b16 %v4254, %v4253
    %v4997 = vpack.c.b16 %v4256, %v4255
    %v4998 = vpack.c.b16 %v4258, %v4257
    %v4999 = vpack.c.b16 %v4260, %v4259
    %v5000 = vpack.c.b16 %v4262, %v4261
    %v5001 = vpack.c.b16 %v4264, %v4263
    %v5002 = vpack.c.b16 %v4266, %v4265
    %v5003 = vpack.c.b16 %v4268, %v4267
    %v5004 = vpack.c.b16 %v4270, %v4269
    %v5005 = vpack.c.b16 %v4272, %v4271
    %v5006 = vpack.c.b16 %v4274, %v4273
    %v5007 = vpack.c.b16 %v4276, %v4275
    %v5008 = vpack.c.b16 %v4278, %v4277
    %v5009 = vpack.c.b16 %v4280, %v4279
    %v5010 = vpack.c.b16 %v4282, %v4281
    %v5011 = vpack.c.b16 %v4284, %v4283
    %v5012 = vpack.c.b16 %v4286, %v4285
    %v5013 = vpack.c.b16 %v4288, %v4287
    %v5014 = vpack.c.b16 %v4290, %v4289
    %v5015 = vpack.c.b16 %v4292, %v4291
    %v5016 = vpack.c.b16 %v4294, %v4293
    %v5017 = vpack.c.b16 %v4296, %v4295
    %v5018 = vpack.c.b16 %v4298, %v4297
    %v5019 = vpack.c.b16 %v4300, %v4299
    %v5020 = vpack.c.b16 %v4302, %v4301
    %v5021 = vpack.c.b16 %v4304, %v4303
    %v5022 = vpack.c.b16 %v4306, %v4305
    %v5023 = vpack.c.b16 %v4308, %v4307
    %v5024 = vpack.c.b16 %v4310, %v4309
    %v5025 = vpack.c.b16 %v4312, %v4311
    %v5026 = vpack.c.b16 %v4314, %v4313
    %v5027 = vpack.c.b16 %v4316, %v4315
    %v5028 = vpack.c.b16 %v4318, %v4317
    %v5029 = vpack.c.b16 %v4320, %v4319
    %v5030 = vpack.c.b16 %v4322, %v4321
    %v5031 = vpack.c.b16 %v4324, %v4323
    %v5032 = vpack.c.b16 %v4326, %v4325
    %v5033 = vpack.c.b16 %v4328, %v4327
    %v5034 = vpack.c.b16 %v4330, %v4329
    %v5035 = vpack.c.b16 %v4332, %v4331
    %v5036 = vpack.c.b16 %v4334, %v4333
    %v5037 = vpack.c.b16 %v4336, %v4335
    %v5038 = vpack.c.b16 %v4338, %v4337
    %v5039 = vpack.c.b16 %v4340, %v4339
    %v5040 = vpack.c.b16 %v4342, %v4341
    %v5041 = vpack.c.b16 %v4344, %v4343
    %v5042 = vpack.c.b16 %v4346, %v4345
    %v5043 = vpack.c.b16 %v4348, %v4347
    %v5044 = vpack.c.b16 %v4350, %v4349
    %v5045 = vpack.c.b16 %v4352, %v4351
    %v5046 = vpack.c.b16 %v4354, %v4353
    %v5047 = vpack.c.b16 %v4356, %v4355
    %v5048 = vpack.c.b16 %v4358, %v4357
    %v5049 = vpack.c.b16 %v4360, %v4359
    %v5050 = vpack.c.b16 %v4362, %v4361
    %v5051 = vpack.c.b16 %v4364, %v4363
    %v5052 = vpack.c.b16 %v4366, %v4365
    %v5053 = vpack.c.b16 %v4368, %v4367
    %v5054 = vpack.c.b16 %v4370, %v4369
    %v5055 = vpack.c.b16 %v4372, %v4371
    %v5056 = vpack.c.b16 %v4374, %v4373
    %v5057 = vpack.c.b16 %v4376, %v4375
    %v5058 = vpack.c.b16 %v4378, %v4377
    %v5059 = vpack.c.b16 %v4380, %v4379
    %v5060 = vpack.c.b16 %v4382, %v4381
    %v5061 = vpack.c.b16 %v4384, %v4383
    %v5062 = vpack.c.b16 %v4386, %v4385
    %v5063 = vpack.c.b16 %v4388, %v4387
    %v5064 = vpack.c.b16 %v4390, %v4389
    %v5065 = vpack.c.b16 %v4392, %v4391
    %v5066 = vpack.c.b16 %v4394, %v4393
    %v5067 = vpack.c.b16 %v4396, %v4395
    %v5068 = vpack.c.b16 %v4398, %v4397
    %v5069 = vpack.c.b16 %v4400, %v4399
    %v5070 = vpack.c.b16 %v4402, %v4401
    %v5071 = vpack.c.b16 %v4404, %v4403
    %v5072 = vpack.c.b16 %v4406, %v4405
    %v5073 = vpack.c.b16 %v4408, %v4407
    %v5074 = vpack.c.b16 %v4410, %v4409
    %v5075 = vpack.c.b16 %v4412, %v4411
    %v5076 = vpack.c.b16 %v4414, %v4413
    %v5077 = vpack.c.b16 %v4416, %v4415
    %v5078 = vpack.c.b16 %v4418, %v4417
    %v5079 = vpack.c.b16 %v4420, %v4419
    %v5080 = vpack.c.b16 %v4422, %v4421
    %v5081 = vpack.c.b16 %v4424, %v4423
    %v5082 = vpack.c.b16 %v4426, %v4425
    %v5083 = vpack.c.b16 %v4428, %v4427
    %v5084 = vpack.c.b16 %v4430, %v4429
    %v5085 = vpack.c.b16 %v4432, %v4431
    %v5086 = vpack.c.b16 %v4434, %v4433
    %v5087 = vpack.c.b16 %v4436, %v4435
    %v5088 = vpack.c.b16 %v4438, %v4437
    %v5089 = vpack.c.b16 %v4440, %v4439
    %v5090 = vpack.c.b16 %v4442, %v4441
    %v5091 = vpack.c.b16 %v4444, %v4443
    %v5092 = vpack.c.b16 %v4446, %v4445
    %v5093 = vpack.c.b16 %v4448, %v4447
    %v5094 = vpack.c.b16 %v4450, %v4449
    %v5095 = vpack.c.b16 %v4452, %v4451
    %v5096 = vpack.c.b16 %v4454, %v4453
    %v5097 = vpack.c.b16 %v4456, %v4455
    %v5098 = vpack.c.b16 %v4458, %v4457
    %5739 = vmatprep.subr.bf16.mxu0 0
    %5740 = vmatpush1.bf16.msra.mxu0 %v4466
    %5741 = vmatprep.subr.bf16.mxu0 0
    %5742 = vmatpush1.bf16.msra.mxu0 %v4465
    %5743 = vmatprep.subr.bf16.mxu0 0
    %5744 = vmatpush1.bf16.msra.mxu0 %v4464
    %5745 = vmatprep.subr.bf16.mxu0 0
    %5746 = vmatpush1.bf16.msra.mxu0 %v4463
    %5747 = vmatprep.subr.bf16.mxu0 0
    %5748 = vmatpush1.bf16.msra.mxu0 %v4462
    %5749 = vmatprep.subr.bf16.mxu0 0
    %5750 = vmatpush1.bf16.msra.mxu0 %v4461
    %5751 = vmatprep.subr.bf16.mxu0 0
    %5752 = vmatpush1.bf16.msra.mxu0 %v4460
    %5753 = vmatprep.subr.bf16.mxu0 0
    %5754 = vmatpush1.bf16.msra.mxu0 %v4459
    %5755 = vmatprep.subr.bf16.mxu0 0
    %5756 = vmatpush2.bf16.msra.mxu0 %v4474
    %5757 = vmatprep.subr.bf16.mxu0 0
    %5758 = vmatpush2.bf16.msra.mxu0 %v4473
    %5759 = vmatprep.subr.bf16.mxu0 0
    %5760 = vmatpush2.bf16.msra.mxu0 %v4472
    %5761 = vmatprep.subr.bf16.mxu0 0
    %5762 = vmatpush2.bf16.msra.mxu0 %v4471
    %5763 = vmatprep.subr.bf16.mxu0 0
    %5764 = vmatpush2.bf16.msra.mxu0 %v4470
    %5765 = vmatprep.subr.bf16.mxu0 0
    %5766 = vmatpush2.bf16.msra.mxu0 %v4469
    %5767 = vmatprep.subr.bf16.mxu0 0
    %5768 = vmatpush2.bf16.msra.mxu0 %v4468
    %5769 = vmatprep.subr.bf16.mxu0 0
    %5770 = vmatpush2.bf16.msra.mxu0 %v4467
    %5771 = vmatprep.mubr.bf16.mxu0 %v1366
    %5772 = vmatmul.mubr.bf16.gmra.mxu0 %v1352
    %v5773 = vpop.f32.mrf.mxu0
    %v5774 = vadd.f32 %v1317, %v5773
    %v5775 = vpop.f32.mrf.mxu0
    %v5776 = vpop.f32.mrf.mxu0
    %v5777 = vpop.f32.mrf.mxu0
    %5778 = vdwg.mxu0
    %5779 = vmatprep.subr.bf16.mxu0 0
    %5780 = vmatpush1.bf16.msra.mxu0 %v4482
    %5781 = vmatprep.subr.bf16.mxu0 0
    %5782 = vmatpush1.bf16.msra.mxu0 %v4481
    %5783 = vmatprep.subr.bf16.mxu0 0
    %5784 = vmatpush1.bf16.msra.mxu0 %v4480
    %5785 = vmatprep.subr.bf16.mxu0 0
    %5786 = vmatpush1.bf16.msra.mxu0 %v4479
    %5787 = vmatprep.subr.bf16.mxu0 0
    %5788 = vmatpush1.bf16.msra.mxu0 %v4478
    %5789 = vmatprep.subr.bf16.mxu0 0
    %5790 = vmatpush1.bf16.msra.mxu0 %v4477
    %5791 = vmatprep.subr.bf16.mxu0 0
    %5792 = vmatpush1.bf16.msra.mxu0 %v4476
    %5793 = vmatprep.subr.bf16.mxu0 0
    %5794 = vmatpush1.bf16.msra.mxu0 %v4475
    %5795 = vmatprep.subr.bf16.mxu0 0
    %5796 = vmatpush2.bf16.msra.mxu0 %v4490
    %5797 = vmatprep.subr.bf16.mxu0 0
    %5798 = vmatpush2.bf16.msra.mxu0 %v4489
    %5799 = vmatprep.subr.bf16.mxu0 0
    %5800 = vmatpush2.bf16.msra.mxu0 %v4488
    %5801 = vmatprep.subr.bf16.mxu0 0
    %5802 = vmatpush2.bf16.msra.mxu0 %v4487
    %5803 = vmatprep.subr.bf16.mxu0 0
    %5804 = vmatpush2.bf16.msra.mxu0 %v4486
    %5805 = vmatprep.subr.bf16.mxu0 0
    %5806 = vmatpush2.bf16.msra.mxu0 %v4485
    %5807 = vmatprep.subr.bf16.mxu0 0
    %5808 = vmatpush2.bf16.msra.mxu0 %v4484
    %5809 = vmatprep.subr.bf16.mxu0 0
    %5810 = vmatpush2.bf16.msra.mxu0 %v4483
    %5811 = vmatprep.mubr.bf16.mxu0 %v1376
    %5812 = vmatmul.mubr.bf16.gmra.mxu0 %v1374
    %v5813 = vpop.f32.mrf.mxu0
    %v5814 = vadd.f32 %v5774, %v5813
    %v5815 = vpop.f32.mrf.mxu0
    %v5816 = vpop.f32.mrf.mxu0
    %v5817 = vpop.f32.mrf.mxu0
    %5818 = vdwg.mxu0
    %5819 = vmatprep.subr.bf16.mxu0 0
    %5820 = vmatpush1.bf16.msra.mxu0 %v4498
    %5821 = vmatprep.subr.bf16.mxu0 0
    %5822 = vmatpush1.bf16.msra.mxu0 %v4497
    %5823 = vmatprep.subr.bf16.mxu0 0
    %5824 = vmatpush1.bf16.msra.mxu0 %v4496
    %5825 = vmatprep.subr.bf16.mxu0 0
    %5826 = vmatpush1.bf16.msra.mxu0 %v4495
    %5827 = vmatprep.subr.bf16.mxu0 0
    %5828 = vmatpush1.bf16.msra.mxu0 %v4494
    %5829 = vmatprep.subr.bf16.mxu0 0
    %5830 = vmatpush1.bf16.msra.mxu0 %v4493
    %5831 = vmatprep.subr.bf16.mxu0 0
    %5832 = vmatpush1.bf16.msra.mxu0 %v4492
    %5833 = vmatprep.subr.bf16.mxu0 0
    %5834 = vmatpush1.bf16.msra.mxu0 %v4491
    %5835 = vmatprep.subr.bf16.mxu0 0
    %5836 = vmatpush2.bf16.msra.mxu0 %v4506
    %5837 = vmatprep.subr.bf16.mxu0 0
    %5838 = vmatpush2.bf16.msra.mxu0 %v4505
    %5839 = vmatprep.subr.bf16.mxu0 0
    %5840 = vmatpush2.bf16.msra.mxu0 %v4504
    %5841 = vmatprep.subr.bf16.mxu0 0
    %5842 = vmatpush2.bf16.msra.mxu0 %v4503
    %5843 = vmatprep.subr.bf16.mxu0 0
    %5844 = vmatpush2.bf16.msra.mxu0 %v4502
    %5845 = vmatprep.subr.bf16.mxu0 0
    %5846 = vmatpush2.bf16.msra.mxu0 %v4501
    %5847 = vmatprep.subr.bf16.mxu0 0
    %5848 = vmatpush2.bf16.msra.mxu0 %v4500
    %5849 = vmatprep.subr.bf16.mxu0 0
    %5850 = vmatpush2.bf16.msra.mxu0 %v4499
    %5851 = vmatprep.mubr.bf16.mxu0 %v1373
    %5852 = vmatmul.mubr.bf16.gmra.mxu0 %v1359
    %v5853 = vpop.f32.mrf.mxu0
    %v5854 = vadd.f32 %v5814, %v5853
    %v5855 = vpop.f32.mrf.mxu0
    %v5856 = vpop.f32.mrf.mxu0
    %v5857 = vpop.f32.mrf.mxu0
    %5858 = vdwg.mxu0
    %5859 = vmatprep.subr.bf16.mxu0 0
    %5860 = vmatpush1.bf16.msra.mxu0 %v4514
    %5861 = vmatprep.subr.bf16.mxu0 0
    %5862 = vmatpush1.bf16.msra.mxu0 %v4513
    %5863 = vmatprep.subr.bf16.mxu0 0
    %5864 = vmatpush1.bf16.msra.mxu0 %v4512
    %5865 = vmatprep.subr.bf16.mxu0 0
    %5866 = vmatpush1.bf16.msra.mxu0 %v4511
    %5867 = vmatprep.subr.bf16.mxu0 0
    %5868 = vmatpush1.bf16.msra.mxu0 %v4510
    %5869 = vmatprep.subr.bf16.mxu0 0
    %5870 = vmatpush1.bf16.msra.mxu0 %v4509
    %5871 = vmatprep.subr.bf16.mxu0 0
    %5872 = vmatpush1.bf16.msra.mxu0 %v4508
    %5873 = vmatprep.subr.bf16.mxu0 0
    %5874 = vmatpush1.bf16.msra.mxu0 %v4507
    %5875 = vmatprep.subr.bf16.mxu0 0
    %5876 = vmatpush2.bf16.msra.mxu0 %v4522
    %5877 = vmatprep.subr.bf16.mxu0 0
    %5878 = vmatpush2.bf16.msra.mxu0 %v4521
    %5879 = vmatprep.subr.bf16.mxu0 0
    %5880 = vmatpush2.bf16.msra.mxu0 %v4520
    %5881 = vmatprep.subr.bf16.mxu0 0
    %5882 = vmatpush2.bf16.msra.mxu0 %v4519
    %5883 = vmatprep.subr.bf16.mxu0 0
    %5884 = vmatpush2.bf16.msra.mxu0 %v4518
    %5885 = vmatprep.subr.bf16.mxu0 0
    %5886 = vmatpush2.bf16.msra.mxu0 %v4517
    %5887 = vmatprep.subr.bf16.mxu0 0
    %5888 = vmatpush2.bf16.msra.mxu0 %v4516
    %5889 = vmatprep.subr.bf16.mxu0 0
    %5890 = vmatpush2.bf16.msra.mxu0 %v4515
    %5891 = vmatprep.mubr.bf16.mxu0 %v1377
    %5892 = vmatmul.mubr.bf16.gmra.mxu0 %v1375
    %v5893 = vpop.f32.mrf.mxu0
    %v5894 = vadd.f32 %v5854, %v5893
    %v5895 = vpop.f32.mrf.mxu0
    %v5896 = vpop.f32.mrf.mxu0
    %v5897 = vpop.f32.mrf.mxu0
    %5898 = vdwg.mxu0
    %5899 = vmatprep.subr.bf16.mxu0 0
    %5900 = vmatpush1.bf16.msra.mxu0 %v4530
    %5901 = vmatprep.subr.bf16.mxu0 0
    %5902 = vmatpush1.bf16.msra.mxu0 %v4529
    %5903 = vmatprep.subr.bf16.mxu0 0
    %5904 = vmatpush1.bf16.msra.mxu0 %v4528
    %5905 = vmatprep.subr.bf16.mxu0 0
    %5906 = vmatpush1.bf16.msra.mxu0 %v4527
    %5907 = vmatprep.subr.bf16.mxu0 0
    %5908 = vmatpush1.bf16.msra.mxu0 %v4526
    %5909 = vmatprep.subr.bf16.mxu0 0
    %5910 = vmatpush1.bf16.msra.mxu0 %v4525
    %5911 = vmatprep.subr.bf16.mxu0 0
    %5912 = vmatpush1.bf16.msra.mxu0 %v4524
    %5913 = vmatprep.subr.bf16.mxu0 0
    %5914 = vmatpush1.bf16.msra.mxu0 %v4523
    %5915 = vmatprep.subr.bf16.mxu0 0
    %5916 = vmatpush2.bf16.msra.mxu0 %v4538
    %5917 = vmatprep.subr.bf16.mxu0 0
    %5918 = vmatpush2.bf16.msra.mxu0 %v4537
    %5919 = vmatprep.subr.bf16.mxu0 0
    %5920 = vmatpush2.bf16.msra.mxu0 %v4536
    %5921 = vmatprep.subr.bf16.mxu0 0
    %5922 = vmatpush2.bf16.msra.mxu0 %v4535
    %5923 = vmatprep.subr.bf16.mxu0 0
    %5924 = vmatpush2.bf16.msra.mxu0 %v4534
    %5925 = vmatprep.subr.bf16.mxu0 0
    %5926 = vmatpush2.bf16.msra.mxu0 %v4533
    %5927 = vmatprep.subr.bf16.mxu0 0
    %5928 = vmatpush2.bf16.msra.mxu0 %v4532
    %5929 = vmatprep.subr.bf16.mxu0 0
    %5930 = vmatpush2.bf16.msra.mxu0 %v4531
    %5931 = vmatprep.mubr.bf16.mxu0 %v1415
    %5932 = vmatmul.mubr.bf16.gmra.mxu0 %v1401
    %v5933 = vpop.f32.mrf.mxu0
    %v5934 = vadd.f32 %v5894, %v5933
    %v5935 = vpop.f32.mrf.mxu0
    %v5936 = vpop.f32.mrf.mxu0
    %v5937 = vpop.f32.mrf.mxu0
    %5938 = vdwg.mxu0
    %5939 = vmatprep.subr.bf16.mxu0 0
    %5940 = vmatpush1.bf16.msra.mxu0 %v4546
    %5941 = vmatprep.subr.bf16.mxu0 0
    %5942 = vmatpush1.bf16.msra.mxu0 %v4545
    %5943 = vmatprep.subr.bf16.mxu0 0
    %5944 = vmatpush1.bf16.msra.mxu0 %v4544
    %5945 = vmatprep.subr.bf16.mxu0 0
    %5946 = vmatpush1.bf16.msra.mxu0 %v4543
    %5947 = vmatprep.subr.bf16.mxu0 0
    %5948 = vmatpush1.bf16.msra.mxu0 %v4542
    %5949 = vmatprep.subr.bf16.mxu0 0
    %5950 = vmatpush1.bf16.msra.mxu0 %v4541
    %5951 = vmatprep.subr.bf16.mxu0 0
    %5952 = vmatpush1.bf16.msra.mxu0 %v4540
    %5953 = vmatprep.subr.bf16.mxu0 0
    %5954 = vmatpush1.bf16.msra.mxu0 %v4539
    %5955 = vmatprep.subr.bf16.mxu0 0
    %5956 = vmatpush2.bf16.msra.mxu0 %v4554
    %5957 = vmatprep.subr.bf16.mxu0 0
    %5958 = vmatpush2.bf16.msra.mxu0 %v4553
    %5959 = vmatprep.subr.bf16.mxu0 0
    %5960 = vmatpush2.bf16.msra.mxu0 %v4552
    %5961 = vmatprep.subr.bf16.mxu0 0
    %5962 = vmatpush2.bf16.msra.mxu0 %v4551
    %5963 = vmatprep.subr.bf16.mxu0 0
    %5964 = vmatpush2.bf16.msra.mxu0 %v4550
    %5965 = vmatprep.subr.bf16.mxu0 0
    %5966 = vmatpush2.bf16.msra.mxu0 %v4549
    %5967 = vmatprep.subr.bf16.mxu0 0
    %5968 = vmatpush2.bf16.msra.mxu0 %v4548
    %5969 = vmatprep.subr.bf16.mxu0 0
    %5970 = vmatpush2.bf16.msra.mxu0 %v4547
    %5971 = vmatprep.mubr.bf16.mxu0 %v1425
    %5972 = vmatmul.mubr.bf16.gmra.mxu0 %v1423
    %v5973 = vpop.f32.mrf.mxu0
    %v5974 = vadd.f32 %v5934, %v5973
    %v5975 = vpop.f32.mrf.mxu0
    %v5976 = vpop.f32.mrf.mxu0
    %v5977 = vpop.f32.mrf.mxu0
    %5978 = vdwg.mxu0
    %5979 = vmatprep.subr.bf16.mxu0 0
    %5980 = vmatpush1.bf16.msra.mxu0 %v4562
    %5981 = vmatprep.subr.bf16.mxu0 0
    %5982 = vmatpush1.bf16.msra.mxu0 %v4561
    %5983 = vmatprep.subr.bf16.mxu0 0
    %5984 = vmatpush1.bf16.msra.mxu0 %v4560
    %5985 = vmatprep.subr.bf16.mxu0 0
    %5986 = vmatpush1.bf16.msra.mxu0 %v4559
    %5987 = vmatprep.subr.bf16.mxu0 0
    %5988 = vmatpush1.bf16.msra.mxu0 %v4558
    %5989 = vmatprep.subr.bf16.mxu0 0
    %5990 = vmatpush1.bf16.msra.mxu0 %v4557
    %5991 = vmatprep.subr.bf16.mxu0 0
    %5992 = vmatpush1.bf16.msra.mxu0 %v4556
    %5993 = vmatprep.subr.bf16.mxu0 0
    %5994 = vmatpush1.bf16.msra.mxu0 %v4555
    %5995 = vmatprep.subr.bf16.mxu0 0
    %5996 = vmatpush2.bf16.msra.mxu0 %v4570
    %5997 = vmatprep.subr.bf16.mxu0 0
    %5998 = vmatpush2.bf16.msra.mxu0 %v4569
    %5999 = vmatprep.subr.bf16.mxu0 0
    %6000 = vmatpush2.bf16.msra.mxu0 %v4568
    %6001 = vmatprep.subr.bf16.mxu0 0
    %6002 = vmatpush2.bf16.msra.mxu0 %v4567
    %6003 = vmatprep.subr.bf16.mxu0 0
    %6004 = vmatpush2.bf16.msra.mxu0 %v4566
    %6005 = vmatprep.subr.bf16.mxu0 0
    %6006 = vmatpush2.bf16.msra.mxu0 %v4565
    %6007 = vmatprep.subr.bf16.mxu0 0
    %6008 = vmatpush2.bf16.msra.mxu0 %v4564
    %6009 = vmatprep.subr.bf16.mxu0 0
    %6010 = vmatpush2.bf16.msra.mxu0 %v4563
    %6011 = vmatprep.mubr.bf16.mxu0 %v1422
    %6012 = vmatmul.mubr.bf16.gmra.mxu0 %v1408
    %v6013 = vpop.f32.mrf.mxu0
    %v6014 = vadd.f32 %v5974, %v6013
    %v6015 = vpop.f32.mrf.mxu0
    %v6016 = vpop.f32.mrf.mxu0
    %v6017 = vpop.f32.mrf.mxu0
    %6018 = vdwg.mxu0
    %6019 = vmatprep.subr.bf16.mxu0 0
    %6020 = vmatpush1.bf16.msra.mxu0 %v4578
    %6021 = vmatprep.subr.bf16.mxu0 0
    %6022 = vmatpush1.bf16.msra.mxu0 %v4577
    %6023 = vmatprep.subr.bf16.mxu0 0
    %6024 = vmatpush1.bf16.msra.mxu0 %v4576
    %6025 = vmatprep.subr.bf16.mxu0 0
    %6026 = vmatpush1.bf16.msra.mxu0 %v4575
    %6027 = vmatprep.subr.bf16.mxu0 0
    %6028 = vmatpush1.bf16.msra.mxu0 %v4574
    %6029 = vmatprep.subr.bf16.mxu0 0
    %6030 = vmatpush1.bf16.msra.mxu0 %v4573
    %6031 = vmatprep.subr.bf16.mxu0 0
    %6032 = vmatpush1.bf16.msra.mxu0 %v4572
    %6033 = vmatprep.subr.bf16.mxu0 0
    %6034 = vmatpush1.bf16.msra.mxu0 %v4571
    %6035 = vmatprep.subr.bf16.mxu0 0
    %6036 = vmatpush2.bf16.msra.mxu0 %v4586
    %6037 = vmatprep.subr.bf16.mxu0 0
    %6038 = vmatpush2.bf16.msra.mxu0 %v4585
    %6039 = vmatprep.subr.bf16.mxu0 0
    %6040 = vmatpush2.bf16.msra.mxu0 %v4584
    %6041 = vmatprep.subr.bf16.mxu0 0
    %6042 = vmatpush2.bf16.msra.mxu0 %v4583
    %6043 = vmatprep.subr.bf16.mxu0 0
    %6044 = vmatpush2.bf16.msra.mxu0 %v4582
    %6045 = vmatprep.subr.bf16.mxu0 0
    %6046 = vmatpush2.bf16.msra.mxu0 %v4581
    %6047 = vmatprep.subr.bf16.mxu0 0
    %6048 = vmatpush2.bf16.msra.mxu0 %v4580
    %6049 = vmatprep.subr.bf16.mxu0 0
    %6050 = vmatpush2.bf16.msra.mxu0 %v4579
    %6051 = vmatprep.mubr.bf16.mxu0 %v1426
    %6052 = vmatmul.mubr.bf16.gmra.mxu0 %v1424
    %v6053 = vpop.f32.mrf.mxu0
    %v6054 = vadd.f32 %v6014, %v6053
    %v6055 = vpop.f32.mrf.mxu0
    %v6056 = vpop.f32.mrf.mxu0
    %v6057 = vpop.f32.mrf.mxu0
    %6058 = vdwg.mxu0
    %6059 = vmatprep.subr.bf16.mxu0 0
    %6060 = vmatpush1.bf16.msra.mxu0 %v4594
    %6061 = vmatprep.subr.bf16.mxu0 0
    %6062 = vmatpush1.bf16.msra.mxu0 %v4593
    %6063 = vmatprep.subr.bf16.mxu0 0
    %6064 = vmatpush1.bf16.msra.mxu0 %v4592
    %6065 = vmatprep.subr.bf16.mxu0 0
    %6066 = vmatpush1.bf16.msra.mxu0 %v4591
    %6067 = vmatprep.subr.bf16.mxu0 0
    %6068 = vmatpush1.bf16.msra.mxu0 %v4590
    %6069 = vmatprep.subr.bf16.mxu0 0
    %6070 = vmatpush1.bf16.msra.mxu0 %v4589
    %6071 = vmatprep.subr.bf16.mxu0 0
    %6072 = vmatpush1.bf16.msra.mxu0 %v4588
    %6073 = vmatprep.subr.bf16.mxu0 0
    %6074 = vmatpush1.bf16.msra.mxu0 %v4587
    %6075 = vmatprep.subr.bf16.mxu0 0
    %6076 = vmatpush2.bf16.msra.mxu0 %v4602
    %6077 = vmatprep.subr.bf16.mxu0 0
    %6078 = vmatpush2.bf16.msra.mxu0 %v4601
    %6079 = vmatprep.subr.bf16.mxu0 0
    %6080 = vmatpush2.bf16.msra.mxu0 %v4600
    %6081 = vmatprep.subr.bf16.mxu0 0
    %6082 = vmatpush2.bf16.msra.mxu0 %v4599
    %6083 = vmatprep.subr.bf16.mxu0 0
    %6084 = vmatpush2.bf16.msra.mxu0 %v4598
    %6085 = vmatprep.subr.bf16.mxu0 0
    %6086 = vmatpush2.bf16.msra.mxu0 %v4597
    %6087 = vmatprep.subr.bf16.mxu0 0
    %6088 = vmatpush2.bf16.msra.mxu0 %v4596
    %6089 = vmatprep.subr.bf16.mxu0 0
    %6090 = vmatpush2.bf16.msra.mxu0 %v4595
    %6091 = vmatprep.mubr.bf16.mxu0 %v1464
    %6092 = vmatmul.mubr.bf16.gmra.mxu0 %v1450
    %v6093 = vpop.f32.mrf.mxu0
    %v6094 = vadd.f32 %v6054, %v6093
    %v6095 = vpop.f32.mrf.mxu0
    %v6096 = vpop.f32.mrf.mxu0
    %v6097 = vpop.f32.mrf.mxu0
    %6098 = vdwg.mxu0
    %6099 = vmatprep.subr.bf16.mxu0 0
    %6100 = vmatpush1.bf16.msra.mxu0 %v4610
    %6101 = vmatprep.subr.bf16.mxu0 0
    %6102 = vmatpush1.bf16.msra.mxu0 %v4609
    %6103 = vmatprep.subr.bf16.mxu0 0
    %6104 = vmatpush1.bf16.msra.mxu0 %v4608
    %6105 = vmatprep.subr.bf16.mxu0 0
    %6106 = vmatpush1.bf16.msra.mxu0 %v4607
    %6107 = vmatprep.subr.bf16.mxu0 0
    %6108 = vmatpush1.bf16.msra.mxu0 %v4606
    %6109 = vmatprep.subr.bf16.mxu0 0
    %6110 = vmatpush1.bf16.msra.mxu0 %v4605
    %6111 = vmatprep.subr.bf16.mxu0 0
    %6112 = vmatpush1.bf16.msra.mxu0 %v4604
    %6113 = vmatprep.subr.bf16.mxu0 0
    %6114 = vmatpush1.bf16.msra.mxu0 %v4603
    %6115 = vmatprep.subr.bf16.mxu0 0
    %6116 = vmatpush2.bf16.msra.mxu0 %v4618
    %6117 = vmatprep.subr.bf16.mxu0 0
    %6118 = vmatpush2.bf16.msra.mxu0 %v4617
    %6119 = vmatprep.subr.bf16.mxu0 0
    %6120 = vmatpush2.bf16.msra.mxu0 %v4616
    %6121 = vmatprep.subr.bf16.mxu0 0
    %6122 = vmatpush2.bf16.msra.mxu0 %v4615
    %6123 = vmatprep.subr.bf16.mxu0 0
    %6124 = vmatpush2.bf16.msra.mxu0 %v4614
    %6125 = vmatprep.subr.bf16.mxu0 0
    %6126 = vmatpush2.bf16.msra.mxu0 %v4613
    %6127 = vmatprep.subr.bf16.mxu0 0
    %6128 = vmatpush2.bf16.msra.mxu0 %v4612
    %6129 = vmatprep.subr.bf16.mxu0 0
    %6130 = vmatpush2.bf16.msra.mxu0 %v4611
    %6131 = vmatprep.mubr.bf16.mxu0 %v1474
    %6132 = vmatmul.mubr.bf16.gmra.mxu0 %v1472
    %v6133 = vpop.f32.mrf.mxu0
    %v6134 = vadd.f32 %v6094, %v6133
    %v6135 = vpop.f32.mrf.mxu0
    %v6136 = vpop.f32.mrf.mxu0
    %v6137 = vpop.f32.mrf.mxu0
    %6138 = vdwg.mxu0
    %6139 = vmatprep.subr.bf16.mxu0 0
    %6140 = vmatpush1.bf16.msra.mxu0 %v4626
    %6141 = vmatprep.subr.bf16.mxu0 0
    %6142 = vmatpush1.bf16.msra.mxu0 %v4625
    %6143 = vmatprep.subr.bf16.mxu0 0
    %6144 = vmatpush1.bf16.msra.mxu0 %v4624
    %6145 = vmatprep.subr.bf16.mxu0 0
    %6146 = vmatpush1.bf16.msra.mxu0 %v4623
    %6147 = vmatprep.subr.bf16.mxu0 0
    %6148 = vmatpush1.bf16.msra.mxu0 %v4622
    %6149 = vmatprep.subr.bf16.mxu0 0
    %6150 = vmatpush1.bf16.msra.mxu0 %v4621
    %6151 = vmatprep.subr.bf16.mxu0 0
    %6152 = vmatpush1.bf16.msra.mxu0 %v4620
    %6153 = vmatprep.subr.bf16.mxu0 0
    %6154 = vmatpush1.bf16.msra.mxu0 %v4619
    %6155 = vmatprep.subr.bf16.mxu0 0
    %6156 = vmatpush2.bf16.msra.mxu0 %v4634
    %6157 = vmatprep.subr.bf16.mxu0 0
    %6158 = vmatpush2.bf16.msra.mxu0 %v4633
    %6159 = vmatprep.subr.bf16.mxu0 0
    %6160 = vmatpush2.bf16.msra.mxu0 %v4632
    %6161 = vmatprep.subr.bf16.mxu0 0
    %6162 = vmatpush2.bf16.msra.mxu0 %v4631
    %6163 = vmatprep.subr.bf16.mxu0 0
    %6164 = vmatpush2.bf16.msra.mxu0 %v4630
    %6165 = vmatprep.subr.bf16.mxu0 0
    %6166 = vmatpush2.bf16.msra.mxu0 %v4629
    %6167 = vmatprep.subr.bf16.mxu0 0
    %6168 = vmatpush2.bf16.msra.mxu0 %v4628
    %6169 = vmatprep.subr.bf16.mxu0 0
    %6170 = vmatpush2.bf16.msra.mxu0 %v4627
    %6171 = vmatprep.mubr.bf16.mxu0 %v1471
    %6172 = vmatmul.mubr.bf16.gmra.mxu0 %v1457
    %v6173 = vpop.f32.mrf.mxu0
    %v6174 = vadd.f32 %v6134, %v6173
    %v6175 = vpop.f32.mrf.mxu0
    %v6176 = vpop.f32.mrf.mxu0
    %v6177 = vpop.f32.mrf.mxu0
    %6178 = vdwg.mxu0
    %6179 = vmatprep.subr.bf16.mxu0 0
    %6180 = vmatpush1.bf16.msra.mxu0 %v4642
    %6181 = vmatprep.subr.bf16.mxu0 0
    %6182 = vmatpush1.bf16.msra.mxu0 %v4641
    %6183 = vmatprep.subr.bf16.mxu0 0
    %6184 = vmatpush1.bf16.msra.mxu0 %v4640
    %6185 = vmatprep.subr.bf16.mxu0 0
    %6186 = vmatpush1.bf16.msra.mxu0 %v4639
    %6187 = vmatprep.subr.bf16.mxu0 0
    %6188 = vmatpush1.bf16.msra.mxu0 %v4638
    %6189 = vmatprep.subr.bf16.mxu0 0
    %6190 = vmatpush1.bf16.msra.mxu0 %v4637
    %6191 = vmatprep.subr.bf16.mxu0 0
    %6192 = vmatpush1.bf16.msra.mxu0 %v4636
    %6193 = vmatprep.subr.bf16.mxu0 0
    %6194 = vmatpush1.bf16.msra.mxu0 %v4635
    %6195 = vmatprep.subr.bf16.mxu0 0
    %6196 = vmatpush2.bf16.msra.mxu0 %v4650
    %6197 = vmatprep.subr.bf16.mxu0 0
    %6198 = vmatpush2.bf16.msra.mxu0 %v4649
    %6199 = vmatprep.subr.bf16.mxu0 0
    %6200 = vmatpush2.bf16.msra.mxu0 %v4648
    %6201 = vmatprep.subr.bf16.mxu0 0
    %6202 = vmatpush2.bf16.msra.mxu0 %v4647
    %6203 = vmatprep.subr.bf16.mxu0 0
    %6204 = vmatpush2.bf16.msra.mxu0 %v4646
    %6205 = vmatprep.subr.bf16.mxu0 0
    %6206 = vmatpush2.bf16.msra.mxu0 %v4645
    %6207 = vmatprep.subr.bf16.mxu0 0
    %6208 = vmatpush2.bf16.msra.mxu0 %v4644
    %6209 = vmatprep.subr.bf16.mxu0 0
    %6210 = vmatpush2.bf16.msra.mxu0 %v4643
    %6211 = vmatprep.mubr.bf16.mxu0 %v1475
    %6212 = vmatmul.mubr.bf16.gmra.mxu0 %v1473
    %v6213 = vpop.f32.mrf.mxu0
    %v6214 = vadd.f32 %v6174, %v6213
    %v6215 = vpop.f32.mrf.mxu0
    %v6216 = vpop.f32.mrf.mxu0
    %v6217 = vpop.f32.mrf.mxu0
    %6218 = vdwg.mxu0
    %6219 = vmatprep.subr.bf16.mxu0 0
    %6220 = vmatpush1.bf16.msra.mxu0 %v4658
    %6221 = vmatprep.subr.bf16.mxu0 0
    %6222 = vmatpush1.bf16.msra.mxu0 %v4657
    %6223 = vmatprep.subr.bf16.mxu0 0
    %6224 = vmatpush1.bf16.msra.mxu0 %v4656
    %6225 = vmatprep.subr.bf16.mxu0 0
    %6226 = vmatpush1.bf16.msra.mxu0 %v4655
    %6227 = vmatprep.subr.bf16.mxu0 0
    %6228 = vmatpush1.bf16.msra.mxu0 %v4654
    %6229 = vmatprep.subr.bf16.mxu0 0
    %6230 = vmatpush1.bf16.msra.mxu0 %v4653
    %6231 = vmatprep.subr.bf16.mxu0 0
    %6232 = vmatpush1.bf16.msra.mxu0 %v4652
    %6233 = vmatprep.subr.bf16.mxu0 0
    %6234 = vmatpush1.bf16.msra.mxu0 %v4651
    %6235 = vmatprep.subr.bf16.mxu0 0
    %6236 = vmatpush2.bf16.msra.mxu0 %v4666
    %6237 = vmatprep.subr.bf16.mxu0 0
    %6238 = vmatpush2.bf16.msra.mxu0 %v4665
    %6239 = vmatprep.subr.bf16.mxu0 0
    %6240 = vmatpush2.bf16.msra.mxu0 %v4664
    %6241 = vmatprep.subr.bf16.mxu0 0
    %6242 = vmatpush2.bf16.msra.mxu0 %v4663
    %6243 = vmatprep.subr.bf16.mxu0 0
    %6244 = vmatpush2.bf16.msra.mxu0 %v4662
    %6245 = vmatprep.subr.bf16.mxu0 0
    %6246 = vmatpush2.bf16.msra.mxu0 %v4661
    %6247 = vmatprep.subr.bf16.mxu0 0
    %6248 = vmatpush2.bf16.msra.mxu0 %v4660
    %6249 = vmatprep.subr.bf16.mxu0 0
    %6250 = vmatpush2.bf16.msra.mxu0 %v4659
    %6251 = vmatprep.mubr.bf16.mxu0 %v1513
    %6252 = vmatmul.mubr.bf16.gmra.mxu0 %v1499
    %v6253 = vpop.f32.mrf.mxu0
    %v6254 = vadd.f32 %v6214, %v6253
    %v6255 = vpop.f32.mrf.mxu0
    %v6256 = vpop.f32.mrf.mxu0
    %v6257 = vpop.f32.mrf.mxu0
    %6258 = vdwg.mxu0
    %6259 = vmatprep.subr.bf16.mxu0 0
    %6260 = vmatpush1.bf16.msra.mxu0 %v4674
    %6261 = vmatprep.subr.bf16.mxu0 0
    %6262 = vmatpush1.bf16.msra.mxu0 %v4673
    %6263 = vmatprep.subr.bf16.mxu0 0
    %6264 = vmatpush1.bf16.msra.mxu0 %v4672
    %6265 = vmatprep.subr.bf16.mxu0 0
    %6266 = vmatpush1.bf16.msra.mxu0 %v4671
    %6267 = vmatprep.subr.bf16.mxu0 0
    %6268 = vmatpush1.bf16.msra.mxu0 %v4670
    %6269 = vmatprep.subr.bf16.mxu0 0
    %6270 = vmatpush1.bf16.msra.mxu0 %v4669
    %6271 = vmatprep.subr.bf16.mxu0 0
    %6272 = vmatpush1.bf16.msra.mxu0 %v4668
    %6273 = vmatprep.subr.bf16.mxu0 0
    %6274 = vmatpush1.bf16.msra.mxu0 %v4667
    %6275 = vmatprep.subr.bf16.mxu0 0
    %6276 = vmatpush2.bf16.msra.mxu0 %v4682
    %6277 = vmatprep.subr.bf16.mxu0 0
    %6278 = vmatpush2.bf16.msra.mxu0 %v4681
    %6279 = vmatprep.subr.bf16.mxu0 0
    %6280 = vmatpush2.bf16.msra.mxu0 %v4680
    %6281 = vmatprep.subr.bf16.mxu0 0
    %6282 = vmatpush2.bf16.msra.mxu0 %v4679
    %6283 = vmatprep.subr.bf16.mxu0 0
    %6284 = vmatpush2.bf16.msra.mxu0 %v4678
    %6285 = vmatprep.subr.bf16.mxu0 0
    %6286 = vmatpush2.bf16.msra.mxu0 %v4677
    %6287 = vmatprep.subr.bf16.mxu0 0
    %6288 = vmatpush2.bf16.msra.mxu0 %v4676
    %6289 = vmatprep.subr.bf16.mxu0 0
    %6290 = vmatpush2.bf16.msra.mxu0 %v4675
    %6291 = vmatprep.mubr.bf16.mxu0 %v1523
    %6292 = vmatmul.mubr.bf16.gmra.mxu0 %v1521
    %v6293 = vpop.f32.mrf.mxu0
    %v6294 = vadd.f32 %v6254, %v6293
    %v6295 = vpop.f32.mrf.mxu0
    %v6296 = vpop.f32.mrf.mxu0
    %v6297 = vpop.f32.mrf.mxu0
    %6298 = vdwg.mxu0
    %6299 = vmatprep.subr.bf16.mxu0 0
    %6300 = vmatpush1.bf16.msra.mxu0 %v4690
    %6301 = vmatprep.subr.bf16.mxu0 0
    %6302 = vmatpush1.bf16.msra.mxu0 %v4689
    %6303 = vmatprep.subr.bf16.mxu0 0
    %6304 = vmatpush1.bf16.msra.mxu0 %v4688
    %6305 = vmatprep.subr.bf16.mxu0 0
    %6306 = vmatpush1.bf16.msra.mxu0 %v4687
    %6307 = vmatprep.subr.bf16.mxu0 0
    %6308 = vmatpush1.bf16.msra.mxu0 %v4686
    %6309 = vmatprep.subr.bf16.mxu0 0
    %6310 = vmatpush1.bf16.msra.mxu0 %v4685
    %6311 = vmatprep.subr.bf16.mxu0 0
    %6312 = vmatpush1.bf16.msra.mxu0 %v4684
    %6313 = vmatprep.subr.bf16.mxu0 0
    %6314 = vmatpush1.bf16.msra.mxu0 %v4683
    %6315 = vmatprep.subr.bf16.mxu0 0
    %6316 = vmatpush2.bf16.msra.mxu0 %v4698
    %6317 = vmatprep.subr.bf16.mxu0 0
    %6318 = vmatpush2.bf16.msra.mxu0 %v4697
    %6319 = vmatprep.subr.bf16.mxu0 0
    %6320 = vmatpush2.bf16.msra.mxu0 %v4696
    %6321 = vmatprep.subr.bf16.mxu0 0
    %6322 = vmatpush2.bf16.msra.mxu0 %v4695
    %6323 = vmatprep.subr.bf16.mxu0 0
    %6324 = vmatpush2.bf16.msra.mxu0 %v4694
    %6325 = vmatprep.subr.bf16.mxu0 0
    %6326 = vmatpush2.bf16.msra.mxu0 %v4693
    %6327 = vmatprep.subr.bf16.mxu0 0
    %6328 = vmatpush2.bf16.msra.mxu0 %v4692
    %6329 = vmatprep.subr.bf16.mxu0 0
    %6330 = vmatpush2.bf16.msra.mxu0 %v4691
    %6331 = vmatprep.mubr.bf16.mxu0 %v1520
    %6332 = vmatmul.mubr.bf16.gmra.mxu0 %v1506
    %v6333 = vpop.f32.mrf.mxu0
    %v6334 = vadd.f32 %v6294, %v6333
    %v6335 = vpop.f32.mrf.mxu0
    %v6336 = vpop.f32.mrf.mxu0
    %v6337 = vpop.f32.mrf.mxu0
    %6338 = vdwg.mxu0
    %6339 = vmatprep.subr.bf16.mxu0 0
    %6340 = vmatpush1.bf16.msra.mxu0 %v4706
    %6341 = vmatprep.subr.bf16.mxu0 0
    %6342 = vmatpush1.bf16.msra.mxu0 %v4705
    %6343 = vmatprep.subr.bf16.mxu0 0
    %6344 = vmatpush1.bf16.msra.mxu0 %v4704
    %6345 = vmatprep.subr.bf16.mxu0 0
    %6346 = vmatpush1.bf16.msra.mxu0 %v4703
    %6347 = vmatprep.subr.bf16.mxu0 0
    %6348 = vmatpush1.bf16.msra.mxu0 %v4702
    %6349 = vmatprep.subr.bf16.mxu0 0
    %6350 = vmatpush1.bf16.msra.mxu0 %v4701
    %6351 = vmatprep.subr.bf16.mxu0 0
    %6352 = vmatpush1.bf16.msra.mxu0 %v4700
    %6353 = vmatprep.subr.bf16.mxu0 0
    %6354 = vmatpush1.bf16.msra.mxu0 %v4699
    %6355 = vmatprep.subr.bf16.mxu0 0
    %6356 = vmatpush2.bf16.msra.mxu0 %v4714
    %6357 = vmatprep.subr.bf16.mxu0 0
    %6358 = vmatpush2.bf16.msra.mxu0 %v4713
    %6359 = vmatprep.subr.bf16.mxu0 0
    %6360 = vmatpush2.bf16.msra.mxu0 %v4712
    %6361 = vmatprep.subr.bf16.mxu0 0
    %6362 = vmatpush2.bf16.msra.mxu0 %v4711
    %6363 = vmatprep.subr.bf16.mxu0 0
    %6364 = vmatpush2.bf16.msra.mxu0 %v4710
    %6365 = vmatprep.subr.bf16.mxu0 0
    %6366 = vmatpush2.bf16.msra.mxu0 %v4709
    %6367 = vmatprep.subr.bf16.mxu0 0
    %6368 = vmatpush2.bf16.msra.mxu0 %v4708
    %6369 = vmatprep.subr.bf16.mxu0 0
    %6370 = vmatpush2.bf16.msra.mxu0 %v4707
    %6371 = vmatprep.mubr.bf16.mxu0 %v1524
    %6372 = vmatmul.mubr.bf16.gmra.mxu0 %v1522
    %v6373 = vpop.f32.mrf.mxu0
    %v6374 = vadd.f32 %v6334, %v6373
    %v6375 = vpop.f32.mrf.mxu0
    %v6376 = vpop.f32.mrf.mxu0
    %v6377 = vpop.f32.mrf.mxu0
    %6378 = vdwg.mxu0
    %6379 = vmatprep.subr.bf16.mxu0 0
    %6380 = vmatpush1.bf16.msra.mxu0 %v4722
    %6381 = vmatprep.subr.bf16.mxu0 0
    %6382 = vmatpush1.bf16.msra.mxu0 %v4721
    %6383 = vmatprep.subr.bf16.mxu0 0
    %6384 = vmatpush1.bf16.msra.mxu0 %v4720
    %6385 = vmatprep.subr.bf16.mxu0 0
    %6386 = vmatpush1.bf16.msra.mxu0 %v4719
    %6387 = vmatprep.subr.bf16.mxu0 0
    %6388 = vmatpush1.bf16.msra.mxu0 %v4718
    %6389 = vmatprep.subr.bf16.mxu0 0
    %6390 = vmatpush1.bf16.msra.mxu0 %v4717
    %6391 = vmatprep.subr.bf16.mxu0 0
    %6392 = vmatpush1.bf16.msra.mxu0 %v4716
    %6393 = vmatprep.subr.bf16.mxu0 0
    %6394 = vmatpush1.bf16.msra.mxu0 %v4715
    %6395 = vmatprep.subr.bf16.mxu0 0
    %6396 = vmatpush2.bf16.msra.mxu0 %v4730
    %6397 = vmatprep.subr.bf16.mxu0 0
    %6398 = vmatpush2.bf16.msra.mxu0 %v4729
    %6399 = vmatprep.subr.bf16.mxu0 0
    %6400 = vmatpush2.bf16.msra.mxu0 %v4728
    %6401 = vmatprep.subr.bf16.mxu0 0
    %6402 = vmatpush2.bf16.msra.mxu0 %v4727
    %6403 = vmatprep.subr.bf16.mxu0 0
    %6404 = vmatpush2.bf16.msra.mxu0 %v4726
    %6405 = vmatprep.subr.bf16.mxu0 0
    %6406 = vmatpush2.bf16.msra.mxu0 %v4725
    %6407 = vmatprep.subr.bf16.mxu0 0
    %6408 = vmatpush2.bf16.msra.mxu0 %v4724
    %6409 = vmatprep.subr.bf16.mxu0 0
    %6410 = vmatpush2.bf16.msra.mxu0 %v4723
    %6411 = vmatprep.mubr.bf16.mxu0 %v1562
    %6412 = vmatmul.mubr.bf16.gmra.mxu0 %v1548
    %v6413 = vpop.f32.mrf.mxu0
    %v6414 = vadd.f32 %v6374, %v6413
    %v6415 = vpop.f32.mrf.mxu0
    %v6416 = vpop.f32.mrf.mxu0
    %v6417 = vpop.f32.mrf.mxu0
    %6418 = vdwg.mxu0
    %6419 = vmatprep.subr.bf16.mxu0 0
    %6420 = vmatpush1.bf16.msra.mxu0 %v4738
    %6421 = vmatprep.subr.bf16.mxu0 0
    %6422 = vmatpush1.bf16.msra.mxu0 %v4737
    %6423 = vmatprep.subr.bf16.mxu0 0
    %6424 = vmatpush1.bf16.msra.mxu0 %v4736
    %6425 = vmatprep.subr.bf16.mxu0 0
    %6426 = vmatpush1.bf16.msra.mxu0 %v4735
    %6427 = vmatprep.subr.bf16.mxu0 0
    %6428 = vmatpush1.bf16.msra.mxu0 %v4734
    %6429 = vmatprep.subr.bf16.mxu0 0
    %6430 = vmatpush1.bf16.msra.mxu0 %v4733
    %6431 = vmatprep.subr.bf16.mxu0 0
    %6432 = vmatpush1.bf16.msra.mxu0 %v4732
    %6433 = vmatprep.subr.bf16.mxu0 0
    %6434 = vmatpush1.bf16.msra.mxu0 %v4731
    %6435 = vmatprep.subr.bf16.mxu0 0
    %6436 = vmatpush2.bf16.msra.mxu0 %v4746
    %6437 = vmatprep.subr.bf16.mxu0 0
    %6438 = vmatpush2.bf16.msra.mxu0 %v4745
    %6439 = vmatprep.subr.bf16.mxu0 0
    %6440 = vmatpush2.bf16.msra.mxu0 %v4744
    %6441 = vmatprep.subr.bf16.mxu0 0
    %6442 = vmatpush2.bf16.msra.mxu0 %v4743
    %6443 = vmatprep.subr.bf16.mxu0 0
    %6444 = vmatpush2.bf16.msra.mxu0 %v4742
    %6445 = vmatprep.subr.bf16.mxu0 0
    %6446 = vmatpush2.bf16.msra.mxu0 %v4741
    %6447 = vmatprep.subr.bf16.mxu0 0
    %6448 = vmatpush2.bf16.msra.mxu0 %v4740
    %6449 = vmatprep.subr.bf16.mxu0 0
    %6450 = vmatpush2.bf16.msra.mxu0 %v4739
    %6451 = vmatprep.mubr.bf16.mxu0 %v1572
    %6452 = vmatmul.mubr.bf16.gmra.mxu0 %v1570
    %v6453 = vpop.f32.mrf.mxu0
    %v6454 = vadd.f32 %v6414, %v6453
    %v6455 = vpop.f32.mrf.mxu0
    %v6456 = vpop.f32.mrf.mxu0
    %v6457 = vpop.f32.mrf.mxu0
    %6458 = vdwg.mxu0
    %6459 = vmatprep.subr.bf16.mxu0 0
    %6460 = vmatpush1.bf16.msra.mxu0 %v4754
    %6461 = vmatprep.subr.bf16.mxu0 0
    %6462 = vmatpush1.bf16.msra.mxu0 %v4753
    %6463 = vmatprep.subr.bf16.mxu0 0
    %6464 = vmatpush1.bf16.msra.mxu0 %v4752
    %6465 = vmatprep.subr.bf16.mxu0 0
    %6466 = vmatpush1.bf16.msra.mxu0 %v4751
    %6467 = vmatprep.subr.bf16.mxu0 0
    %6468 = vmatpush1.bf16.msra.mxu0 %v4750
    %6469 = vmatprep.subr.bf16.mxu0 0
    %6470 = vmatpush1.bf16.msra.mxu0 %v4749
    %6471 = vmatprep.subr.bf16.mxu0 0
    %6472 = vmatpush1.bf16.msra.mxu0 %v4748
    %6473 = vmatprep.subr.bf16.mxu0 0
    %6474 = vmatpush1.bf16.msra.mxu0 %v4747
    %6475 = vmatprep.subr.bf16.mxu0 0
    %6476 = vmatpush2.bf16.msra.mxu0 %v4762
    %6477 = vmatprep.subr.bf16.mxu0 0
    %6478 = vmatpush2.bf16.msra.mxu0 %v4761
    %6479 = vmatprep.subr.bf16.mxu0 0
    %6480 = vmatpush2.bf16.msra.mxu0 %v4760
    %6481 = vmatprep.subr.bf16.mxu0 0
    %6482 = vmatpush2.bf16.msra.mxu0 %v4759
    %6483 = vmatprep.subr.bf16.mxu0 0
    %6484 = vmatpush2.bf16.msra.mxu0 %v4758
    %6485 = vmatprep.subr.bf16.mxu0 0
    %6486 = vmatpush2.bf16.msra.mxu0 %v4757
    %6487 = vmatprep.subr.bf16.mxu0 0
    %6488 = vmatpush2.bf16.msra.mxu0 %v4756
    %6489 = vmatprep.subr.bf16.mxu0 0
    %6490 = vmatpush2.bf16.msra.mxu0 %v4755
    %6491 = vmatprep.mubr.bf16.mxu0 %v1569
    %6492 = vmatmul.mubr.bf16.gmra.mxu0 %v1555
    %v6493 = vpop.f32.mrf.mxu0
    %v6494 = vadd.f32 %v6454, %v6493
    %v6495 = vpop.f32.mrf.mxu0
    %v6496 = vpop.f32.mrf.mxu0
    %v6497 = vpop.f32.mrf.mxu0
    %6498 = vdwg.mxu0
    %6499 = vmatprep.subr.bf16.mxu0 0
    %6500 = vmatpush1.bf16.msra.mxu0 %v4770
    %6501 = vmatprep.subr.bf16.mxu0 0
    %6502 = vmatpush1.bf16.msra.mxu0 %v4769
    %6503 = vmatprep.subr.bf16.mxu0 0
    %6504 = vmatpush1.bf16.msra.mxu0 %v4768
    %6505 = vmatprep.subr.bf16.mxu0 0
    %6506 = vmatpush1.bf16.msra.mxu0 %v4767
    %6507 = vmatprep.subr.bf16.mxu0 0
    %6508 = vmatpush1.bf16.msra.mxu0 %v4766
    %6509 = vmatprep.subr.bf16.mxu0 0
    %6510 = vmatpush1.bf16.msra.mxu0 %v4765
    %6511 = vmatprep.subr.bf16.mxu0 0
    %6512 = vmatpush1.bf16.msra.mxu0 %v4764
    %6513 = vmatprep.subr.bf16.mxu0 0
    %6514 = vmatpush1.bf16.msra.mxu0 %v4763
    %6515 = vmatprep.subr.bf16.mxu0 0
    %6516 = vmatpush2.bf16.msra.mxu0 %v4778
    %6517 = vmatprep.subr.bf16.mxu0 0
    %6518 = vmatpush2.bf16.msra.mxu0 %v4777
    %6519 = vmatprep.subr.bf16.mxu0 0
    %6520 = vmatpush2.bf16.msra.mxu0 %v4776
    %6521 = vmatprep.subr.bf16.mxu0 0
    %6522 = vmatpush2.bf16.msra.mxu0 %v4775
    %6523 = vmatprep.subr.bf16.mxu0 0
    %6524 = vmatpush2.bf16.msra.mxu0 %v4774
    %6525 = vmatprep.subr.bf16.mxu0 0
    %6526 = vmatpush2.bf16.msra.mxu0 %v4773
    %6527 = vmatprep.subr.bf16.mxu0 0
    %6528 = vmatpush2.bf16.msra.mxu0 %v4772
    %6529 = vmatprep.subr.bf16.mxu0 0
    %6530 = vmatpush2.bf16.msra.mxu0 %v4771
    %6531 = vmatprep.mubr.bf16.mxu0 %v1573
    %6532 = vmatmul.mubr.bf16.gmra.mxu0 %v1571
    %v6533 = vpop.f32.mrf.mxu0
    %v6534 = vadd.f32 %v6494, %v6533
    %v6535 = vpop.f32.mrf.mxu0
    %v6536 = vpop.f32.mrf.mxu0
    %v6537 = vpop.f32.mrf.mxu0
    %6538 = vdwg.mxu0
    %6539 = vmatprep.subr.bf16.mxu0 0
    %6540 = vmatpush1.bf16.msra.mxu0 %v4786
    %6541 = vmatprep.subr.bf16.mxu0 0
    %6542 = vmatpush1.bf16.msra.mxu0 %v4785
    %6543 = vmatprep.subr.bf16.mxu0 0
    %6544 = vmatpush1.bf16.msra.mxu0 %v4784
    %6545 = vmatprep.subr.bf16.mxu0 0
    %6546 = vmatpush1.bf16.msra.mxu0 %v4783
    %6547 = vmatprep.subr.bf16.mxu0 0
    %6548 = vmatpush1.bf16.msra.mxu0 %v4782
    %6549 = vmatprep.subr.bf16.mxu0 0
    %6550 = vmatpush1.bf16.msra.mxu0 %v4781
    %6551 = vmatprep.subr.bf16.mxu0 0
    %6552 = vmatpush1.bf16.msra.mxu0 %v4780
    %6553 = vmatprep.subr.bf16.mxu0 0
    %6554 = vmatpush1.bf16.msra.mxu0 %v4779
    %6555 = vmatprep.subr.bf16.mxu0 0
    %6556 = vmatpush2.bf16.msra.mxu0 %v4794
    %6557 = vmatprep.subr.bf16.mxu0 0
    %6558 = vmatpush2.bf16.msra.mxu0 %v4793
    %6559 = vmatprep.subr.bf16.mxu0 0
    %6560 = vmatpush2.bf16.msra.mxu0 %v4792
    %6561 = vmatprep.subr.bf16.mxu0 0
    %6562 = vmatpush2.bf16.msra.mxu0 %v4791
    %6563 = vmatprep.subr.bf16.mxu0 0
    %6564 = vmatpush2.bf16.msra.mxu0 %v4790
    %6565 = vmatprep.subr.bf16.mxu0 0
    %6566 = vmatpush2.bf16.msra.mxu0 %v4789
    %6567 = vmatprep.subr.bf16.mxu0 0
    %6568 = vmatpush2.bf16.msra.mxu0 %v4788
    %6569 = vmatprep.subr.bf16.mxu0 0
    %6570 = vmatpush2.bf16.msra.mxu0 %v4787
    %6571 = vmatprep.mubr.bf16.mxu0 %v1611
    %6572 = vmatmul.mubr.bf16.gmra.mxu0 %v1597
    %v6573 = vpop.f32.mrf.mxu0
    %v6574 = vadd.f32 %v6534, %v6573
    %v6575 = vpop.f32.mrf.mxu0
    %v6576 = vpop.f32.mrf.mxu0
    %v6577 = vpop.f32.mrf.mxu0
    %6578 = vdwg.mxu0
    %6579 = vmatprep.subr.bf16.mxu0 0
    %6580 = vmatpush1.bf16.msra.mxu0 %v4802
    %6581 = vmatprep.subr.bf16.mxu0 0
    %6582 = vmatpush1.bf16.msra.mxu0 %v4801
    %6583 = vmatprep.subr.bf16.mxu0 0
    %6584 = vmatpush1.bf16.msra.mxu0 %v4800
    %6585 = vmatprep.subr.bf16.mxu0 0
    %6586 = vmatpush1.bf16.msra.mxu0 %v4799
    %6587 = vmatprep.subr.bf16.mxu0 0
    %6588 = vmatpush1.bf16.msra.mxu0 %v4798
    %6589 = vmatprep.subr.bf16.mxu0 0
    %6590 = vmatpush1.bf16.msra.mxu0 %v4797
    %6591 = vmatprep.subr.bf16.mxu0 0
    %6592 = vmatpush1.bf16.msra.mxu0 %v4796
    %6593 = vmatprep.subr.bf16.mxu0 0
    %6594 = vmatpush1.bf16.msra.mxu0 %v4795
    %6595 = vmatprep.subr.bf16.mxu0 0
    %6596 = vmatpush2.bf16.msra.mxu0 %v4810
    %6597 = vmatprep.subr.bf16.mxu0 0
    %6598 = vmatpush2.bf16.msra.mxu0 %v4809
    %6599 = vmatprep.subr.bf16.mxu0 0
    %6600 = vmatpush2.bf16.msra.mxu0 %v4808
    %6601 = vmatprep.subr.bf16.mxu0 0
    %6602 = vmatpush2.bf16.msra.mxu0 %v4807
    %6603 = vmatprep.subr.bf16.mxu0 0
    %6604 = vmatpush2.bf16.msra.mxu0 %v4806
    %6605 = vmatprep.subr.bf16.mxu0 0
    %6606 = vmatpush2.bf16.msra.mxu0 %v4805
    %6607 = vmatprep.subr.bf16.mxu0 0
    %6608 = vmatpush2.bf16.msra.mxu0 %v4804
    %6609 = vmatprep.subr.bf16.mxu0 0
    %6610 = vmatpush2.bf16.msra.mxu0 %v4803
    %6611 = vmatprep.mubr.bf16.mxu0 %v1621
    %6612 = vmatmul.mubr.bf16.gmra.mxu0 %v1619
    %v6613 = vpop.f32.mrf.mxu0
    %v6614 = vadd.f32 %v6574, %v6613
    %v6615 = vpop.f32.mrf.mxu0
    %v6616 = vpop.f32.mrf.mxu0
    %v6617 = vpop.f32.mrf.mxu0
    %6618 = vdwg.mxu0
    %6619 = vmatprep.subr.bf16.mxu0 0
    %6620 = vmatpush1.bf16.msra.mxu0 %v4818
    %6621 = vmatprep.subr.bf16.mxu0 0
    %6622 = vmatpush1.bf16.msra.mxu0 %v4817
    %6623 = vmatprep.subr.bf16.mxu0 0
    %6624 = vmatpush1.bf16.msra.mxu0 %v4816
    %6625 = vmatprep.subr.bf16.mxu0 0
    %6626 = vmatpush1.bf16.msra.mxu0 %v4815
    %6627 = vmatprep.subr.bf16.mxu0 0
    %6628 = vmatpush1.bf16.msra.mxu0 %v4814
    %6629 = vmatprep.subr.bf16.mxu0 0
    %6630 = vmatpush1.bf16.msra.mxu0 %v4813
    %6631 = vmatprep.subr.bf16.mxu0 0
    %6632 = vmatpush1.bf16.msra.mxu0 %v4812
    %6633 = vmatprep.subr.bf16.mxu0 0
    %6634 = vmatpush1.bf16.msra.mxu0 %v4811
    %6635 = vmatprep.subr.bf16.mxu0 0
    %6636 = vmatpush2.bf16.msra.mxu0 %v4826
    %6637 = vmatprep.subr.bf16.mxu0 0
    %6638 = vmatpush2.bf16.msra.mxu0 %v4825
    %6639 = vmatprep.subr.bf16.mxu0 0
    %6640 = vmatpush2.bf16.msra.mxu0 %v4824
    %6641 = vmatprep.subr.bf16.mxu0 0
    %6642 = vmatpush2.bf16.msra.mxu0 %v4823
    %6643 = vmatprep.subr.bf16.mxu0 0
    %6644 = vmatpush2.bf16.msra.mxu0 %v4822
    %6645 = vmatprep.subr.bf16.mxu0 0
    %6646 = vmatpush2.bf16.msra.mxu0 %v4821
    %6647 = vmatprep.subr.bf16.mxu0 0
    %6648 = vmatpush2.bf16.msra.mxu0 %v4820
    %6649 = vmatprep.subr.bf16.mxu0 0
    %6650 = vmatpush2.bf16.msra.mxu0 %v4819
    %6651 = vmatprep.mubr.bf16.mxu0 %v1618
    %6652 = vmatmul.mubr.bf16.gmra.mxu0 %v1604
    %v6653 = vpop.f32.mrf.mxu0
    %v6654 = vadd.f32 %v6614, %v6653
    %v6655 = vpop.f32.mrf.mxu0
    %v6656 = vpop.f32.mrf.mxu0
    %v6657 = vpop.f32.mrf.mxu0
    %6658 = vdwg.mxu0
    %6659 = vmatprep.subr.bf16.mxu0 0
    %6660 = vmatpush1.bf16.msra.mxu0 %v4834
    %6661 = vmatprep.subr.bf16.mxu0 0
    %6662 = vmatpush1.bf16.msra.mxu0 %v4833
    %6663 = vmatprep.subr.bf16.mxu0 0
    %6664 = vmatpush1.bf16.msra.mxu0 %v4832
    %6665 = vmatprep.subr.bf16.mxu0 0
    %6666 = vmatpush1.bf16.msra.mxu0 %v4831
    %6667 = vmatprep.subr.bf16.mxu0 0
    %6668 = vmatpush1.bf16.msra.mxu0 %v4830
    %6669 = vmatprep.subr.bf16.mxu0 0
    %6670 = vmatpush1.bf16.msra.mxu0 %v4829
    %6671 = vmatprep.subr.bf16.mxu0 0
    %6672 = vmatpush1.bf16.msra.mxu0 %v4828
    %6673 = vmatprep.subr.bf16.mxu0 0
    %6674 = vmatpush1.bf16.msra.mxu0 %v4827
    %6675 = vmatprep.subr.bf16.mxu0 0
    %6676 = vmatpush2.bf16.msra.mxu0 %v4842
    %6677 = vmatprep.subr.bf16.mxu0 0
    %6678 = vmatpush2.bf16.msra.mxu0 %v4841
    %6679 = vmatprep.subr.bf16.mxu0 0
    %6680 = vmatpush2.bf16.msra.mxu0 %v4840
    %6681 = vmatprep.subr.bf16.mxu0 0
    %6682 = vmatpush2.bf16.msra.mxu0 %v4839
    %6683 = vmatprep.subr.bf16.mxu0 0
    %6684 = vmatpush2.bf16.msra.mxu0 %v4838
    %6685 = vmatprep.subr.bf16.mxu0 0
    %6686 = vmatpush2.bf16.msra.mxu0 %v4837
    %6687 = vmatprep.subr.bf16.mxu0 0
    %6688 = vmatpush2.bf16.msra.mxu0 %v4836
    %6689 = vmatprep.subr.bf16.mxu0 0
    %6690 = vmatpush2.bf16.msra.mxu0 %v4835
    %6691 = vmatprep.mubr.bf16.mxu0 %v1622
    %6692 = vmatmul.mubr.bf16.gmra.mxu0 %v1620
    %v6693 = vpop.f32.mrf.mxu0
    %v6694 = vadd.f32 %v6654, %v6693
    %v6695 = vpop.f32.mrf.mxu0
    %v6696 = vpop.f32.mrf.mxu0
    %v6697 = vpop.f32.mrf.mxu0
    %6698 = vdwg.mxu0
    %6699 = vmatprep.subr.bf16.mxu0 0
    %6700 = vmatpush1.bf16.msra.mxu0 %v4850
    %6701 = vmatprep.subr.bf16.mxu0 0
    %6702 = vmatpush1.bf16.msra.mxu0 %v4849
    %6703 = vmatprep.subr.bf16.mxu0 0
    %6704 = vmatpush1.bf16.msra.mxu0 %v4848
    %6705 = vmatprep.subr.bf16.mxu0 0
    %6706 = vmatpush1.bf16.msra.mxu0 %v4847
    %6707 = vmatprep.subr.bf16.mxu0 0
    %6708 = vmatpush1.bf16.msra.mxu0 %v4846
    %6709 = vmatprep.subr.bf16.mxu0 0
    %6710 = vmatpush1.bf16.msra.mxu0 %v4845
    %6711 = vmatprep.subr.bf16.mxu0 0
    %6712 = vmatpush1.bf16.msra.mxu0 %v4844
    %6713 = vmatprep.subr.bf16.mxu0 0
    %6714 = vmatpush1.bf16.msra.mxu0 %v4843
    %6715 = vmatprep.subr.bf16.mxu0 0
    %6716 = vmatpush2.bf16.msra.mxu0 %v4858
    %6717 = vmatprep.subr.bf16.mxu0 0
    %6718 = vmatpush2.bf16.msra.mxu0 %v4857
    %6719 = vmatprep.subr.bf16.mxu0 0
    %6720 = vmatpush2.bf16.msra.mxu0 %v4856
    %6721 = vmatprep.subr.bf16.mxu0 0
    %6722 = vmatpush2.bf16.msra.mxu0 %v4855
    %6723 = vmatprep.subr.bf16.mxu0 0
    %6724 = vmatpush2.bf16.msra.mxu0 %v4854
    %6725 = vmatprep.subr.bf16.mxu0 0
    %6726 = vmatpush2.bf16.msra.mxu0 %v4853
    %6727 = vmatprep.subr.bf16.mxu0 0
    %6728 = vmatpush2.bf16.msra.mxu0 %v4852
    %6729 = vmatprep.subr.bf16.mxu0 0
    %6730 = vmatpush2.bf16.msra.mxu0 %v4851
    %6731 = vmatprep.mubr.bf16.mxu0 %v1660
    %6732 = vmatmul.mubr.bf16.gmra.mxu0 %v1646
    %v6733 = vpop.f32.mrf.mxu0
    %v6734 = vadd.f32 %v6694, %v6733
    %v6735 = vpop.f32.mrf.mxu0
    %v6736 = vpop.f32.mrf.mxu0
    %v6737 = vpop.f32.mrf.mxu0
    %6738 = vdwg.mxu0
    %6739 = vmatprep.subr.bf16.mxu0 0
    %6740 = vmatpush1.bf16.msra.mxu0 %v4866
    %6741 = vmatprep.subr.bf16.mxu0 0
    %6742 = vmatpush1.bf16.msra.mxu0 %v4865
    %6743 = vmatprep.subr.bf16.mxu0 0
    %6744 = vmatpush1.bf16.msra.mxu0 %v4864
    %6745 = vmatprep.subr.bf16.mxu0 0
    %6746 = vmatpush1.bf16.msra.mxu0 %v4863
    %6747 = vmatprep.subr.bf16.mxu0 0
    %6748 = vmatpush1.bf16.msra.mxu0 %v4862
    %6749 = vmatprep.subr.bf16.mxu0 0
    %6750 = vmatpush1.bf16.msra.mxu0 %v4861
    %6751 = vmatprep.subr.bf16.mxu0 0
    %6752 = vmatpush1.bf16.msra.mxu0 %v4860
    %6753 = vmatprep.subr.bf16.mxu0 0
    %6754 = vmatpush1.bf16.msra.mxu0 %v4859
    %6755 = vmatprep.subr.bf16.mxu0 0
    %6756 = vmatpush2.bf16.msra.mxu0 %v4874
    %6757 = vmatprep.subr.bf16.mxu0 0
    %6758 = vmatpush2.bf16.msra.mxu0 %v4873
    %6759 = vmatprep.subr.bf16.mxu0 0
    %6760 = vmatpush2.bf16.msra.mxu0 %v4872
    %6761 = vmatprep.subr.bf16.mxu0 0
    %6762 = vmatpush2.bf16.msra.mxu0 %v4871
    %6763 = vmatprep.subr.bf16.mxu0 0
    %6764 = vmatpush2.bf16.msra.mxu0 %v4870
    %6765 = vmatprep.subr.bf16.mxu0 0
    %6766 = vmatpush2.bf16.msra.mxu0 %v4869
    %6767 = vmatprep.subr.bf16.mxu0 0
    %6768 = vmatpush2.bf16.msra.mxu0 %v4868
    %6769 = vmatprep.subr.bf16.mxu0 0
    %6770 = vmatpush2.bf16.msra.mxu0 %v4867
    %6771 = vmatprep.mubr.bf16.mxu0 %v1670
    %6772 = vmatmul.mubr.bf16.gmra.mxu0 %v1668
    %v6773 = vpop.f32.mrf.mxu0
    %v6774 = vadd.f32 %v6734, %v6773
    %v6775 = vpop.f32.mrf.mxu0
    %v6776 = vpop.f32.mrf.mxu0
    %v6777 = vpop.f32.mrf.mxu0
    %6778 = vdwg.mxu0
    %6779 = vmatprep.subr.bf16.mxu0 0
    %6780 = vmatpush1.bf16.msra.mxu0 %v4882
    %6781 = vmatprep.subr.bf16.mxu0 0
    %6782 = vmatpush1.bf16.msra.mxu0 %v4881
    %6783 = vmatprep.subr.bf16.mxu0 0
    %6784 = vmatpush1.bf16.msra.mxu0 %v4880
    %6785 = vmatprep.subr.bf16.mxu0 0
    %6786 = vmatpush1.bf16.msra.mxu0 %v4879
    %6787 = vmatprep.subr.bf16.mxu0 0
    %6788 = vmatpush1.bf16.msra.mxu0 %v4878
    %6789 = vmatprep.subr.bf16.mxu0 0
    %6790 = vmatpush1.bf16.msra.mxu0 %v4877
    %6791 = vmatprep.subr.bf16.mxu0 0
    %6792 = vmatpush1.bf16.msra.mxu0 %v4876
    %6793 = vmatprep.subr.bf16.mxu0 0
    %6794 = vmatpush1.bf16.msra.mxu0 %v4875
    %6795 = vmatprep.subr.bf16.mxu0 0
    %6796 = vmatpush2.bf16.msra.mxu0 %v4890
    %6797 = vmatprep.subr.bf16.mxu0 0
    %6798 = vmatpush2.bf16.msra.mxu0 %v4889
    %6799 = vmatprep.subr.bf16.mxu0 0
    %6800 = vmatpush2.bf16.msra.mxu0 %v4888
    %6801 = vmatprep.subr.bf16.mxu0 0
    %6802 = vmatpush2.bf16.msra.mxu0 %v4887
    %6803 = vmatprep.subr.bf16.mxu0 0
    %6804 = vmatpush2.bf16.msra.mxu0 %v4886
    %6805 = vmatprep.subr.bf16.mxu0 0
    %6806 = vmatpush2.bf16.msra.mxu0 %v4885
    %6807 = vmatprep.subr.bf16.mxu0 0
    %6808 = vmatpush2.bf16.msra.mxu0 %v4884
    %6809 = vmatprep.subr.bf16.mxu0 0
    %6810 = vmatpush2.bf16.msra.mxu0 %v4883
    %6811 = vmatprep.mubr.bf16.mxu0 %v1667
    %6812 = vmatmul.mubr.bf16.gmra.mxu0 %v1653
    %v6813 = vpop.f32.mrf.mxu0
    %v6814 = vadd.f32 %v6774, %v6813
    %v6815 = vpop.f32.mrf.mxu0
    %v6816 = vpop.f32.mrf.mxu0
    %v6817 = vpop.f32.mrf.mxu0
    %6818 = vdwg.mxu0
    %6819 = vmatprep.subr.bf16.mxu0 0
    %6820 = vmatpush1.bf16.msra.mxu0 %v4898
    %6821 = vmatprep.subr.bf16.mxu0 0
    %6822 = vmatpush1.bf16.msra.mxu0 %v4897
    %6823 = vmatprep.subr.bf16.mxu0 0
    %6824 = vmatpush1.bf16.msra.mxu0 %v4896
    %6825 = vmatprep.subr.bf16.mxu0 0
    %6826 = vmatpush1.bf16.msra.mxu0 %v4895
    %6827 = vmatprep.subr.bf16.mxu0 0
    %6828 = vmatpush1.bf16.msra.mxu0 %v4894
    %6829 = vmatprep.subr.bf16.mxu0 0
    %6830 = vmatpush1.bf16.msra.mxu0 %v4893
    %6831 = vmatprep.subr.bf16.mxu0 0
    %6832 = vmatpush1.bf16.msra.mxu0 %v4892
    %6833 = vmatprep.subr.bf16.mxu0 0
    %6834 = vmatpush1.bf16.msra.mxu0 %v4891
    %6835 = vmatprep.subr.bf16.mxu0 0
    %6836 = vmatpush2.bf16.msra.mxu0 %v4906
    %6837 = vmatprep.subr.bf16.mxu0 0
    %6838 = vmatpush2.bf16.msra.mxu0 %v4905
    %6839 = vmatprep.subr.bf16.mxu0 0
    %6840 = vmatpush2.bf16.msra.mxu0 %v4904
    %6841 = vmatprep.subr.bf16.mxu0 0
    %6842 = vmatpush2.bf16.msra.mxu0 %v4903
    %6843 = vmatprep.subr.bf16.mxu0 0
    %6844 = vmatpush2.bf16.msra.mxu0 %v4902
    %6845 = vmatprep.subr.bf16.mxu0 0
    %6846 = vmatpush2.bf16.msra.mxu0 %v4901
    %6847 = vmatprep.subr.bf16.mxu0 0
    %6848 = vmatpush2.bf16.msra.mxu0 %v4900
    %6849 = vmatprep.subr.bf16.mxu0 0
    %6850 = vmatpush2.bf16.msra.mxu0 %v4899
    %6851 = vmatprep.mubr.bf16.mxu0 %v1671
    %6852 = vmatmul.mubr.bf16.gmra.mxu0 %v1669
    %v6853 = vpop.f32.mrf.mxu0
    %v6854 = vadd.f32 %v6814, %v6853
    %v6855 = vpop.f32.mrf.mxu0
    %v6856 = vpop.f32.mrf.mxu0
    %v6857 = vpop.f32.mrf.mxu0
    %6858 = vdwg.mxu0
    %6859 = vmatprep.subr.bf16.mxu0 0
    %6860 = vmatpush1.bf16.msra.mxu0 %v4914
    %6861 = vmatprep.subr.bf16.mxu0 0
    %6862 = vmatpush1.bf16.msra.mxu0 %v4913
    %6863 = vmatprep.subr.bf16.mxu0 0
    %6864 = vmatpush1.bf16.msra.mxu0 %v4912
    %6865 = vmatprep.subr.bf16.mxu0 0
    %6866 = vmatpush1.bf16.msra.mxu0 %v4911
    %6867 = vmatprep.subr.bf16.mxu0 0
    %6868 = vmatpush1.bf16.msra.mxu0 %v4910
    %6869 = vmatprep.subr.bf16.mxu0 0
    %6870 = vmatpush1.bf16.msra.mxu0 %v4909
    %6871 = vmatprep.subr.bf16.mxu0 0
    %6872 = vmatpush1.bf16.msra.mxu0 %v4908
    %6873 = vmatprep.subr.bf16.mxu0 0
    %6874 = vmatpush1.bf16.msra.mxu0 %v4907
    %6875 = vmatprep.subr.bf16.mxu0 0
    %6876 = vmatpush2.bf16.msra.mxu0 %v4922
    %6877 = vmatprep.subr.bf16.mxu0 0
    %6878 = vmatpush2.bf16.msra.mxu0 %v4921
    %6879 = vmatprep.subr.bf16.mxu0 0
    %6880 = vmatpush2.bf16.msra.mxu0 %v4920
    %6881 = vmatprep.subr.bf16.mxu0 0
    %6882 = vmatpush2.bf16.msra.mxu0 %v4919
    %6883 = vmatprep.subr.bf16.mxu0 0
    %6884 = vmatpush2.bf16.msra.mxu0 %v4918
    %6885 = vmatprep.subr.bf16.mxu0 0
    %6886 = vmatpush2.bf16.msra.mxu0 %v4917
    %6887 = vmatprep.subr.bf16.mxu0 0
    %6888 = vmatpush2.bf16.msra.mxu0 %v4916
    %6889 = vmatprep.subr.bf16.mxu0 0
    %6890 = vmatpush2.bf16.msra.mxu0 %v4915
    %6891 = vmatprep.mubr.bf16.mxu0 %v1709
    %6892 = vmatmul.mubr.bf16.gmra.mxu0 %v1695
    %v6893 = vpop.f32.mrf.mxu0
    %v6894 = vadd.f32 %v6854, %v6893
    %v6895 = vpop.f32.mrf.mxu0
    %v6896 = vpop.f32.mrf.mxu0
    %v6897 = vpop.f32.mrf.mxu0
    %6898 = vdwg.mxu0
    %6899 = vmatprep.subr.bf16.mxu0 0
    %6900 = vmatpush1.bf16.msra.mxu0 %v4930
    %6901 = vmatprep.subr.bf16.mxu0 0
    %6902 = vmatpush1.bf16.msra.mxu0 %v4929
    %6903 = vmatprep.subr.bf16.mxu0 0
    %6904 = vmatpush1.bf16.msra.mxu0 %v4928
    %6905 = vmatprep.subr.bf16.mxu0 0
    %6906 = vmatpush1.bf16.msra.mxu0 %v4927
    %6907 = vmatprep.subr.bf16.mxu0 0
    %6908 = vmatpush1.bf16.msra.mxu0 %v4926
    %6909 = vmatprep.subr.bf16.mxu0 0
    %6910 = vmatpush1.bf16.msra.mxu0 %v4925
    %6911 = vmatprep.subr.bf16.mxu0 0
    %6912 = vmatpush1.bf16.msra.mxu0 %v4924
    %6913 = vmatprep.subr.bf16.mxu0 0
    %6914 = vmatpush1.bf16.msra.mxu0 %v4923
    %6915 = vmatprep.subr.bf16.mxu0 0
    %6916 = vmatpush2.bf16.msra.mxu0 %v4938
    %6917 = vmatprep.subr.bf16.mxu0 0
    %6918 = vmatpush2.bf16.msra.mxu0 %v4937
    %6919 = vmatprep.subr.bf16.mxu0 0
    %6920 = vmatpush2.bf16.msra.mxu0 %v4936
    %6921 = vmatprep.subr.bf16.mxu0 0
    %6922 = vmatpush2.bf16.msra.mxu0 %v4935
    %6923 = vmatprep.subr.bf16.mxu0 0
    %6924 = vmatpush2.bf16.msra.mxu0 %v4934
    %6925 = vmatprep.subr.bf16.mxu0 0
    %6926 = vmatpush2.bf16.msra.mxu0 %v4933
    %6927 = vmatprep.subr.bf16.mxu0 0
    %6928 = vmatpush2.bf16.msra.mxu0 %v4932
    %6929 = vmatprep.subr.bf16.mxu0 0
    %6930 = vmatpush2.bf16.msra.mxu0 %v4931
    %6931 = vmatprep.mubr.bf16.mxu0 %v1719
    %6932 = vmatmul.mubr.bf16.gmra.mxu0 %v1717
    %v6933 = vpop.f32.mrf.mxu0
    %v6934 = vadd.f32 %v6894, %v6933
    %v6935 = vpop.f32.mrf.mxu0
    %v6936 = vpop.f32.mrf.mxu0
    %v6937 = vpop.f32.mrf.mxu0
    %6938 = vdwg.mxu0
    %6939 = vmatprep.subr.bf16.mxu0 0
    %6940 = vmatpush1.bf16.msra.mxu0 %v4946
    %6941 = vmatprep.subr.bf16.mxu0 0
    %6942 = vmatpush1.bf16.msra.mxu0 %v4945
    %6943 = vmatprep.subr.bf16.mxu0 0
    %6944 = vmatpush1.bf16.msra.mxu0 %v4944
    %6945 = vmatprep.subr.bf16.mxu0 0
    %6946 = vmatpush1.bf16.msra.mxu0 %v4943
    %6947 = vmatprep.subr.bf16.mxu0 0
    %6948 = vmatpush1.bf16.msra.mxu0 %v4942
    %6949 = vmatprep.subr.bf16.mxu0 0
    %6950 = vmatpush1.bf16.msra.mxu0 %v4941
    %6951 = vmatprep.subr.bf16.mxu0 0
    %6952 = vmatpush1.bf16.msra.mxu0 %v4940
    %6953 = vmatprep.subr.bf16.mxu0 0
    %6954 = vmatpush1.bf16.msra.mxu0 %v4939
    %6955 = vmatprep.subr.bf16.mxu0 0
    %6956 = vmatpush2.bf16.msra.mxu0 %v4954
    %6957 = vmatprep.subr.bf16.mxu0 0
    %6958 = vmatpush2.bf16.msra.mxu0 %v4953
    %6959 = vmatprep.subr.bf16.mxu0 0
    %6960 = vmatpush2.bf16.msra.mxu0 %v4952
    %6961 = vmatprep.subr.bf16.mxu0 0
    %6962 = vmatpush2.bf16.msra.mxu0 %v4951
    %6963 = vmatprep.subr.bf16.mxu0 0
    %6964 = vmatpush2.bf16.msra.mxu0 %v4950
    %6965 = vmatprep.subr.bf16.mxu0 0
    %6966 = vmatpush2.bf16.msra.mxu0 %v4949
    %6967 = vmatprep.subr.bf16.mxu0 0
    %6968 = vmatpush2.bf16.msra.mxu0 %v4948
    %6969 = vmatprep.subr.bf16.mxu0 0
    %6970 = vmatpush2.bf16.msra.mxu0 %v4947
    %6971 = vmatprep.mubr.bf16.mxu0 %v1716
    %6972 = vmatmul.mubr.bf16.gmra.mxu0 %v1702
    %v6973 = vpop.f32.mrf.mxu0
    %v6974 = vadd.f32 %v6934, %v6973
    %v6975 = vpop.f32.mrf.mxu0
    %v6976 = vpop.f32.mrf.mxu0
    %v6977 = vpop.f32.mrf.mxu0
    %6978 = vdwg.mxu0
    %6979 = vmatprep.subr.bf16.mxu0 0
    %6980 = vmatpush1.bf16.msra.mxu0 %v4962
    %6981 = vmatprep.subr.bf16.mxu0 0
    %6982 = vmatpush1.bf16.msra.mxu0 %v4961
    %6983 = vmatprep.subr.bf16.mxu0 0
    %6984 = vmatpush1.bf16.msra.mxu0 %v4960
    %6985 = vmatprep.subr.bf16.mxu0 0
    %6986 = vmatpush1.bf16.msra.mxu0 %v4959
    %6987 = vmatprep.subr.bf16.mxu0 0
    %6988 = vmatpush1.bf16.msra.mxu0 %v4958
    %6989 = vmatprep.subr.bf16.mxu0 0
    %6990 = vmatpush1.bf16.msra.mxu0 %v4957
    %6991 = vmatprep.subr.bf16.mxu0 0
    %6992 = vmatpush1.bf16.msra.mxu0 %v4956
    %6993 = vmatprep.subr.bf16.mxu0 0
    %6994 = vmatpush1.bf16.msra.mxu0 %v4955
    %6995 = vmatprep.subr.bf16.mxu0 0
    %6996 = vmatpush2.bf16.msra.mxu0 %v4970
    %6997 = vmatprep.subr.bf16.mxu0 0
    %6998 = vmatpush2.bf16.msra.mxu0 %v4969
    %6999 = vmatprep.subr.bf16.mxu0 0
    %7000 = vmatpush2.bf16.msra.mxu0 %v4968
    %7001 = vmatprep.subr.bf16.mxu0 0
    %7002 = vmatpush2.bf16.msra.mxu0 %v4967
    %7003 = vmatprep.subr.bf16.mxu0 0
    %7004 = vmatpush2.bf16.msra.mxu0 %v4966
    %7005 = vmatprep.subr.bf16.mxu0 0
    %7006 = vmatpush2.bf16.msra.mxu0 %v4965
    %7007 = vmatprep.subr.bf16.mxu0 0
    %7008 = vmatpush2.bf16.msra.mxu0 %v4964
    %7009 = vmatprep.subr.bf16.mxu0 0
    %7010 = vmatpush2.bf16.msra.mxu0 %v4963
    %7011 = vmatprep.mubr.bf16.mxu0 %v1720
    %7012 = vmatmul.mubr.bf16.gmra.mxu0 %v1718
    %v7013 = vpop.f32.mrf.mxu0
    %v7014 = vadd.f32 %v6974, %v7013
    %v7015 = vpop.f32.mrf.mxu0
    %v7016 = vpop.f32.mrf.mxu0
    %v7017 = vpop.f32.mrf.mxu0
    %7018 = vdwg.mxu0
    %7019 = vmatprep.subr.bf16.mxu0 0
    %7020 = vmatpush1.bf16.msra.mxu0 %v4978
    %7021 = vmatprep.subr.bf16.mxu0 0
    %7022 = vmatpush1.bf16.msra.mxu0 %v4977
    %7023 = vmatprep.subr.bf16.mxu0 0
    %7024 = vmatpush1.bf16.msra.mxu0 %v4976
    %7025 = vmatprep.subr.bf16.mxu0 0
    %7026 = vmatpush1.bf16.msra.mxu0 %v4975
    %7027 = vmatprep.subr.bf16.mxu0 0
    %7028 = vmatpush1.bf16.msra.mxu0 %v4974
    %7029 = vmatprep.subr.bf16.mxu0 0
    %7030 = vmatpush1.bf16.msra.mxu0 %v4973
    %7031 = vmatprep.subr.bf16.mxu0 0
    %7032 = vmatpush1.bf16.msra.mxu0 %v4972
    %7033 = vmatprep.subr.bf16.mxu0 0
    %7034 = vmatpush1.bf16.msra.mxu0 %v4971
    %7035 = vmatprep.subr.bf16.mxu0 0
    %7036 = vmatpush2.bf16.msra.mxu0 %v4986
    %7037 = vmatprep.subr.bf16.mxu0 0
    %7038 = vmatpush2.bf16.msra.mxu0 %v4985
    %7039 = vmatprep.subr.bf16.mxu0 0
    %7040 = vmatpush2.bf16.msra.mxu0 %v4984
    %7041 = vmatprep.subr.bf16.mxu0 0
    %7042 = vmatpush2.bf16.msra.mxu0 %v4983
    %7043 = vmatprep.subr.bf16.mxu0 0
    %7044 = vmatpush2.bf16.msra.mxu0 %v4982
    %7045 = vmatprep.subr.bf16.mxu0 0
    %7046 = vmatpush2.bf16.msra.mxu0 %v4981
    %7047 = vmatprep.subr.bf16.mxu0 0
    %7048 = vmatpush2.bf16.msra.mxu0 %v4980
    %7049 = vmatprep.subr.bf16.mxu0 0
    %7050 = vmatpush2.bf16.msra.mxu0 %v4979
    %7051 = vmatprep.mubr.bf16.mxu0 %v1758
    %7052 = vmatmul.mubr.bf16.gmra.mxu0 %v1744
    %v7053 = vpop.f32.mrf.mxu0
    %v7054 = vadd.f32 %v7014, %v7053
    %v7055 = vpop.f32.mrf.mxu0
    %v7056 = vpop.f32.mrf.mxu0
    %v7057 = vpop.f32.mrf.mxu0
    %7058 = vdwg.mxu0
    %7059 = vmatprep.subr.bf16.mxu0 0
    %7060 = vmatpush1.bf16.msra.mxu0 %v4994
    %7061 = vmatprep.subr.bf16.mxu0 0
    %7062 = vmatpush1.bf16.msra.mxu0 %v4993
    %7063 = vmatprep.subr.bf16.mxu0 0
    %7064 = vmatpush1.bf16.msra.mxu0 %v4992
    %7065 = vmatprep.subr.bf16.mxu0 0
    %7066 = vmatpush1.bf16.msra.mxu0 %v4991
    %7067 = vmatprep.subr.bf16.mxu0 0
    %7068 = vmatpush1.bf16.msra.mxu0 %v4990
    %7069 = vmatprep.subr.bf16.mxu0 0
    %7070 = vmatpush1.bf16.msra.mxu0 %v4989
    %7071 = vmatprep.subr.bf16.mxu0 0
    %7072 = vmatpush1.bf16.msra.mxu0 %v4988
    %7073 = vmatprep.subr.bf16.mxu0 0
    %7074 = vmatpush1.bf16.msra.mxu0 %v4987
    %7075 = vmatprep.subr.bf16.mxu0 0
    %7076 = vmatpush2.bf16.msra.mxu0 %v5002
    %7077 = vmatprep.subr.bf16.mxu0 0
    %7078 = vmatpush2.bf16.msra.mxu0 %v5001
    %7079 = vmatprep.subr.bf16.mxu0 0
    %7080 = vmatpush2.bf16.msra.mxu0 %v5000
    %7081 = vmatprep.subr.bf16.mxu0 0
    %7082 = vmatpush2.bf16.msra.mxu0 %v4999
    %7083 = vmatprep.subr.bf16.mxu0 0
    %7084 = vmatpush2.bf16.msra.mxu0 %v4998
    %7085 = vmatprep.subr.bf16.mxu0 0
    %7086 = vmatpush2.bf16.msra.mxu0 %v4997
    %7087 = vmatprep.subr.bf16.mxu0 0
    %7088 = vmatpush2.bf16.msra.mxu0 %v4996
    %7089 = vmatprep.subr.bf16.mxu0 0
    %7090 = vmatpush2.bf16.msra.mxu0 %v4995
    %7091 = vmatprep.mubr.bf16.mxu0 %v1768
    %7092 = vmatmul.mubr.bf16.gmra.mxu0 %v1766
    %v7093 = vpop.f32.mrf.mxu0
    %v7094 = vadd.f32 %v7054, %v7093
    %v7095 = vpop.f32.mrf.mxu0
    %v7096 = vpop.f32.mrf.mxu0
    %v7097 = vpop.f32.mrf.mxu0
    %7098 = vdwg.mxu0
    %7099 = vmatprep.subr.bf16.mxu0 0
    %7100 = vmatpush1.bf16.msra.mxu0 %v5010
    %7101 = vmatprep.subr.bf16.mxu0 0
    %7102 = vmatpush1.bf16.msra.mxu0 %v5009
    %7103 = vmatprep.subr.bf16.mxu0 0
    %7104 = vmatpush1.bf16.msra.mxu0 %v5008
    %7105 = vmatprep.subr.bf16.mxu0 0
    %7106 = vmatpush1.bf16.msra.mxu0 %v5007
    %7107 = vmatprep.subr.bf16.mxu0 0
    %7108 = vmatpush1.bf16.msra.mxu0 %v5006
    %7109 = vmatprep.subr.bf16.mxu0 0
    %7110 = vmatpush1.bf16.msra.mxu0 %v5005
    %7111 = vmatprep.subr.bf16.mxu0 0
    %7112 = vmatpush1.bf16.msra.mxu0 %v5004
    %7113 = vmatprep.subr.bf16.mxu0 0
    %7114 = vmatpush1.bf16.msra.mxu0 %v5003
    %7115 = vmatprep.subr.bf16.mxu0 0
    %7116 = vmatpush2.bf16.msra.mxu0 %v5018
    %7117 = vmatprep.subr.bf16.mxu0 0
    %7118 = vmatpush2.bf16.msra.mxu0 %v5017
    %7119 = vmatprep.subr.bf16.mxu0 0
    %7120 = vmatpush2.bf16.msra.mxu0 %v5016
    %7121 = vmatprep.subr.bf16.mxu0 0
    %7122 = vmatpush2.bf16.msra.mxu0 %v5015
    %7123 = vmatprep.subr.bf16.mxu0 0
    %7124 = vmatpush2.bf16.msra.mxu0 %v5014
    %7125 = vmatprep.subr.bf16.mxu0 0
    %7126 = vmatpush2.bf16.msra.mxu0 %v5013
    %7127 = vmatprep.subr.bf16.mxu0 0
    %7128 = vmatpush2.bf16.msra.mxu0 %v5012
    %7129 = vmatprep.subr.bf16.mxu0 0
    %7130 = vmatpush2.bf16.msra.mxu0 %v5011
    %7131 = vmatprep.mubr.bf16.mxu0 %v1765
    %7132 = vmatmul.mubr.bf16.gmra.mxu0 %v1751
    %v7133 = vpop.f32.mrf.mxu0
    %v7134 = vadd.f32 %v7094, %v7133
    %v7135 = vpop.f32.mrf.mxu0
    %v7136 = vpop.f32.mrf.mxu0
    %v7137 = vpop.f32.mrf.mxu0
    %7138 = vdwg.mxu0
    %7139 = vmatprep.subr.bf16.mxu0 0
    %7140 = vmatpush1.bf16.msra.mxu0 %v5026
    %7141 = vmatprep.subr.bf16.mxu0 0
    %7142 = vmatpush1.bf16.msra.mxu0 %v5025
    %7143 = vmatprep.subr.bf16.mxu0 0
    %7144 = vmatpush1.bf16.msra.mxu0 %v5024
    %7145 = vmatprep.subr.bf16.mxu0 0
    %7146 = vmatpush1.bf16.msra.mxu0 %v5023
    %7147 = vmatprep.subr.bf16.mxu0 0
    %7148 = vmatpush1.bf16.msra.mxu0 %v5022
    %7149 = vmatprep.subr.bf16.mxu0 0
    %7150 = vmatpush1.bf16.msra.mxu0 %v5021
    %7151 = vmatprep.subr.bf16.mxu0 0
    %7152 = vmatpush1.bf16.msra.mxu0 %v5020
    %7153 = vmatprep.subr.bf16.mxu0 0
    %7154 = vmatpush1.bf16.msra.mxu0 %v5019
    %7155 = vmatprep.subr.bf16.mxu0 0
    %7156 = vmatpush2.bf16.msra.mxu0 %v5034
    %7157 = vmatprep.subr.bf16.mxu0 0
    %7158 = vmatpush2.bf16.msra.mxu0 %v5033
    %7159 = vmatprep.subr.bf16.mxu0 0
    %7160 = vmatpush2.bf16.msra.mxu0 %v5032
    %7161 = vmatprep.subr.bf16.mxu0 0
    %7162 = vmatpush2.bf16.msra.mxu0 %v5031
    %7163 = vmatprep.subr.bf16.mxu0 0
    %7164 = vmatpush2.bf16.msra.mxu0 %v5030
    %7165 = vmatprep.subr.bf16.mxu0 0
    %7166 = vmatpush2.bf16.msra.mxu0 %v5029
    %7167 = vmatprep.subr.bf16.mxu0 0
    %7168 = vmatpush2.bf16.msra.mxu0 %v5028
    %7169 = vmatprep.subr.bf16.mxu0 0
    %7170 = vmatpush2.bf16.msra.mxu0 %v5027
    %7171 = vmatprep.mubr.bf16.mxu0 %v1769
    %7172 = vmatmul.mubr.bf16.gmra.mxu0 %v1767
    %v7173 = vpop.f32.mrf.mxu0
    %v7174 = vadd.f32 %v7134, %v7173
    %v7175 = vpop.f32.mrf.mxu0
    %v7176 = vpop.f32.mrf.mxu0
    %v7177 = vpop.f32.mrf.mxu0
    %7178 = vdwg.mxu0
    %7179 = vmatprep.subr.bf16.mxu0 0
    %7180 = vmatpush1.bf16.msra.mxu0 %v5042
    %7181 = vmatprep.subr.bf16.mxu0 0
    %7182 = vmatpush1.bf16.msra.mxu0 %v5041
    %7183 = vmatprep.subr.bf16.mxu0 0
    %7184 = vmatpush1.bf16.msra.mxu0 %v5040
    %7185 = vmatprep.subr.bf16.mxu0 0
    %7186 = vmatpush1.bf16.msra.mxu0 %v5039
    %7187 = vmatprep.subr.bf16.mxu0 0
    %7188 = vmatpush1.bf16.msra.mxu0 %v5038
    %7189 = vmatprep.subr.bf16.mxu0 0
    %7190 = vmatpush1.bf16.msra.mxu0 %v5037
    %7191 = vmatprep.subr.bf16.mxu0 0
    %7192 = vmatpush1.bf16.msra.mxu0 %v5036
    %7193 = vmatprep.subr.bf16.mxu0 0
    %7194 = vmatpush1.bf16.msra.mxu0 %v5035
    %7195 = vmatprep.subr.bf16.mxu0 0
    %7196 = vmatpush2.bf16.msra.mxu0 %v5050
    %7197 = vmatprep.subr.bf16.mxu0 0
    %7198 = vmatpush2.bf16.msra.mxu0 %v5049
    %7199 = vmatprep.subr.bf16.mxu0 0
    %7200 = vmatpush2.bf16.msra.mxu0 %v5048
    %7201 = vmatprep.subr.bf16.mxu0 0
    %7202 = vmatpush2.bf16.msra.mxu0 %v5047
    %7203 = vmatprep.subr.bf16.mxu0 0
    %7204 = vmatpush2.bf16.msra.mxu0 %v5046
    %7205 = vmatprep.subr.bf16.mxu0 0
    %7206 = vmatpush2.bf16.msra.mxu0 %v5045
    %7207 = vmatprep.subr.bf16.mxu0 0
    %7208 = vmatpush2.bf16.msra.mxu0 %v5044
    %7209 = vmatprep.subr.bf16.mxu0 0
    %7210 = vmatpush2.bf16.msra.mxu0 %v5043
    %7211 = vmatprep.mubr.bf16.mxu0 %v1807
    %7212 = vmatmul.mubr.bf16.gmra.mxu0 %v1793
    %v7213 = vpop.f32.mrf.mxu0
    %v7214 = vadd.f32 %v7174, %v7213
    %v7215 = vpop.f32.mrf.mxu0
    %v7216 = vpop.f32.mrf.mxu0
    %v7217 = vpop.f32.mrf.mxu0
    %7218 = vdwg.mxu0
    %7219 = vmatprep.subr.bf16.mxu0 0
    %7220 = vmatpush1.bf16.msra.mxu0 %v5058
    %7221 = vmatprep.subr.bf16.mxu0 0
    %7222 = vmatpush1.bf16.msra.mxu0 %v5057
    %7223 = vmatprep.subr.bf16.mxu0 0
    %7224 = vmatpush1.bf16.msra.mxu0 %v5056
    %7225 = vmatprep.subr.bf16.mxu0 0
    %7226 = vmatpush1.bf16.msra.mxu0 %v5055
    %7227 = vmatprep.subr.bf16.mxu0 0
    %7228 = vmatpush1.bf16.msra.mxu0 %v5054
    %7229 = vmatprep.subr.bf16.mxu0 0
    %7230 = vmatpush1.bf16.msra.mxu0 %v5053
    %7231 = vmatprep.subr.bf16.mxu0 0
    %7232 = vmatpush1.bf16.msra.mxu0 %v5052
    %7233 = vmatprep.subr.bf16.mxu0 0
    %7234 = vmatpush1.bf16.msra.mxu0 %v5051
    %7235 = vmatprep.subr.bf16.mxu0 0
    %7236 = vmatpush2.bf16.msra.mxu0 %v5066
    %7237 = vmatprep.subr.bf16.mxu0 0
    %7238 = vmatpush2.bf16.msra.mxu0 %v5065
    %7239 = vmatprep.subr.bf16.mxu0 0
    %7240 = vmatpush2.bf16.msra.mxu0 %v5064
    %7241 = vmatprep.subr.bf16.mxu0 0
    %7242 = vmatpush2.bf16.msra.mxu0 %v5063
    %7243 = vmatprep.subr.bf16.mxu0 0
    %7244 = vmatpush2.bf16.msra.mxu0 %v5062
    %7245 = vmatprep.subr.bf16.mxu0 0
    %7246 = vmatpush2.bf16.msra.mxu0 %v5061
    %7247 = vmatprep.subr.bf16.mxu0 0
    %7248 = vmatpush2.bf16.msra.mxu0 %v5060
    %7249 = vmatprep.subr.bf16.mxu0 0
    %7250 = vmatpush2.bf16.msra.mxu0 %v5059
    %7251 = vmatprep.mubr.bf16.mxu0 %v1817
    %7252 = vmatmul.mubr.bf16.gmra.mxu0 %v1815
    %v7253 = vpop.f32.mrf.mxu0
    %v7254 = vadd.f32 %v7214, %v7253
    %v7255 = vpop.f32.mrf.mxu0
    %v7256 = vpop.f32.mrf.mxu0
    %v7257 = vpop.f32.mrf.mxu0
    %7258 = vdwg.mxu0
    %7259 = vmatprep.subr.bf16.mxu0 0
    %7260 = vmatpush1.bf16.msra.mxu0 %v5074
    %7261 = vmatprep.subr.bf16.mxu0 0
    %7262 = vmatpush1.bf16.msra.mxu0 %v5073
    %7263 = vmatprep.subr.bf16.mxu0 0
    %7264 = vmatpush1.bf16.msra.mxu0 %v5072
    %7265 = vmatprep.subr.bf16.mxu0 0
    %7266 = vmatpush1.bf16.msra.mxu0 %v5071
    %7267 = vmatprep.subr.bf16.mxu0 0
    %7268 = vmatpush1.bf16.msra.mxu0 %v5070
    %7269 = vmatprep.subr.bf16.mxu0 0
    %7270 = vmatpush1.bf16.msra.mxu0 %v5069
    %7271 = vmatprep.subr.bf16.mxu0 0
    %7272 = vmatpush1.bf16.msra.mxu0 %v5068
    %7273 = vmatprep.subr.bf16.mxu0 0
    %7274 = vmatpush1.bf16.msra.mxu0 %v5067
    %7275 = vmatprep.subr.bf16.mxu0 0
    %7276 = vmatpush2.bf16.msra.mxu0 %v5082
    %7277 = vmatprep.subr.bf16.mxu0 0
    %7278 = vmatpush2.bf16.msra.mxu0 %v5081
    %7279 = vmatprep.subr.bf16.mxu0 0
    %7280 = vmatpush2.bf16.msra.mxu0 %v5080
    %7281 = vmatprep.subr.bf16.mxu0 0
    %7282 = vmatpush2.bf16.msra.mxu0 %v5079
    %7283 = vmatprep.subr.bf16.mxu0 0
    %7284 = vmatpush2.bf16.msra.mxu0 %v5078
    %7285 = vmatprep.subr.bf16.mxu0 0
    %7286 = vmatpush2.bf16.msra.mxu0 %v5077
    %7287 = vmatprep.subr.bf16.mxu0 0
    %7288 = vmatpush2.bf16.msra.mxu0 %v5076
    %7289 = vmatprep.subr.bf16.mxu0 0
    %7290 = vmatpush2.bf16.msra.mxu0 %v5075
    %7291 = vmatprep.mubr.bf16.mxu0 %v1814
    %7292 = vmatmul.mubr.bf16.gmra.mxu0 %v1800
    %v7293 = vpop.f32.mrf.mxu0
    %v7294 = vadd.f32 %v7254, %v7293
    %v7295 = vpop.f32.mrf.mxu0
    %v7296 = vpop.f32.mrf.mxu0
    %v7297 = vpop.f32.mrf.mxu0
    %7298 = vdwg.mxu0
    %7299 = vmatprep.subr.bf16.mxu0 0
    %7300 = vmatpush1.bf16.msra.mxu0 %v5090
    %7301 = vmatprep.subr.bf16.mxu0 0
    %7302 = vmatpush1.bf16.msra.mxu0 %v5089
    %7303 = vmatprep.subr.bf16.mxu0 0
    %7304 = vmatpush1.bf16.msra.mxu0 %v5088
    %7305 = vmatprep.subr.bf16.mxu0 0
    %7306 = vmatpush1.bf16.msra.mxu0 %v5087
    %7307 = vmatprep.subr.bf16.mxu0 0
    %7308 = vmatpush1.bf16.msra.mxu0 %v5086
    %7309 = vmatprep.subr.bf16.mxu0 0
    %7310 = vmatpush1.bf16.msra.mxu0 %v5085
    %7311 = vmatprep.subr.bf16.mxu0 0
    %7312 = vmatpush1.bf16.msra.mxu0 %v5084
    %7313 = vmatprep.subr.bf16.mxu0 0
    %7314 = vmatpush1.bf16.msra.mxu0 %v5083
    %7315 = vmatprep.subr.bf16.mxu0 0
    %7316 = vmatpush2.bf16.msra.mxu0 %v5098
    %7317 = vmatprep.subr.bf16.mxu0 0
    %7318 = vmatpush2.bf16.msra.mxu0 %v5097
    %7319 = vmatprep.subr.bf16.mxu0 0
    %7320 = vmatpush2.bf16.msra.mxu0 %v5096
    %7321 = vmatprep.subr.bf16.mxu0 0
    %7322 = vmatpush2.bf16.msra.mxu0 %v5095
    %7323 = vmatprep.subr.bf16.mxu0 0
    %7324 = vmatpush2.bf16.msra.mxu0 %v5094
    %7325 = vmatprep.subr.bf16.mxu0 0
    %7326 = vmatpush2.bf16.msra.mxu0 %v5093
    %7327 = vmatprep.subr.bf16.mxu0 0
    %7328 = vmatpush2.bf16.msra.mxu0 %v5092
    %7329 = vmatprep.subr.bf16.mxu0 0
    %7330 = vmatpush2.bf16.msra.mxu0 %v5091
    %7331 = vmatprep.mubr.bf16.mxu0 %v1818
    %7332 = vmatmul.mubr.bf16.gmra.mxu0 %v1816
    %v7333 = vpop.f32.mrf.mxu0
    %v7334 = vadd.f32 %v7294, %v7333
    %v7335 = vpop.f32.mrf.mxu0
    %v7336 = vpop.f32.mrf.mxu0
    %v7337 = vpop.f32.mrf.mxu0
    %7338 = vdwg.mxu0
    %v7339 = vmax.f32 %v7334, 0.0
    %v7340 = vpack.c.bf16 %v7339, %v7339
    %v7341 = vld [vmem:[%s3] sm:$0xf]
    %v7342 = vld [vmem:[%s3 + $0x4] sm:$0xf]
    %v7343 = vld [vmem:[%s3 + $0x8] sm:$0xf]
    %v7344 = vld [vmem:[%s3 + $0xc] sm:$0xf]
    %v7345 = vld [vmem:[%s3 + $0x10] sm:$0xf]
    %v7346 = vld [vmem:[%s3 + $0x14] sm:$0xf]
    %v7347 = vld [vmem:[%s3 + $0x18] sm:$0xf]
    %v7348 = vld [vmem:[%s3 + $0x1c] sm:$0xf]
    %v7349 = vld [vmem:[%s3 + $0x20] sm:$0xf]
    %v7350 = vld [vmem:[%s3 + $0x24] sm:$0xf]
    %v7351 = vld [vmem:[%s3 + $0x28] sm:$0xf]
    %v7352 = vld [vmem:[%s3 + $0x2c] sm:$0xf]
    %v7353 = vld [vmem:[%s3 + $0x30] sm:$0xf]
    %v7354 = vld [vmem:[%s3 + $0x34] sm:$0xf]
    %v7355 = vld [vmem:[%s3 + $0x38] sm:$0xf]
    %v7356 = vld [vmem:[%s3 + $0x3c] sm:$0xf]
    %v7357 = vld [vmem:[%s4] sm:$0x1]
    %v7359 = vlaneseq
    %v7360 = vshrl.u32 %v7359, 7
    %v7361 = vsub.s32 0, %v7360
    %v7362 = vrot.slane %v7357, %v7361
    %v7380 = vunpack.c.l.b16 %v7341
    %v7381 = vunpack.c.l.b16 %v7342
    %v7382 = vunpack.c.l.b16 %v7343
    %v7383 = vunpack.c.l.b16 %v7344
    %v7384 = vunpack.c.l.b16 %v7345
    %v7385 = vunpack.c.l.b16 %v7346
    %v7386 = vunpack.c.l.b16 %v7347
    %v7387 = vunpack.c.l.b16 %v7348
    %v7388 = vunpack.c.l.b16 %v7349
    %v7389 = vunpack.c.l.b16 %v7350
    %v7390 = vunpack.c.l.b16 %v7351
    %v7391 = vunpack.c.l.b16 %v7352
    %v7392 = vunpack.c.l.b16 %v7353
    %v7393 = vunpack.c.l.b16 %v7354
    %v7394 = vunpack.c.l.b16 %v7355
    %v7395 = vunpack.c.l.b16 %v7356
    %v7396 = vpack.c.b16 %v7381, %v7380
    %v7397 = vpack.c.b16 %v7383, %v7382
    %v7398 = vpack.c.b16 %v7385, %v7384
    %v7399 = vpack.c.b16 %v7387, %v7386
    %v7400 = vpack.c.b16 %v7389, %v7388
    %v7401 = vpack.c.b16 %v7391, %v7390
    %v7402 = vpack.c.b16 %v7393, %v7392
    %v7403 = vpack.c.b16 %v7395, %v7394
    %7412 = vmatprep.subr.bf16.mxu0 0
    %7413 = vmatpush1.bf16.msra.mxu0 %v7403
    %7414 = vmatprep.subr.bf16.mxu0 0
    %7415 = vmatpush1.bf16.msra.mxu0 %v7402
    %7416 = vmatprep.subr.bf16.mxu0 0
    %7417 = vmatpush1.bf16.msra.mxu0 %v7401
    %7418 = vmatprep.subr.bf16.mxu0 0
    %7419 = vmatpush1.bf16.msra.mxu0 %v7400
    %7420 = vmatprep.subr.bf16.mxu0 0
    %7421 = vmatpush1.bf16.msra.mxu0 %v7399
    %7422 = vmatprep.subr.bf16.mxu0 0
    %7423 = vmatpush1.bf16.msra.mxu0 %v7398
    %7424 = vmatprep.subr.bf16.mxu0 0
    %7425 = vmatpush1.bf16.msra.mxu0 %v7397
    %7426 = vmatprep.subr.bf16.mxu0 0
    %7427 = vmatpush1.bf16.msra.mxu0 %v7396
    %7428 = vmatprep.subr.bf16.mxu0 0
    %7429 = vmatpush2.bf16.msra.mxu0 0
    %7430 = vmatprep.subr.bf16.mxu0 0
    %7431 = vmatpush2.bf16.msra.mxu0 0
    %7432 = vmatprep.subr.bf16.mxu0 0
    %7433 = vmatpush2.bf16.msra.mxu0 0
    %7434 = vmatprep.subr.bf16.mxu0 0
    %7435 = vmatpush2.bf16.msra.mxu0 0
    %7436 = vmatprep.subr.bf16.mxu0 0
    %7437 = vmatpush2.bf16.msra.mxu0 0
    %7438 = vmatprep.subr.bf16.mxu0 0
    %7439 = vmatpush2.bf16.msra.mxu0 0
    %7440 = vmatprep.subr.bf16.mxu0 0
    %7441 = vmatpush2.bf16.msra.mxu0 0
    %7442 = vmatprep.subr.bf16.mxu0 0
    %7443 = vmatpush2.bf16.msra.mxu0 0
    %7444 = vmatprep.mubr.bf16.mxu0 0
    %7445 = vmatmul.mubr.bf16.gmra.mxu0 %v7340
    %v7446 = vpop.f32.mrf.mxu0
    %v7447 = vadd.f32 %v7362, %v7446
    %v7448 = vpop.f32.mrf.mxu0
    %v7449 = vpop.f32.mrf.mxu0
    %v7450 = vpop.f32.mrf.mxu0
    %7451 = vdwg.mxu0
    %vm7452 = vcmask 1041408
    %v7453 = vsel %vm7452, %v7447, -inf
    %7454 = vmax.xlane.f32.xlu0 %v7453
    %v7455 = vpop.xlane.xlu0 %7454
    %v7456 = vsub.f32 %v7447, %v7455
    %v7457 = vmul.f32 %v7456, 1.442695
    %v7458 = vpow.pop %v7457
    %v7459 = vsel %vm7452, %v7458, 0.0
    %7460 = vadd.xlane.f32.xlu0 %v7459
    %v7461 = vpop.xlane.xlu0 %7460
    %v7462 = vlog2.pop %v7461
    %v7463 = vmul.f32 %v7462, 0.6931472
    %v7464 = vsub.f32 %v7456, %v7463
    %7465 = vst [vmem:[#allocation2] sm:$0x3] %v7464
    // Predicated region
    $region22: #{net_forward.3} parent=1 // pred_check
      _
    $region23: #{net_forward.3} parent=1 // pred_check_branch
      %7467 = sbr.rel (0) target = $region25
    $region24: #{net_forward.3} parent=1 // pred_region
      %s7469 = ssub.s32 32, 32
      %7470 = vsyncadd [#allocation3], %s7469
      %s7472 = sshll.u32 [#allocation2], 4
      %s7473 = int_to_ptr.vmem [resolvable:$true] %s7472
      %7475 = dma.vmem_to_hbm [thread:$0]  %s7473, 32, %s5, [#allocation3]
    $region25: #{net_forward.3} parent=1 // pred_fallthru
      _
    // Predicated region
    $region26: #{net_forward.3} parent=1 // pred_check
      _
    $region27: #{net_forward.3} parent=1 // pred_check_branch
      %7477 = sbr.rel (0) target = $region29
    $region28: #{net_forward.3} parent=1 // pred_region
      %7478 = dma.done [#allocation3], 32
    $region29: #{net_forward.3} parent=1 // pred_fallthru
      _
    %7479 = vsyncpa [#allocation3], 1

</llo_original>
